<compile_context>
chip_gen: v7x
topology: tpu7x:2x2x1
jax: 0.10.0
libtpu: 0.0.40
codegen_flags: <defaults>
</compile_context>

<pallas_src>
import functools

import jax
import jax.numpy as jnp
from jax import lax
from jax.experimental import pallas as pl
from jax.experimental.pallas import tpu as pltpu


LATENT_DIM = 1 << 9    # 512
HIDDEN_DIM = 1 << 10   # 1024
BN_EPS = 1e-5


def _round_up(x, m):
    return (x + m - 1) // m * m


# ---------------------------------------------------------------------------
# Fused kernel. Grid = (3,) over the three middle (1024 -> 1024) layers.
#   k == 0        : layer0 (512->1024) from x, then layer1 with w123[0]
#   k == 1, 2     : layer2 / layer3 with w123[k]
#   k == last     : final Linear (1024 -> 512) + bias, write output
# ---------------------------------------------------------------------------
def _hegen_kernel(x_ref, w0_ref, w123_ref, w4_ref, bn_ref, b4_ref,
                  out_ref, h_ref, *, batch, eps):
    k = pl.program_id(0)
    bp = x_ref.shape[0]
    inv_b = jnp.float32(1.0 / batch)

    # Mask padded rows out of the BN batch statistics only when padding exists
    # (batch and bp are Python ints -> this branch resolves at trace time).
    if batch == bp:
        row_mask = None
    else:
        row_ids = lax.broadcasted_iota(jnp.int32, (bp, 1), 0)
        row_mask = (row_ids < batch).astype(jnp.float32)

    def bn_relu(y, layer):
        # Single-pass masked stats in f32: mean and E[y^2].
        if row_mask is None:
            s1 = jnp.sum(y, axis=0, keepdims=True)
            s2 = jnp.sum(y * y, axis=0, keepdims=True)
        else:
            ym = y * row_mask
            s1 = jnp.sum(ym, axis=0, keepdims=True)
            s2 = jnp.sum(ym * y, axis=0, keepdims=True)
        mean = s1 * inv_b
        var = jnp.maximum(s2 * inv_b - mean * mean, 0.0)   # biased var, clamp rounding
        gamma = bn_ref[pl.ds(layer, 1), :]       # rows 0..3: gamma
        beta = bn_ref[pl.ds(layer + 4, 1), :]    # rows 4..7: beta
        scale = gamma * lax.rsqrt(var + eps)
        shift = beta - mean * scale
        return jnp.maximum(y * scale + shift, 0.0)

    @pl.when(k == 0)
    def _():
        # Layer 0: (Bp, 512) bf16 x (512, 1024) bf16 -> f32 accumulate.
        y0 = jnp.dot(x_ref[...], w0_ref[...], preferred_element_type=jnp.float32)
        h_ref[...] = bn_relu(y0, 0).astype(jnp.bfloat16)

    # Middle layer k+1 (uses the streamed weight block for this grid step).
    y = jnp.dot(h_ref[...], w123_ref[0], preferred_element_type=jnp.float32)
    h_ref[...] = bn_relu(y, k + 1).astype(jnp.bfloat16)

    @pl.when(k == pl.num_programs(0) - 1)
    def _():
        out_ref[...] = (jnp.dot(h_ref[...], w4_ref[...],
                                preferred_element_type=jnp.float32)
                        + b4_ref[...])


def hegen_forward(params, x):
    """HEGen.forward(x): x (B, 512) -> (B, 512). One fused, pipelined pallas_call."""
    B, D = x.shape
    assert D == LATENT_DIM
    Bp = max(8, _round_up(B, 8))                 # sublane alignment only
    xp = jnp.pad(x, ((0, Bp - B), (0, 0))).astype(jnp.bfloat16)

    kernel = functools.partial(_hegen_kernel, batch=B, eps=BN_EPS)
    out = pl.pallas_call(
        kernel,
        out_shape=jax.ShapeDtypeStruct((Bp, LATENT_DIM), jnp.float32),
        grid_spec=pltpu.PrefetchScalarGridSpec(
            num_scalar_prefetch=0,
            grid=(3,),
            in_specs=[
                pl.BlockSpec((Bp, LATENT_DIM), lambda k: (0, 0)),           # x (resident)
                pl.BlockSpec((LATENT_DIM, HIDDEN_DIM), lambda k: (0, 0)),   # w0 (resident)
                pl.BlockSpec((1, HIDDEN_DIM, HIDDEN_DIM),
                             lambda k: (k, 0, 0)),                          # w1..w3 streamed
                pl.BlockSpec((HIDDEN_DIM, LATENT_DIM), lambda k: (0, 0)),   # w4 (resident)
                pl.BlockSpec((8, HIDDEN_DIM), lambda k: (0, 0)),            # packed gamma/beta
                pl.BlockSpec((1, LATENT_DIM), lambda k: (0, 0)),            # b4
            ],
            out_specs=pl.BlockSpec((Bp, LATENT_DIM), lambda k: (0, 0)),
            scratch_shapes=[pltpu.VMEM((Bp, HIDDEN_DIM), jnp.bfloat16)],    # carried h
        ),
        compiler_params=pltpu.CompilerParams(
            dimension_semantics=("arbitrary",),
            vmem_limit_bytes=32 * 1024 * 1024),
    )(xp, params["w0"], params["w123"], params["w4"], params["bnvec"], params["b4"])
    return out[:B]


# ---------------------------------------------------------------------------
# Parameters (deterministic, torch-default init) + plain-JAX reference
# ---------------------------------------------------------------------------
def init_params(key):
    dims = ([(LATENT_DIM, HIDDEN_DIM)]
            + [(HIDDEN_DIM, HIDDEN_DIM)] * 3
            + [(HIDDEN_DIM, LATENT_DIM)])
    p = {}
    ks = jax.random.split(key, 2 * len(dims))
    for i, (din, dout) in enumerate(dims):
        bound = float(din) ** -0.5                     # torch nn.Linear default init scale
        p[f"w{i}"] = jax.random.uniform(ks[2 * i], (din, dout), jnp.float32,
                                        -bound, bound)
        p[f"b{i}"] = jax.random.uniform(ks[2 * i + 1], (1, dout), jnp.float32,
                                        -bound, bound)
        if i < 4:                                      # BatchNorm1d affine defaults
            p[f"g{i}"] = jnp.ones((1, dout), jnp.float32)
            p[f"beta{i}"] = jnp.zeros((1, dout), jnp.float32)
    return p


def prep_params(p):
    """Kernel-side layout: bf16 weights (w1..w3 stacked), packed BN vectors, b4.

    Pre-BN biases b0..b3 are intentionally dropped: a per-column constant added
    before training-mode BatchNorm is cancelled exactly by the mean subtraction.
    """
    return {
        "w0": p["w0"].astype(jnp.bfloat16),
        "w123": jnp.stack([p["w1"], p["w2"], p["w3"]], axis=0).astype(jnp.bfloat16),
        "w4": p["w4"].astype(jnp.bfloat16),
        "bnvec": jnp.concatenate([p[f"g{i}"] for i in range(4)]
                                 + [p[f"beta{i}"] for i in range(4)], axis=0),
        "b4": p["b4"],
    }


def reference_forward(p, x):
    """Plain-JAX reference with full torch semantics (incl. pre-BN biases,
    two-pass variance) and the same bf16-weight / f32-accum matmul numerics."""
    h = x.astype(jnp.float32)
    for i in range(4):
        y = jnp.dot(h.astype(jnp.bfloat16), p[f"w{i}"].astype(jnp.bfloat16),
                    preferred_element_type=jnp.float32) + p[f"b{i}"]
        mean = jnp.mean(y, axis=0, keepdims=True)
        var = jnp.mean(jnp.square(y - mean), axis=0, keepdims=True)
        h = jnp.maximum((y - mean) * lax.rsqrt(var + BN_EPS) * p[f"g{i}"]
                        + p[f"beta{i}"], 0.0)
    return jnp.dot(h.astype(jnp.bfloat16), p["w4"].astype(jnp.bfloat16),
                   preferred_element_type=jnp.float32) + p["b4"]


if __name__ == "__main__":
    key = jax.random.PRNGKey(0)
    k_param, k_x = jax.random.split(key)

    B = 8                                              # small batch, sublane-aligned
    x = jax.random.normal(k_x, (B, LATENT_DIM), jnp.float32)
    raw_params = init_params(k_param)
    kernel_params = prep_params(raw_params)

    fwd = jax.jit(hegen_forward)
    out = fwd(kernel_params, x)
    jax.block_until_ready(out)

    ref = reference_forward(raw_params, x)
    assert out.shape == (B, LATENT_DIM)
    assert bool(jnp.all(jnp.isfinite(out)))
    assert bool(jnp.allclose(out, ref, rtol=5e-2, atol=5e-2)), \
        float(jnp.max(jnp.abs(out - ref)))
    print("KERNEL_OK")
</pallas_src>

<mosaic_0001>
module attributes {stable_mosaic.version = 11 : i64} {
  func.func @_hegen_kernel(%arg0: i32, %arg1: memref<8x512xbf16, #tpu.memory_space<vmem>>, %arg2: memref<512x1024xbf16, #tpu.memory_space<vmem>>, %arg3: memref<1x1024x1024xbf16, #tpu.memory_space<vmem>>, %arg4: memref<1024x512xbf16, #tpu.memory_space<vmem>>, %arg5: memref<8x1024xf32, #tpu.memory_space<vmem>>, %arg6: memref<1x512xf32, #tpu.memory_space<vmem>>, %arg7: memref<8x512xf32, #tpu.memory_space<vmem>>, %arg8: memref<8x1024xbf16, #tpu.memory_space<vmem>>) attributes {dimension_semantics = [#tpu.dimension_semantics<arbitrary>], iteration_bounds = array<i64: 3>, scalar_prefetch = 0 : i64, scratch_operands = 1 : i64, tpu.core_type = #tpu.core_type<tc>, window_params = [{pipeline_mode = #tpu.pipeline_mode<synchronous>, transform_indices = @transform_0, window_bounds = array<i64: 8, 512>}, {pipeline_mode = #tpu.pipeline_mode<synchronous>, transform_indices = @transform_1, window_bounds = array<i64: 512, 1024>}, {transform_indices = @transform_2, window_bounds = array<i64: 1, 1024, 1024>}, {pipeline_mode = #tpu.pipeline_mode<synchronous>, transform_indices = @transform_3, window_bounds = array<i64: 1024, 512>}, {pipeline_mode = #tpu.pipeline_mode<synchronous>, transform_indices = @transform_4, window_bounds = array<i64: 8, 1024>}, {pipeline_mode = #tpu.pipeline_mode<synchronous>, transform_indices = @transform_5, window_bounds = array<i64: 1, 512>}, {pipeline_mode = #tpu.pipeline_mode<synchronous>, transform_indices = @transform_6, window_bounds = array<i64: 8, 512>}]} {
    %c0_i32 = arith.constant 0 : i32
    %0 = arith.cmpi eq, %arg0, %c0_i32 : i32
    %1 = arith.extui %0 : i1 to i32
    %cst = arith.constant 1.250000e-01 : f32
    %c0_i32_0 = arith.constant 0 : i32
    %2 = arith.cmpi ne, %1, %c0_i32_0 : i32
    scf.if %2 {
      %c0_18 = arith.constant 0 : index
      %c0_19 = arith.constant 0 : index
      %43 = vector.load %arg1[%c0_18, %c0_19] : memref<8x512xbf16, #tpu.memory_space<vmem>>, vector<8x512xbf16>
      %c0_20 = arith.constant 0 : index
      %c0_21 = arith.constant 0 : index
      %44 = vector.load %arg2[%c0_20, %c0_21] : memref<512x1024xbf16, #tpu.memory_space<vmem>>, vector<512x1024xbf16>
      %cst_22 = arith.constant dense<0.000000e+00> : vector<8x1024xf32>
      %45 = tpu.matmul %43, %44, %cst_22 {dimension_numbers = #tpu.dot_dimension_numbers<[1], [0], [0], [1], [0, 0, 1, 1], [], []>} : vector<8x512xbf16>, vector<512x1024xbf16>, vector<8x1024xf32> -> vector<8x1024xf32>
      %cst_23 = arith.constant dense<0.000000e+00> : vector<1024xf32>
      %46 = vector.multi_reduction <add>, %45, %cst_23 [0] : vector<8x1024xf32> to vector<1024xf32>
      %47 = vector.shape_cast %46 : vector<1024xf32> to vector<1x1024xf32>
      %48 = arith.mulf %45, %45 : vector<8x1024xf32>
      %cst_24 = arith.constant dense<0.000000e+00> : vector<1024xf32>
      %49 = vector.multi_reduction <add>, %48, %cst_24 [0] : vector<8x1024xf32> to vector<1024xf32>
      %50 = vector.shape_cast %49 : vector<1024xf32> to vector<1x1024xf32>
      %51 = vector.broadcast %cst : f32 to vector<1x1024xf32>
      %52 = arith.mulf %47, %51 : vector<1x1024xf32>
      %53 = vector.broadcast %cst : f32 to vector<1x1024xf32>
      %54 = arith.mulf %50, %53 : vector<1x1024xf32>
      %55 = arith.mulf %52, %52 : vector<1x1024xf32>
      %56 = arith.subf %54, %55 : vector<1x1024xf32>
      %cst_25 = arith.constant 0.000000e+00 : f32
      %57 = vector.broadcast %cst_25 : f32 to vector<1x1024xf32>
      %58 = arith.maximumf %56, %57 : vector<1x1024xf32>
      %c0_26 = arith.constant 0 : index
      %c0_27 = arith.constant 0 : index
      %59 = vector.load %arg5[%c0_26, %c0_27] : memref<8x1024xf32, #tpu.memory_space<vmem>>, vector<1x1024xf32>
      %c4 = arith.constant 4 : index
      %c0_28 = arith.constant 0 : index
      %60 = vector.load %arg5[%c4, %c0_28] : memref<8x1024xf32, #tpu.memory_space<vmem>>, vector<1x1024xf32>
      %cst_29 = arith.constant 9.99999974E-6 : f32
      %61 = vector.broadcast %cst_29 : f32 to vector<1x1024xf32>
      %62 = arith.addf %58, %61 : vector<1x1024xf32>
      %63 = math.rsqrt %62 : vector<1x1024xf32>
      %64 = arith.mulf %59, %63 : vector<1x1024xf32>
      %65 = arith.mulf %52, %64 : vector<1x1024xf32>
      %66 = arith.subf %60, %65 : vector<1x1024xf32>
      %67 = vector.broadcast %64 : vector<1x1024xf32> to vector<8x1024xf32>
      %68 = arith.mulf %45, %67 : vector<8x1024xf32>
      %69 = vector.broadcast %66 : vector<1x1024xf32> to vector<8x1024xf32>
      %70 = arith.addf %68, %69 : vector<8x1024xf32>
      %cst_30 = arith.constant 0.000000e+00 : f32
      %71 = vector.broadcast %cst_30 : f32 to vector<8x1024xf32>
      %72 = arith.maximumf %70, %71 : vector<8x1024xf32>
      %73 = arith.truncf %72 : vector<8x1024xf32> to vector<8x1024xbf16>
      %c0_31 = arith.constant 0 : index
      %c0_32 = arith.constant 0 : index
      %74 = vector.load %arg8[%c0_31, %c0_32] : memref<8x1024xbf16, #tpu.memory_space<vmem>>, vector<8x1024xbf16>
      tpu.vector_store %arg8[%c0_31, %c0_32], %73 {strides = array<i32>} : memref<8x1024xbf16, #tpu.memory_space<vmem>>, vector<8x1024xbf16>,
    } else {
    }
    %c0 = arith.constant 0 : index
    %c0_1 = arith.constant 0 : index
    %3 = vector.load %arg8[%c0, %c0_1] : memref<8x1024xbf16, #tpu.memory_space<vmem>>, vector<8x1024xbf16>
    %c0_2 = arith.constant 0 : index
    %c0_3 = arith.constant 0 : index
    %c0_4 = arith.constant 0 : index
    %4 = vector.load %arg3[%c0_2, %c0_3, %c0_4] : memref<1x1024x1024xbf16, #tpu.memory_space<vmem>>, vector<1x1024x1024xbf16>
    %5 = vector.shape_cast %4 : vector<1x1024x1024xbf16> to vector<1024x1024xbf16>
    %cst_5 = arith.constant dense<0.000000e+00> : vector<8x1024xf32>
    %6 = tpu.matmul %3, %5, %cst_5 {dimension_numbers = #tpu.dot_dimension_numbers<[1], [0], [0], [1], [0, 0, 1, 1], [], []>} : vector<8x1024xbf16>, vector<1024x1024xbf16>, vector<8x1024xf32> -> vector<8x1024xf32>
    %c1_i32 = arith.constant 1 : i32
    %7 = arith.addi %arg0, %c1_i32 : i32
    %cst_6 = arith.constant dense<0.000000e+00> : vector<1024xf32>
    %8 = vector.multi_reduction <add>, %6, %cst_6 [0] : vector<8x1024xf32> to vector<1024xf32>
    %9 = vector.shape_cast %8 : vector<1024xf32> to vector<1x1024xf32>
    %10 = arith.mulf %6, %6 : vector<8x1024xf32>
    %cst_7 = arith.constant dense<0.000000e+00> : vector<1024xf32>
    %11 = vector.multi_reduction <add>, %10, %cst_7 [0] : vector<8x1024xf32> to vector<1024xf32>
    %12 = vector.shape_cast %11 : vector<1024xf32> to vector<1x1024xf32>
    %cst_8 = arith.constant 1.250000e-01 : f32
    %13 = vector.broadcast %cst_8 : f32 to vector<1x1024xf32>
    %14 = arith.mulf %9, %13 : vector<1x1024xf32>
    %cst_9 = arith.constant 1.250000e-01 : f32
    %15 = vector.broadcast %cst_9 : f32 to vector<1x1024xf32>
    %16 = arith.mulf %12, %15 : vector<1x1024xf32>
    %17 = arith.mulf %14, %14 : vector<1x1024xf32>
    %18 = arith.subf %16, %17 : vector<1x1024xf32>
    %cst_10 = arith.constant 0.000000e+00 : f32
    %19 = vector.broadcast %cst_10 : f32 to vector<1x1024xf32>
    %20 = arith.maximumf %18, %19 : vector<1x1024xf32>
    %21 = arith.index_cast %7 : i32 to index
    %c0_11 = arith.constant 0 : index
    %22 = vector.load %arg5[%21, %c0_11] : memref<8x1024xf32, #tpu.memory_space<vmem>>, vector<1x1024xf32>
    %c4_i32 = arith.constant 4 : i32
    %23 = arith.addi %7, %c4_i32 : i32
    %24 = arith.index_cast %23 : i32 to index
    %c0_12 = arith.constant 0 : index
    %25 = vector.load %arg5[%24, %c0_12] : memref<8x1024xf32, #tpu.memory_space<vmem>>, vector<1x1024xf32>
    %cst_13 = arith.constant 9.99999974E-6 : f32
    %26 = vector.broadcast %cst_13 : f32 to vector<1x1024xf32>
    %27 = arith.addf %20, %26 : vector<1x1024xf32>
    %28 = math.rsqrt %27 : vector<1x1024xf32>
    %29 = arith.mulf %22, %28 : vector<1x1024xf32>
    %30 = arith.mulf %14, %29 : vector<1x1024xf32>
    %31 = arith.subf %25, %30 : vector<1x1024xf32>
    %32 = vector.broadcast %29 : vector<1x1024xf32> to vector<8x1024xf32>
    %33 = arith.mulf %6, %32 : vector<8x1024xf32>
    %34 = vector.broadcast %31 : vector<1x1024xf32> to vector<8x1024xf32>
    %35 = arith.addf %33, %34 : vector<8x1024xf32>
    %cst_14 = arith.constant 0.000000e+00 : f32
    %36 = vector.broadcast %cst_14 : f32 to vector<8x1024xf32>
    %37 = arith.maximumf %35, %36 : vector<8x1024xf32>
    %38 = arith.truncf %37 : vector<8x1024xf32> to vector<8x1024xbf16>
    %c0_15 = arith.constant 0 : index
    %c0_16 = arith.constant 0 : index
    %39 = vector.load %arg8[%c0_15, %c0_16] : memref<8x1024xbf16, #tpu.memory_space<vmem>>, vector<8x1024xbf16>
    tpu.vector_store %arg8[%c0_15, %c0_16], %38 {strides = array<i32>} : memref<8x1024xbf16, #tpu.memory_space<vmem>>, vector<8x1024xbf16>,
    %c2_i32 = arith.constant 2 : i32
    %40 = arith.cmpi eq, %arg0, %c2_i32 : i32
    %41 = arith.extui %40 : i1 to i32
    %c0_i32_17 = arith.constant 0 : i32
    %42 = arith.cmpi ne, %41, %c0_i32_17 : i32
    scf.if %42 {
      %c0_18 = arith.constant 0 : index
      %c0_19 = arith.constant 0 : index
      %43 = vector.load %arg8[%c0_18, %c0_19] : memref<8x1024xbf16, #tpu.memory_space<vmem>>, vector<8x1024xbf16>
      %c0_20 = arith.constant 0 : index
      %c0_21 = arith.constant 0 : index
      %44 = vector.load %arg4[%c0_20, %c0_21] : memref<1024x512xbf16, #tpu.memory_space<vmem>>, vector<1024x512xbf16>
      %cst_22 = arith.constant dense<0.000000e+00> : vector<8x512xf32>
      %45 = tpu.matmul %43, %44, %cst_22 {dimension_numbers = #tpu.dot_dimension_numbers<[1], [0], [0], [1], [0, 0, 1, 1], [], []>} : vector<8x1024xbf16>, vector<1024x512xbf16>, vector<8x512xf32> -> vector<8x512xf32>
      %c0_23 = arith.constant 0 : index
      %c0_24 = arith.constant 0 : index
      %46 = vector.load %arg6[%c0_23, %c0_24] : memref<1x512xf32, #tpu.memory_space<vmem>>, vector<1x512xf32>
      %47 = vector.broadcast %46 : vector<1x512xf32> to vector<8x512xf32>
      %48 = arith.addf %45, %47 : vector<8x512xf32>
      %c0_25 = arith.constant 0 : index
      %c0_26 = arith.constant 0 : index
      %49 = vector.load %arg7[%c0_25, %c0_26] : memref<8x512xf32, #tpu.memory_space<vmem>>, vector<8x512xf32>
      tpu.vector_store %arg7[%c0_25, %c0_26], %48 {strides = array<i32>} : memref<8x512xf32, #tpu.memory_space<vmem>>, vector<8x512xf32>,
    } else {
    }
    return
  }
  func.func @transform_0(%arg0: i32) -> (i32, i32) {
    %c0_i32 = arith.constant 0 : i32
    %c0_i32_0 = arith.constant 0 : i32
    %c0_i32_1 = arith.constant 0 : i32
    return %c0_i32, %c0_i32_0 : i32, i32
  }
  func.func @transform_1(%arg0: i32) -> (i32, i32) {
    %c0_i32 = arith.constant 0 : i32
    %c0_i32_0 = arith.constant 0 : i32
    %c0_i32_1 = arith.constant 0 : i32
    return %c0_i32, %c0_i32_0 : i32, i32
  }
  func.func @transform_2(%arg0: i32) -> (i32, i32, i32) {
    %c0_i32 = arith.constant 0 : i32
    %c0_i32_0 = arith.constant 0 : i32
    %c0_i32_1 = arith.constant 0 : i32
    return %arg0, %c0_i32, %c0_i32_0 : i32, i32, i32
  }
  func.func @transform_3(%arg0: i32) -> (i32, i32) {
    %c0_i32 = arith.constant 0 : i32
    %c0_i32_0 = arith.constant 0 : i32
    %c0_i32_1 = arith.constant 0 : i32
    return %c0_i32, %c0_i32_0 : i32, i32
  }
  func.func @transform_4(%arg0: i32) -> (i32, i32) {
    %c0_i32 = arith.constant 0 : i32
    %c0_i32_0 = arith.constant 0 : i32
    %c0_i32_1 = arith.constant 0 : i32
    return %c0_i32, %c0_i32_0 : i32, i32
  }
  func.func @transform_5(%arg0: i32) -> (i32, i32) {
    %c0_i32 = arith.constant 0 : i32
    %c0_i32_0 = arith.constant 0 : i32
    %c0_i32_1 = arith.constant 0 : i32
    return %c0_i32, %c0_i32_0 : i32, i32
  }
  func.func @transform_6(%arg0: i32) -> (i32, i32) {
    %c0_i32 = arith.constant 0 : i32
    %c0_i32_0 = arith.constant 0 : i32
    %c0_i32_1 = arith.constant 0 : i32
    return %c0_i32, %c0_i32_0 : i32, i32
  }
}

</mosaic_0001>

<llo_original>
// kernel: hegen_forward.1
$region0: #{hegen_forward.1}
  #allocation0 [shape = 'u32[]', space=smem, size = 0x4, offset = 0x4, fixed_abs, tag = 'smem constant byte address 0x4 - core index']
  #allocation1 [shape = 'u32[144,128]{1,0:T(1,128)}', space=vmem, size = 0x12000, scoped, tag = 'internal scratch']
  #allocation2 [shape = 'bf16[8,1024]{1,0:T(8,128)(2,1)}', space=vmem, size = 0x4000, scoped, tag = 'scratch operand']
  %s0 = inlined_call_operand.vmem [shape: bf16[8,512], index: 0, kind: input, shape index: {}]
  %s1 = inlined_call_operand.hbm [shape: bf16[512,1024], index: 1, kind: input, shape index: {}]
  %s2 = inlined_call_operand.hbm [shape: bf16[3,1024,1024], index: 2, kind: input, shape index: {}]
  %s3 = inlined_call_operand.hbm [shape: bf16[1024,512], index: 3, kind: input, shape index: {}]
  %s4 = inlined_call_operand.hbm [shape: f32[8,1024], index: 4, kind: input, shape index: {}]
  %s5 = inlined_call_operand.hbm [shape: f32[1,512], index: 5, kind: input, shape index: {}]
  %s6 = inlined_call_operand.hbm [shape: f32[8,512], index: 6, kind: output, shape index: {}]
  %s7 = sld [smem:[#allocation0]]
  $region85: #{hegen_forward.1} parent=0
    _
  %s9 = ssub.s32 1, %s7
  %s10 = scalar_select 0, %s9, %s7
  $region1: #{hegen_forward.1} parent=0
    #allocation3 [shape = 'u8[1048576]{0}', space=vmem, size = 0x100000, scoped, tag = 'input window, operand 1, single buffered']
    #allocation4 [shape = 's32[2]{0}', space=sflag, size = 0x8, scoped, tag = 'scoped memory for hegen_forward.1']
    #allocation5 [shape = 's32[2]{0}', space=sflag, size = 0x8, scoped, tag = 'scoped memory for hegen_forward.1']
    #allocation6 [shape = 'u8[4194304]{0}', space=vmem, size = 0x400000, scoped, tag = 'input window, operand 2']
    #allocation7 [shape = 's32[2]{0}', space=sflag, size = 0x8, scoped, tag = 'scoped memory for hegen_forward.1']
    #allocation8 [shape = 'u8[1048576]{0}', space=vmem, size = 0x100000, scoped, tag = 'input window, operand 3, single buffered']
    #allocation9 [shape = 'u8[32768]{0}', space=vmem, size = 0x8000, scoped, tag = 'input window, operand 4, single buffered']
    #allocation10 [shape = 's32[1]{0}', space=sflag, size = 0x4, scoped, tag = 'scoped memory for hegen_forward.1']
    #allocation11 [shape = 'u8[2048]{0}', space=vmem, size = 0x800, scoped, tag = 'input window, operand 5, single buffered']
    #allocation12 [shape = 'u8[16384]{0}', space=vmem, size = 0x4000, scoped, tag = 'output window, operand 0, single buffered']
    %11 = vsyncpa [#allocation4], 0
    %12 = vsyncpa [#allocation7], 0
    %s13 = scalar_lea.sflag [#allocation7], 1
    %14 = vsyncpa %s13, 0
    %15 = vsyncpa [#allocation10], 0
    %16 = vsyncpa [#allocation5], 0
    loop: start=0, step=1, limit=5
    $region2: #{hegen_forward.1} parent=1 // loop_pre_header
      _
    $region3: #{hegen_forward.1} parent=1 // loop_header
      %s18 = sphi 0, %s22
      %p19 = scmp.ge.s32.totalorder %s18, 5
      %s26 = sphi 0, %s26
      %s28 = sphi 0, %s26
      %s29 = sphi 0, %s28
      %s43 = sphi 0, %s29
      %s47 = sphi 0, %s47
      %s49 = sphi 0, %s47
      %s50 = sphi 0, %s49
      %s64 = sphi 0, %s50
      %s70 = sphi 0, %s72
      %s73 = sphi 0, %s70
      %s74 = sphi 0, %s73
      %s90 = sphi 0, %s74
      %s94 = sphi 0, %s94
      %s96 = sphi 0, %s94
      %s97 = sphi 0, %s96
      %s111 = sphi 0, %s97
      %s115 = sphi 0, %s115
      %s117 = sphi 0, %s115
      %s118 = sphi 0, %s117
      %s132 = sphi 0, %s118
      %s136 = sphi 0, %s136
      %s138 = sphi 0, %s136
      %s139 = sphi 0, %s138
      %s153 = sphi 0, %s139
      %s157 = sphi 0, %s157
      %s159 = sphi 0, %s157
      %s160 = sphi 0, %s159
      %s174 = sphi 0, %s160
    $region4: #{hegen_forward.1} parent=1 // loop_header_branch
      %21 = sbr.rel (%p19) target = $region8
    $region5: #{hegen_forward.1} parent=1 // loop_body
      %s23 = ssub.s32 %s18, 1
      %s24 = ssub.s32 %s18, 2
      %s25 = sadd.s32 %s18, 1
      %s27 = sadd.s32 %s26, 1
      %p30 = scmp.eq.s32.totalorder %s18, 2
      %p31 = scmp.ne.s32.totalorder %s26, %s28
      %p32 = scmp.eq.s32.totalorder %s18, 0
      %p33 = por %p31, %p32
      %p34 = scmp.ne.s32.totalorder %s26, %s28
      %p35 = scmp.eq.s32.totalorder %s23, 2
      %p36 = por %p34, %p35
      %p37 = scmp.ne.s32.totalorder %s28, %s29
      %p38 = scmp.eq.s32.totalorder %s23, 0
      %p39 = por %p37, %p38
      %p40 = scmp.ne.s32.totalorder %s28, %s29
      %p41 = scmp.eq.s32.totalorder %s24, 2
      %p42 = por %p40, %p41
      %p44 = scmp.ne.s32.totalorder %s29, %s43
      %p45 = scmp.eq.s32.totalorder %s24, 0
      %p46 = por %p44, %p45
      %s48 = sadd.s32 %s47, 1
      %p51 = scmp.eq.s32.totalorder %s18, 2
      %p52 = scmp.ne.s32.totalorder %s47, %s49
      %p53 = scmp.eq.s32.totalorder %s18, 0
      %p54 = por %p52, %p53
      %p55 = scmp.ne.s32.totalorder %s47, %s49
      %p56 = scmp.eq.s32.totalorder %s23, 2
      %p57 = por %p55, %p56
      %p58 = scmp.ne.s32.totalorder %s49, %s50
      %p59 = scmp.eq.s32.totalorder %s23, 0
      %p60 = por %p58, %p59
      %p61 = scmp.ne.s32.totalorder %s49, %s50
      %p62 = scmp.eq.s32.totalorder %s24, 2
      %p63 = por %p61, %p62
      %p65 = scmp.ne.s32.totalorder %s50, %s64
      %p66 = scmp.eq.s32.totalorder %s24, 0
      %p67 = por %p65, %p66
      %s68 = ssub.s32 %s18, %s25
      %p69 = scmp.eq.s32.totalorder %s68, 0
      %s71 = sadd.s32 %s70, 1
      %s72 = scalar_select %p69, %s70, %s71
      %p75 = pneg %p69
      %p76 = scmp.eq.s32.totalorder %s18, 2
      %p77 = por %p75, %p76
      %p78 = scmp.ne.s32.totalorder %s70, %s73
      %p79 = scmp.eq.s32.totalorder %s18, 0
      %p80 = por %p78, %p79
      %p81 = scmp.ne.s32.totalorder %s70, %s73
      %p82 = scmp.eq.s32.totalorder %s23, 2
      %p83 = por %p81, %p82
      %p84 = scmp.ne.s32.totalorder %s73, %s74
      %p85 = scmp.eq.s32.totalorder %s23, 0
      %p86 = por %p84, %p85
      %p87 = scmp.ne.s32.totalorder %s73, %s74
      %p88 = scmp.eq.s32.totalorder %s24, 2
      %p89 = por %p87, %p88
      %p91 = scmp.ne.s32.totalorder %s74, %s90
      %p92 = scmp.eq.s32.totalorder %s24, 0
      %p93 = por %p91, %p92
      %s95 = sadd.s32 %s94, 1
      %p98 = scmp.eq.s32.totalorder %s18, 2
      %p99 = scmp.ne.s32.totalorder %s94, %s96
      %p100 = scmp.eq.s32.totalorder %s18, 0
      %p101 = por %p99, %p100
      %p102 = scmp.ne.s32.totalorder %s94, %s96
      %p103 = scmp.eq.s32.totalorder %s23, 2
      %p104 = por %p102, %p103
      %p105 = scmp.ne.s32.totalorder %s96, %s97
      %p106 = scmp.eq.s32.totalorder %s23, 0
      %p107 = por %p105, %p106
      %p108 = scmp.ne.s32.totalorder %s96, %s97
      %p109 = scmp.eq.s32.totalorder %s24, 2
      %p110 = por %p108, %p109
      %p112 = scmp.ne.s32.totalorder %s97, %s111
      %p113 = scmp.eq.s32.totalorder %s24, 0
      %p114 = por %p112, %p113
      %s116 = sadd.s32 %s115, 1
      %p119 = scmp.eq.s32.totalorder %s18, 2
      %p120 = scmp.ne.s32.totalorder %s115, %s117
      %p121 = scmp.eq.s32.totalorder %s18, 0
      %p122 = por %p120, %p121
      %p123 = scmp.ne.s32.totalorder %s115, %s117
      %p124 = scmp.eq.s32.totalorder %s23, 2
      %p125 = por %p123, %p124
      %p126 = scmp.ne.s32.totalorder %s117, %s118
      %p127 = scmp.eq.s32.totalorder %s23, 0
      %p128 = por %p126, %p127
      %p129 = scmp.ne.s32.totalorder %s117, %s118
      %p130 = scmp.eq.s32.totalorder %s24, 2
      %p131 = por %p129, %p130
      %p133 = scmp.ne.s32.totalorder %s118, %s132
      %p134 = scmp.eq.s32.totalorder %s24, 0
      %p135 = por %p133, %p134
      %s137 = sadd.s32 %s136, 1
      %p140 = scmp.eq.s32.totalorder %s18, 2
      %p141 = scmp.ne.s32.totalorder %s136, %s138
      %p142 = scmp.eq.s32.totalorder %s18, 0
      %p143 = por %p141, %p142
      %p144 = scmp.ne.s32.totalorder %s136, %s138
      %p145 = scmp.eq.s32.totalorder %s23, 2
      %p146 = por %p144, %p145
      %p147 = scmp.ne.s32.totalorder %s138, %s139
      %p148 = scmp.eq.s32.totalorder %s23, 0
      %p149 = por %p147, %p148
      %p150 = scmp.ne.s32.totalorder %s138, %s139
      %p151 = scmp.eq.s32.totalorder %s24, 2
      %p152 = por %p150, %p151
      %p154 = scmp.ne.s32.totalorder %s139, %s153
      %p155 = scmp.eq.s32.totalorder %s24, 0
      %p156 = por %p154, %p155
      %s158 = sadd.s32 %s157, 1
      %p161 = scmp.eq.s32.totalorder %s18, 2
      %p162 = scmp.ne.s32.totalorder %s157, %s159
      %p163 = scmp.eq.s32.totalorder %s18, 0
      %p164 = por %p162, %p163
      %p165 = scmp.ne.s32.totalorder %s157, %s159
      %p166 = scmp.eq.s32.totalorder %s23, 2
      %p167 = por %p165, %p166
      %p168 = scmp.ne.s32.totalorder %s159, %s160
      %p169 = scmp.eq.s32.totalorder %s23, 0
      %p170 = por %p168, %p169
      %p171 = scmp.ne.s32.totalorder %s159, %s160
      %p172 = scmp.eq.s32.totalorder %s24, 2
      %p173 = por %p171, %p172
      %p175 = scmp.ne.s32.totalorder %s160, %s174
      %p176 = scmp.eq.s32.totalorder %s24, 0
      %p177 = por %p175, %p176
      %p178 = scmp.le.s32.totalorder 1, %s18
      %p179 = scmp.lt.s32.totalorder %s18, 4
      %p180 = pnand %p178, %p179
      %p181 = pneg %p180
      // Predicated region
      $region9: #{hegen_forward.1} parent=5 // pred_check
        _
      $region10: #{hegen_forward.1} parent=5 // pred_check_branch
        %183 = sbr.rel (%p180) target = $region12
      $region11: #{hegen_forward.1} parent=5 // pred_region
        %s184 = ssub.s32 %s18, 1
        // Predicated region
        $region13: #{hegen_forward.1} parent=11 // pred_check
          %p185 = pneg %p39
        $region14: #{hegen_forward.1} parent=11 // pred_check_branch
          %187 = sbr.rel (%p185) target = $region16
        $region15: #{hegen_forward.1} parent=11 // pred_region
          _
        $region16: #{hegen_forward.1} parent=11 // pred_fallthru
          _
        // Predicated region
        $region17: #{hegen_forward.1} parent=11 // pred_check
          %p188 = pneg %p60
        $region18: #{hegen_forward.1} parent=11 // pred_check_branch
          %190 = sbr.rel (%p188) target = $region20
        $region19: #{hegen_forward.1} parent=11 // pred_region
          %s192 = ssub.s32 32768, 32768
          %193 = vsyncadd [#allocation4], %s192
          %s194 = sshll.u32 [#allocation3], 4
          %s195 = int_to_ptr.vmem [resolvable:$true] %s194
          %200 = dma.hbm_to_vmem [thread:$0]  %s1, 32768, %s195, [#allocation4], 512, 512, 32
        $region20: #{hegen_forward.1} parent=11 // pred_fallthru
          _
        // Predicated region
        $region21: #{hegen_forward.1} parent=11 // pred_check
          %p201 = pneg %p107
        $region22: #{hegen_forward.1} parent=11 // pred_check_branch
          %203 = sbr.rel (%p201) target = $region24
        $region23: #{hegen_forward.1} parent=11 // pred_region
          %s205 = ssub.s32 32768, 32768
          %206 = vsyncadd [#allocation7], %s205
          %s207 = sshll.u32 [#allocation8], 4
          %s208 = int_to_ptr.vmem [resolvable:$true] %s207
          %213 = dma.hbm_to_vmem [thread:$0]  %s3, 32768, %s208, [#allocation7], 256, 256, 16
        $region24: #{hegen_forward.1} parent=11 // pred_fallthru
          _
        // Predicated region
        $region25: #{hegen_forward.1} parent=11 // pred_check
          %p214 = pneg %p128
        $region26: #{hegen_forward.1} parent=11 // pred_check_branch
          %216 = sbr.rel (%p214) target = $region28
        $region27: #{hegen_forward.1} parent=11 // pred_region
          %s218 = ssub.s32 1024, 1024
          %219 = vsyncadd [#allocation10], %s218
          %s221 = sshll.u32 [#allocation9], 4
          %s222 = int_to_ptr.vmem [resolvable:$true] %s221
          %224 = dma.hbm_to_vmem [thread:$0]  %s4, 1024, %s222, [#allocation10]
        $region28: #{hegen_forward.1} parent=11 // pred_fallthru
          _
        // Predicated region
        $region29: #{hegen_forward.1} parent=11 // pred_check
          %p225 = pneg %p149
        $region30: #{hegen_forward.1} parent=11 // pred_check_branch
          %227 = sbr.rel (%p225) target = $region32
        $region31: #{hegen_forward.1} parent=11 // pred_region
          %s229 = ssub.s32 64, 64
          %230 = vsyncadd [#allocation10], %s229
          %s232 = sshll.u32 [#allocation11], 4
          %s233 = int_to_ptr.vmem [resolvable:$true] %s232
          %235 = dma.hbm_to_vmem [thread:$0]  %s5, 64, %s233, [#allocation10]
        $region32: #{hegen_forward.1} parent=11 // pred_fallthru
          _
      $region12: #{hegen_forward.1} parent=5 // pred_fallthru
        _
      %p236 = scmp.lt.s32.totalorder %s18, 3
      // Predicated region
      $region33: #{hegen_forward.1} parent=5 // pred_check
        %p237 = pneg %p236
      $region34: #{hegen_forward.1} parent=5 // pred_check_branch
        %239 = sbr.rel (%p237) target = $region36
      $region35: #{hegen_forward.1} parent=5 // pred_region
        // Predicated region
        $region37: #{hegen_forward.1} parent=35 // pred_check
          %p240 = pneg %p80
        $region38: #{hegen_forward.1} parent=35 // pred_check_branch
          %242 = sbr.rel (%p240) target = $region40
        $region39: #{hegen_forward.1} parent=35 // pred_region
          %s243 = sand.u32 %s18, 1
          %s244 = scalar_lea.sflag [#allocation7], %s243
          %s245 = sand.u32 %s70, 1
          %s246 = smul.addr %s245, 4096
          %s247 = scalar_lea.vmem [#allocation6], %s246
          %s249 = ssub.s32 65536, 65536
          %250 = vsyncadd %s244, %s249
          %s251 = smul.addr %s18, 1024
          %s252 = smul.addr %s251, 64
          %s253 = scalar_lea.hbm %s2, %s252
          %s254 = sshll.u32 %s247, 4
          %s255 = int_to_ptr.vmem [resolvable:$true] %s254
          %260 = dma.hbm_to_vmem [thread:$0]  %s253, 65536, %s255, %s244, 512, 512, 32
        $region40: #{hegen_forward.1} parent=35 // pred_fallthru
          _
      $region36: #{hegen_forward.1} parent=5 // pred_fallthru
        _
      %p261 = scmp.le.s32.totalorder 1, %s18
      %p262 = scmp.lt.s32.totalorder %s18, 4
      %p263 = pnand %p261, %p262
      %p264 = pneg %p263
      // Predicated region
      $region41: #{hegen_forward.1} parent=5 // pred_check
        _
      $region42: #{hegen_forward.1} parent=5 // pred_check_branch
        %266 = sbr.rel (%p263) target = $region44
      $region43: #{hegen_forward.1} parent=5 // pred_region
        %s267 = ssub.s32 %s18, 1
        // Predicated region
        $region45: #{hegen_forward.1} parent=43 // pred_check
          %p268 = pneg %p60
        $region46: #{hegen_forward.1} parent=43 // pred_check_branch
          %270 = sbr.rel (%p268) target = $region48
        $region47: #{hegen_forward.1} parent=43 // pred_region
          %271 = dma.done [#allocation4], 32768
        $region48: #{hegen_forward.1} parent=43 // pred_fallthru
          _
        %s272 = sand.u32 %s23, 1
        %s273 = scalar_lea.sflag [#allocation7], %s272
        %s274 = sand.u32 %s73, 1
        %s275 = smul.addr %s274, 4096
        %s276 = scalar_lea.vmem [#allocation6], %s275
        // Predicated region
        $region49: #{hegen_forward.1} parent=43 // pred_check
          %p277 = pneg %p86
        $region50: #{hegen_forward.1} parent=43 // pred_check_branch
          %279 = sbr.rel (%p277) target = $region52
        $region51: #{hegen_forward.1} parent=43 // pred_region
          %280 = dma.done %s273, 65536
        $region52: #{hegen_forward.1} parent=43 // pred_fallthru
          _
        // Predicated region
        $region53: #{hegen_forward.1} parent=43 // pred_check
          %p281 = pneg %p107
        $region54: #{hegen_forward.1} parent=43 // pred_check_branch
          %283 = sbr.rel (%p281) target = $region56
        $region55: #{hegen_forward.1} parent=43 // pred_region
          %284 = dma.done [#allocation7], 32768
        $region56: #{hegen_forward.1} parent=43 // pred_fallthru
          _
        // Predicated region
        $region57: #{hegen_forward.1} parent=43 // pred_check
          %p285 = pneg %p128
        $region58: #{hegen_forward.1} parent=43 // pred_check_branch
          %287 = sbr.rel (%p285) target = $region60
        $region59: #{hegen_forward.1} parent=43 // pred_region
          %288 = dma.done [#allocation10], 1024
        $region60: #{hegen_forward.1} parent=43 // pred_fallthru
          _
        // Predicated region
        $region61: #{hegen_forward.1} parent=43 // pred_check
          %p289 = pneg %p149
        $region62: #{hegen_forward.1} parent=43 // pred_check_branch
          %291 = sbr.rel (%p289) target = $region64
        $region63: #{hegen_forward.1} parent=43 // pred_region
          %292 = dma.done [#allocation10], 64
        $region64: #{hegen_forward.1} parent=43 // pred_fallthru
          _
        %p293 = pneg %p39
        %p294 = pneg %p36
        %p295 = pneg %p60
        %p296 = pneg %p57
        %s297 = sand.u32 %s23, 1
        %s298 = scalar_lea.sflag [#allocation7], %s297
        %s299 = sand.u32 %s73, 1
        %s300 = smul.addr %s299, 4096
        %s301 = scalar_lea.vmem [#allocation6], %s300
        %p302 = pneg %p86
        %p303 = pneg %p83
        %p304 = pneg %p107
        %p305 = pneg %p104
        %p306 = pneg %p128
        %p307 = pneg %p125
        %p308 = pneg %p149
        %p309 = pneg %p146
        %p310 = pneg %p170
        %p311 = pneg %p167
        %p312 = scmp.eq.s32.totalorder %s23, 0
        // Predicated region
        $region65: #{hegen_forward.1} parent=43 // pred_check
          %p313 = pneg %p312
        $region66: #{hegen_forward.1} parent=43 // pred_check_branch
          %315 = sbr.rel (%p313) target = $region68
        $region67: #{hegen_forward.1} parent=43 // pred_region
          %v316 = vld [vmem:[%s0] sm:$0xff]
          %v317 = vld [vmem:[%s0 + $0x8] sm:$0xff]
          %v318 = vld [vmem:[#allocation3] sm:$0xff]
          %v319 = vld [vmem:[#allocation3 + $0x8] sm:$0xff]
          %v320 = vld [vmem:[#allocation3 + $0x10] sm:$0xff]
          %v321 = vld [vmem:[#allocation3 + $0x18] sm:$0xff]
          %v322 = vld [vmem:[#allocation3 + $0x20] sm:$0xff]
          %v323 = vld [vmem:[#allocation3 + $0x28] sm:$0xff]
          %v324 = vld [vmem:[#allocation3 + $0x30] sm:$0xff]
          %v325 = vld [vmem:[#allocation3 + $0x38] sm:$0xff]
          %v326 = vld [vmem:[#allocation3 + $0x40] sm:$0xff]
          %v327 = vld [vmem:[#allocation3 + $0x48] sm:$0xff]
          %v328 = vld [vmem:[#allocation3 + $0x50] sm:$0xff]
          %v329 = vld [vmem:[#allocation3 + $0x58] sm:$0xff]
          %v330 = vld [vmem:[#allocation3 + $0x60] sm:$0xff]
          %v331 = vld [vmem:[#allocation3 + $0x68] sm:$0xff]
          %v332 = vld [vmem:[#allocation3 + $0x70] sm:$0xff]
          %v333 = vld [vmem:[#allocation3 + $0x78] sm:$0xff]
          %v334 = vld [vmem:[#allocation3 + $0x80] sm:$0xff]
          %v335 = vld [vmem:[#allocation3 + $0x88] sm:$0xff]
          %v336 = vld [vmem:[#allocation3 + $0x90] sm:$0xff]
          %v337 = vld [vmem:[#allocation3 + $0x98] sm:$0xff]
          %v338 = vld [vmem:[#allocation3 + $0xa0] sm:$0xff]
          %v339 = vld [vmem:[#allocation3 + $0xa8] sm:$0xff]
          %v340 = vld [vmem:[#allocation3 + $0xb0] sm:$0xff]
          %v341 = vld [vmem:[#allocation3 + $0xb8] sm:$0xff]
          %v342 = vld [vmem:[#allocation3 + $0xc0] sm:$0xff]
          %v343 = vld [vmem:[#allocation3 + $0xc8] sm:$0xff]
          %v344 = vld [vmem:[#allocation3 + $0xd0] sm:$0xff]
          %v345 = vld [vmem:[#allocation3 + $0xd8] sm:$0xff]
          %v346 = vld [vmem:[#allocation3 + $0xe0] sm:$0xff]
          %v347 = vld [vmem:[#allocation3 + $0xe8] sm:$0xff]
          %v348 = vld [vmem:[#allocation3 + $0xf0] sm:$0xff]
          %v349 = vld [vmem:[#allocation3 + $0xf8] sm:$0xff]
          %v350 = vld [vmem:[#allocation3 + $0x100] sm:$0xff]
          %v351 = vld [vmem:[#allocation3 + $0x108] sm:$0xff]
          %v352 = vld [vmem:[#allocation3 + $0x110] sm:$0xff]
          %v353 = vld [vmem:[#allocation3 + $0x118] sm:$0xff]
          %v354 = vld [vmem:[#allocation3 + $0x120] sm:$0xff]
          %v355 = vld [vmem:[#allocation3 + $0x128] sm:$0xff]
          %v356 = vld [vmem:[#allocation3 + $0x130] sm:$0xff]
          %v357 = vld [vmem:[#allocation3 + $0x138] sm:$0xff]
          %v358 = vld [vmem:[#allocation3 + $0x140] sm:$0xff]
          %v359 = vld [vmem:[#allocation3 + $0x148] sm:$0xff]
          %v360 = vld [vmem:[#allocation3 + $0x150] sm:$0xff]
          %v361 = vld [vmem:[#allocation3 + $0x158] sm:$0xff]
          %v362 = vld [vmem:[#allocation3 + $0x160] sm:$0xff]
          %v363 = vld [vmem:[#allocation3 + $0x168] sm:$0xff]
          %v364 = vld [vmem:[#allocation3 + $0x170] sm:$0xff]
          %v365 = vld [vmem:[#allocation3 + $0x178] sm:$0xff]
          %v366 = vld [vmem:[#allocation3 + $0x180] sm:$0xff]
          %v367 = vld [vmem:[#allocation3 + $0x188] sm:$0xff]
          %v368 = vld [vmem:[#allocation3 + $0x190] sm:$0xff]
          %v369 = vld [vmem:[#allocation3 + $0x198] sm:$0xff]
          %v370 = vld [vmem:[#allocation3 + $0x1a0] sm:$0xff]
          %v371 = vld [vmem:[#allocation3 + $0x1a8] sm:$0xff]
          %v372 = vld [vmem:[#allocation3 + $0x1b0] sm:$0xff]
          %v373 = vld [vmem:[#allocation3 + $0x1b8] sm:$0xff]
          %v374 = vld [vmem:[#allocation3 + $0x1c0] sm:$0xff]
          %v375 = vld [vmem:[#allocation3 + $0x1c8] sm:$0xff]
          %v376 = vld [vmem:[#allocation3 + $0x1d0] sm:$0xff]
          %v377 = vld [vmem:[#allocation3 + $0x1d8] sm:$0xff]
          %v378 = vld [vmem:[#allocation3 + $0x1e0] sm:$0xff]
          %v379 = vld [vmem:[#allocation3 + $0x1e8] sm:$0xff]
          %v380 = vld [vmem:[#allocation3 + $0x1f0] sm:$0xff]
          %v381 = vld [vmem:[#allocation3 + $0x1f8] sm:$0xff]
          %v382 = vld [vmem:[#allocation3 + $0x200] sm:$0xff]
          %v383 = vld [vmem:[#allocation3 + $0x208] sm:$0xff]
          %v384 = vld [vmem:[#allocation3 + $0x210] sm:$0xff]
          %v385 = vld [vmem:[#allocation3 + $0x218] sm:$0xff]
          %v386 = vld [vmem:[#allocation3 + $0x220] sm:$0xff]
          %v387 = vld [vmem:[#allocation3 + $0x228] sm:$0xff]
          %v388 = vld [vmem:[#allocation3 + $0x230] sm:$0xff]
          %v389 = vld [vmem:[#allocation3 + $0x238] sm:$0xff]
          %v390 = vld [vmem:[#allocation3 + $0x240] sm:$0xff]
          %v391 = vld [vmem:[#allocation3 + $0x248] sm:$0xff]
          %v392 = vld [vmem:[#allocation3 + $0x250] sm:$0xff]
          %v393 = vld [vmem:[#allocation3 + $0x258] sm:$0xff]
          %v394 = vld [vmem:[#allocation3 + $0x260] sm:$0xff]
          %v395 = vld [vmem:[#allocation3 + $0x268] sm:$0xff]
          %v396 = vld [vmem:[#allocation3 + $0x270] sm:$0xff]
          %v397 = vld [vmem:[#allocation3 + $0x278] sm:$0xff]
          %v398 = vld [vmem:[#allocation3 + $0x280] sm:$0xff]
          %v399 = vld [vmem:[#allocation3 + $0x288] sm:$0xff]
          %v400 = vld [vmem:[#allocation3 + $0x290] sm:$0xff]
          %v401 = vld [vmem:[#allocation3 + $0x298] sm:$0xff]
          %v402 = vld [vmem:[#allocation3 + $0x2a0] sm:$0xff]
          %v403 = vld [vmem:[#allocation3 + $0x2a8] sm:$0xff]
          %v404 = vld [vmem:[#allocation3 + $0x2b0] sm:$0xff]
          %v405 = vld [vmem:[#allocation3 + $0x2b8] sm:$0xff]
          %v406 = vld [vmem:[#allocation3 + $0x2c0] sm:$0xff]
          %v407 = vld [vmem:[#allocation3 + $0x2c8] sm:$0xff]
          %v408 = vld [vmem:[#allocation3 + $0x2d0] sm:$0xff]
          %v409 = vld [vmem:[#allocation3 + $0x2d8] sm:$0xff]
          %v410 = vld [vmem:[#allocation3 + $0x2e0] sm:$0xff]
          %v411 = vld [vmem:[#allocation3 + $0x2e8] sm:$0xff]
          %v412 = vld [vmem:[#allocation3 + $0x2f0] sm:$0xff]
          %v413 = vld [vmem:[#allocation3 + $0x2f8] sm:$0xff]
          %v414 = vld [vmem:[#allocation3 + $0x300] sm:$0xff]
          %v415 = vld [vmem:[#allocation3 + $0x308] sm:$0xff]
          %v416 = vld [vmem:[#allocation3 + $0x310] sm:$0xff]
          %v417 = vld [vmem:[#allocation3 + $0x318] sm:$0xff]
          %v418 = vld [vmem:[#allocation3 + $0x320] sm:$0xff]
          %v419 = vld [vmem:[#allocation3 + $0x328] sm:$0xff]
          %v420 = vld [vmem:[#allocation3 + $0x330] sm:$0xff]
          %v421 = vld [vmem:[#allocation3 + $0x338] sm:$0xff]
          %v422 = vld [vmem:[#allocation3 + $0x340] sm:$0xff]
          %v423 = vld [vmem:[#allocation3 + $0x348] sm:$0xff]
          %v424 = vld [vmem:[#allocation3 + $0x350] sm:$0xff]
          %v425 = vld [vmem:[#allocation3 + $0x358] sm:$0xff]
          %v426 = vld [vmem:[#allocation3 + $0x360] sm:$0xff]
          %v427 = vld [vmem:[#allocation3 + $0x368] sm:$0xff]
          %v428 = vld [vmem:[#allocation3 + $0x370] sm:$0xff]
          %v429 = vld [vmem:[#allocation3 + $0x378] sm:$0xff]
          %v430 = vld [vmem:[#allocation3 + $0x380] sm:$0xff]
          %v431 = vld [vmem:[#allocation3 + $0x388] sm:$0xff]
          %v432 = vld [vmem:[#allocation3 + $0x390] sm:$0xff]
          %v433 = vld [vmem:[#allocation3 + $0x398] sm:$0xff]
          %v434 = vld [vmem:[#allocation3 + $0x3a0] sm:$0xff]
          %v435 = vld [vmem:[#allocation3 + $0x3a8] sm:$0xff]
          %v436 = vld [vmem:[#allocation3 + $0x3b0] sm:$0xff]
          %v437 = vld [vmem:[#allocation3 + $0x3b8] sm:$0xff]
          %v438 = vld [vmem:[#allocation3 + $0x3c0] sm:$0xff]
          %v439 = vld [vmem:[#allocation3 + $0x3c8] sm:$0xff]
          %v440 = vld [vmem:[#allocation3 + $0x3d0] sm:$0xff]
          %v441 = vld [vmem:[#allocation3 + $0x3d8] sm:$0xff]
          %v442 = vld [vmem:[#allocation3 + $0x3e0] sm:$0xff]
          %v443 = vld [vmem:[#allocation3 + $0x3e8] sm:$0xff]
          %v444 = vld [vmem:[#allocation3 + $0x3f0] sm:$0xff]
          %v445 = vld [vmem:[#allocation3 + $0x3f8] sm:$0xff]
          %v446 = vld [vmem:[#allocation3 + $0x400] sm:$0xff]
          %v447 = vld [vmem:[#allocation3 + $0x408] sm:$0xff]
          %v448 = vld [vmem:[#allocation3 + $0x410] sm:$0xff]
          %v449 = vld [vmem:[#allocation3 + $0x418] sm:$0xff]
          %v450 = vld [vmem:[#allocation3 + $0x420] sm:$0xff]
          %v451 = vld [vmem:[#allocation3 + $0x428] sm:$0xff]
          %v452 = vld [vmem:[#allocation3 + $0x430] sm:$0xff]
          %v453 = vld [vmem:[#allocation3 + $0x438] sm:$0xff]
          %v454 = vld [vmem:[#allocation3 + $0x440] sm:$0xff]
          %v455 = vld [vmem:[#allocation3 + $0x448] sm:$0xff]
          %v456 = vld [vmem:[#allocation3 + $0x450] sm:$0xff]
          %v457 = vld [vmem:[#allocation3 + $0x458] sm:$0xff]
          %v458 = vld [vmem:[#allocation3 + $0x460] sm:$0xff]
          %v459 = vld [vmem:[#allocation3 + $0x468] sm:$0xff]
          %v460 = vld [vmem:[#allocation3 + $0x470] sm:$0xff]
          %v461 = vld [vmem:[#allocation3 + $0x478] sm:$0xff]
          %v462 = vld [vmem:[#allocation3 + $0x480] sm:$0xff]
          %v463 = vld [vmem:[#allocation3 + $0x488] sm:$0xff]
          %v464 = vld [vmem:[#allocation3 + $0x490] sm:$0xff]
          %v465 = vld [vmem:[#allocation3 + $0x498] sm:$0xff]
          %v466 = vld [vmem:[#allocation3 + $0x4a0] sm:$0xff]
          %v467 = vld [vmem:[#allocation3 + $0x4a8] sm:$0xff]
          %v468 = vld [vmem:[#allocation3 + $0x4b0] sm:$0xff]
          %v469 = vld [vmem:[#allocation3 + $0x4b8] sm:$0xff]
          %v470 = vld [vmem:[#allocation3 + $0x4c0] sm:$0xff]
          %v471 = vld [vmem:[#allocation3 + $0x4c8] sm:$0xff]
          %v472 = vld [vmem:[#allocation3 + $0x4d0] sm:$0xff]
          %v473 = vld [vmem:[#allocation3 + $0x4d8] sm:$0xff]
          %v474 = vld [vmem:[#allocation3 + $0x4e0] sm:$0xff]
          %v475 = vld [vmem:[#allocation3 + $0x4e8] sm:$0xff]
          %v476 = vld [vmem:[#allocation3 + $0x4f0] sm:$0xff]
          %v477 = vld [vmem:[#allocation3 + $0x4f8] sm:$0xff]
          %v478 = vld [vmem:[#allocation3 + $0x500] sm:$0xff]
          %v479 = vld [vmem:[#allocation3 + $0x508] sm:$0xff]
          %v480 = vld [vmem:[#allocation3 + $0x510] sm:$0xff]
          %v481 = vld [vmem:[#allocation3 + $0x518] sm:$0xff]
          %v482 = vld [vmem:[#allocation3 + $0x520] sm:$0xff]
          %v483 = vld [vmem:[#allocation3 + $0x528] sm:$0xff]
          %v484 = vld [vmem:[#allocation3 + $0x530] sm:$0xff]
          %v485 = vld [vmem:[#allocation3 + $0x538] sm:$0xff]
          %v486 = vld [vmem:[#allocation3 + $0x540] sm:$0xff]
          %v487 = vld [vmem:[#allocation3 + $0x548] sm:$0xff]
          %v488 = vld [vmem:[#allocation3 + $0x550] sm:$0xff]
          %v489 = vld [vmem:[#allocation3 + $0x558] sm:$0xff]
          %v490 = vld [vmem:[#allocation3 + $0x560] sm:$0xff]
          %v491 = vld [vmem:[#allocation3 + $0x568] sm:$0xff]
          %v492 = vld [vmem:[#allocation3 + $0x570] sm:$0xff]
          %v493 = vld [vmem:[#allocation3 + $0x578] sm:$0xff]
          %v494 = vld [vmem:[#allocation3 + $0x580] sm:$0xff]
          %v495 = vld [vmem:[#allocation3 + $0x588] sm:$0xff]
          %v496 = vld [vmem:[#allocation3 + $0x590] sm:$0xff]
          %v497 = vld [vmem:[#allocation3 + $0x598] sm:$0xff]
          %v498 = vld [vmem:[#allocation3 + $0x5a0] sm:$0xff]
          %v499 = vld [vmem:[#allocation3 + $0x5a8] sm:$0xff]
          %v500 = vld [vmem:[#allocation3 + $0x5b0] sm:$0xff]
          %v501 = vld [vmem:[#allocation3 + $0x5b8] sm:$0xff]
          %v502 = vld [vmem:[#allocation3 + $0x5c0] sm:$0xff]
          %v503 = vld [vmem:[#allocation3 + $0x5c8] sm:$0xff]
          %v504 = vld [vmem:[#allocation3 + $0x5d0] sm:$0xff]
          %v505 = vld [vmem:[#allocation3 + $0x5d8] sm:$0xff]
          %v506 = vld [vmem:[#allocation3 + $0x5e0] sm:$0xff]
          %v507 = vld [vmem:[#allocation3 + $0x5e8] sm:$0xff]
          %v508 = vld [vmem:[#allocation3 + $0x5f0] sm:$0xff]
          %v509 = vld [vmem:[#allocation3 + $0x5f8] sm:$0xff]
          %v510 = vld [vmem:[#allocation3 + $0x600] sm:$0xff]
          %v511 = vld [vmem:[#allocation3 + $0x608] sm:$0xff]
          %v512 = vld [vmem:[#allocation3 + $0x610] sm:$0xff]
          %v513 = vld [vmem:[#allocation3 + $0x618] sm:$0xff]
          %v514 = vld [vmem:[#allocation3 + $0x620] sm:$0xff]
          %v515 = vld [vmem:[#allocation3 + $0x628] sm:$0xff]
          %v516 = vld [vmem:[#allocation3 + $0x630] sm:$0xff]
          %v517 = vld [vmem:[#allocation3 + $0x638] sm:$0xff]
          %v518 = vld [vmem:[#allocation3 + $0x640] sm:$0xff]
          %v519 = vld [vmem:[#allocation3 + $0x648] sm:$0xff]
          %v520 = vld [vmem:[#allocation3 + $0x650] sm:$0xff]
          %v521 = vld [vmem:[#allocation3 + $0x658] sm:$0xff]
          %v522 = vld [vmem:[#allocation3 + $0x660] sm:$0xff]
          %v523 = vld [vmem:[#allocation3 + $0x668] sm:$0xff]
          %v524 = vld [vmem:[#allocation3 + $0x670] sm:$0xff]
          %v525 = vld [vmem:[#allocation3 + $0x678] sm:$0xff]
          %v526 = vld [vmem:[#allocation3 + $0x680] sm:$0xff]
          %v527 = vld [vmem:[#allocation3 + $0x688] sm:$0xff]
          %v528 = vld [vmem:[#allocation3 + $0x690] sm:$0xff]
          %v529 = vld [vmem:[#allocation3 + $0x698] sm:$0xff]
          %v530 = vld [vmem:[#allocation3 + $0x6a0] sm:$0xff]
          %v531 = vld [vmem:[#allocation3 + $0x6a8] sm:$0xff]
          %v532 = vld [vmem:[#allocation3 + $0x6b0] sm:$0xff]
          %v533 = vld [vmem:[#allocation3 + $0x6b8] sm:$0xff]
          %v534 = vld [vmem:[#allocation3 + $0x6c0] sm:$0xff]
          %v535 = vld [vmem:[#allocation3 + $0x6c8] sm:$0xff]
          %v536 = vld [vmem:[#allocation3 + $0x6d0] sm:$0xff]
          %v537 = vld [vmem:[#allocation3 + $0x6d8] sm:$0xff]
          %v538 = vld [vmem:[#allocation3 + $0x6e0] sm:$0xff]
          %v539 = vld [vmem:[#allocation3 + $0x6e8] sm:$0xff]
          %v540 = vld [vmem:[#allocation3 + $0x6f0] sm:$0xff]
          %v541 = vld [vmem:[#allocation3 + $0x6f8] sm:$0xff]
          %v542 = vld [vmem:[#allocation3 + $0x700] sm:$0xff]
          %v543 = vld [vmem:[#allocation3 + $0x708] sm:$0xff]
          %v544 = vld [vmem:[#allocation3 + $0x710] sm:$0xff]
          %v545 = vld [vmem:[#allocation3 + $0x718] sm:$0xff]
          %v546 = vld [vmem:[#allocation3 + $0x720] sm:$0xff]
          %v547 = vld [vmem:[#allocation3 + $0x728] sm:$0xff]
          %v548 = vld [vmem:[#allocation3 + $0x730] sm:$0xff]
          %v549 = vld [vmem:[#allocation3 + $0x738] sm:$0xff]
          %v550 = vld [vmem:[#allocation3 + $0x740] sm:$0xff]
          %v551 = vld [vmem:[#allocation3 + $0x748] sm:$0xff]
          %v552 = vld [vmem:[#allocation3 + $0x750] sm:$0xff]
          %v553 = vld [vmem:[#allocation3 + $0x758] sm:$0xff]
          %v554 = vld [vmem:[#allocation3 + $0x760] sm:$0xff]
          %v555 = vld [vmem:[#allocation3 + $0x768] sm:$0xff]
          %v556 = vld [vmem:[#allocation3 + $0x770] sm:$0xff]
          %v557 = vld [vmem:[#allocation3 + $0x778] sm:$0xff]
          %v558 = vld [vmem:[#allocation3 + $0x780] sm:$0xff]
          %v559 = vld [vmem:[#allocation3 + $0x788] sm:$0xff]
          %v560 = vld [vmem:[#allocation3 + $0x790] sm:$0xff]
          %v561 = vld [vmem:[#allocation3 + $0x798] sm:$0xff]
          %v562 = vld [vmem:[#allocation3 + $0x7a0] sm:$0xff]
          %v563 = vld [vmem:[#allocation3 + $0x7a8] sm:$0xff]
          %v564 = vld [vmem:[#allocation3 + $0x7b0] sm:$0xff]
          %v565 = vld [vmem:[#allocation3 + $0x7b8] sm:$0xff]
          %v566 = vld [vmem:[#allocation3 + $0x7c0] sm:$0xff]
          %v567 = vld [vmem:[#allocation3 + $0x7c8] sm:$0xff]
          %v568 = vld [vmem:[#allocation3 + $0x7d0] sm:$0xff]
          %v569 = vld [vmem:[#allocation3 + $0x7d8] sm:$0xff]
          %v570 = vld [vmem:[#allocation3 + $0x7e0] sm:$0xff]
          %v571 = vld [vmem:[#allocation3 + $0x7e8] sm:$0xff]
          %v572 = vld [vmem:[#allocation3 + $0x7f0] sm:$0xff]
          %v573 = vld [vmem:[#allocation3 + $0x7f8] sm:$0xff]
          %v576 = vunpack.c.l.b16 %v316
          %v577 = vunpack.c.h.b16 %v316
          %v578 = vunpack.c.l.b16 %v317
          %v579 = vunpack.c.h.b16 %v317
          %v580 = vpack.c.b16 %v576, %v576
          %v581 = vpack.c.b16 %v577, %v577
          %v582 = vpack.c.b16 %v578, %v578
          %v583 = vpack.c.b16 %v579, %v579
          %v844 = vunpack.c.l.b16 %v318
          %v845 = vunpack.c.h.b16 %v318
          %v846 = vunpack.c.l.b16 %v319
          %v847 = vunpack.c.h.b16 %v319
          %v848 = vunpack.c.l.b16 %v320
          %v849 = vunpack.c.h.b16 %v320
          %v850 = vunpack.c.l.b16 %v321
          %v851 = vunpack.c.h.b16 %v321
          %v852 = vunpack.c.l.b16 %v322
          %v853 = vunpack.c.h.b16 %v322
          %v854 = vunpack.c.l.b16 %v323
          %v855 = vunpack.c.h.b16 %v323
          %v856 = vunpack.c.l.b16 %v324
          %v857 = vunpack.c.h.b16 %v324
          %v858 = vunpack.c.l.b16 %v325
          %v859 = vunpack.c.h.b16 %v325
          %v860 = vunpack.c.l.b16 %v326
          %v861 = vunpack.c.h.b16 %v326
          %v862 = vunpack.c.l.b16 %v327
          %v863 = vunpack.c.h.b16 %v327
          %v864 = vunpack.c.l.b16 %v328
          %v865 = vunpack.c.h.b16 %v328
          %v866 = vunpack.c.l.b16 %v329
          %v867 = vunpack.c.h.b16 %v329
          %v868 = vunpack.c.l.b16 %v330
          %v869 = vunpack.c.h.b16 %v330
          %v870 = vunpack.c.l.b16 %v331
          %v871 = vunpack.c.h.b16 %v331
          %v872 = vunpack.c.l.b16 %v332
          %v873 = vunpack.c.h.b16 %v332
          %v874 = vunpack.c.l.b16 %v333
          %v875 = vunpack.c.h.b16 %v333
          %v876 = vunpack.c.l.b16 %v334
          %v877 = vunpack.c.h.b16 %v334
          %v878 = vunpack.c.l.b16 %v335
          %v879 = vunpack.c.h.b16 %v335
          %v880 = vunpack.c.l.b16 %v336
          %v881 = vunpack.c.h.b16 %v336
          %v882 = vunpack.c.l.b16 %v337
          %v883 = vunpack.c.h.b16 %v337
          %v884 = vunpack.c.l.b16 %v338
          %v885 = vunpack.c.h.b16 %v338
          %v886 = vunpack.c.l.b16 %v339
          %v887 = vunpack.c.h.b16 %v339
          %v888 = vunpack.c.l.b16 %v340
          %v889 = vunpack.c.h.b16 %v340
          %v890 = vunpack.c.l.b16 %v341
          %v891 = vunpack.c.h.b16 %v341
          %v892 = vunpack.c.l.b16 %v342
          %v893 = vunpack.c.h.b16 %v342
          %v894 = vunpack.c.l.b16 %v343
          %v895 = vunpack.c.h.b16 %v343
          %v896 = vunpack.c.l.b16 %v344
          %v897 = vunpack.c.h.b16 %v344
          %v898 = vunpack.c.l.b16 %v345
          %v899 = vunpack.c.h.b16 %v345
          %v900 = vunpack.c.l.b16 %v346
          %v901 = vunpack.c.h.b16 %v346
          %v902 = vunpack.c.l.b16 %v347
          %v903 = vunpack.c.h.b16 %v347
          %v904 = vunpack.c.l.b16 %v348
          %v905 = vunpack.c.h.b16 %v348
          %v906 = vunpack.c.l.b16 %v349
          %v907 = vunpack.c.h.b16 %v349
          %v908 = vunpack.c.l.b16 %v350
          %v909 = vunpack.c.h.b16 %v350
          %v910 = vunpack.c.l.b16 %v351
          %v911 = vunpack.c.h.b16 %v351
          %v912 = vunpack.c.l.b16 %v352
          %v913 = vunpack.c.h.b16 %v352
          %v914 = vunpack.c.l.b16 %v353
          %v915 = vunpack.c.h.b16 %v353
          %v916 = vunpack.c.l.b16 %v354
          %v917 = vunpack.c.h.b16 %v354
          %v918 = vunpack.c.l.b16 %v355
          %v919 = vunpack.c.h.b16 %v355
          %v920 = vunpack.c.l.b16 %v356
          %v921 = vunpack.c.h.b16 %v356
          %v922 = vunpack.c.l.b16 %v357
          %v923 = vunpack.c.h.b16 %v357
          %v924 = vunpack.c.l.b16 %v358
          %v925 = vunpack.c.h.b16 %v358
          %v926 = vunpack.c.l.b16 %v359
          %v927 = vunpack.c.h.b16 %v359
          %v928 = vunpack.c.l.b16 %v360
          %v929 = vunpack.c.h.b16 %v360
          %v930 = vunpack.c.l.b16 %v361
          %v931 = vunpack.c.h.b16 %v361
          %v932 = vunpack.c.l.b16 %v362
          %v933 = vunpack.c.h.b16 %v362
          %v934 = vunpack.c.l.b16 %v363
          %v935 = vunpack.c.h.b16 %v363
          %v936 = vunpack.c.l.b16 %v364
          %v937 = vunpack.c.h.b16 %v364
          %v938 = vunpack.c.l.b16 %v365
          %v939 = vunpack.c.h.b16 %v365
          %v940 = vunpack.c.l.b16 %v366
          %v941 = vunpack.c.h.b16 %v366
          %v942 = vunpack.c.l.b16 %v367
          %v943 = vunpack.c.h.b16 %v367
          %v944 = vunpack.c.l.b16 %v368
          %v945 = vunpack.c.h.b16 %v368
          %v946 = vunpack.c.l.b16 %v369
          %v947 = vunpack.c.h.b16 %v369
          %v948 = vunpack.c.l.b16 %v370
          %v949 = vunpack.c.h.b16 %v370
          %v950 = vunpack.c.l.b16 %v371
          %v951 = vunpack.c.h.b16 %v371
          %v952 = vunpack.c.l.b16 %v372
          %v953 = vunpack.c.h.b16 %v372
          %v954 = vunpack.c.l.b16 %v373
          %v955 = vunpack.c.h.b16 %v373
          %v956 = vunpack.c.l.b16 %v374
          %v957 = vunpack.c.h.b16 %v374
          %v958 = vunpack.c.l.b16 %v375
          %v959 = vunpack.c.h.b16 %v375
          %v960 = vunpack.c.l.b16 %v376
          %v961 = vunpack.c.h.b16 %v376
          %v962 = vunpack.c.l.b16 %v377
          %v963 = vunpack.c.h.b16 %v377
          %v964 = vunpack.c.l.b16 %v378
          %v965 = vunpack.c.h.b16 %v378
          %v966 = vunpack.c.l.b16 %v379
          %v967 = vunpack.c.h.b16 %v379
          %v968 = vunpack.c.l.b16 %v380
          %v969 = vunpack.c.h.b16 %v380
          %v970 = vunpack.c.l.b16 %v381
          %v971 = vunpack.c.h.b16 %v381
          %v972 = vunpack.c.l.b16 %v382
          %v973 = vunpack.c.h.b16 %v382
          %v974 = vunpack.c.l.b16 %v383
          %v975 = vunpack.c.h.b16 %v383
          %v976 = vunpack.c.l.b16 %v384
          %v977 = vunpack.c.h.b16 %v384
          %v978 = vunpack.c.l.b16 %v385
          %v979 = vunpack.c.h.b16 %v385
          %v980 = vunpack.c.l.b16 %v386
          %v981 = vunpack.c.h.b16 %v386
          %v982 = vunpack.c.l.b16 %v387
          %v983 = vunpack.c.h.b16 %v387
          %v984 = vunpack.c.l.b16 %v388
          %v985 = vunpack.c.h.b16 %v388
          %v986 = vunpack.c.l.b16 %v389
          %v987 = vunpack.c.h.b16 %v389
          %v988 = vunpack.c.l.b16 %v390
          %v989 = vunpack.c.h.b16 %v390
          %v990 = vunpack.c.l.b16 %v391
          %v991 = vunpack.c.h.b16 %v391
          %v992 = vunpack.c.l.b16 %v392
          %v993 = vunpack.c.h.b16 %v392
          %v994 = vunpack.c.l.b16 %v393
          %v995 = vunpack.c.h.b16 %v393
          %v996 = vunpack.c.l.b16 %v394
          %v997 = vunpack.c.h.b16 %v394
          %v998 = vunpack.c.l.b16 %v395
          %v999 = vunpack.c.h.b16 %v395
          %v1000 = vunpack.c.l.b16 %v396
          %v1001 = vunpack.c.h.b16 %v396
          %v1002 = vunpack.c.l.b16 %v397
          %v1003 = vunpack.c.h.b16 %v397
          %v1004 = vunpack.c.l.b16 %v398
          %v1005 = vunpack.c.h.b16 %v398
          %v1006 = vunpack.c.l.b16 %v399
          %v1007 = vunpack.c.h.b16 %v399
          %v1008 = vunpack.c.l.b16 %v400
          %v1009 = vunpack.c.h.b16 %v400
          %v1010 = vunpack.c.l.b16 %v401
          %v1011 = vunpack.c.h.b16 %v401
          %v1012 = vunpack.c.l.b16 %v402
          %v1013 = vunpack.c.h.b16 %v402
          %v1014 = vunpack.c.l.b16 %v403
          %v1015 = vunpack.c.h.b16 %v403
          %v1016 = vunpack.c.l.b16 %v404
          %v1017 = vunpack.c.h.b16 %v404
          %v1018 = vunpack.c.l.b16 %v405
          %v1019 = vunpack.c.h.b16 %v405
          %v1020 = vunpack.c.l.b16 %v406
          %v1021 = vunpack.c.h.b16 %v406
          %v1022 = vunpack.c.l.b16 %v407
          %v1023 = vunpack.c.h.b16 %v407
          %v1024 = vunpack.c.l.b16 %v408
          %v1025 = vunpack.c.h.b16 %v408
          %v1026 = vunpack.c.l.b16 %v409
          %v1027 = vunpack.c.h.b16 %v409
          %v1028 = vunpack.c.l.b16 %v410
          %v1029 = vunpack.c.h.b16 %v410
          %v1030 = vunpack.c.l.b16 %v411
          %v1031 = vunpack.c.h.b16 %v411
          %v1032 = vunpack.c.l.b16 %v412
          %v1033 = vunpack.c.h.b16 %v412
          %v1034 = vunpack.c.l.b16 %v413
          %v1035 = vunpack.c.h.b16 %v413
          %v1036 = vunpack.c.l.b16 %v414
          %v1037 = vunpack.c.h.b16 %v414
          %v1038 = vunpack.c.l.b16 %v415
          %v1039 = vunpack.c.h.b16 %v415
          %v1040 = vunpack.c.l.b16 %v416
          %v1041 = vunpack.c.h.b16 %v416
          %v1042 = vunpack.c.l.b16 %v417
          %v1043 = vunpack.c.h.b16 %v417
          %v1044 = vunpack.c.l.b16 %v418
          %v1045 = vunpack.c.h.b16 %v418
          %v1046 = vunpack.c.l.b16 %v419
          %v1047 = vunpack.c.h.b16 %v419
          %v1048 = vunpack.c.l.b16 %v420
          %v1049 = vunpack.c.h.b16 %v420
          %v1050 = vunpack.c.l.b16 %v421
          %v1051 = vunpack.c.h.b16 %v421
          %v1052 = vunpack.c.l.b16 %v422
          %v1053 = vunpack.c.h.b16 %v422
          %v1054 = vunpack.c.l.b16 %v423
          %v1055 = vunpack.c.h.b16 %v423
          %v1056 = vunpack.c.l.b16 %v424
          %v1057 = vunpack.c.h.b16 %v424
          %v1058 = vunpack.c.l.b16 %v425
          %v1059 = vunpack.c.h.b16 %v425
          %v1060 = vunpack.c.l.b16 %v426
          %v1061 = vunpack.c.h.b16 %v426
          %v1062 = vunpack.c.l.b16 %v427
          %v1063 = vunpack.c.h.b16 %v427
          %v1064 = vunpack.c.l.b16 %v428
          %v1065 = vunpack.c.h.b16 %v428
          %v1066 = vunpack.c.l.b16 %v429
          %v1067 = vunpack.c.h.b16 %v429
          %v1068 = vunpack.c.l.b16 %v430
          %v1069 = vunpack.c.h.b16 %v430
          %v1070 = vunpack.c.l.b16 %v431
          %v1071 = vunpack.c.h.b16 %v431
          %v1072 = vunpack.c.l.b16 %v432
          %v1073 = vunpack.c.h.b16 %v432
          %v1074 = vunpack.c.l.b16 %v433
          %v1075 = vunpack.c.h.b16 %v433
          %v1076 = vunpack.c.l.b16 %v434
          %v1077 = vunpack.c.h.b16 %v434
          %v1078 = vunpack.c.l.b16 %v435
          %v1079 = vunpack.c.h.b16 %v435
          %v1080 = vunpack.c.l.b16 %v436
          %v1081 = vunpack.c.h.b16 %v436
          %v1082 = vunpack.c.l.b16 %v437
          %v1083 = vunpack.c.h.b16 %v437
          %v1084 = vunpack.c.l.b16 %v438
          %v1085 = vunpack.c.h.b16 %v438
          %v1086 = vunpack.c.l.b16 %v439
          %v1087 = vunpack.c.h.b16 %v439
          %v1088 = vunpack.c.l.b16 %v440
          %v1089 = vunpack.c.h.b16 %v440
          %v1090 = vunpack.c.l.b16 %v441
          %v1091 = vunpack.c.h.b16 %v441
          %v1092 = vunpack.c.l.b16 %v442
          %v1093 = vunpack.c.h.b16 %v442
          %v1094 = vunpack.c.l.b16 %v443
          %v1095 = vunpack.c.h.b16 %v443
          %v1096 = vunpack.c.l.b16 %v444
          %v1097 = vunpack.c.h.b16 %v444
          %v1098 = vunpack.c.l.b16 %v445
          %v1099 = vunpack.c.h.b16 %v445
          %v1100 = vunpack.c.l.b16 %v446
          %v1101 = vunpack.c.h.b16 %v446
          %v1102 = vunpack.c.l.b16 %v447
          %v1103 = vunpack.c.h.b16 %v447
          %v1104 = vunpack.c.l.b16 %v448
          %v1105 = vunpack.c.h.b16 %v448
          %v1106 = vunpack.c.l.b16 %v449
          %v1107 = vunpack.c.h.b16 %v449
          %v1108 = vunpack.c.l.b16 %v450
          %v1109 = vunpack.c.h.b16 %v450
          %v1110 = vunpack.c.l.b16 %v451
          %v1111 = vunpack.c.h.b16 %v451
          %v1112 = vunpack.c.l.b16 %v452
          %v1113 = vunpack.c.h.b16 %v452
          %v1114 = vunpack.c.l.b16 %v453
          %v1115 = vunpack.c.h.b16 %v453
          %v1116 = vunpack.c.l.b16 %v454
          %v1117 = vunpack.c.h.b16 %v454
          %v1118 = vunpack.c.l.b16 %v455
          %v1119 = vunpack.c.h.b16 %v455
          %v1120 = vunpack.c.l.b16 %v456
          %v1121 = vunpack.c.h.b16 %v456
          %v1122 = vunpack.c.l.b16 %v457
          %v1123 = vunpack.c.h.b16 %v457
          %v1124 = vunpack.c.l.b16 %v458
          %v1125 = vunpack.c.h.b16 %v458
          %v1126 = vunpack.c.l.b16 %v459
          %v1127 = vunpack.c.h.b16 %v459
          %v1128 = vunpack.c.l.b16 %v460
          %v1129 = vunpack.c.h.b16 %v460
          %v1130 = vunpack.c.l.b16 %v461
          %v1131 = vunpack.c.h.b16 %v461
          %v1132 = vunpack.c.l.b16 %v462
          %v1133 = vunpack.c.h.b16 %v462
          %v1134 = vunpack.c.l.b16 %v463
          %v1135 = vunpack.c.h.b16 %v463
          %v1136 = vunpack.c.l.b16 %v464
          %v1137 = vunpack.c.h.b16 %v464
          %v1138 = vunpack.c.l.b16 %v465
          %v1139 = vunpack.c.h.b16 %v465
          %v1140 = vunpack.c.l.b16 %v466
          %v1141 = vunpack.c.h.b16 %v466
          %v1142 = vunpack.c.l.b16 %v467
          %v1143 = vunpack.c.h.b16 %v467
          %v1144 = vunpack.c.l.b16 %v468
          %v1145 = vunpack.c.h.b16 %v468
          %v1146 = vunpack.c.l.b16 %v469
          %v1147 = vunpack.c.h.b16 %v469
          %v1148 = vunpack.c.l.b16 %v470
          %v1149 = vunpack.c.h.b16 %v470
          %v1150 = vunpack.c.l.b16 %v471
          %v1151 = vunpack.c.h.b16 %v471
          %v1152 = vunpack.c.l.b16 %v472
          %v1153 = vunpack.c.h.b16 %v472
          %v1154 = vunpack.c.l.b16 %v473
          %v1155 = vunpack.c.h.b16 %v473
          %v1156 = vunpack.c.l.b16 %v474
          %v1157 = vunpack.c.h.b16 %v474
          %v1158 = vunpack.c.l.b16 %v475
          %v1159 = vunpack.c.h.b16 %v475
          %v1160 = vunpack.c.l.b16 %v476
          %v1161 = vunpack.c.h.b16 %v476
          %v1162 = vunpack.c.l.b16 %v477
          %v1163 = vunpack.c.h.b16 %v477
          %v1164 = vunpack.c.l.b16 %v478
          %v1165 = vunpack.c.h.b16 %v478
          %v1166 = vunpack.c.l.b16 %v479
          %v1167 = vunpack.c.h.b16 %v479
          %v1168 = vunpack.c.l.b16 %v480
          %v1169 = vunpack.c.h.b16 %v480
          %v1170 = vunpack.c.l.b16 %v481
          %v1171 = vunpack.c.h.b16 %v481
          %v1172 = vunpack.c.l.b16 %v482
          %v1173 = vunpack.c.h.b16 %v482
          %v1174 = vunpack.c.l.b16 %v483
          %v1175 = vunpack.c.h.b16 %v483
          %v1176 = vunpack.c.l.b16 %v484
          %v1177 = vunpack.c.h.b16 %v484
          %v1178 = vunpack.c.l.b16 %v485
          %v1179 = vunpack.c.h.b16 %v485
          %v1180 = vunpack.c.l.b16 %v486
          %v1181 = vunpack.c.h.b16 %v486
          %v1182 = vunpack.c.l.b16 %v487
          %v1183 = vunpack.c.h.b16 %v487
          %v1184 = vunpack.c.l.b16 %v488
          %v1185 = vunpack.c.h.b16 %v488
          %v1186 = vunpack.c.l.b16 %v489
          %v1187 = vunpack.c.h.b16 %v489
          %v1188 = vunpack.c.l.b16 %v490
          %v1189 = vunpack.c.h.b16 %v490
          %v1190 = vunpack.c.l.b16 %v491
          %v1191 = vunpack.c.h.b16 %v491
          %v1192 = vunpack.c.l.b16 %v492
          %v1193 = vunpack.c.h.b16 %v492
          %v1194 = vunpack.c.l.b16 %v493
          %v1195 = vunpack.c.h.b16 %v493
          %v1196 = vunpack.c.l.b16 %v494
          %v1197 = vunpack.c.h.b16 %v494
          %v1198 = vunpack.c.l.b16 %v495
          %v1199 = vunpack.c.h.b16 %v495
          %v1200 = vunpack.c.l.b16 %v496
          %v1201 = vunpack.c.h.b16 %v496
          %v1202 = vunpack.c.l.b16 %v497
          %v1203 = vunpack.c.h.b16 %v497
          %v1204 = vunpack.c.l.b16 %v498
          %v1205 = vunpack.c.h.b16 %v498
          %v1206 = vunpack.c.l.b16 %v499
          %v1207 = vunpack.c.h.b16 %v499
          %v1208 = vunpack.c.l.b16 %v500
          %v1209 = vunpack.c.h.b16 %v500
          %v1210 = vunpack.c.l.b16 %v501
          %v1211 = vunpack.c.h.b16 %v501
          %v1212 = vunpack.c.l.b16 %v502
          %v1213 = vunpack.c.h.b16 %v502
          %v1214 = vunpack.c.l.b16 %v503
          %v1215 = vunpack.c.h.b16 %v503
          %v1216 = vunpack.c.l.b16 %v504
          %v1217 = vunpack.c.h.b16 %v504
          %v1218 = vunpack.c.l.b16 %v505
          %v1219 = vunpack.c.h.b16 %v505
          %v1220 = vunpack.c.l.b16 %v506
          %v1221 = vunpack.c.h.b16 %v506
          %v1222 = vunpack.c.l.b16 %v507
          %v1223 = vunpack.c.h.b16 %v507
          %v1224 = vunpack.c.l.b16 %v508
          %v1225 = vunpack.c.h.b16 %v508
          %v1226 = vunpack.c.l.b16 %v509
          %v1227 = vunpack.c.h.b16 %v509
          %v1228 = vunpack.c.l.b16 %v510
          %v1229 = vunpack.c.h.b16 %v510
          %v1230 = vunpack.c.l.b16 %v511
          %v1231 = vunpack.c.h.b16 %v511
          %v1232 = vunpack.c.l.b16 %v512
          %v1233 = vunpack.c.h.b16 %v512
          %v1234 = vunpack.c.l.b16 %v513
          %v1235 = vunpack.c.h.b16 %v513
          %v1236 = vunpack.c.l.b16 %v514
          %v1237 = vunpack.c.h.b16 %v514
          %v1238 = vunpack.c.l.b16 %v515
          %v1239 = vunpack.c.h.b16 %v515
          %v1240 = vunpack.c.l.b16 %v516
          %v1241 = vunpack.c.h.b16 %v516
          %v1242 = vunpack.c.l.b16 %v517
          %v1243 = vunpack.c.h.b16 %v517
          %v1244 = vunpack.c.l.b16 %v518
          %v1245 = vunpack.c.h.b16 %v518
          %v1246 = vunpack.c.l.b16 %v519
          %v1247 = vunpack.c.h.b16 %v519
          %v1248 = vunpack.c.l.b16 %v520
          %v1249 = vunpack.c.h.b16 %v520
          %v1250 = vunpack.c.l.b16 %v521
          %v1251 = vunpack.c.h.b16 %v521
          %v1252 = vunpack.c.l.b16 %v522
          %v1253 = vunpack.c.h.b16 %v522
          %v1254 = vunpack.c.l.b16 %v523
          %v1255 = vunpack.c.h.b16 %v523
          %v1256 = vunpack.c.l.b16 %v524
          %v1257 = vunpack.c.h.b16 %v524
          %v1258 = vunpack.c.l.b16 %v525
          %v1259 = vunpack.c.h.b16 %v525
          %v1260 = vunpack.c.l.b16 %v526
          %v1261 = vunpack.c.h.b16 %v526
          %v1262 = vunpack.c.l.b16 %v527
          %v1263 = vunpack.c.h.b16 %v527
          %v1264 = vunpack.c.l.b16 %v528
          %v1265 = vunpack.c.h.b16 %v528
          %v1266 = vunpack.c.l.b16 %v529
          %v1267 = vunpack.c.h.b16 %v529
          %v1268 = vunpack.c.l.b16 %v530
          %v1269 = vunpack.c.h.b16 %v530
          %v1270 = vunpack.c.l.b16 %v531
          %v1271 = vunpack.c.h.b16 %v531
          %v1272 = vunpack.c.l.b16 %v532
          %v1273 = vunpack.c.h.b16 %v532
          %v1274 = vunpack.c.l.b16 %v533
          %v1275 = vunpack.c.h.b16 %v533
          %v1276 = vunpack.c.l.b16 %v534
          %v1277 = vunpack.c.h.b16 %v534
          %v1278 = vunpack.c.l.b16 %v535
          %v1279 = vunpack.c.h.b16 %v535
          %v1280 = vunpack.c.l.b16 %v536
          %v1281 = vunpack.c.h.b16 %v536
          %v1282 = vunpack.c.l.b16 %v537
          %v1283 = vunpack.c.h.b16 %v537
          %v1284 = vunpack.c.l.b16 %v538
          %v1285 = vunpack.c.h.b16 %v538
          %v1286 = vunpack.c.l.b16 %v539
          %v1287 = vunpack.c.h.b16 %v539
          %v1288 = vunpack.c.l.b16 %v540
          %v1289 = vunpack.c.h.b16 %v540
          %v1290 = vunpack.c.l.b16 %v541
          %v1291 = vunpack.c.h.b16 %v541
          %v1292 = vunpack.c.l.b16 %v542
          %v1293 = vunpack.c.h.b16 %v542
          %v1294 = vunpack.c.l.b16 %v543
          %v1295 = vunpack.c.h.b16 %v543
          %v1296 = vunpack.c.l.b16 %v544
          %v1297 = vunpack.c.h.b16 %v544
          %v1298 = vunpack.c.l.b16 %v545
          %v1299 = vunpack.c.h.b16 %v545
          %v1300 = vunpack.c.l.b16 %v546
          %v1301 = vunpack.c.h.b16 %v546
          %v1302 = vunpack.c.l.b16 %v547
          %v1303 = vunpack.c.h.b16 %v547
          %v1304 = vunpack.c.l.b16 %v548
          %v1305 = vunpack.c.h.b16 %v548
          %v1306 = vunpack.c.l.b16 %v549
          %v1307 = vunpack.c.h.b16 %v549
          %v1308 = vunpack.c.l.b16 %v550
          %v1309 = vunpack.c.h.b16 %v550
          %v1310 = vunpack.c.l.b16 %v551
          %v1311 = vunpack.c.h.b16 %v551
          %v1312 = vunpack.c.l.b16 %v552
          %v1313 = vunpack.c.h.b16 %v552
          %v1314 = vunpack.c.l.b16 %v553
          %v1315 = vunpack.c.h.b16 %v553
          %v1316 = vunpack.c.l.b16 %v554
          %v1317 = vunpack.c.h.b16 %v554
          %v1318 = vunpack.c.l.b16 %v555
          %v1319 = vunpack.c.h.b16 %v555
          %v1320 = vunpack.c.l.b16 %v556
          %v1321 = vunpack.c.h.b16 %v556
          %v1322 = vunpack.c.l.b16 %v557
          %v1323 = vunpack.c.h.b16 %v557
          %v1324 = vunpack.c.l.b16 %v558
          %v1325 = vunpack.c.h.b16 %v558
          %v1326 = vunpack.c.l.b16 %v559
          %v1327 = vunpack.c.h.b16 %v559
          %v1328 = vunpack.c.l.b16 %v560
          %v1329 = vunpack.c.h.b16 %v560
          %v1330 = vunpack.c.l.b16 %v561
          %v1331 = vunpack.c.h.b16 %v561
          %v1332 = vunpack.c.l.b16 %v562
          %v1333 = vunpack.c.h.b16 %v562
          %v1334 = vunpack.c.l.b16 %v563
          %v1335 = vunpack.c.h.b16 %v563
          %v1336 = vunpack.c.l.b16 %v564
          %v1337 = vunpack.c.h.b16 %v564
          %v1338 = vunpack.c.l.b16 %v565
          %v1339 = vunpack.c.h.b16 %v565
          %v1340 = vunpack.c.l.b16 %v566
          %v1341 = vunpack.c.h.b16 %v566
          %v1342 = vunpack.c.l.b16 %v567
          %v1343 = vunpack.c.h.b16 %v567
          %v1344 = vunpack.c.l.b16 %v568
          %v1345 = vunpack.c.h.b16 %v568
          %v1346 = vunpack.c.l.b16 %v569
          %v1347 = vunpack.c.h.b16 %v569
          %v1348 = vunpack.c.l.b16 %v570
          %v1349 = vunpack.c.h.b16 %v570
          %v1350 = vunpack.c.l.b16 %v571
          %v1351 = vunpack.c.h.b16 %v571
          %v1352 = vunpack.c.l.b16 %v572
          %v1353 = vunpack.c.h.b16 %v572
          %v1354 = vunpack.c.l.b16 %v573
          %v1355 = vunpack.c.h.b16 %v573
          %v1356 = vpack.c.b16 %v852, %v844
          %v1357 = vpack.c.b16 %v853, %v845
          %v1358 = vpack.c.b16 %v854, %v846
          %v1359 = vpack.c.b16 %v855, %v847
          %v1360 = vpack.c.b16 %v856, %v848
          %v1361 = vpack.c.b16 %v857, %v849
          %v1362 = vpack.c.b16 %v858, %v850
          %v1363 = vpack.c.b16 %v859, %v851
          %v1364 = vpack.c.b16 %v868, %v860
          %v1365 = vpack.c.b16 %v869, %v861
          %v1366 = vpack.c.b16 %v870, %v862
          %v1367 = vpack.c.b16 %v871, %v863
          %v1368 = vpack.c.b16 %v872, %v864
          %v1369 = vpack.c.b16 %v873, %v865
          %v1370 = vpack.c.b16 %v874, %v866
          %v1371 = vpack.c.b16 %v875, %v867
          %v1372 = vpack.c.b16 %v884, %v876
          %v1373 = vpack.c.b16 %v885, %v877
          %v1374 = vpack.c.b16 %v886, %v878
          %v1375 = vpack.c.b16 %v887, %v879
          %v1376 = vpack.c.b16 %v888, %v880
          %v1377 = vpack.c.b16 %v889, %v881
          %v1378 = vpack.c.b16 %v890, %v882
          %v1379 = vpack.c.b16 %v891, %v883
          %v1380 = vpack.c.b16 %v900, %v892
          %v1381 = vpack.c.b16 %v901, %v893
          %v1382 = vpack.c.b16 %v902, %v894
          %v1383 = vpack.c.b16 %v903, %v895
          %v1384 = vpack.c.b16 %v904, %v896
          %v1385 = vpack.c.b16 %v905, %v897
          %v1386 = vpack.c.b16 %v906, %v898
          %v1387 = vpack.c.b16 %v907, %v899
          %v1388 = vpack.c.b16 %v916, %v908
          %v1389 = vpack.c.b16 %v917, %v909
          %v1390 = vpack.c.b16 %v918, %v910
          %v1391 = vpack.c.b16 %v919, %v911
          %v1392 = vpack.c.b16 %v920, %v912
          %v1393 = vpack.c.b16 %v921, %v913
          %v1394 = vpack.c.b16 %v922, %v914
          %v1395 = vpack.c.b16 %v923, %v915
          %v1396 = vpack.c.b16 %v932, %v924
          %v1397 = vpack.c.b16 %v933, %v925
          %v1398 = vpack.c.b16 %v934, %v926
          %v1399 = vpack.c.b16 %v935, %v927
          %v1400 = vpack.c.b16 %v936, %v928
          %v1401 = vpack.c.b16 %v937, %v929
          %v1402 = vpack.c.b16 %v938, %v930
          %v1403 = vpack.c.b16 %v939, %v931
          %v1404 = vpack.c.b16 %v948, %v940
          %v1405 = vpack.c.b16 %v949, %v941
          %v1406 = vpack.c.b16 %v950, %v942
          %v1407 = vpack.c.b16 %v951, %v943
          %v1408 = vpack.c.b16 %v952, %v944
          %v1409 = vpack.c.b16 %v953, %v945
          %v1410 = vpack.c.b16 %v954, %v946
          %v1411 = vpack.c.b16 %v955, %v947
          %v1412 = vpack.c.b16 %v964, %v956
          %v1413 = vpack.c.b16 %v965, %v957
          %v1414 = vpack.c.b16 %v966, %v958
          %v1415 = vpack.c.b16 %v967, %v959
          %v1416 = vpack.c.b16 %v968, %v960
          %v1417 = vpack.c.b16 %v969, %v961
          %v1418 = vpack.c.b16 %v970, %v962
          %v1419 = vpack.c.b16 %v971, %v963
          %v1420 = vpack.c.b16 %v980, %v972
          %v1421 = vpack.c.b16 %v981, %v973
          %v1422 = vpack.c.b16 %v982, %v974
          %v1423 = vpack.c.b16 %v983, %v975
          %v1424 = vpack.c.b16 %v984, %v976
          %v1425 = vpack.c.b16 %v985, %v977
          %v1426 = vpack.c.b16 %v986, %v978
          %v1427 = vpack.c.b16 %v987, %v979
          %v1428 = vpack.c.b16 %v996, %v988
          %v1429 = vpack.c.b16 %v997, %v989
          %v1430 = vpack.c.b16 %v998, %v990
          %v1431 = vpack.c.b16 %v999, %v991
          %v1432 = vpack.c.b16 %v1000, %v992
          %v1433 = vpack.c.b16 %v1001, %v993
          %v1434 = vpack.c.b16 %v1002, %v994
          %v1435 = vpack.c.b16 %v1003, %v995
          %v1436 = vpack.c.b16 %v1012, %v1004
          %v1437 = vpack.c.b16 %v1013, %v1005
          %v1438 = vpack.c.b16 %v1014, %v1006
          %v1439 = vpack.c.b16 %v1015, %v1007
          %v1440 = vpack.c.b16 %v1016, %v1008
          %v1441 = vpack.c.b16 %v1017, %v1009
          %v1442 = vpack.c.b16 %v1018, %v1010
          %v1443 = vpack.c.b16 %v1019, %v1011
          %v1444 = vpack.c.b16 %v1028, %v1020
          %v1445 = vpack.c.b16 %v1029, %v1021
          %v1446 = vpack.c.b16 %v1030, %v1022
          %v1447 = vpack.c.b16 %v1031, %v1023
          %v1448 = vpack.c.b16 %v1032, %v1024
          %v1449 = vpack.c.b16 %v1033, %v1025
          %v1450 = vpack.c.b16 %v1034, %v1026
          %v1451 = vpack.c.b16 %v1035, %v1027
          %v1452 = vpack.c.b16 %v1044, %v1036
          %v1453 = vpack.c.b16 %v1045, %v1037
          %v1454 = vpack.c.b16 %v1046, %v1038
          %v1455 = vpack.c.b16 %v1047, %v1039
          %v1456 = vpack.c.b16 %v1048, %v1040
          %v1457 = vpack.c.b16 %v1049, %v1041
          %v1458 = vpack.c.b16 %v1050, %v1042
          %v1459 = vpack.c.b16 %v1051, %v1043
          %v1460 = vpack.c.b16 %v1060, %v1052
          %v1461 = vpack.c.b16 %v1061, %v1053
          %v1462 = vpack.c.b16 %v1062, %v1054
          %v1463 = vpack.c.b16 %v1063, %v1055
          %v1464 = vpack.c.b16 %v1064, %v1056
          %v1465 = vpack.c.b16 %v1065, %v1057
          %v1466 = vpack.c.b16 %v1066, %v1058
          %v1467 = vpack.c.b16 %v1067, %v1059
          %v1468 = vpack.c.b16 %v1076, %v1068
          %v1469 = vpack.c.b16 %v1077, %v1069
          %v1470 = vpack.c.b16 %v1078, %v1070
          %v1471 = vpack.c.b16 %v1079, %v1071
          %v1472 = vpack.c.b16 %v1080, %v1072
          %v1473 = vpack.c.b16 %v1081, %v1073
          %v1474 = vpack.c.b16 %v1082, %v1074
          %v1475 = vpack.c.b16 %v1083, %v1075
          %v1476 = vpack.c.b16 %v1092, %v1084
          %v1477 = vpack.c.b16 %v1093, %v1085
          %v1478 = vpack.c.b16 %v1094, %v1086
          %v1479 = vpack.c.b16 %v1095, %v1087
          %v1480 = vpack.c.b16 %v1096, %v1088
          %v1481 = vpack.c.b16 %v1097, %v1089
          %v1482 = vpack.c.b16 %v1098, %v1090
          %v1483 = vpack.c.b16 %v1099, %v1091
          %v1484 = vpack.c.b16 %v1108, %v1100
          %v1485 = vpack.c.b16 %v1109, %v1101
          %v1486 = vpack.c.b16 %v1110, %v1102
          %v1487 = vpack.c.b16 %v1111, %v1103
          %v1488 = vpack.c.b16 %v1112, %v1104
          %v1489 = vpack.c.b16 %v1113, %v1105
          %v1490 = vpack.c.b16 %v1114, %v1106
          %v1491 = vpack.c.b16 %v1115, %v1107
          %v1492 = vpack.c.b16 %v1124, %v1116
          %v1493 = vpack.c.b16 %v1125, %v1117
          %v1494 = vpack.c.b16 %v1126, %v1118
          %v1495 = vpack.c.b16 %v1127, %v1119
          %v1496 = vpack.c.b16 %v1128, %v1120
          %v1497 = vpack.c.b16 %v1129, %v1121
          %v1498 = vpack.c.b16 %v1130, %v1122
          %v1499 = vpack.c.b16 %v1131, %v1123
          %v1500 = vpack.c.b16 %v1140, %v1132
          %v1501 = vpack.c.b16 %v1141, %v1133
          %v1502 = vpack.c.b16 %v1142, %v1134
          %v1503 = vpack.c.b16 %v1143, %v1135
          %v1504 = vpack.c.b16 %v1144, %v1136
          %v1505 = vpack.c.b16 %v1145, %v1137
          %v1506 = vpack.c.b16 %v1146, %v1138
          %v1507 = vpack.c.b16 %v1147, %v1139
          %v1508 = vpack.c.b16 %v1156, %v1148
          %v1509 = vpack.c.b16 %v1157, %v1149
          %v1510 = vpack.c.b16 %v1158, %v1150
          %v1511 = vpack.c.b16 %v1159, %v1151
          %v1512 = vpack.c.b16 %v1160, %v1152
          %v1513 = vpack.c.b16 %v1161, %v1153
          %v1514 = vpack.c.b16 %v1162, %v1154
          %v1515 = vpack.c.b16 %v1163, %v1155
          %v1516 = vpack.c.b16 %v1172, %v1164
          %v1517 = vpack.c.b16 %v1173, %v1165
          %v1518 = vpack.c.b16 %v1174, %v1166
          %v1519 = vpack.c.b16 %v1175, %v1167
          %v1520 = vpack.c.b16 %v1176, %v1168
          %v1521 = vpack.c.b16 %v1177, %v1169
          %v1522 = vpack.c.b16 %v1178, %v1170
          %v1523 = vpack.c.b16 %v1179, %v1171
          %v1524 = vpack.c.b16 %v1188, %v1180
          %v1525 = vpack.c.b16 %v1189, %v1181
          %v1526 = vpack.c.b16 %v1190, %v1182
          %v1527 = vpack.c.b16 %v1191, %v1183
          %v1528 = vpack.c.b16 %v1192, %v1184
          %v1529 = vpack.c.b16 %v1193, %v1185
          %v1530 = vpack.c.b16 %v1194, %v1186
          %v1531 = vpack.c.b16 %v1195, %v1187
          %v1532 = vpack.c.b16 %v1204, %v1196
          %v1533 = vpack.c.b16 %v1205, %v1197
          %v1534 = vpack.c.b16 %v1206, %v1198
          %v1535 = vpack.c.b16 %v1207, %v1199
          %v1536 = vpack.c.b16 %v1208, %v1200
          %v1537 = vpack.c.b16 %v1209, %v1201
          %v1538 = vpack.c.b16 %v1210, %v1202
          %v1539 = vpack.c.b16 %v1211, %v1203
          %v1540 = vpack.c.b16 %v1220, %v1212
          %v1541 = vpack.c.b16 %v1221, %v1213
          %v1542 = vpack.c.b16 %v1222, %v1214
          %v1543 = vpack.c.b16 %v1223, %v1215
          %v1544 = vpack.c.b16 %v1224, %v1216
          %v1545 = vpack.c.b16 %v1225, %v1217
          %v1546 = vpack.c.b16 %v1226, %v1218
          %v1547 = vpack.c.b16 %v1227, %v1219
          %v1548 = vpack.c.b16 %v1236, %v1228
          %v1549 = vpack.c.b16 %v1237, %v1229
          %v1550 = vpack.c.b16 %v1238, %v1230
          %v1551 = vpack.c.b16 %v1239, %v1231
          %v1552 = vpack.c.b16 %v1240, %v1232
          %v1553 = vpack.c.b16 %v1241, %v1233
          %v1554 = vpack.c.b16 %v1242, %v1234
          %v1555 = vpack.c.b16 %v1243, %v1235
          %v1556 = vpack.c.b16 %v1252, %v1244
          %v1557 = vpack.c.b16 %v1253, %v1245
          %v1558 = vpack.c.b16 %v1254, %v1246
          %v1559 = vpack.c.b16 %v1255, %v1247
          %v1560 = vpack.c.b16 %v1256, %v1248
          %v1561 = vpack.c.b16 %v1257, %v1249
          %v1562 = vpack.c.b16 %v1258, %v1250
          %v1563 = vpack.c.b16 %v1259, %v1251
          %v1564 = vpack.c.b16 %v1268, %v1260
          %v1565 = vpack.c.b16 %v1269, %v1261
          %v1566 = vpack.c.b16 %v1270, %v1262
          %v1567 = vpack.c.b16 %v1271, %v1263
          %v1568 = vpack.c.b16 %v1272, %v1264
          %v1569 = vpack.c.b16 %v1273, %v1265
          %v1570 = vpack.c.b16 %v1274, %v1266
          %v1571 = vpack.c.b16 %v1275, %v1267
          %v1572 = vpack.c.b16 %v1284, %v1276
          %v1573 = vpack.c.b16 %v1285, %v1277
          %v1574 = vpack.c.b16 %v1286, %v1278
          %v1575 = vpack.c.b16 %v1287, %v1279
          %v1576 = vpack.c.b16 %v1288, %v1280
          %v1577 = vpack.c.b16 %v1289, %v1281
          %v1578 = vpack.c.b16 %v1290, %v1282
          %v1579 = vpack.c.b16 %v1291, %v1283
          %v1580 = vpack.c.b16 %v1300, %v1292
          %v1581 = vpack.c.b16 %v1301, %v1293
          %v1582 = vpack.c.b16 %v1302, %v1294
          %v1583 = vpack.c.b16 %v1303, %v1295
          %v1584 = vpack.c.b16 %v1304, %v1296
          %v1585 = vpack.c.b16 %v1305, %v1297
          %v1586 = vpack.c.b16 %v1306, %v1298
          %v1587 = vpack.c.b16 %v1307, %v1299
          %v1588 = vpack.c.b16 %v1316, %v1308
          %v1589 = vpack.c.b16 %v1317, %v1309
          %v1590 = vpack.c.b16 %v1318, %v1310
          %v1591 = vpack.c.b16 %v1319, %v1311
          %v1592 = vpack.c.b16 %v1320, %v1312
          %v1593 = vpack.c.b16 %v1321, %v1313
          %v1594 = vpack.c.b16 %v1322, %v1314
          %v1595 = vpack.c.b16 %v1323, %v1315
          %v1596 = vpack.c.b16 %v1332, %v1324
          %v1597 = vpack.c.b16 %v1333, %v1325
          %v1598 = vpack.c.b16 %v1334, %v1326
          %v1599 = vpack.c.b16 %v1335, %v1327
          %v1600 = vpack.c.b16 %v1336, %v1328
          %v1601 = vpack.c.b16 %v1337, %v1329
          %v1602 = vpack.c.b16 %v1338, %v1330
          %v1603 = vpack.c.b16 %v1339, %v1331
          %v1604 = vpack.c.b16 %v1348, %v1340
          %v1605 = vpack.c.b16 %v1349, %v1341
          %v1606 = vpack.c.b16 %v1350, %v1342
          %v1607 = vpack.c.b16 %v1351, %v1343
          %v1608 = vpack.c.b16 %v1352, %v1344
          %v1609 = vpack.c.b16 %v1353, %v1345
          %v1610 = vpack.c.b16 %v1354, %v1346
          %v1611 = vpack.c.b16 %v1355, %v1347
          %1868 = vmatprep.subr.bf16.mxu0 %v1357
          %1869 = vmatpush1.bf16.msra.mxu0 %v1356
          %1870 = vmatprep.subr.bf16.mxu0 %v1365
          %1871 = vmatpush1.bf16.msra.mxu0 %v1364
          %1872 = vmatprep.subr.bf16.mxu0 %v1373
          %1873 = vmatpush1.bf16.msra.mxu0 %v1372
          %1874 = vmatprep.subr.bf16.mxu0 %v1381
          %1875 = vmatpush1.bf16.msra.mxu0 %v1380
          %1876 = vmatprep.subr.bf16.mxu0 %v1389
          %1877 = vmatpush1.bf16.msra.mxu0 %v1388
          %1878 = vmatprep.subr.bf16.mxu0 %v1397
          %1879 = vmatpush1.bf16.msra.mxu0 %v1396
          %1880 = vmatprep.subr.bf16.mxu0 %v1405
          %1881 = vmatpush1.bf16.msra.mxu0 %v1404
          %1882 = vmatprep.subr.bf16.mxu0 %v1413
          %1883 = vmatpush1.bf16.msra.mxu0 %v1412
          %1884 = vmatprep.subr.bf16.mxu0 %v1421
          %1885 = vmatpush1.bf16.msra.mxu0 %v1420
          %1886 = vmatprep.subr.bf16.mxu0 %v1429
          %1887 = vmatpush1.bf16.msra.mxu0 %v1428
          %1888 = vmatprep.subr.bf16.mxu0 %v1437
          %1889 = vmatpush1.bf16.msra.mxu0 %v1436
          %1890 = vmatprep.subr.bf16.mxu0 %v1445
          %1891 = vmatpush1.bf16.msra.mxu0 %v1444
          %1892 = vmatprep.subr.bf16.mxu0 %v1453
          %1893 = vmatpush1.bf16.msra.mxu0 %v1452
          %1894 = vmatprep.subr.bf16.mxu0 %v1461
          %1895 = vmatpush1.bf16.msra.mxu0 %v1460
          %1896 = vmatprep.subr.bf16.mxu0 %v1469
          %1897 = vmatpush1.bf16.msra.mxu0 %v1468
          %1898 = vmatprep.subr.bf16.mxu0 %v1477
          %1899 = vmatpush1.bf16.msra.mxu0 %v1476
          %1900 = vmatprep.mubr.bf16.mxu0 %v581
          %1901 = vmatmul.mubr.bf16.gmra.mrb[0].mxu0 %v580
          %v1902 = vpop.f32.mrb[0].mxu0
          %v1903 = vadd.f32 0.0, %v1902
          %v1904 = vpop.f32.mrb[0].mxu0
          %v1905 = vadd.f32 0.0, %v1904
          %v1906 = vpop.f32.mrb[0].mxu0
          %v1907 = vpop.f32.mrb[0].mxu0
          %1908 = vdwg.mxu0
          %1909 = vmatprep.subr.bf16.mxu0 %v1485
          %1910 = vmatpush1.bf16.msra.mxu0 %v1484
          %1911 = vmatprep.subr.bf16.mxu0 %v1493
          %1912 = vmatpush1.bf16.msra.mxu0 %v1492
          %1913 = vmatprep.subr.bf16.mxu0 %v1501
          %1914 = vmatpush1.bf16.msra.mxu0 %v1500
          %1915 = vmatprep.subr.bf16.mxu0 %v1509
          %1916 = vmatpush1.bf16.msra.mxu0 %v1508
          %1917 = vmatprep.subr.bf16.mxu0 %v1517
          %1918 = vmatpush1.bf16.msra.mxu0 %v1516
          %1919 = vmatprep.subr.bf16.mxu0 %v1525
          %1920 = vmatpush1.bf16.msra.mxu0 %v1524
          %1921 = vmatprep.subr.bf16.mxu0 %v1533
          %1922 = vmatpush1.bf16.msra.mxu0 %v1532
          %1923 = vmatprep.subr.bf16.mxu0 %v1541
          %1924 = vmatpush1.bf16.msra.mxu0 %v1540
          %1925 = vmatprep.subr.bf16.mxu0 %v1549
          %1926 = vmatpush1.bf16.msra.mxu0 %v1548
          %1927 = vmatprep.subr.bf16.mxu0 %v1557
          %1928 = vmatpush1.bf16.msra.mxu0 %v1556
          %1929 = vmatprep.subr.bf16.mxu0 %v1565
          %1930 = vmatpush1.bf16.msra.mxu0 %v1564
          %1931 = vmatprep.subr.bf16.mxu0 %v1573
          %1932 = vmatpush1.bf16.msra.mxu0 %v1572
          %1933 = vmatprep.subr.bf16.mxu0 %v1581
          %1934 = vmatpush1.bf16.msra.mxu0 %v1580
          %1935 = vmatprep.subr.bf16.mxu0 %v1589
          %1936 = vmatpush1.bf16.msra.mxu0 %v1588
          %1937 = vmatprep.subr.bf16.mxu0 %v1597
          %1938 = vmatpush1.bf16.msra.mxu0 %v1596
          %1939 = vmatprep.subr.bf16.mxu0 %v1605
          %1940 = vmatpush1.bf16.msra.mxu0 %v1604
          %1941 = vmatprep.mubr.bf16.mxu0 %v583
          %1942 = vmatmul.mubr.bf16.gmra.mrb[0].mxu0 %v582
          %v1943 = vpop.f32.mrb[0].mxu0
          %v1944 = vadd.f32 %v1903, %v1943
          %v1945 = vpop.f32.mrb[0].mxu0
          %v1946 = vadd.f32 %v1905, %v1945
          %v1947 = vpop.f32.mrb[0].mxu0
          %v1948 = vpop.f32.mrb[0].mxu0
          %1949 = vdwg.mxu0
          %1950 = vmatprep.subr.bf16.mxu0 %v1359
          %1951 = vmatpush1.bf16.msra.mxu0 %v1358
          %1952 = vmatprep.subr.bf16.mxu0 %v1367
          %1953 = vmatpush1.bf16.msra.mxu0 %v1366
          %1954 = vmatprep.subr.bf16.mxu0 %v1375
          %1955 = vmatpush1.bf16.msra.mxu0 %v1374
          %1956 = vmatprep.subr.bf16.mxu0 %v1383
          %1957 = vmatpush1.bf16.msra.mxu0 %v1382
          %1958 = vmatprep.subr.bf16.mxu0 %v1391
          %1959 = vmatpush1.bf16.msra.mxu0 %v1390
          %1960 = vmatprep.subr.bf16.mxu0 %v1399
          %1961 = vmatpush1.bf16.msra.mxu0 %v1398
          %1962 = vmatprep.subr.bf16.mxu0 %v1407
          %1963 = vmatpush1.bf16.msra.mxu0 %v1406
          %1964 = vmatprep.subr.bf16.mxu0 %v1415
          %1965 = vmatpush1.bf16.msra.mxu0 %v1414
          %1966 = vmatprep.subr.bf16.mxu0 %v1423
          %1967 = vmatpush1.bf16.msra.mxu0 %v1422
          %1968 = vmatprep.subr.bf16.mxu0 %v1431
          %1969 = vmatpush1.bf16.msra.mxu0 %v1430
          %1970 = vmatprep.subr.bf16.mxu0 %v1439
          %1971 = vmatpush1.bf16.msra.mxu0 %v1438
          %1972 = vmatprep.subr.bf16.mxu0 %v1447
          %1973 = vmatpush1.bf16.msra.mxu0 %v1446
          %1974 = vmatprep.subr.bf16.mxu0 %v1455
          %1975 = vmatpush1.bf16.msra.mxu0 %v1454
          %1976 = vmatprep.subr.bf16.mxu0 %v1463
          %1977 = vmatpush1.bf16.msra.mxu0 %v1462
          %1978 = vmatprep.subr.bf16.mxu0 %v1471
          %1979 = vmatpush1.bf16.msra.mxu0 %v1470
          %1980 = vmatprep.subr.bf16.mxu0 %v1479
          %1981 = vmatpush1.bf16.msra.mxu0 %v1478
          %1982 = vmatprep.mubr.bf16.mxu0 %v581
          %1983 = vmatmul.mubr.bf16.gmra.mrb[0].mxu0 %v580
          %v1984 = vpop.f32.mrb[0].mxu0
          %v1985 = vadd.f32 0.0, %v1984
          %v1986 = vpop.f32.mrb[0].mxu0
          %v1987 = vadd.f32 0.0, %v1986
          %v1988 = vpop.f32.mrb[0].mxu0
          %v1989 = vpop.f32.mrb[0].mxu0
          %1990 = vdwg.mxu0
          %1991 = vmatprep.subr.bf16.mxu0 %v1487
          %1992 = vmatpush1.bf16.msra.mxu0 %v1486
          %1993 = vmatprep.subr.bf16.mxu0 %v1495
          %1994 = vmatpush1.bf16.msra.mxu0 %v1494
          %1995 = vmatprep.subr.bf16.mxu0 %v1503
          %1996 = vmatpush1.bf16.msra.mxu0 %v1502
          %1997 = vmatprep.subr.bf16.mxu0 %v1511
          %1998 = vmatpush1.bf16.msra.mxu0 %v1510
          %1999 = vmatprep.subr.bf16.mxu0 %v1519
          %2000 = vmatpush1.bf16.msra.mxu0 %v1518
          %2001 = vmatprep.subr.bf16.mxu0 %v1527
          %2002 = vmatpush1.bf16.msra.mxu0 %v1526
          %2003 = vmatprep.subr.bf16.mxu0 %v1535
          %2004 = vmatpush1.bf16.msra.mxu0 %v1534
          %2005 = vmatprep.subr.bf16.mxu0 %v1543
          %2006 = vmatpush1.bf16.msra.mxu0 %v1542
          %2007 = vmatprep.subr.bf16.mxu0 %v1551
          %2008 = vmatpush1.bf16.msra.mxu0 %v1550
          %2009 = vmatprep.subr.bf16.mxu0 %v1559
          %2010 = vmatpush1.bf16.msra.mxu0 %v1558
          %2011 = vmatprep.subr.bf16.mxu0 %v1567
          %2012 = vmatpush1.bf16.msra.mxu0 %v1566
          %2013 = vmatprep.subr.bf16.mxu0 %v1575
          %2014 = vmatpush1.bf16.msra.mxu0 %v1574
          %2015 = vmatprep.subr.bf16.mxu0 %v1583
          %2016 = vmatpush1.bf16.msra.mxu0 %v1582
          %2017 = vmatprep.subr.bf16.mxu0 %v1591
          %2018 = vmatpush1.bf16.msra.mxu0 %v1590
          %2019 = vmatprep.subr.bf16.mxu0 %v1599
          %2020 = vmatpush1.bf16.msra.mxu0 %v1598
          %2021 = vmatprep.subr.bf16.mxu0 %v1607
          %2022 = vmatpush1.bf16.msra.mxu0 %v1606
          %2023 = vmatprep.mubr.bf16.mxu0 %v583
          %2024 = vmatmul.mubr.bf16.gmra.mrb[0].mxu0 %v582
          %v2025 = vpop.f32.mrb[0].mxu0
          %v2026 = vadd.f32 %v1985, %v2025
          %v2027 = vpop.f32.mrb[0].mxu0
          %v2028 = vadd.f32 %v1987, %v2027
          %v2029 = vpop.f32.mrb[0].mxu0
          %v2030 = vpop.f32.mrb[0].mxu0
          %2031 = vdwg.mxu0
          %2032 = vmatprep.subr.bf16.mxu0 %v1361
          %2033 = vmatpush1.bf16.msra.mxu0 %v1360
          %2034 = vmatprep.subr.bf16.mxu0 %v1369
          %2035 = vmatpush1.bf16.msra.mxu0 %v1368
          %2036 = vmatprep.subr.bf16.mxu0 %v1377
          %2037 = vmatpush1.bf16.msra.mxu0 %v1376
          %2038 = vmatprep.subr.bf16.mxu0 %v1385
          %2039 = vmatpush1.bf16.msra.mxu0 %v1384
          %2040 = vmatprep.subr.bf16.mxu0 %v1393
          %2041 = vmatpush1.bf16.msra.mxu0 %v1392
          %2042 = vmatprep.subr.bf16.mxu0 %v1401
          %2043 = vmatpush1.bf16.msra.mxu0 %v1400
          %2044 = vmatprep.subr.bf16.mxu0 %v1409
          %2045 = vmatpush1.bf16.msra.mxu0 %v1408
          %2046 = vmatprep.subr.bf16.mxu0 %v1417
          %2047 = vmatpush1.bf16.msra.mxu0 %v1416
          %2048 = vmatprep.subr.bf16.mxu0 %v1425
          %2049 = vmatpush1.bf16.msra.mxu0 %v1424
          %2050 = vmatprep.subr.bf16.mxu0 %v1433
          %2051 = vmatpush1.bf16.msra.mxu0 %v1432
          %2052 = vmatprep.subr.bf16.mxu0 %v1441
          %2053 = vmatpush1.bf16.msra.mxu0 %v1440
          %2054 = vmatprep.subr.bf16.mxu0 %v1449
          %2055 = vmatpush1.bf16.msra.mxu0 %v1448
          %2056 = vmatprep.subr.bf16.mxu0 %v1457
          %2057 = vmatpush1.bf16.msra.mxu0 %v1456
          %2058 = vmatprep.subr.bf16.mxu0 %v1465
          %2059 = vmatpush1.bf16.msra.mxu0 %v1464
          %2060 = vmatprep.subr.bf16.mxu0 %v1473
          %2061 = vmatpush1.bf16.msra.mxu0 %v1472
          %2062 = vmatprep.subr.bf16.mxu0 %v1481
          %2063 = vmatpush1.bf16.msra.mxu0 %v1480
          %2064 = vmatprep.mubr.bf16.mxu0 %v581
          %2065 = vmatmul.mubr.bf16.gmra.mrb[0].mxu0 %v580
          %v2066 = vpop.f32.mrb[0].mxu0
          %v2067 = vadd.f32 0.0, %v2066
          %v2068 = vpop.f32.mrb[0].mxu0
          %v2069 = vadd.f32 0.0, %v2068
          %v2070 = vpop.f32.mrb[0].mxu0
          %v2071 = vpop.f32.mrb[0].mxu0
          %2072 = vdwg.mxu0
          %2073 = vmatprep.subr.bf16.mxu0 %v1489
          %2074 = vmatpush1.bf16.msra.mxu0 %v1488
          %2075 = vmatprep.subr.bf16.mxu0 %v1497
          %2076 = vmatpush1.bf16.msra.mxu0 %v1496
          %2077 = vmatprep.subr.bf16.mxu0 %v1505
          %2078 = vmatpush1.bf16.msra.mxu0 %v1504
          %2079 = vmatprep.subr.bf16.mxu0 %v1513
          %2080 = vmatpush1.bf16.msra.mxu0 %v1512
          %2081 = vmatprep.subr.bf16.mxu0 %v1521
          %2082 = vmatpush1.bf16.msra.mxu0 %v1520
          %2083 = vmatprep.subr.bf16.mxu0 %v1529
          %2084 = vmatpush1.bf16.msra.mxu0 %v1528
          %2085 = vmatprep.subr.bf16.mxu0 %v1537
          %2086 = vmatpush1.bf16.msra.mxu0 %v1536
          %2087 = vmatprep.subr.bf16.mxu0 %v1545
          %2088 = vmatpush1.bf16.msra.mxu0 %v1544
          %2089 = vmatprep.subr.bf16.mxu0 %v1553
          %2090 = vmatpush1.bf16.msra.mxu0 %v1552
          %2091 = vmatprep.subr.bf16.mxu0 %v1561
          %2092 = vmatpush1.bf16.msra.mxu0 %v1560
          %2093 = vmatprep.subr.bf16.mxu0 %v1569
          %2094 = vmatpush1.bf16.msra.mxu0 %v1568
          %2095 = vmatprep.subr.bf16.mxu0 %v1577
          %2096 = vmatpush1.bf16.msra.mxu0 %v1576
          %2097 = vmatprep.subr.bf16.mxu0 %v1585
          %2098 = vmatpush1.bf16.msra.mxu0 %v1584
          %2099 = vmatprep.subr.bf16.mxu0 %v1593
          %2100 = vmatpush1.bf16.msra.mxu0 %v1592
          %2101 = vmatprep.subr.bf16.mxu0 %v1601
          %2102 = vmatpush1.bf16.msra.mxu0 %v1600
          %2103 = vmatprep.subr.bf16.mxu0 %v1609
          %2104 = vmatpush1.bf16.msra.mxu0 %v1608
          %2105 = vmatprep.mubr.bf16.mxu0 %v583
          %2106 = vmatmul.mubr.bf16.gmra.mrb[0].mxu0 %v582
          %v2107 = vpop.f32.mrb[0].mxu0
          %v2108 = vadd.f32 %v2067, %v2107
          %v2109 = vpop.f32.mrb[0].mxu0
          %v2110 = vadd.f32 %v2069, %v2109
          %v2111 = vpop.f32.mrb[0].mxu0
          %v2112 = vpop.f32.mrb[0].mxu0
          %2113 = vdwg.mxu0
          %2114 = vmatprep.subr.bf16.mxu0 %v1363
          %2115 = vmatpush1.bf16.msra.mxu0 %v1362
          %2116 = vmatprep.subr.bf16.mxu0 %v1371
          %2117 = vmatpush1.bf16.msra.mxu0 %v1370
          %2118 = vmatprep.subr.bf16.mxu0 %v1379
          %2119 = vmatpush1.bf16.msra.mxu0 %v1378
          %2120 = vmatprep.subr.bf16.mxu0 %v1387
          %2121 = vmatpush1.bf16.msra.mxu0 %v1386
          %2122 = vmatprep.subr.bf16.mxu0 %v1395
          %2123 = vmatpush1.bf16.msra.mxu0 %v1394
          %2124 = vmatprep.subr.bf16.mxu0 %v1403
          %2125 = vmatpush1.bf16.msra.mxu0 %v1402
          %2126 = vmatprep.subr.bf16.mxu0 %v1411
          %2127 = vmatpush1.bf16.msra.mxu0 %v1410
          %2128 = vmatprep.subr.bf16.mxu0 %v1419
          %2129 = vmatpush1.bf16.msra.mxu0 %v1418
          %2130 = vmatprep.subr.bf16.mxu0 %v1427
          %2131 = vmatpush1.bf16.msra.mxu0 %v1426
          %2132 = vmatprep.subr.bf16.mxu0 %v1435
          %2133 = vmatpush1.bf16.msra.mxu0 %v1434
          %2134 = vmatprep.subr.bf16.mxu0 %v1443
          %2135 = vmatpush1.bf16.msra.mxu0 %v1442
          %2136 = vmatprep.subr.bf16.mxu0 %v1451
          %2137 = vmatpush1.bf16.msra.mxu0 %v1450
          %2138 = vmatprep.subr.bf16.mxu0 %v1459
          %2139 = vmatpush1.bf16.msra.mxu0 %v1458
          %2140 = vmatprep.subr.bf16.mxu0 %v1467
          %2141 = vmatpush1.bf16.msra.mxu0 %v1466
          %2142 = vmatprep.subr.bf16.mxu0 %v1475
          %2143 = vmatpush1.bf16.msra.mxu0 %v1474
          %2144 = vmatprep.subr.bf16.mxu0 %v1483
          %2145 = vmatpush1.bf16.msra.mxu0 %v1482
          %2146 = vmatprep.mubr.bf16.mxu0 %v581
          %2147 = vmatmul.mubr.bf16.gmra.mrb[0].mxu0 %v580
          %v2148 = vpop.f32.mrb[0].mxu0
          %v2149 = vadd.f32 0.0, %v2148
          %v2150 = vpop.f32.mrb[0].mxu0
          %v2151 = vadd.f32 0.0, %v2150
          %v2152 = vpop.f32.mrb[0].mxu0
          %v2153 = vpop.f32.mrb[0].mxu0
          %2154 = vdwg.mxu0
          %2155 = vmatprep.subr.bf16.mxu0 %v1491
          %2156 = vmatpush1.bf16.msra.mxu0 %v1490
          %2157 = vmatprep.subr.bf16.mxu0 %v1499
          %2158 = vmatpush1.bf16.msra.mxu0 %v1498
          %2159 = vmatprep.subr.bf16.mxu0 %v1507
          %2160 = vmatpush1.bf16.msra.mxu0 %v1506
          %2161 = vmatprep.subr.bf16.mxu0 %v1515
          %2162 = vmatpush1.bf16.msra.mxu0 %v1514
          %2163 = vmatprep.subr.bf16.mxu0 %v1523
          %2164 = vmatpush1.bf16.msra.mxu0 %v1522
          %2165 = vmatprep.subr.bf16.mxu0 %v1531
          %2166 = vmatpush1.bf16.msra.mxu0 %v1530
          %2167 = vmatprep.subr.bf16.mxu0 %v1539
          %2168 = vmatpush1.bf16.msra.mxu0 %v1538
          %2169 = vmatprep.subr.bf16.mxu0 %v1547
          %2170 = vmatpush1.bf16.msra.mxu0 %v1546
          %2171 = vmatprep.subr.bf16.mxu0 %v1555
          %2172 = vmatpush1.bf16.msra.mxu0 %v1554
          %2173 = vmatprep.subr.bf16.mxu0 %v1563
          %2174 = vmatpush1.bf16.msra.mxu0 %v1562
          %2175 = vmatprep.subr.bf16.mxu0 %v1571
          %2176 = vmatpush1.bf16.msra.mxu0 %v1570
          %2177 = vmatprep.subr.bf16.mxu0 %v1579
          %2178 = vmatpush1.bf16.msra.mxu0 %v1578
          %2179 = vmatprep.subr.bf16.mxu0 %v1587
          %2180 = vmatpush1.bf16.msra.mxu0 %v1586
          %2181 = vmatprep.subr.bf16.mxu0 %v1595
          %2182 = vmatpush1.bf16.msra.mxu0 %v1594
          %2183 = vmatprep.subr.bf16.mxu0 %v1603
          %2184 = vmatpush1.bf16.msra.mxu0 %v1602
          %2185 = vmatprep.subr.bf16.mxu0 %v1611
          %2186 = vmatpush1.bf16.msra.mxu0 %v1610
          %2187 = vmatprep.mubr.bf16.mxu0 %v583
          %2188 = vmatmul.mubr.bf16.gmra.mrb[0].mxu0 %v582
          %v2189 = vpop.f32.mrb[0].mxu0
          %v2190 = vadd.f32 %v2149, %v2189
          %v2191 = vpop.f32.mrb[0].mxu0
          %v2192 = vadd.f32 %v2151, %v2191
          %v2193 = vpop.f32.mrb[0].mxu0
          %v2194 = vpop.f32.mrb[0].mxu0
          %2195 = vdwg.mxu0
          %v2196 = vrot.slane %v1944, 4
          %v2197 = vadd.f32 %v1944, %v2196
          %v2198 = vrot.slane %v2197, 2
          %v2199 = vadd.f32 %v2197, %v2198
          %v2200 = vrot.slane %v2199, 1
          %v2201 = vadd.f32 %v2199, %v2200
          %v2202 = vrot.slane %v1946, 4
          %v2203 = vadd.f32 %v1946, %v2202
          %v2204 = vrot.slane %v2203, 2
          %v2205 = vadd.f32 %v2203, %v2204
          %v2206 = vrot.slane %v2205, 1
          %v2207 = vadd.f32 %v2205, %v2206
          %v2208 = vrot.slane %v2026, 4
          %v2209 = vadd.f32 %v2026, %v2208
          %v2210 = vrot.slane %v2209, 2
          %v2211 = vadd.f32 %v2209, %v2210
          %v2212 = vrot.slane %v2211, 1
          %v2213 = vadd.f32 %v2211, %v2212
          %v2214 = vrot.slane %v2028, 4
          %v2215 = vadd.f32 %v2028, %v2214
          %v2216 = vrot.slane %v2215, 2
          %v2217 = vadd.f32 %v2215, %v2216
          %v2218 = vrot.slane %v2217, 1
          %v2219 = vadd.f32 %v2217, %v2218
          %v2220 = vrot.slane %v2108, 4
          %v2221 = vadd.f32 %v2108, %v2220
          %v2222 = vrot.slane %v2221, 2
          %v2223 = vadd.f32 %v2221, %v2222
          %v2224 = vrot.slane %v2223, 1
          %v2225 = vadd.f32 %v2223, %v2224
          %v2226 = vrot.slane %v2110, 4
          %v2227 = vadd.f32 %v2110, %v2226
          %v2228 = vrot.slane %v2227, 2
          %v2229 = vadd.f32 %v2227, %v2228
          %v2230 = vrot.slane %v2229, 1
          %v2231 = vadd.f32 %v2229, %v2230
          %v2232 = vrot.slane %v2190, 4
          %v2233 = vadd.f32 %v2190, %v2232
          %v2234 = vrot.slane %v2233, 2
          %v2235 = vadd.f32 %v2233, %v2234
          %v2236 = vrot.slane %v2235, 1
          %v2237 = vadd.f32 %v2235, %v2236
          %v2238 = vrot.slane %v2192, 4
          %v2239 = vadd.f32 %v2192, %v2238
          %v2240 = vrot.slane %v2239, 2
          %v2241 = vadd.f32 %v2239, %v2240
          %v2242 = vrot.slane %v2241, 1
          %v2243 = vadd.f32 %v2241, %v2242
          %v2244 = vmul.f32 %v1944, %v1944
          %v2245 = vmul.f32 %v1946, %v1946
          %v2246 = vmul.f32 %v2026, %v2026
          %v2247 = vmul.f32 %v2028, %v2028
          %v2248 = vmul.f32 %v2108, %v2108
          %v2249 = vmul.f32 %v2110, %v2110
          %v2250 = vmul.f32 %v2190, %v2190
          %v2251 = vmul.f32 %v2192, %v2192
          %v2252 = vrot.slane %v2244, 4
          %v2253 = vadd.f32 %v2244, %v2252
          %v2254 = vrot.slane %v2253, 2
          %v2255 = vadd.f32 %v2253, %v2254
          %v2256 = vrot.slane %v2255, 1
          %v2257 = vadd.f32 %v2255, %v2256
          %v2258 = vrot.slane %v2245, 4
          %v2259 = vadd.f32 %v2245, %v2258
          %v2260 = vrot.slane %v2259, 2
          %v2261 = vadd.f32 %v2259, %v2260
          %v2262 = vrot.slane %v2261, 1
          %v2263 = vadd.f32 %v2261, %v2262
          %v2264 = vrot.slane %v2246, 4
          %v2265 = vadd.f32 %v2246, %v2264
          %v2266 = vrot.slane %v2265, 2
          %v2267 = vadd.f32 %v2265, %v2266
          %v2268 = vrot.slane %v2267, 1
          %v2269 = vadd.f32 %v2267, %v2268
          %v2270 = vrot.slane %v2247, 4
          %v2271 = vadd.f32 %v2247, %v2270
          %v2272 = vrot.slane %v2271, 2
          %v2273 = vadd.f32 %v2271, %v2272
          %v2274 = vrot.slane %v2273, 1
          %v2275 = vadd.f32 %v2273, %v2274
          %v2276 = vrot.slane %v2248, 4
          %v2277 = vadd.f32 %v2248, %v2276
          %v2278 = vrot.slane %v2277, 2
          %v2279 = vadd.f32 %v2277, %v2278
          %v2280 = vrot.slane %v2279, 1
          %v2281 = vadd.f32 %v2279, %v2280
          %v2282 = vrot.slane %v2249, 4
          %v2283 = vadd.f32 %v2249, %v2282
          %v2284 = vrot.slane %v2283, 2
          %v2285 = vadd.f32 %v2283, %v2284
          %v2286 = vrot.slane %v2285, 1
          %v2287 = vadd.f32 %v2285, %v2286
          %v2288 = vrot.slane %v2250, 4
          %v2289 = vadd.f32 %v2250, %v2288
          %v2290 = vrot.slane %v2289, 2
          %v2291 = vadd.f32 %v2289, %v2290
          %v2292 = vrot.slane %v2291, 1
          %v2293 = vadd.f32 %v2291, %v2292
          %v2294 = vrot.slane %v2251, 4
          %v2295 = vadd.f32 %v2251, %v2294
          %v2296 = vrot.slane %v2295, 2
          %v2297 = vadd.f32 %v2295, %v2296
          %v2298 = vrot.slane %v2297, 1
          %v2299 = vadd.f32 %v2297, %v2298
          %v2300 = vmul.f32 %v2201, 0.125
          %v2301 = vmul.f32 %v2207, 0.125
          %v2302 = vmul.f32 %v2213, 0.125
          %v2303 = vmul.f32 %v2219, 0.125
          %v2304 = vmul.f32 %v2225, 0.125
          %v2305 = vmul.f32 %v2231, 0.125
          %v2306 = vmul.f32 %v2237, 0.125
          %v2307 = vmul.f32 %v2243, 0.125
          %v2308 = vmul.f32 %v2257, 0.125
          %v2309 = vmul.f32 %v2263, 0.125
          %v2310 = vmul.f32 %v2269, 0.125
          %v2311 = vmul.f32 %v2275, 0.125
          %v2312 = vmul.f32 %v2281, 0.125
          %v2313 = vmul.f32 %v2287, 0.125
          %v2314 = vmul.f32 %v2293, 0.125
          %v2315 = vmul.f32 %v2299, 0.125
          %v2316 = vmul.f32 %v2300, %v2300
          %v2317 = vmul.f32 %v2301, %v2301
          %v2318 = vmul.f32 %v2302, %v2302
          %v2319 = vmul.f32 %v2303, %v2303
          %v2320 = vmul.f32 %v2304, %v2304
          %v2321 = vmul.f32 %v2305, %v2305
          %v2322 = vmul.f32 %v2306, %v2306
          %v2323 = vmul.f32 %v2307, %v2307
          %v2324 = vsub.f32 %v2308, %v2316
          %v2325 = vsub.f32 %v2309, %v2317
          %v2326 = vsub.f32 %v2310, %v2318
          %v2327 = vsub.f32 %v2311, %v2319
          %v2328 = vsub.f32 %v2312, %v2320
          %v2329 = vsub.f32 %v2313, %v2321
          %v2330 = vsub.f32 %v2314, %v2322
          %v2331 = vsub.f32 %v2315, %v2323
          %v2332 = vmax.f32 %v2324, 0.0
          %v2333 = vmax.f32 %v2325, 0.0
          %v2334 = vmax.f32 %v2326, 0.0
          %v2335 = vmax.f32 %v2327, 0.0
          %v2336 = vmax.f32 %v2328, 0.0
          %v2337 = vmax.f32 %v2329, 0.0
          %v2338 = vmax.f32 %v2330, 0.0
          %v2339 = vmax.f32 %v2331, 0.0
          %v2340 = vld [vmem:[#allocation9] ss:$8 sm:$0xf]
          %v2341 = vld [vmem:[#allocation9] ss:$8 sm:$0xf0]
          %v2342 = vor.u32 %v2340, %v2341
          %s2343 = scalar_lea.vmem [#allocation9], 4
          %v2344 = vld [vmem:[%s2343] ss:$8 sm:$0xf]
          %v2345 = vld [vmem:[%s2343] ss:$8 sm:$0xf0]
          %v2346 = vor.u32 %v2344, %v2345
          %v2347 = vadd.f32 %v2332, 1e-05
          %v2348 = vadd.f32 %v2333, 1e-05
          %v2349 = vadd.f32 %v2334, 1e-05
          %v2350 = vadd.f32 %v2335, 1e-05
          %v2351 = vadd.f32 %v2336, 1e-05
          %v2352 = vadd.f32 %v2337, 1e-05
          %v2353 = vadd.f32 %v2338, 1e-05
          %v2354 = vadd.f32 %v2339, 1e-05
          %v2355 = vrsqrt.pop %v2347
          %v2356 = vrsqrt.pop %v2348
          %v2357 = vrsqrt.pop %v2349
          %v2358 = vrsqrt.pop %v2350
          %v2359 = vrsqrt.pop %v2351
          %v2360 = vrsqrt.pop %v2352
          %v2361 = vrsqrt.pop %v2353
          %v2362 = vrsqrt.pop %v2354
          %v2371 = vcombine.low %v2355, %v2356
          %v2372 = vcombine.low %v2357, %v2358
          %v2373 = vcombine.low %v2359, %v2360
          %v2374 = vcombine.low %v2361, %v2362
          %v2376 = vunpack.c.l.s4 1966171168
          %v2377 = vunpack.c.0.s8 %v2376
          %v2378 = vlaneseq
          %v2379 = vshrl.u32 %v2378, 7
          %v2380 = vsub.s32 %v2377, %v2379
          %v2381 = vrot.slane %v2371, %v2380
          %v2383 = vunpack.c.l.s4 1966171168
          %v2384 = vunpack.c.0.s8 %v2383
          %v2385 = vlaneseq
          %v2386 = vshrl.u32 %v2385, 7
          %v2387 = vsub.s32 %v2384, %v2386
          %v2388 = vrot.slane %v2372, %v2387
          %v2390 = vunpack.c.l.s4 1966171168
          %v2391 = vunpack.c.0.s8 %v2390
          %v2392 = vlaneseq
          %v2393 = vshrl.u32 %v2392, 7
          %v2394 = vsub.s32 %v2391, %v2393
          %v2395 = vrot.slane %v2373, %v2394
          %v2397 = vunpack.c.l.s4 1966171168
          %v2398 = vunpack.c.0.s8 %v2397
          %v2399 = vlaneseq
          %v2400 = vshrl.u32 %v2399, 7
          %v2401 = vsub.s32 %v2398, %v2400
          %v2402 = vrot.slane %v2374, %v2401
          %v2403 = vcombine.low %v2381, %v2388
          %v2404 = vcombine.low %v2395, %v2402
          %v2406 = vunpack.c.l.s4 1966171168
          %v2407 = vunpack.c.0.s8 %v2406
          %v2408 = vlaneseq
          %v2409 = vshrl.u32 %v2408, 7
          %v2410 = vsub.s32 %v2407, %v2409
          %v2411 = vrot.slane %v2403, %v2410
          %v2413 = vunpack.c.l.s4 1966171168
          %v2414 = vunpack.c.0.s8 %v2413
          %v2415 = vlaneseq
          %v2416 = vshrl.u32 %v2415, 7
          %v2417 = vsub.s32 %v2414, %v2416
          %v2418 = vrot.slane %v2404, %v2417
          %v2419 = vcombine.low %v2411, %v2418
          %v2421 = vmul.f32 %v2342, %v2419
          %v2423 = vlaneseq
          %v2424 = vshrl.u32 %v2423, 7
          %v2425 = vsub.s32 0, %v2424
          %v2426 = vrot.slane %v2421, %v2425
          %v2427 = vlaneseq
          %v2428 = vshrl.u32 %v2427, 7
          %v2429 = vsub.s32 1, %v2428
          %v2430 = vrot.slane %v2421, %v2429
          %v2431 = vlaneseq
          %v2432 = vshrl.u32 %v2431, 7
          %v2433 = vsub.s32 2, %v2432
          %v2434 = vrot.slane %v2421, %v2433
          %v2435 = vlaneseq
          %v2436 = vshrl.u32 %v2435, 7
          %v2437 = vsub.s32 3, %v2436
          %v2438 = vrot.slane %v2421, %v2437
          %v2439 = vlaneseq
          %v2440 = vshrl.u32 %v2439, 7
          %v2441 = vsub.s32 4, %v2440
          %v2442 = vrot.slane %v2421, %v2441
          %v2443 = vlaneseq
          %v2444 = vshrl.u32 %v2443, 7
          %v2445 = vsub.s32 5, %v2444
          %v2446 = vrot.slane %v2421, %v2445
          %v2447 = vlaneseq
          %v2448 = vshrl.u32 %v2447, 7
          %v2449 = vsub.s32 6, %v2448
          %v2450 = vrot.slane %v2421, %v2449
          %v2451 = vlaneseq
          %v2452 = vshrl.u32 %v2451, 7
          %v2453 = vsub.s32 7, %v2452
          %v2454 = vrot.slane %v2421, %v2453
          %v2463 = vmul.f32 %v2300, %v2426
          %v2464 = vmul.f32 %v2301, %v2430
          %v2465 = vmul.f32 %v2302, %v2434
          %v2466 = vmul.f32 %v2303, %v2438
          %v2467 = vmul.f32 %v2304, %v2442
          %v2468 = vmul.f32 %v2305, %v2446
          %v2469 = vmul.f32 %v2306, %v2450
          %v2470 = vmul.f32 %v2307, %v2454
          %v2479 = vcombine.low %v2463, %v2464
          %v2480 = vcombine.low %v2465, %v2466
          %v2481 = vcombine.low %v2467, %v2468
          %v2482 = vcombine.low %v2469, %v2470
          %v2484 = vunpack.c.l.s4 1966171168
          %v2485 = vunpack.c.0.s8 %v2484
          %v2486 = vlaneseq
          %v2487 = vshrl.u32 %v2486, 7
          %v2488 = vsub.s32 %v2485, %v2487
          %v2489 = vrot.slane %v2479, %v2488
          %v2491 = vunpack.c.l.s4 1966171168
          %v2492 = vunpack.c.0.s8 %v2491
          %v2493 = vlaneseq
          %v2494 = vshrl.u32 %v2493, 7
          %v2495 = vsub.s32 %v2492, %v2494
          %v2496 = vrot.slane %v2480, %v2495
          %v2498 = vunpack.c.l.s4 1966171168
          %v2499 = vunpack.c.0.s8 %v2498
          %v2500 = vlaneseq
          %v2501 = vshrl.u32 %v2500, 7
          %v2502 = vsub.s32 %v2499, %v2501
          %v2503 = vrot.slane %v2481, %v2502
          %v2505 = vunpack.c.l.s4 1966171168
          %v2506 = vunpack.c.0.s8 %v2505
          %v2507 = vlaneseq
          %v2508 = vshrl.u32 %v2507, 7
          %v2509 = vsub.s32 %v2506, %v2508
          %v2510 = vrot.slane %v2482, %v2509
          %v2511 = vcombine.low %v2489, %v2496
          %v2512 = vcombine.low %v2503, %v2510
          %v2514 = vunpack.c.l.s4 1966171168
          %v2515 = vunpack.c.0.s8 %v2514
          %v2516 = vlaneseq
          %v2517 = vshrl.u32 %v2516, 7
          %v2518 = vsub.s32 %v2515, %v2517
          %v2519 = vrot.slane %v2511, %v2518
          %v2521 = vunpack.c.l.s4 1966171168
          %v2522 = vunpack.c.0.s8 %v2521
          %v2523 = vlaneseq
          %v2524 = vshrl.u32 %v2523, 7
          %v2525 = vsub.s32 %v2522, %v2524
          %v2526 = vrot.slane %v2512, %v2525
          %v2527 = vcombine.low %v2519, %v2526
          %v2529 = vsub.f32 %v2346, %v2527
          %v2530 = vmul.f32 %v1944, %v2426
          %v2531 = vmul.f32 %v1946, %v2430
          %v2532 = vmul.f32 %v2026, %v2434
          %v2533 = vmul.f32 %v2028, %v2438
          %v2534 = vmul.f32 %v2108, %v2442
          %v2535 = vmul.f32 %v2110, %v2446
          %v2536 = vmul.f32 %v2190, %v2450
          %v2537 = vmul.f32 %v2192, %v2454
          %v2539 = vlaneseq
          %v2540 = vshrl.u32 %v2539, 7
          %v2541 = vsub.s32 0, %v2540
          %v2542 = vrot.slane %v2529, %v2541
          %v2543 = vlaneseq
          %v2544 = vshrl.u32 %v2543, 7
          %v2545 = vsub.s32 1, %v2544
          %v2546 = vrot.slane %v2529, %v2545
          %v2547 = vlaneseq
          %v2548 = vshrl.u32 %v2547, 7
          %v2549 = vsub.s32 2, %v2548
          %v2550 = vrot.slane %v2529, %v2549
          %v2551 = vlaneseq
          %v2552 = vshrl.u32 %v2551, 7
          %v2553 = vsub.s32 3, %v2552
          %v2554 = vrot.slane %v2529, %v2553
          %v2555 = vlaneseq
          %v2556 = vshrl.u32 %v2555, 7
          %v2557 = vsub.s32 4, %v2556
          %v2558 = vrot.slane %v2529, %v2557
          %v2559 = vlaneseq
          %v2560 = vshrl.u32 %v2559, 7
          %v2561 = vsub.s32 5, %v2560
          %v2562 = vrot.slane %v2529, %v2561
          %v2563 = vlaneseq
          %v2564 = vshrl.u32 %v2563, 7
          %v2565 = vsub.s32 6, %v2564
          %v2566 = vrot.slane %v2529, %v2565
          %v2567 = vlaneseq
          %v2568 = vshrl.u32 %v2567, 7
          %v2569 = vsub.s32 7, %v2568
          %v2570 = vrot.slane %v2529, %v2569
          %v2579 = vadd.f32 %v2530, %v2542
          %v2580 = vadd.f32 %v2531, %v2546
          %v2581 = vadd.f32 %v2532, %v2550
          %v2582 = vadd.f32 %v2533, %v2554
          %v2583 = vadd.f32 %v2534, %v2558
          %v2584 = vadd.f32 %v2535, %v2562
          %v2585 = vadd.f32 %v2536, %v2566
          %v2586 = vadd.f32 %v2537, %v2570
          %v2587 = vmax.f32 %v2579, 0.0
          %v2588 = vmax.f32 %v2580, 0.0
          %v2589 = vmax.f32 %v2581, 0.0
          %v2590 = vmax.f32 %v2582, 0.0
          %v2591 = vmax.f32 %v2583, 0.0
          %v2592 = vmax.f32 %v2584, 0.0
          %v2593 = vmax.f32 %v2585, 0.0
          %v2594 = vmax.f32 %v2586, 0.0
          %v2595 = vpack.c.bf16 %v2587, %v2587
          %v2596 = vpack.c.bf16 %v2588, %v2588
          %v2597 = vpack.c.bf16 %v2589, %v2589
          %v2598 = vpack.c.bf16 %v2590, %v2590
          %v2599 = vpack.c.bf16 %v2591, %v2591
          %v2600 = vpack.c.bf16 %v2592, %v2592
          %v2601 = vpack.c.bf16 %v2593, %v2593
          %v2602 = vpack.c.bf16 %v2594, %v2594
          %v2611 = vunpack.c.l.b16 %v2595
          %v2612 = vunpack.c.l.b16 %v2596
          %v2613 = vunpack.c.l.b16 %v2597
          %v2614 = vunpack.c.l.b16 %v2598
          %v2615 = vunpack.c.l.b16 %v2599
          %v2616 = vunpack.c.l.b16 %v2600
          %v2617 = vunpack.c.l.b16 %v2601
          %v2618 = vunpack.c.l.b16 %v2602
          %v2619 = vpack.c.b16 %v2612, %v2611
          %v2620 = vpack.c.b16 %v2614, %v2613
          %v2621 = vpack.c.b16 %v2616, %v2615
          %v2622 = vpack.c.b16 %v2618, %v2617
          %2627 = vst [vmem:[#allocation2] sm:$0xff] %v2619
          %2628 = vst [vmem:[#allocation2 + $0x8] sm:$0xff] %v2620
          %2629 = vst [vmem:[#allocation2 + $0x10] sm:$0xff] %v2621
          %2630 = vst [vmem:[#allocation2 + $0x18] sm:$0xff] %v2622
        $region68: #{hegen_forward.1} parent=43 // pred_fallthru
          _
        %v2631 = vld [vmem:[#allocation2] sm:$0xff]
        %v2632 = vld [vmem:[#allocation2 + $0x8] sm:$0xff]
        %v2633 = vld [vmem:[#allocation2 + $0x10] sm:$0xff]
        %v2634 = vld [vmem:[#allocation2 + $0x18] sm:$0xff]
        %v2635 = vld [vmem:[%s276] sm:$0xff]
        %v2636 = vld [vmem:[%s276 + $0x8] sm:$0xff]
        %v2637 = vld [vmem:[%s276 + $0x10] sm:$0xff]
        %v2638 = vld [vmem:[%s276 + $0x18] sm:$0xff]
        %v2639 = vld [vmem:[%s276 + $0x20] sm:$0xff]
        %v2640 = vld [vmem:[%s276 + $0x28] sm:$0xff]
        %v2641 = vld [vmem:[%s276 + $0x30] sm:$0xff]
        %v2642 = vld [vmem:[%s276 + $0x38] sm:$0xff]
        %v2643 = vld [vmem:[%s276 + $0x40] sm:$0xff]
        %v2644 = vld [vmem:[%s276 + $0x48] sm:$0xff]
        %v2645 = vld [vmem:[%s276 + $0x50] sm:$0xff]
        %v2646 = vld [vmem:[%s276 + $0x58] sm:$0xff]
        %v2647 = vld [vmem:[%s276 + $0x60] sm:$0xff]
        %v2648 = vld [vmem:[%s276 + $0x68] sm:$0xff]
        %v2649 = vld [vmem:[%s276 + $0x70] sm:$0xff]
        %v2650 = vld [vmem:[%s276 + $0x78] sm:$0xff]
        %v2651 = vld [vmem:[%s276 + $0x80] sm:$0xff]
        %v2652 = vld [vmem:[%s276 + $0x88] sm:$0xff]
        %v2653 = vld [vmem:[%s276 + $0x90] sm:$0xff]
        %v2654 = vld [vmem:[%s276 + $0x98] sm:$0xff]
        %v2655 = vld [vmem:[%s276 + $0xa0] sm:$0xff]
        %v2656 = vld [vmem:[%s276 + $0xa8] sm:$0xff]
        %v2657 = vld [vmem:[%s276 + $0xb0] sm:$0xff]
        %v2658 = vld [vmem:[%s276 + $0xb8] sm:$0xff]
        %v2659 = vld [vmem:[%s276 + $0xc0] sm:$0xff]
        %v2660 = vld [vmem:[%s276 + $0xc8] sm:$0xff]
        %v2661 = vld [vmem:[%s276 + $0xd0] sm:$0xff]
        %v2662 = vld [vmem:[%s276 + $0xd8] sm:$0xff]
        %v2663 = vld [vmem:[%s276 + $0xe0] sm:$0xff]
        %v2664 = vld [vmem:[%s276 + $0xe8] sm:$0xff]
        %v2665 = vld [vmem:[%s276 + $0xf0] sm:$0xff]
        %v2666 = vld [vmem:[%s276 + $0xf8] sm:$0xff]
        %v2667 = vld [vmem:[%s276 + $0x100] sm:$0xff]
        %v2668 = vld [vmem:[%s276 + $0x108] sm:$0xff]
        %v2669 = vld [vmem:[%s276 + $0x110] sm:$0xff]
        %v2670 = vld [vmem:[%s276 + $0x118] sm:$0xff]
        %v2671 = vld [vmem:[%s276 + $0x120] sm:$0xff]
        %v2672 = vld [vmem:[%s276 + $0x128] sm:$0xff]
        %v2673 = vld [vmem:[%s276 + $0x130] sm:$0xff]
        %v2674 = vld [vmem:[%s276 + $0x138] sm:$0xff]
        %v2675 = vld [vmem:[%s276 + $0x140] sm:$0xff]
        %v2676 = vld [vmem:[%s276 + $0x148] sm:$0xff]
        %v2677 = vld [vmem:[%s276 + $0x150] sm:$0xff]
        %v2678 = vld [vmem:[%s276 + $0x158] sm:$0xff]
        %v2679 = vld [vmem:[%s276 + $0x160] sm:$0xff]
        %v2680 = vld [vmem:[%s276 + $0x168] sm:$0xff]
        %v2681 = vld [vmem:[%s276 + $0x170] sm:$0xff]
        %v2682 = vld [vmem:[%s276 + $0x178] sm:$0xff]
        %v2683 = vld [vmem:[%s276 + $0x180] sm:$0xff]
        %v2684 = vld [vmem:[%s276 + $0x188] sm:$0xff]
        %v2685 = vld [vmem:[%s276 + $0x190] sm:$0xff]
        %v2686 = vld [vmem:[%s276 + $0x198] sm:$0xff]
        %v2687 = vld [vmem:[%s276 + $0x1a0] sm:$0xff]
        %v2688 = vld [vmem:[%s276 + $0x1a8] sm:$0xff]
        %v2689 = vld [vmem:[%s276 + $0x1b0] sm:$0xff]
        %v2690 = vld [vmem:[%s276 + $0x1b8] sm:$0xff]
        %v2691 = vld [vmem:[%s276 + $0x1c0] sm:$0xff]
        %v2692 = vld [vmem:[%s276 + $0x1c8] sm:$0xff]
        %v2693 = vld [vmem:[%s276 + $0x1d0] sm:$0xff]
        %v2694 = vld [vmem:[%s276 + $0x1d8] sm:$0xff]
        %v2695 = vld [vmem:[%s276 + $0x1e0] sm:$0xff]
        %v2696 = vld [vmem:[%s276 + $0x1e8] sm:$0xff]
        %v2697 = vld [vmem:[%s276 + $0x1f0] sm:$0xff]
        %v2698 = vld [vmem:[%s276 + $0x1f8] sm:$0xff]
        %v2699 = vld [vmem:[%s276 + $0x200] sm:$0xff]
        %v2700 = vld [vmem:[%s276 + $0x208] sm:$0xff]
        %v2701 = vld [vmem:[%s276 + $0x210] sm:$0xff]
        %v2702 = vld [vmem:[%s276 + $0x218] sm:$0xff]
        %v2703 = vld [vmem:[%s276 + $0x220] sm:$0xff]
        %v2704 = vld [vmem:[%s276 + $0x228] sm:$0xff]
        %v2705 = vld [vmem:[%s276 + $0x230] sm:$0xff]
        %v2706 = vld [vmem:[%s276 + $0x238] sm:$0xff]
        %v2707 = vld [vmem:[%s276 + $0x240] sm:$0xff]
        %v2708 = vld [vmem:[%s276 + $0x248] sm:$0xff]
        %v2709 = vld [vmem:[%s276 + $0x250] sm:$0xff]
        %v2710 = vld [vmem:[%s276 + $0x258] sm:$0xff]
        %v2711 = vld [vmem:[%s276 + $0x260] sm:$0xff]
        %v2712 = vld [vmem:[%s276 + $0x268] sm:$0xff]
        %v2713 = vld [vmem:[%s276 + $0x270] sm:$0xff]
        %v2714 = vld [vmem:[%s276 + $0x278] sm:$0xff]
        %v2715 = vld [vmem:[%s276 + $0x280] sm:$0xff]
        %v2716 = vld [vmem:[%s276 + $0x288] sm:$0xff]
        %v2717 = vld [vmem:[%s276 + $0x290] sm:$0xff]
        %v2718 = vld [vmem:[%s276 + $0x298] sm:$0xff]
        %v2719 = vld [vmem:[%s276 + $0x2a0] sm:$0xff]
        %v2720 = vld [vmem:[%s276 + $0x2a8] sm:$0xff]
        %v2721 = vld [vmem:[%s276 + $0x2b0] sm:$0xff]
        %v2722 = vld [vmem:[%s276 + $0x2b8] sm:$0xff]
        %v2723 = vld [vmem:[%s276 + $0x2c0] sm:$0xff]
        %v2724 = vld [vmem:[%s276 + $0x2c8] sm:$0xff]
        %v2725 = vld [vmem:[%s276 + $0x2d0] sm:$0xff]
        %v2726 = vld [vmem:[%s276 + $0x2d8] sm:$0xff]
        %v2727 = vld [vmem:[%s276 + $0x2e0] sm:$0xff]
        %v2728 = vld [vmem:[%s276 + $0x2e8] sm:$0xff]
        %v2729 = vld [vmem:[%s276 + $0x2f0] sm:$0xff]
        %v2730 = vld [vmem:[%s276 + $0x2f8] sm:$0xff]
        %v2731 = vld [vmem:[%s276 + $0x300] sm:$0xff]
        %v2732 = vld [vmem:[%s276 + $0x308] sm:$0xff]
        %v2733 = vld [vmem:[%s276 + $0x310] sm:$0xff]
        %v2734 = vld [vmem:[%s276 + $0x318] sm:$0xff]
        %v2735 = vld [vmem:[%s276 + $0x320] sm:$0xff]
        %v2736 = vld [vmem:[%s276 + $0x328] sm:$0xff]
        %v2737 = vld [vmem:[%s276 + $0x330] sm:$0xff]
        %v2738 = vld [vmem:[%s276 + $0x338] sm:$0xff]
        %v2739 = vld [vmem:[%s276 + $0x340] sm:$0xff]
        %v2740 = vld [vmem:[%s276 + $0x348] sm:$0xff]
        %v2741 = vld [vmem:[%s276 + $0x350] sm:$0xff]
        %v2742 = vld [vmem:[%s276 + $0x358] sm:$0xff]
        %v2743 = vld [vmem:[%s276 + $0x360] sm:$0xff]
        %v2744 = vld [vmem:[%s276 + $0x368] sm:$0xff]
        %v2745 = vld [vmem:[%s276 + $0x370] sm:$0xff]
        %v2746 = vld [vmem:[%s276 + $0x378] sm:$0xff]
        %v2747 = vld [vmem:[%s276 + $0x380] sm:$0xff]
        %v2748 = vld [vmem:[%s276 + $0x388] sm:$0xff]
        %v2749 = vld [vmem:[%s276 + $0x390] sm:$0xff]
        %v2750 = vld [vmem:[%s276 + $0x398] sm:$0xff]
        %v2751 = vld [vmem:[%s276 + $0x3a0] sm:$0xff]
        %v2752 = vld [vmem:[%s276 + $0x3a8] sm:$0xff]
        %v2753 = vld [vmem:[%s276 + $0x3b0] sm:$0xff]
        %v2754 = vld [vmem:[%s276 + $0x3b8] sm:$0xff]
        %v2755 = vld [vmem:[%s276 + $0x3c0] sm:$0xff]
        %v2756 = vld [vmem:[%s276 + $0x3c8] sm:$0xff]
        %v2757 = vld [vmem:[%s276 + $0x3d0] sm:$0xff]
        %v2758 = vld [vmem:[%s276 + $0x3d8] sm:$0xff]
        %v2759 = vld [vmem:[%s276 + $0x3e0] sm:$0xff]
        %v2760 = vld [vmem:[%s276 + $0x3e8] sm:$0xff]
        %v2761 = vld [vmem:[%s276 + $0x3f0] sm:$0xff]
        %v2762 = vld [vmem:[%s276 + $0x3f8] sm:$0xff]
        %v2763 = vld [vmem:[%s276 + $0x400] sm:$0xff]
        %v2764 = vld [vmem:[%s276 + $0x408] sm:$0xff]
        %v2765 = vld [vmem:[%s276 + $0x410] sm:$0xff]
        %v2766 = vld [vmem:[%s276 + $0x418] sm:$0xff]
        %v2767 = vld [vmem:[%s276 + $0x420] sm:$0xff]
        %v2768 = vld [vmem:[%s276 + $0x428] sm:$0xff]
        %v2769 = vld [vmem:[%s276 + $0x430] sm:$0xff]
        %v2770 = vld [vmem:[%s276 + $0x438] sm:$0xff]
        %v2771 = vld [vmem:[%s276 + $0x440] sm:$0xff]
        %v2772 = vld [vmem:[%s276 + $0x448] sm:$0xff]
        %v2773 = vld [vmem:[%s276 + $0x450] sm:$0xff]
        %v2774 = vld [vmem:[%s276 + $0x458] sm:$0xff]
        %v2775 = vld [vmem:[%s276 + $0x460] sm:$0xff]
        %v2776 = vld [vmem:[%s276 + $0x468] sm:$0xff]
        %v2777 = vld [vmem:[%s276 + $0x470] sm:$0xff]
        %v2778 = vld [vmem:[%s276 + $0x478] sm:$0xff]
        %v2779 = vld [vmem:[%s276 + $0x480] sm:$0xff]
        %v2780 = vld [vmem:[%s276 + $0x488] sm:$0xff]
        %v2781 = vld [vmem:[%s276 + $0x490] sm:$0xff]
        %v2782 = vld [vmem:[%s276 + $0x498] sm:$0xff]
        %v2783 = vld [vmem:[%s276 + $0x4a0] sm:$0xff]
        %v2784 = vld [vmem:[%s276 + $0x4a8] sm:$0xff]
        %v2785 = vld [vmem:[%s276 + $0x4b0] sm:$0xff]
        %v2786 = vld [vmem:[%s276 + $0x4b8] sm:$0xff]
        %v2787 = vld [vmem:[%s276 + $0x4c0] sm:$0xff]
        %v2788 = vld [vmem:[%s276 + $0x4c8] sm:$0xff]
        %v2789 = vld [vmem:[%s276 + $0x4d0] sm:$0xff]
        %v2790 = vld [vmem:[%s276 + $0x4d8] sm:$0xff]
        %v2791 = vld [vmem:[%s276 + $0x4e0] sm:$0xff]
        %v2792 = vld [vmem:[%s276 + $0x4e8] sm:$0xff]
        %v2793 = vld [vmem:[%s276 + $0x4f0] sm:$0xff]
        %v2794 = vld [vmem:[%s276 + $0x4f8] sm:$0xff]
        %v2795 = vld [vmem:[%s276 + $0x500] sm:$0xff]
        %v2796 = vld [vmem:[%s276 + $0x508] sm:$0xff]
        %v2797 = vld [vmem:[%s276 + $0x510] sm:$0xff]
        %v2798 = vld [vmem:[%s276 + $0x518] sm:$0xff]
        %v2799 = vld [vmem:[%s276 + $0x520] sm:$0xff]
        %v2800 = vld [vmem:[%s276 + $0x528] sm:$0xff]
        %v2801 = vld [vmem:[%s276 + $0x530] sm:$0xff]
        %v2802 = vld [vmem:[%s276 + $0x538] sm:$0xff]
        %v2803 = vld [vmem:[%s276 + $0x540] sm:$0xff]
        %v2804 = vld [vmem:[%s276 + $0x548] sm:$0xff]
        %v2805 = vld [vmem:[%s276 + $0x550] sm:$0xff]
        %v2806 = vld [vmem:[%s276 + $0x558] sm:$0xff]
        %v2807 = vld [vmem:[%s276 + $0x560] sm:$0xff]
        %v2808 = vld [vmem:[%s276 + $0x568] sm:$0xff]
        %v2809 = vld [vmem:[%s276 + $0x570] sm:$0xff]
        %v2810 = vld [vmem:[%s276 + $0x578] sm:$0xff]
        %v2811 = vld [vmem:[%s276 + $0x580] sm:$0xff]
        %v2812 = vld [vmem:[%s276 + $0x588] sm:$0xff]
        %v2813 = vld [vmem:[%s276 + $0x590] sm:$0xff]
        %v2814 = vld [vmem:[%s276 + $0x598] sm:$0xff]
        %v2815 = vld [vmem:[%s276 + $0x5a0] sm:$0xff]
        %v2816 = vld [vmem:[%s276 + $0x5a8] sm:$0xff]
        %v2817 = vld [vmem:[%s276 + $0x5b0] sm:$0xff]
        %v2818 = vld [vmem:[%s276 + $0x5b8] sm:$0xff]
        %v2819 = vld [vmem:[%s276 + $0x5c0] sm:$0xff]
        %v2820 = vld [vmem:[%s276 + $0x5c8] sm:$0xff]
        %v2821 = vld [vmem:[%s276 + $0x5d0] sm:$0xff]
        %v2822 = vld [vmem:[%s276 + $0x5d8] sm:$0xff]
        %v2823 = vld [vmem:[%s276 + $0x5e0] sm:$0xff]
        %v2824 = vld [vmem:[%s276 + $0x5e8] sm:$0xff]
        %v2825 = vld [vmem:[%s276 + $0x5f0] sm:$0xff]
        %v2826 = vld [vmem:[%s276 + $0x5f8] sm:$0xff]
        %v2827 = vld [vmem:[%s276 + $0x600] sm:$0xff]
        %v2828 = vld [vmem:[%s276 + $0x608] sm:$0xff]
        %v2829 = vld [vmem:[%s276 + $0x610] sm:$0xff]
        %v2830 = vld [vmem:[%s276 + $0x618] sm:$0xff]
        %v2831 = vld [vmem:[%s276 + $0x620] sm:$0xff]
        %v2832 = vld [vmem:[%s276 + $0x628] sm:$0xff]
        %v2833 = vld [vmem:[%s276 + $0x630] sm:$0xff]
        %v2834 = vld [vmem:[%s276 + $0x638] sm:$0xff]
        %v2835 = vld [vmem:[%s276 + $0x640] sm:$0xff]
        %v2836 = vld [vmem:[%s276 + $0x648] sm:$0xff]
        %v2837 = vld [vmem:[%s276 + $0x650] sm:$0xff]
        %v2838 = vld [vmem:[%s276 + $0x658] sm:$0xff]
        %v2839 = vld [vmem:[%s276 + $0x660] sm:$0xff]
        %v2840 = vld [vmem:[%s276 + $0x668] sm:$0xff]
        %v2841 = vld [vmem:[%s276 + $0x670] sm:$0xff]
        %v2842 = vld [vmem:[%s276 + $0x678] sm:$0xff]
        %v2843 = vld [vmem:[%s276 + $0x680] sm:$0xff]
        %v2844 = vld [vmem:[%s276 + $0x688] sm:$0xff]
        %v2845 = vld [vmem:[%s276 + $0x690] sm:$0xff]
        %v2846 = vld [vmem:[%s276 + $0x698] sm:$0xff]
        %v2847 = vld [vmem:[%s276 + $0x6a0] sm:$0xff]
        %v2848 = vld [vmem:[%s276 + $0x6a8] sm:$0xff]
        %v2849 = vld [vmem:[%s276 + $0x6b0] sm:$0xff]
        %v2850 = vld [vmem:[%s276 + $0x6b8] sm:$0xff]
        %v2851 = vld [vmem:[%s276 + $0x6c0] sm:$0xff]
        %v2852 = vld [vmem:[%s276 + $0x6c8] sm:$0xff]
        %v2853 = vld [vmem:[%s276 + $0x6d0] sm:$0xff]
        %v2854 = vld [vmem:[%s276 + $0x6d8] sm:$0xff]
        %v2855 = vld [vmem:[%s276 + $0x6e0] sm:$0xff]
        %v2856 = vld [vmem:[%s276 + $0x6e8] sm:$0xff]
        %v2857 = vld [vmem:[%s276 + $0x6f0] sm:$0xff]
        %v2858 = vld [vmem:[%s276 + $0x6f8] sm:$0xff]
        %v2859 = vld [vmem:[%s276 + $0x700] sm:$0xff]
        %v2860 = vld [vmem:[%s276 + $0x708] sm:$0xff]
        %v2861 = vld [vmem:[%s276 + $0x710] sm:$0xff]
        %v2862 = vld [vmem:[%s276 + $0x718] sm:$0xff]
        %v2863 = vld [vmem:[%s276 + $0x720] sm:$0xff]
        %v2864 = vld [vmem:[%s276 + $0x728] sm:$0xff]
        %v2865 = vld [vmem:[%s276 + $0x730] sm:$0xff]
        %v2866 = vld [vmem:[%s276 + $0x738] sm:$0xff]
        %v2867 = vld [vmem:[%s276 + $0x740] sm:$0xff]
        %v2868 = vld [vmem:[%s276 + $0x748] sm:$0xff]
        %v2869 = vld [vmem:[%s276 + $0x750] sm:$0xff]
        %v2870 = vld [vmem:[%s276 + $0x758] sm:$0xff]
        %v2871 = vld [vmem:[%s276 + $0x760] sm:$0xff]
        %v2872 = vld [vmem:[%s276 + $0x768] sm:$0xff]
        %v2873 = vld [vmem:[%s276 + $0x770] sm:$0xff]
        %v2874 = vld [vmem:[%s276 + $0x778] sm:$0xff]
        %v2875 = vld [vmem:[%s276 + $0x780] sm:$0xff]
        %v2876 = vld [vmem:[%s276 + $0x788] sm:$0xff]
        %v2877 = vld [vmem:[%s276 + $0x790] sm:$0xff]
        %v2878 = vld [vmem:[%s276 + $0x798] sm:$0xff]
        %v2879 = vld [vmem:[%s276 + $0x7a0] sm:$0xff]
        %v2880 = vld [vmem:[%s276 + $0x7a8] sm:$0xff]
        %v2881 = vld [vmem:[%s276 + $0x7b0] sm:$0xff]
        %v2882 = vld [vmem:[%s276 + $0x7b8] sm:$0xff]
        %v2883 = vld [vmem:[%s276 + $0x7c0] sm:$0xff]
        %v2884 = vld [vmem:[%s276 + $0x7c8] sm:$0xff]
        %v2885 = vld [vmem:[%s276 + $0x7d0] sm:$0xff]
        %v2886 = vld [vmem:[%s276 + $0x7d8] sm:$0xff]
        %v2887 = vld [vmem:[%s276 + $0x7e0] sm:$0xff]
        %v2888 = vld [vmem:[%s276 + $0x7e8] sm:$0xff]
        %v2889 = vld [vmem:[%s276 + $0x7f0] sm:$0xff]
        %v2890 = vld [vmem:[%s276 + $0x7f8] sm:$0xff]
        %v2891 = vld [vmem:[%s276 + $0x800] sm:$0xff]
        %v2892 = vld [vmem:[%s276 + $0x808] sm:$0xff]
        %v2893 = vld [vmem:[%s276 + $0x810] sm:$0xff]
        %v2894 = vld [vmem:[%s276 + $0x818] sm:$0xff]
        %v2895 = vld [vmem:[%s276 + $0x820] sm:$0xff]
        %v2896 = vld [vmem:[%s276 + $0x828] sm:$0xff]
        %v2897 = vld [vmem:[%s276 + $0x830] sm:$0xff]
        %v2898 = vld [vmem:[%s276 + $0x838] sm:$0xff]
        %v2899 = vld [vmem:[%s276 + $0x840] sm:$0xff]
        %v2900 = vld [vmem:[%s276 + $0x848] sm:$0xff]
        %v2901 = vld [vmem:[%s276 + $0x850] sm:$0xff]
        %v2902 = vld [vmem:[%s276 + $0x858] sm:$0xff]
        %v2903 = vld [vmem:[%s276 + $0x860] sm:$0xff]
        %v2904 = vld [vmem:[%s276 + $0x868] sm:$0xff]
        %v2905 = vld [vmem:[%s276 + $0x870] sm:$0xff]
        %v2906 = vld [vmem:[%s276 + $0x878] sm:$0xff]
        %v2907 = vld [vmem:[%s276 + $0x880] sm:$0xff]
        %v2908 = vld [vmem:[%s276 + $0x888] sm:$0xff]
        %v2909 = vld [vmem:[%s276 + $0x890] sm:$0xff]
        %v2910 = vld [vmem:[%s276 + $0x898] sm:$0xff]
        %v2911 = vld [vmem:[%s276 + $0x8a0] sm:$0xff]
        %v2912 = vld [vmem:[%s276 + $0x8a8] sm:$0xff]
        %v2913 = vld [vmem:[%s276 + $0x8b0] sm:$0xff]
        %v2914 = vld [vmem:[%s276 + $0x8b8] sm:$0xff]
        %v2915 = vld [vmem:[%s276 + $0x8c0] sm:$0xff]
        %v2916 = vld [vmem:[%s276 + $0x8c8] sm:$0xff]
        %v2917 = vld [vmem:[%s276 + $0x8d0] sm:$0xff]
        %v2918 = vld [vmem:[%s276 + $0x8d8] sm:$0xff]
        %v2919 = vld [vmem:[%s276 + $0x8e0] sm:$0xff]
        %v2920 = vld [vmem:[%s276 + $0x8e8] sm:$0xff]
        %v2921 = vld [vmem:[%s276 + $0x8f0] sm:$0xff]
        %v2922 = vld [vmem:[%s276 + $0x8f8] sm:$0xff]
        %v2923 = vld [vmem:[%s276 + $0x900] sm:$0xff]
        %v2924 = vld [vmem:[%s276 + $0x908] sm:$0xff]
        %v2925 = vld [vmem:[%s276 + $0x910] sm:$0xff]
        %v2926 = vld [vmem:[%s276 + $0x918] sm:$0xff]
        %v2927 = vld [vmem:[%s276 + $0x920] sm:$0xff]
        %v2928 = vld [vmem:[%s276 + $0x928] sm:$0xff]
        %v2929 = vld [vmem:[%s276 + $0x930] sm:$0xff]
        %v2930 = vld [vmem:[%s276 + $0x938] sm:$0xff]
        %v2931 = vld [vmem:[%s276 + $0x940] sm:$0xff]
        %v2932 = vld [vmem:[%s276 + $0x948] sm:$0xff]
        %v2933 = vld [vmem:[%s276 + $0x950] sm:$0xff]
        %v2934 = vld [vmem:[%s276 + $0x958] sm:$0xff]
        %v2935 = vld [vmem:[%s276 + $0x960] sm:$0xff]
        %v2936 = vld [vmem:[%s276 + $0x968] sm:$0xff]
        %v2937 = vld [vmem:[%s276 + $0x970] sm:$0xff]
        %v2938 = vld [vmem:[%s276 + $0x978] sm:$0xff]
        %v2939 = vld [vmem:[%s276 + $0x980] sm:$0xff]
        %v2940 = vld [vmem:[%s276 + $0x988] sm:$0xff]
        %v2941 = vld [vmem:[%s276 + $0x990] sm:$0xff]
        %v2942 = vld [vmem:[%s276 + $0x998] sm:$0xff]
        %v2943 = vld [vmem:[%s276 + $0x9a0] sm:$0xff]
        %v2944 = vld [vmem:[%s276 + $0x9a8] sm:$0xff]
        %v2945 = vld [vmem:[%s276 + $0x9b0] sm:$0xff]
        %v2946 = vld [vmem:[%s276 + $0x9b8] sm:$0xff]
        %v2947 = vld [vmem:[%s276 + $0x9c0] sm:$0xff]
        %v2948 = vld [vmem:[%s276 + $0x9c8] sm:$0xff]
        %v2949 = vld [vmem:[%s276 + $0x9d0] sm:$0xff]
        %v2950 = vld [vmem:[%s276 + $0x9d8] sm:$0xff]
        %v2951 = vld [vmem:[%s276 + $0x9e0] sm:$0xff]
        %v2952 = vld [vmem:[%s276 + $0x9e8] sm:$0xff]
        %v2953 = vld [vmem:[%s276 + $0x9f0] sm:$0xff]
        %v2954 = vld [vmem:[%s276 + $0x9f8] sm:$0xff]
        %v2955 = vld [vmem:[%s276 + $0xa00] sm:$0xff]
        %v2956 = vld [vmem:[%s276 + $0xa08] sm:$0xff]
        %v2957 = vld [vmem:[%s276 + $0xa10] sm:$0xff]
        %v2958 = vld [vmem:[%s276 + $0xa18] sm:$0xff]
        %v2959 = vld [vmem:[%s276 + $0xa20] sm:$0xff]
        %v2960 = vld [vmem:[%s276 + $0xa28] sm:$0xff]
        %v2961 = vld [vmem:[%s276 + $0xa30] sm:$0xff]
        %v2962 = vld [vmem:[%s276 + $0xa38] sm:$0xff]
        %v2963 = vld [vmem:[%s276 + $0xa40] sm:$0xff]
        %v2964 = vld [vmem:[%s276 + $0xa48] sm:$0xff]
        %v2965 = vld [vmem:[%s276 + $0xa50] sm:$0xff]
        %v2966 = vld [vmem:[%s276 + $0xa58] sm:$0xff]
        %v2967 = vld [vmem:[%s276 + $0xa60] sm:$0xff]
        %v2968 = vld [vmem:[%s276 + $0xa68] sm:$0xff]
        %v2969 = vld [vmem:[%s276 + $0xa70] sm:$0xff]
        %v2970 = vld [vmem:[%s276 + $0xa78] sm:$0xff]
        %v2971 = vld [vmem:[%s276 + $0xa80] sm:$0xff]
        %v2972 = vld [vmem:[%s276 + $0xa88] sm:$0xff]
        %v2973 = vld [vmem:[%s276 + $0xa90] sm:$0xff]
        %v2974 = vld [vmem:[%s276 + $0xa98] sm:$0xff]
        %v2975 = vld [vmem:[%s276 + $0xaa0] sm:$0xff]
        %v2976 = vld [vmem:[%s276 + $0xaa8] sm:$0xff]
        %v2977 = vld [vmem:[%s276 + $0xab0] sm:$0xff]
        %v2978 = vld [vmem:[%s276 + $0xab8] sm:$0xff]
        %v2979 = vld [vmem:[%s276 + $0xac0] sm:$0xff]
        %v2980 = vld [vmem:[%s276 + $0xac8] sm:$0xff]
        %v2981 = vld [vmem:[%s276 + $0xad0] sm:$0xff]
        %v2982 = vld [vmem:[%s276 + $0xad8] sm:$0xff]
        %v2983 = vld [vmem:[%s276 + $0xae0] sm:$0xff]
        %v2984 = vld [vmem:[%s276 + $0xae8] sm:$0xff]
        %v2985 = vld [vmem:[%s276 + $0xaf0] sm:$0xff]
        %v2986 = vld [vmem:[%s276 + $0xaf8] sm:$0xff]
        %v2987 = vld [vmem:[%s276 + $0xb00] sm:$0xff]
        %v2988 = vld [vmem:[%s276 + $0xb08] sm:$0xff]
        %v2989 = vld [vmem:[%s276 + $0xb10] sm:$0xff]
        %v2990 = vld [vmem:[%s276 + $0xb18] sm:$0xff]
        %v2991 = vld [vmem:[%s276 + $0xb20] sm:$0xff]
        %v2992 = vld [vmem:[%s276 + $0xb28] sm:$0xff]
        %v2993 = vld [vmem:[%s276 + $0xb30] sm:$0xff]
        %v2994 = vld [vmem:[%s276 + $0xb38] sm:$0xff]
        %v2995 = vld [vmem:[%s276 + $0xb40] sm:$0xff]
        %v2996 = vld [vmem:[%s276 + $0xb48] sm:$0xff]
        %v2997 = vld [vmem:[%s276 + $0xb50] sm:$0xff]
        %v2998 = vld [vmem:[%s276 + $0xb58] sm:$0xff]
        %v2999 = vld [vmem:[%s276 + $0xb60] sm:$0xff]
        %v3000 = vld [vmem:[%s276 + $0xb68] sm:$0xff]
        %v3001 = vld [vmem:[%s276 + $0xb70] sm:$0xff]
        %v3002 = vld [vmem:[%s276 + $0xb78] sm:$0xff]
        %v3003 = vld [vmem:[%s276 + $0xb80] sm:$0xff]
        %v3004 = vld [vmem:[%s276 + $0xb88] sm:$0xff]
        %v3005 = vld [vmem:[%s276 + $0xb90] sm:$0xff]
        %v3006 = vld [vmem:[%s276 + $0xb98] sm:$0xff]
        %v3007 = vld [vmem:[%s276 + $0xba0] sm:$0xff]
        %v3008 = vld [vmem:[%s276 + $0xba8] sm:$0xff]
        %v3009 = vld [vmem:[%s276 + $0xbb0] sm:$0xff]
        %v3010 = vld [vmem:[%s276 + $0xbb8] sm:$0xff]
        %v3011 = vld [vmem:[%s276 + $0xbc0] sm:$0xff]
        %v3012 = vld [vmem:[%s276 + $0xbc8] sm:$0xff]
        %v3013 = vld [vmem:[%s276 + $0xbd0] sm:$0xff]
        %v3014 = vld [vmem:[%s276 + $0xbd8] sm:$0xff]
        %v3015 = vld [vmem:[%s276 + $0xbe0] sm:$0xff]
        %v3016 = vld [vmem:[%s276 + $0xbe8] sm:$0xff]
        %v3017 = vld [vmem:[%s276 + $0xbf0] sm:$0xff]
        %v3018 = vld [vmem:[%s276 + $0xbf8] sm:$0xff]
        %v3019 = vld [vmem:[%s276 + $0xc00] sm:$0xff]
        %v3020 = vld [vmem:[%s276 + $0xc08] sm:$0xff]
        %v3021 = vld [vmem:[%s276 + $0xc10] sm:$0xff]
        %v3022 = vld [vmem:[%s276 + $0xc18] sm:$0xff]
        %v3023 = vld [vmem:[%s276 + $0xc20] sm:$0xff]
        %v3024 = vld [vmem:[%s276 + $0xc28] sm:$0xff]
        %v3025 = vld [vmem:[%s276 + $0xc30] sm:$0xff]
        %v3026 = vld [vmem:[%s276 + $0xc38] sm:$0xff]
        %v3027 = vld [vmem:[%s276 + $0xc40] sm:$0xff]
        %v3028 = vld [vmem:[%s276 + $0xc48] sm:$0xff]
        %v3029 = vld [vmem:[%s276 + $0xc50] sm:$0xff]
        %v3030 = vld [vmem:[%s276 + $0xc58] sm:$0xff]
        %v3031 = vld [vmem:[%s276 + $0xc60] sm:$0xff]
        %v3032 = vld [vmem:[%s276 + $0xc68] sm:$0xff]
        %v3033 = vld [vmem:[%s276 + $0xc70] sm:$0xff]
        %v3034 = vld [vmem:[%s276 + $0xc78] sm:$0xff]
        %v3035 = vld [vmem:[%s276 + $0xc80] sm:$0xff]
        %v3036 = vld [vmem:[%s276 + $0xc88] sm:$0xff]
        %v3037 = vld [vmem:[%s276 + $0xc90] sm:$0xff]
        %v3038 = vld [vmem:[%s276 + $0xc98] sm:$0xff]
        %v3039 = vld [vmem:[%s276 + $0xca0] sm:$0xff]
        %v3040 = vld [vmem:[%s276 + $0xca8] sm:$0xff]
        %v3041 = vld [vmem:[%s276 + $0xcb0] sm:$0xff]
        %v3042 = vld [vmem:[%s276 + $0xcb8] sm:$0xff]
        %v3043 = vld [vmem:[%s276 + $0xcc0] sm:$0xff]
        %v3044 = vld [vmem:[%s276 + $0xcc8] sm:$0xff]
        %v3045 = vld [vmem:[%s276 + $0xcd0] sm:$0xff]
        %v3046 = vld [vmem:[%s276 + $0xcd8] sm:$0xff]
        %v3047 = vld [vmem:[%s276 + $0xce0] sm:$0xff]
        %v3048 = vld [vmem:[%s276 + $0xce8] sm:$0xff]
        %v3049 = vld [vmem:[%s276 + $0xcf0] sm:$0xff]
        %v3050 = vld [vmem:[%s276 + $0xcf8] sm:$0xff]
        %v3051 = vld [vmem:[%s276 + $0xd00] sm:$0xff]
        %v3052 = vld [vmem:[%s276 + $0xd08] sm:$0xff]
        %v3053 = vld [vmem:[%s276 + $0xd10] sm:$0xff]
        %v3054 = vld [vmem:[%s276 + $0xd18] sm:$0xff]
        %v3055 = vld [vmem:[%s276 + $0xd20] sm:$0xff]
        %v3056 = vld [vmem:[%s276 + $0xd28] sm:$0xff]
        %v3057 = vld [vmem:[%s276 + $0xd30] sm:$0xff]
        %v3058 = vld [vmem:[%s276 + $0xd38] sm:$0xff]
        %v3059 = vld [vmem:[%s276 + $0xd40] sm:$0xff]
        %v3060 = vld [vmem:[%s276 + $0xd48] sm:$0xff]
        %v3061 = vld [vmem:[%s276 + $0xd50] sm:$0xff]
        %v3062 = vld [vmem:[%s276 + $0xd58] sm:$0xff]
        %v3063 = vld [vmem:[%s276 + $0xd60] sm:$0xff]
        %v3064 = vld [vmem:[%s276 + $0xd68] sm:$0xff]
        %v3065 = vld [vmem:[%s276 + $0xd70] sm:$0xff]
        %v3066 = vld [vmem:[%s276 + $0xd78] sm:$0xff]
        %v3067 = vld [vmem:[%s276 + $0xd80] sm:$0xff]
        %v3068 = vld [vmem:[%s276 + $0xd88] sm:$0xff]
        %v3069 = vld [vmem:[%s276 + $0xd90] sm:$0xff]
        %v3070 = vld [vmem:[%s276 + $0xd98] sm:$0xff]
        %v3071 = vld [vmem:[%s276 + $0xda0] sm:$0xff]
        %v3072 = vld [vmem:[%s276 + $0xda8] sm:$0xff]
        %v3073 = vld [vmem:[%s276 + $0xdb0] sm:$0xff]
        %v3074 = vld [vmem:[%s276 + $0xdb8] sm:$0xff]
        %v3075 = vld [vmem:[%s276 + $0xdc0] sm:$0xff]
        %v3076 = vld [vmem:[%s276 + $0xdc8] sm:$0xff]
        %v3077 = vld [vmem:[%s276 + $0xdd0] sm:$0xff]
        %v3078 = vld [vmem:[%s276 + $0xdd8] sm:$0xff]
        %v3079 = vld [vmem:[%s276 + $0xde0] sm:$0xff]
        %v3080 = vld [vmem:[%s276 + $0xde8] sm:$0xff]
        %v3081 = vld [vmem:[%s276 + $0xdf0] sm:$0xff]
        %v3082 = vld [vmem:[%s276 + $0xdf8] sm:$0xff]
        %v3083 = vld [vmem:[%s276 + $0xe00] sm:$0xff]
        %v3084 = vld [vmem:[%s276 + $0xe08] sm:$0xff]
        %v3085 = vld [vmem:[%s276 + $0xe10] sm:$0xff]
        %v3086 = vld [vmem:[%s276 + $0xe18] sm:$0xff]
        %v3087 = vld [vmem:[%s276 + $0xe20] sm:$0xff]
        %v3088 = vld [vmem:[%s276 + $0xe28] sm:$0xff]
        %v3089 = vld [vmem:[%s276 + $0xe30] sm:$0xff]
        %v3090 = vld [vmem:[%s276 + $0xe38] sm:$0xff]
        %v3091 = vld [vmem:[%s276 + $0xe40] sm:$0xff]
        %v3092 = vld [vmem:[%s276 + $0xe48] sm:$0xff]
        %v3093 = vld [vmem:[%s276 + $0xe50] sm:$0xff]
        %v3094 = vld [vmem:[%s276 + $0xe58] sm:$0xff]
        %v3095 = vld [vmem:[%s276 + $0xe60] sm:$0xff]
        %v3096 = vld [vmem:[%s276 + $0xe68] sm:$0xff]
        %v3097 = vld [vmem:[%s276 + $0xe70] sm:$0xff]
        %v3098 = vld [vmem:[%s276 + $0xe78] sm:$0xff]
        %v3099 = vld [vmem:[%s276 + $0xe80] sm:$0xff]
        %v3100 = vld [vmem:[%s276 + $0xe88] sm:$0xff]
        %v3101 = vld [vmem:[%s276 + $0xe90] sm:$0xff]
        %v3102 = vld [vmem:[%s276 + $0xe98] sm:$0xff]
        %v3103 = vld [vmem:[%s276 + $0xea0] sm:$0xff]
        %v3104 = vld [vmem:[%s276 + $0xea8] sm:$0xff]
        %v3105 = vld [vmem:[%s276 + $0xeb0] sm:$0xff]
        %v3106 = vld [vmem:[%s276 + $0xeb8] sm:$0xff]
        %v3107 = vld [vmem:[%s276 + $0xec0] sm:$0xff]
        %v3108 = vld [vmem:[%s276 + $0xec8] sm:$0xff]
        %v3109 = vld [vmem:[%s276 + $0xed0] sm:$0xff]
        %v3110 = vld [vmem:[%s276 + $0xed8] sm:$0xff]
        %v3111 = vld [vmem:[%s276 + $0xee0] sm:$0xff]
        %v3112 = vld [vmem:[%s276 + $0xee8] sm:$0xff]
        %v3113 = vld [vmem:[%s276 + $0xef0] sm:$0xff]
        %v3114 = vld [vmem:[%s276 + $0xef8] sm:$0xff]
        %v3115 = vld [vmem:[%s276 + $0xf00] sm:$0xff]
        %v3116 = vld [vmem:[%s276 + $0xf08] sm:$0xff]
        %v3117 = vld [vmem:[%s276 + $0xf10] sm:$0xff]
        %v3118 = vld [vmem:[%s276 + $0xf18] sm:$0xff]
        %v3119 = vld [vmem:[%s276 + $0xf20] sm:$0xff]
        %v3120 = vld [vmem:[%s276 + $0xf28] sm:$0xff]
        %v3121 = vld [vmem:[%s276 + $0xf30] sm:$0xff]
        %v3122 = vld [vmem:[%s276 + $0xf38] sm:$0xff]
        %v3123 = vld [vmem:[%s276 + $0xf40] sm:$0xff]
        %v3124 = vld [vmem:[%s276 + $0xf48] sm:$0xff]
        %v3125 = vld [vmem:[%s276 + $0xf50] sm:$0xff]
        %v3126 = vld [vmem:[%s276 + $0xf58] sm:$0xff]
        %v3127 = vld [vmem:[%s276 + $0xf60] sm:$0xff]
        %v3128 = vld [vmem:[%s276 + $0xf68] sm:$0xff]
        %v3129 = vld [vmem:[%s276 + $0xf70] sm:$0xff]
        %v3130 = vld [vmem:[%s276 + $0xf78] sm:$0xff]
        %v3131 = vld [vmem:[%s276 + $0xf80] sm:$0xff]
        %v3132 = vld [vmem:[%s276 + $0xf88] sm:$0xff]
        %v3133 = vld [vmem:[%s276 + $0xf90] sm:$0xff]
        %v3134 = vld [vmem:[%s276 + $0xf98] sm:$0xff]
        %v3135 = vld [vmem:[%s276 + $0xfa0] sm:$0xff]
        %v3136 = vld [vmem:[%s276 + $0xfa8] sm:$0xff]
        %v3137 = vld [vmem:[%s276 + $0xfb0] sm:$0xff]
        %v3138 = vld [vmem:[%s276 + $0xfb8] sm:$0xff]
        %v3139 = vld [vmem:[%s276 + $0xfc0] sm:$0xff]
        %v3140 = vld [vmem:[%s276 + $0xfc8] sm:$0xff]
        %v3141 = vld [vmem:[%s276 + $0xfd0] sm:$0xff]
        %v3142 = vld [vmem:[%s276 + $0xfd8] sm:$0xff]
        %v3143 = vld [vmem:[%s276 + $0xfe0] sm:$0xff]
        %v3144 = vld [vmem:[%s276 + $0xfe8] sm:$0xff]
        %v3145 = vld [vmem:[%s276 + $0xff0] sm:$0xff]
        %v3146 = vld [vmem:[%s276 + $0xff8] sm:$0xff]
        %v3151 = vunpack.c.l.b16 %v2631
        %v3152 = vunpack.c.h.b16 %v2631
        %v3153 = vunpack.c.l.b16 %v2632
        %v3154 = vunpack.c.h.b16 %v2632
        %v3155 = vunpack.c.l.b16 %v2633
        %v3156 = vunpack.c.h.b16 %v2633
        %v3157 = vunpack.c.l.b16 %v2634
        %v3158 = vunpack.c.h.b16 %v2634
        %v3159 = vpack.c.b16 %v3151, %v3151
        %v3160 = vpack.c.b16 %v3152, %v3152
        %v3161 = vpack.c.b16 %v3153, %v3153
        %v3162 = vpack.c.b16 %v3154, %v3154
        %v3163 = vpack.c.b16 %v3155, %v3155
        %v3164 = vpack.c.b16 %v3156, %v3156
        %v3165 = vpack.c.b16 %v3157, %v3157
        %v3166 = vpack.c.b16 %v3158, %v3158
        %v3687 = vunpack.c.l.b16 %v2635
        %v3688 = vunpack.c.h.b16 %v2635
        %v3689 = vunpack.c.l.b16 %v2636
        %v3690 = vunpack.c.h.b16 %v2636
        %v3691 = vunpack.c.l.b16 %v2637
        %v3692 = vunpack.c.h.b16 %v2637
        %v3693 = vunpack.c.l.b16 %v2638
        %v3694 = vunpack.c.h.b16 %v2638
        %v3695 = vunpack.c.l.b16 %v2639
        %v3696 = vunpack.c.h.b16 %v2639
        %v3697 = vunpack.c.l.b16 %v2640
        %v3698 = vunpack.c.h.b16 %v2640
        %v3699 = vunpack.c.l.b16 %v2641
        %v3700 = vunpack.c.h.b16 %v2641
        %v3701 = vunpack.c.l.b16 %v2642
        %v3702 = vunpack.c.h.b16 %v2642
        %v3703 = vunpack.c.l.b16 %v2643
        %v3704 = vunpack.c.h.b16 %v2643
        %v3705 = vunpack.c.l.b16 %v2644
        %v3706 = vunpack.c.h.b16 %v2644
        %v3707 = vunpack.c.l.b16 %v2645
        %v3708 = vunpack.c.h.b16 %v2645
        %v3709 = vunpack.c.l.b16 %v2646
        %v3710 = vunpack.c.h.b16 %v2646
        %v3711 = vunpack.c.l.b16 %v2647
        %v3712 = vunpack.c.h.b16 %v2647
        %v3713 = vunpack.c.l.b16 %v2648
        %v3714 = vunpack.c.h.b16 %v2648
        %v3715 = vunpack.c.l.b16 %v2649
        %v3716 = vunpack.c.h.b16 %v2649
        %v3717 = vunpack.c.l.b16 %v2650
        %v3718 = vunpack.c.h.b16 %v2650
        %v3719 = vunpack.c.l.b16 %v2651
        %v3720 = vunpack.c.h.b16 %v2651
        %v3721 = vunpack.c.l.b16 %v2652
        %v3722 = vunpack.c.h.b16 %v2652
        %v3723 = vunpack.c.l.b16 %v2653
        %v3724 = vunpack.c.h.b16 %v2653
        %v3725 = vunpack.c.l.b16 %v2654
        %v3726 = vunpack.c.h.b16 %v2654
        %v3727 = vunpack.c.l.b16 %v2655
        %v3728 = vunpack.c.h.b16 %v2655
        %v3729 = vunpack.c.l.b16 %v2656
        %v3730 = vunpack.c.h.b16 %v2656
        %v3731 = vunpack.c.l.b16 %v2657
        %v3732 = vunpack.c.h.b16 %v2657
        %v3733 = vunpack.c.l.b16 %v2658
        %v3734 = vunpack.c.h.b16 %v2658
        %v3735 = vunpack.c.l.b16 %v2659
        %v3736 = vunpack.c.h.b16 %v2659
        %v3737 = vunpack.c.l.b16 %v2660
        %v3738 = vunpack.c.h.b16 %v2660
        %v3739 = vunpack.c.l.b16 %v2661
        %v3740 = vunpack.c.h.b16 %v2661
        %v3741 = vunpack.c.l.b16 %v2662
        %v3742 = vunpack.c.h.b16 %v2662
        %v3743 = vunpack.c.l.b16 %v2663
        %v3744 = vunpack.c.h.b16 %v2663
        %v3745 = vunpack.c.l.b16 %v2664
        %v3746 = vunpack.c.h.b16 %v2664
        %v3747 = vunpack.c.l.b16 %v2665
        %v3748 = vunpack.c.h.b16 %v2665
        %v3749 = vunpack.c.l.b16 %v2666
        %v3750 = vunpack.c.h.b16 %v2666
        %v3751 = vunpack.c.l.b16 %v2667
        %v3752 = vunpack.c.h.b16 %v2667
        %v3753 = vunpack.c.l.b16 %v2668
        %v3754 = vunpack.c.h.b16 %v2668
        %v3755 = vunpack.c.l.b16 %v2669
        %v3756 = vunpack.c.h.b16 %v2669
        %v3757 = vunpack.c.l.b16 %v2670
        %v3758 = vunpack.c.h.b16 %v2670
        %v3759 = vunpack.c.l.b16 %v2671
        %v3760 = vunpack.c.h.b16 %v2671
        %v3761 = vunpack.c.l.b16 %v2672
        %v3762 = vunpack.c.h.b16 %v2672
        %v3763 = vunpack.c.l.b16 %v2673
        %v3764 = vunpack.c.h.b16 %v2673
        %v3765 = vunpack.c.l.b16 %v2674
        %v3766 = vunpack.c.h.b16 %v2674
        %v3767 = vunpack.c.l.b16 %v2675
        %v3768 = vunpack.c.h.b16 %v2675
        %v3769 = vunpack.c.l.b16 %v2676
        %v3770 = vunpack.c.h.b16 %v2676
        %v3771 = vunpack.c.l.b16 %v2677
        %v3772 = vunpack.c.h.b16 %v2677
        %v3773 = vunpack.c.l.b16 %v2678
        %v3774 = vunpack.c.h.b16 %v2678
        %v3775 = vunpack.c.l.b16 %v2679
        %v3776 = vunpack.c.h.b16 %v2679
        %v3777 = vunpack.c.l.b16 %v2680
        %v3778 = vunpack.c.h.b16 %v2680
        %v3779 = vunpack.c.l.b16 %v2681
        %v3780 = vunpack.c.h.b16 %v2681
        %v3781 = vunpack.c.l.b16 %v2682
        %v3782 = vunpack.c.h.b16 %v2682
        %v3783 = vunpack.c.l.b16 %v2683
        %v3784 = vunpack.c.h.b16 %v2683
        %v3785 = vunpack.c.l.b16 %v2684
        %v3786 = vunpack.c.h.b16 %v2684
        %v3787 = vunpack.c.l.b16 %v2685
        %v3788 = vunpack.c.h.b16 %v2685
        %v3789 = vunpack.c.l.b16 %v2686
        %v3790 = vunpack.c.h.b16 %v2686
        %v3791 = vunpack.c.l.b16 %v2687
        %v3792 = vunpack.c.h.b16 %v2687
        %v3793 = vunpack.c.l.b16 %v2688
        %v3794 = vunpack.c.h.b16 %v2688
        %v3795 = vunpack.c.l.b16 %v2689
        %v3796 = vunpack.c.h.b16 %v2689
        %v3797 = vunpack.c.l.b16 %v2690
        %v3798 = vunpack.c.h.b16 %v2690
        %v3799 = vunpack.c.l.b16 %v2691
        %v3800 = vunpack.c.h.b16 %v2691
        %v3801 = vunpack.c.l.b16 %v2692
        %v3802 = vunpack.c.h.b16 %v2692
        %v3803 = vunpack.c.l.b16 %v2693
        %v3804 = vunpack.c.h.b16 %v2693
        %v3805 = vunpack.c.l.b16 %v2694
        %v3806 = vunpack.c.h.b16 %v2694
        %v3807 = vunpack.c.l.b16 %v2695
        %v3808 = vunpack.c.h.b16 %v2695
        %v3809 = vunpack.c.l.b16 %v2696
        %v3810 = vunpack.c.h.b16 %v2696
        %v3811 = vunpack.c.l.b16 %v2697
        %v3812 = vunpack.c.h.b16 %v2697
        %v3813 = vunpack.c.l.b16 %v2698
        %v3814 = vunpack.c.h.b16 %v2698
        %v3815 = vunpack.c.l.b16 %v2699
        %v3816 = vunpack.c.h.b16 %v2699
        %v3817 = vunpack.c.l.b16 %v2700
        %v3818 = vunpack.c.h.b16 %v2700
        %v3819 = vunpack.c.l.b16 %v2701
        %v3820 = vunpack.c.h.b16 %v2701
        %v3821 = vunpack.c.l.b16 %v2702
        %v3822 = vunpack.c.h.b16 %v2702
        %v3823 = vunpack.c.l.b16 %v2703
        %v3824 = vunpack.c.h.b16 %v2703
        %v3825 = vunpack.c.l.b16 %v2704
        %v3826 = vunpack.c.h.b16 %v2704
        %v3827 = vunpack.c.l.b16 %v2705
        %v3828 = vunpack.c.h.b16 %v2705
        %v3829 = vunpack.c.l.b16 %v2706
        %v3830 = vunpack.c.h.b16 %v2706
        %v3831 = vunpack.c.l.b16 %v2707
        %v3832 = vunpack.c.h.b16 %v2707
        %v3833 = vunpack.c.l.b16 %v2708
        %v3834 = vunpack.c.h.b16 %v2708
        %v3835 = vunpack.c.l.b16 %v2709
        %v3836 = vunpack.c.h.b16 %v2709
        %v3837 = vunpack.c.l.b16 %v2710
        %v3838 = vunpack.c.h.b16 %v2710
        %v3839 = vunpack.c.l.b16 %v2711
        %v3840 = vunpack.c.h.b16 %v2711
        %v3841 = vunpack.c.l.b16 %v2712
        %v3842 = vunpack.c.h.b16 %v2712
        %v3843 = vunpack.c.l.b16 %v2713
        %v3844 = vunpack.c.h.b16 %v2713
        %v3845 = vunpack.c.l.b16 %v2714
        %v3846 = vunpack.c.h.b16 %v2714
        %v3847 = vunpack.c.l.b16 %v2715
        %v3848 = vunpack.c.h.b16 %v2715
        %v3849 = vunpack.c.l.b16 %v2716
        %v3850 = vunpack.c.h.b16 %v2716
        %v3851 = vunpack.c.l.b16 %v2717
        %v3852 = vunpack.c.h.b16 %v2717
        %v3853 = vunpack.c.l.b16 %v2718
        %v3854 = vunpack.c.h.b16 %v2718
        %v3855 = vunpack.c.l.b16 %v2719
        %v3856 = vunpack.c.h.b16 %v2719
        %v3857 = vunpack.c.l.b16 %v2720
        %v3858 = vunpack.c.h.b16 %v2720
        %v3859 = vunpack.c.l.b16 %v2721
        %v3860 = vunpack.c.h.b16 %v2721
        %v3861 = vunpack.c.l.b16 %v2722
        %v3862 = vunpack.c.h.b16 %v2722
        %v3863 = vunpack.c.l.b16 %v2723
        %v3864 = vunpack.c.h.b16 %v2723
        %v3865 = vunpack.c.l.b16 %v2724
        %v3866 = vunpack.c.h.b16 %v2724
        %v3867 = vunpack.c.l.b16 %v2725
        %v3868 = vunpack.c.h.b16 %v2725
        %v3869 = vunpack.c.l.b16 %v2726
        %v3870 = vunpack.c.h.b16 %v2726
        %v3871 = vunpack.c.l.b16 %v2727
        %v3872 = vunpack.c.h.b16 %v2727
        %v3873 = vunpack.c.l.b16 %v2728
        %v3874 = vunpack.c.h.b16 %v2728
        %v3875 = vunpack.c.l.b16 %v2729
        %v3876 = vunpack.c.h.b16 %v2729
        %v3877 = vunpack.c.l.b16 %v2730
        %v3878 = vunpack.c.h.b16 %v2730
        %v3879 = vunpack.c.l.b16 %v2731
        %v3880 = vunpack.c.h.b16 %v2731
        %v3881 = vunpack.c.l.b16 %v2732
        %v3882 = vunpack.c.h.b16 %v2732
        %v3883 = vunpack.c.l.b16 %v2733
        %v3884 = vunpack.c.h.b16 %v2733
        %v3885 = vunpack.c.l.b16 %v2734
        %v3886 = vunpack.c.h.b16 %v2734
        %v3887 = vunpack.c.l.b16 %v2735
        %v3888 = vunpack.c.h.b16 %v2735
        %v3889 = vunpack.c.l.b16 %v2736
        %v3890 = vunpack.c.h.b16 %v2736
        %v3891 = vunpack.c.l.b16 %v2737
        %v3892 = vunpack.c.h.b16 %v2737
        %v3893 = vunpack.c.l.b16 %v2738
        %v3894 = vunpack.c.h.b16 %v2738
        %v3895 = vunpack.c.l.b16 %v2739
        %v3896 = vunpack.c.h.b16 %v2739
        %v3897 = vunpack.c.l.b16 %v2740
        %v3898 = vunpack.c.h.b16 %v2740
        %v3899 = vunpack.c.l.b16 %v2741
        %v3900 = vunpack.c.h.b16 %v2741
        %v3901 = vunpack.c.l.b16 %v2742
        %v3902 = vunpack.c.h.b16 %v2742
        %v3903 = vunpack.c.l.b16 %v2743
        %v3904 = vunpack.c.h.b16 %v2743
        %v3905 = vunpack.c.l.b16 %v2744
        %v3906 = vunpack.c.h.b16 %v2744
        %v3907 = vunpack.c.l.b16 %v2745
        %v3908 = vunpack.c.h.b16 %v2745
        %v3909 = vunpack.c.l.b16 %v2746
        %v3910 = vunpack.c.h.b16 %v2746
        %v3911 = vunpack.c.l.b16 %v2747
        %v3912 = vunpack.c.h.b16 %v2747
        %v3913 = vunpack.c.l.b16 %v2748
        %v3914 = vunpack.c.h.b16 %v2748
        %v3915 = vunpack.c.l.b16 %v2749
        %v3916 = vunpack.c.h.b16 %v2749
        %v3917 = vunpack.c.l.b16 %v2750
        %v3918 = vunpack.c.h.b16 %v2750
        %v3919 = vunpack.c.l.b16 %v2751
        %v3920 = vunpack.c.h.b16 %v2751
        %v3921 = vunpack.c.l.b16 %v2752
        %v3922 = vunpack.c.h.b16 %v2752
        %v3923 = vunpack.c.l.b16 %v2753
        %v3924 = vunpack.c.h.b16 %v2753
        %v3925 = vunpack.c.l.b16 %v2754
        %v3926 = vunpack.c.h.b16 %v2754
        %v3927 = vunpack.c.l.b16 %v2755
        %v3928 = vunpack.c.h.b16 %v2755
        %v3929 = vunpack.c.l.b16 %v2756
        %v3930 = vunpack.c.h.b16 %v2756
        %v3931 = vunpack.c.l.b16 %v2757
        %v3932 = vunpack.c.h.b16 %v2757
        %v3933 = vunpack.c.l.b16 %v2758
        %v3934 = vunpack.c.h.b16 %v2758
        %v3935 = vunpack.c.l.b16 %v2759
        %v3936 = vunpack.c.h.b16 %v2759
        %v3937 = vunpack.c.l.b16 %v2760
        %v3938 = vunpack.c.h.b16 %v2760
        %v3939 = vunpack.c.l.b16 %v2761
        %v3940 = vunpack.c.h.b16 %v2761
        %v3941 = vunpack.c.l.b16 %v2762
        %v3942 = vunpack.c.h.b16 %v2762
        %v3943 = vunpack.c.l.b16 %v2763
        %v3944 = vunpack.c.h.b16 %v2763
        %v3945 = vunpack.c.l.b16 %v2764
        %v3946 = vunpack.c.h.b16 %v2764
        %v3947 = vunpack.c.l.b16 %v2765
        %v3948 = vunpack.c.h.b16 %v2765
        %v3949 = vunpack.c.l.b16 %v2766
        %v3950 = vunpack.c.h.b16 %v2766
        %v3951 = vunpack.c.l.b16 %v2767
        %v3952 = vunpack.c.h.b16 %v2767
        %v3953 = vunpack.c.l.b16 %v2768
        %v3954 = vunpack.c.h.b16 %v2768
        %v3955 = vunpack.c.l.b16 %v2769
        %v3956 = vunpack.c.h.b16 %v2769
        %v3957 = vunpack.c.l.b16 %v2770
        %v3958 = vunpack.c.h.b16 %v2770
        %v3959 = vunpack.c.l.b16 %v2771
        %v3960 = vunpack.c.h.b16 %v2771
        %v3961 = vunpack.c.l.b16 %v2772
        %v3962 = vunpack.c.h.b16 %v2772
        %v3963 = vunpack.c.l.b16 %v2773
        %v3964 = vunpack.c.h.b16 %v2773
        %v3965 = vunpack.c.l.b16 %v2774
        %v3966 = vunpack.c.h.b16 %v2774
        %v3967 = vunpack.c.l.b16 %v2775
        %v3968 = vunpack.c.h.b16 %v2775
        %v3969 = vunpack.c.l.b16 %v2776
        %v3970 = vunpack.c.h.b16 %v2776
        %v3971 = vunpack.c.l.b16 %v2777
        %v3972 = vunpack.c.h.b16 %v2777
        %v3973 = vunpack.c.l.b16 %v2778
        %v3974 = vunpack.c.h.b16 %v2778
        %v3975 = vunpack.c.l.b16 %v2779
        %v3976 = vunpack.c.h.b16 %v2779
        %v3977 = vunpack.c.l.b16 %v2780
        %v3978 = vunpack.c.h.b16 %v2780
        %v3979 = vunpack.c.l.b16 %v2781
        %v3980 = vunpack.c.h.b16 %v2781
        %v3981 = vunpack.c.l.b16 %v2782
        %v3982 = vunpack.c.h.b16 %v2782
        %v3983 = vunpack.c.l.b16 %v2783
        %v3984 = vunpack.c.h.b16 %v2783
        %v3985 = vunpack.c.l.b16 %v2784
        %v3986 = vunpack.c.h.b16 %v2784
        %v3987 = vunpack.c.l.b16 %v2785
        %v3988 = vunpack.c.h.b16 %v2785
        %v3989 = vunpack.c.l.b16 %v2786
        %v3990 = vunpack.c.h.b16 %v2786
        %v3991 = vunpack.c.l.b16 %v2787
        %v3992 = vunpack.c.h.b16 %v2787
        %v3993 = vunpack.c.l.b16 %v2788
        %v3994 = vunpack.c.h.b16 %v2788
        %v3995 = vunpack.c.l.b16 %v2789
        %v3996 = vunpack.c.h.b16 %v2789
        %v3997 = vunpack.c.l.b16 %v2790
        %v3998 = vunpack.c.h.b16 %v2790
        %v3999 = vunpack.c.l.b16 %v2791
        %v4000 = vunpack.c.h.b16 %v2791
        %v4001 = vunpack.c.l.b16 %v2792
        %v4002 = vunpack.c.h.b16 %v2792
        %v4003 = vunpack.c.l.b16 %v2793
        %v4004 = vunpack.c.h.b16 %v2793
        %v4005 = vunpack.c.l.b16 %v2794
        %v4006 = vunpack.c.h.b16 %v2794
        %v4007 = vunpack.c.l.b16 %v2795
        %v4008 = vunpack.c.h.b16 %v2795
        %v4009 = vunpack.c.l.b16 %v2796
        %v4010 = vunpack.c.h.b16 %v2796
        %v4011 = vunpack.c.l.b16 %v2797
        %v4012 = vunpack.c.h.b16 %v2797
        %v4013 = vunpack.c.l.b16 %v2798
        %v4014 = vunpack.c.h.b16 %v2798
        %v4015 = vunpack.c.l.b16 %v2799
        %v4016 = vunpack.c.h.b16 %v2799
        %v4017 = vunpack.c.l.b16 %v2800
        %v4018 = vunpack.c.h.b16 %v2800
        %v4019 = vunpack.c.l.b16 %v2801
        %v4020 = vunpack.c.h.b16 %v2801
        %v4021 = vunpack.c.l.b16 %v2802
        %v4022 = vunpack.c.h.b16 %v2802
        %v4023 = vunpack.c.l.b16 %v2803
        %v4024 = vunpack.c.h.b16 %v2803
        %v4025 = vunpack.c.l.b16 %v2804
        %v4026 = vunpack.c.h.b16 %v2804
        %v4027 = vunpack.c.l.b16 %v2805
        %v4028 = vunpack.c.h.b16 %v2805
        %v4029 = vunpack.c.l.b16 %v2806
        %v4030 = vunpack.c.h.b16 %v2806
        %v4031 = vunpack.c.l.b16 %v2807
        %v4032 = vunpack.c.h.b16 %v2807
        %v4033 = vunpack.c.l.b16 %v2808
        %v4034 = vunpack.c.h.b16 %v2808
        %v4035 = vunpack.c.l.b16 %v2809
        %v4036 = vunpack.c.h.b16 %v2809
        %v4037 = vunpack.c.l.b16 %v2810
        %v4038 = vunpack.c.h.b16 %v2810
        %v4039 = vunpack.c.l.b16 %v2811
        %v4040 = vunpack.c.h.b16 %v2811
        %v4041 = vunpack.c.l.b16 %v2812
        %v4042 = vunpack.c.h.b16 %v2812
        %v4043 = vunpack.c.l.b16 %v2813
        %v4044 = vunpack.c.h.b16 %v2813
        %v4045 = vunpack.c.l.b16 %v2814
        %v4046 = vunpack.c.h.b16 %v2814
        %v4047 = vunpack.c.l.b16 %v2815
        %v4048 = vunpack.c.h.b16 %v2815
        %v4049 = vunpack.c.l.b16 %v2816
        %v4050 = vunpack.c.h.b16 %v2816
        %v4051 = vunpack.c.l.b16 %v2817
        %v4052 = vunpack.c.h.b16 %v2817
        %v4053 = vunpack.c.l.b16 %v2818
        %v4054 = vunpack.c.h.b16 %v2818
        %v4055 = vunpack.c.l.b16 %v2819
        %v4056 = vunpack.c.h.b16 %v2819
        %v4057 = vunpack.c.l.b16 %v2820
        %v4058 = vunpack.c.h.b16 %v2820
        %v4059 = vunpack.c.l.b16 %v2821
        %v4060 = vunpack.c.h.b16 %v2821
        %v4061 = vunpack.c.l.b16 %v2822
        %v4062 = vunpack.c.h.b16 %v2822
        %v4063 = vunpack.c.l.b16 %v2823
        %v4064 = vunpack.c.h.b16 %v2823
        %v4065 = vunpack.c.l.b16 %v2824
        %v4066 = vunpack.c.h.b16 %v2824
        %v4067 = vunpack.c.l.b16 %v2825
        %v4068 = vunpack.c.h.b16 %v2825
        %v4069 = vunpack.c.l.b16 %v2826
        %v4070 = vunpack.c.h.b16 %v2826
        %v4071 = vunpack.c.l.b16 %v2827
        %v4072 = vunpack.c.h.b16 %v2827
        %v4073 = vunpack.c.l.b16 %v2828
        %v4074 = vunpack.c.h.b16 %v2828
        %v4075 = vunpack.c.l.b16 %v2829
        %v4076 = vunpack.c.h.b16 %v2829
        %v4077 = vunpack.c.l.b16 %v2830
        %v4078 = vunpack.c.h.b16 %v2830
        %v4079 = vunpack.c.l.b16 %v2831
        %v4080 = vunpack.c.h.b16 %v2831
        %v4081 = vunpack.c.l.b16 %v2832
        %v4082 = vunpack.c.h.b16 %v2832
        %v4083 = vunpack.c.l.b16 %v2833
        %v4084 = vunpack.c.h.b16 %v2833
        %v4085 = vunpack.c.l.b16 %v2834
        %v4086 = vunpack.c.h.b16 %v2834
        %v4087 = vunpack.c.l.b16 %v2835
        %v4088 = vunpack.c.h.b16 %v2835
        %v4089 = vunpack.c.l.b16 %v2836
        %v4090 = vunpack.c.h.b16 %v2836
        %v4091 = vunpack.c.l.b16 %v2837
        %v4092 = vunpack.c.h.b16 %v2837
        %v4093 = vunpack.c.l.b16 %v2838
        %v4094 = vunpack.c.h.b16 %v2838
        %v4095 = vunpack.c.l.b16 %v2839
        %v4096 = vunpack.c.h.b16 %v2839
        %v4097 = vunpack.c.l.b16 %v2840
        %v4098 = vunpack.c.h.b16 %v2840
        %v4099 = vunpack.c.l.b16 %v2841
        %v4100 = vunpack.c.h.b16 %v2841
        %v4101 = vunpack.c.l.b16 %v2842
        %v4102 = vunpack.c.h.b16 %v2842
        %v4103 = vunpack.c.l.b16 %v2843
        %v4104 = vunpack.c.h.b16 %v2843
        %v4105 = vunpack.c.l.b16 %v2844
        %v4106 = vunpack.c.h.b16 %v2844
        %v4107 = vunpack.c.l.b16 %v2845
        %v4108 = vunpack.c.h.b16 %v2845
        %v4109 = vunpack.c.l.b16 %v2846
        %v4110 = vunpack.c.h.b16 %v2846
        %v4111 = vunpack.c.l.b16 %v2847
        %v4112 = vunpack.c.h.b16 %v2847
        %v4113 = vunpack.c.l.b16 %v2848
        %v4114 = vunpack.c.h.b16 %v2848
        %v4115 = vunpack.c.l.b16 %v2849
        %v4116 = vunpack.c.h.b16 %v2849
        %v4117 = vunpack.c.l.b16 %v2850
        %v4118 = vunpack.c.h.b16 %v2850
        %v4119 = vunpack.c.l.b16 %v2851
        %v4120 = vunpack.c.h.b16 %v2851
        %v4121 = vunpack.c.l.b16 %v2852
        %v4122 = vunpack.c.h.b16 %v2852
        %v4123 = vunpack.c.l.b16 %v2853
        %v4124 = vunpack.c.h.b16 %v2853
        %v4125 = vunpack.c.l.b16 %v2854
        %v4126 = vunpack.c.h.b16 %v2854
        %v4127 = vunpack.c.l.b16 %v2855
        %v4128 = vunpack.c.h.b16 %v2855
        %v4129 = vunpack.c.l.b16 %v2856
        %v4130 = vunpack.c.h.b16 %v2856
        %v4131 = vunpack.c.l.b16 %v2857
        %v4132 = vunpack.c.h.b16 %v2857
        %v4133 = vunpack.c.l.b16 %v2858
        %v4134 = vunpack.c.h.b16 %v2858
        %v4135 = vunpack.c.l.b16 %v2859
        %v4136 = vunpack.c.h.b16 %v2859
        %v4137 = vunpack.c.l.b16 %v2860
        %v4138 = vunpack.c.h.b16 %v2860
        %v4139 = vunpack.c.l.b16 %v2861
        %v4140 = vunpack.c.h.b16 %v2861
        %v4141 = vunpack.c.l.b16 %v2862
        %v4142 = vunpack.c.h.b16 %v2862
        %v4143 = vunpack.c.l.b16 %v2863
        %v4144 = vunpack.c.h.b16 %v2863
        %v4145 = vunpack.c.l.b16 %v2864
        %v4146 = vunpack.c.h.b16 %v2864
        %v4147 = vunpack.c.l.b16 %v2865
        %v4148 = vunpack.c.h.b16 %v2865
        %v4149 = vunpack.c.l.b16 %v2866
        %v4150 = vunpack.c.h.b16 %v2866
        %v4151 = vunpack.c.l.b16 %v2867
        %v4152 = vunpack.c.h.b16 %v2867
        %v4153 = vunpack.c.l.b16 %v2868
        %v4154 = vunpack.c.h.b16 %v2868
        %v4155 = vunpack.c.l.b16 %v2869
        %v4156 = vunpack.c.h.b16 %v2869
        %v4157 = vunpack.c.l.b16 %v2870
        %v4158 = vunpack.c.h.b16 %v2870
        %v4159 = vunpack.c.l.b16 %v2871
        %v4160 = vunpack.c.h.b16 %v2871
        %v4161 = vunpack.c.l.b16 %v2872
        %v4162 = vunpack.c.h.b16 %v2872
        %v4163 = vunpack.c.l.b16 %v2873
        %v4164 = vunpack.c.h.b16 %v2873
        %v4165 = vunpack.c.l.b16 %v2874
        %v4166 = vunpack.c.h.b16 %v2874
        %v4167 = vunpack.c.l.b16 %v2875
        %v4168 = vunpack.c.h.b16 %v2875
        %v4169 = vunpack.c.l.b16 %v2876
        %v4170 = vunpack.c.h.b16 %v2876
        %v4171 = vunpack.c.l.b16 %v2877
        %v4172 = vunpack.c.h.b16 %v2877
        %v4173 = vunpack.c.l.b16 %v2878
        %v4174 = vunpack.c.h.b16 %v2878
        %v4175 = vunpack.c.l.b16 %v2879
        %v4176 = vunpack.c.h.b16 %v2879
        %v4177 = vunpack.c.l.b16 %v2880
        %v4178 = vunpack.c.h.b16 %v2880
        %v4179 = vunpack.c.l.b16 %v2881
        %v4180 = vunpack.c.h.b16 %v2881
        %v4181 = vunpack.c.l.b16 %v2882
        %v4182 = vunpack.c.h.b16 %v2882
        %v4183 = vunpack.c.l.b16 %v2883
        %v4184 = vunpack.c.h.b16 %v2883
        %v4185 = vunpack.c.l.b16 %v2884
        %v4186 = vunpack.c.h.b16 %v2884
        %v4187 = vunpack.c.l.b16 %v2885
        %v4188 = vunpack.c.h.b16 %v2885
        %v4189 = vunpack.c.l.b16 %v2886
        %v4190 = vunpack.c.h.b16 %v2886
        %v4191 = vunpack.c.l.b16 %v2887
        %v4192 = vunpack.c.h.b16 %v2887
        %v4193 = vunpack.c.l.b16 %v2888
        %v4194 = vunpack.c.h.b16 %v2888
        %v4195 = vunpack.c.l.b16 %v2889
        %v4196 = vunpack.c.h.b16 %v2889
        %v4197 = vunpack.c.l.b16 %v2890
        %v4198 = vunpack.c.h.b16 %v2890
        %v4199 = vunpack.c.l.b16 %v2891
        %v4200 = vunpack.c.h.b16 %v2891
        %v4201 = vunpack.c.l.b16 %v2892
        %v4202 = vunpack.c.h.b16 %v2892
        %v4203 = vunpack.c.l.b16 %v2893
        %v4204 = vunpack.c.h.b16 %v2893
        %v4205 = vunpack.c.l.b16 %v2894
        %v4206 = vunpack.c.h.b16 %v2894
        %v4207 = vunpack.c.l.b16 %v2895
        %v4208 = vunpack.c.h.b16 %v2895
        %v4209 = vunpack.c.l.b16 %v2896
        %v4210 = vunpack.c.h.b16 %v2896
        %v4211 = vunpack.c.l.b16 %v2897
        %v4212 = vunpack.c.h.b16 %v2897
        %v4213 = vunpack.c.l.b16 %v2898
        %v4214 = vunpack.c.h.b16 %v2898
        %v4215 = vunpack.c.l.b16 %v2899
        %v4216 = vunpack.c.h.b16 %v2899
        %v4217 = vunpack.c.l.b16 %v2900
        %v4218 = vunpack.c.h.b16 %v2900
        %v4219 = vunpack.c.l.b16 %v2901
        %v4220 = vunpack.c.h.b16 %v2901
        %v4221 = vunpack.c.l.b16 %v2902
        %v4222 = vunpack.c.h.b16 %v2902
        %v4223 = vunpack.c.l.b16 %v2903
        %v4224 = vunpack.c.h.b16 %v2903
        %v4225 = vunpack.c.l.b16 %v2904
        %v4226 = vunpack.c.h.b16 %v2904
        %v4227 = vunpack.c.l.b16 %v2905
        %v4228 = vunpack.c.h.b16 %v2905
        %v4229 = vunpack.c.l.b16 %v2906
        %v4230 = vunpack.c.h.b16 %v2906
        %v4231 = vunpack.c.l.b16 %v2907
        %v4232 = vunpack.c.h.b16 %v2907
        %v4233 = vunpack.c.l.b16 %v2908
        %v4234 = vunpack.c.h.b16 %v2908
        %v4235 = vunpack.c.l.b16 %v2909
        %v4236 = vunpack.c.h.b16 %v2909
        %v4237 = vunpack.c.l.b16 %v2910
        %v4238 = vunpack.c.h.b16 %v2910
        %v4239 = vunpack.c.l.b16 %v2911
        %v4240 = vunpack.c.h.b16 %v2911
        %v4241 = vunpack.c.l.b16 %v2912
        %v4242 = vunpack.c.h.b16 %v2912
        %v4243 = vunpack.c.l.b16 %v2913
        %v4244 = vunpack.c.h.b16 %v2913
        %v4245 = vunpack.c.l.b16 %v2914
        %v4246 = vunpack.c.h.b16 %v2914
        %v4247 = vunpack.c.l.b16 %v2915
        %v4248 = vunpack.c.h.b16 %v2915
        %v4249 = vunpack.c.l.b16 %v2916
        %v4250 = vunpack.c.h.b16 %v2916
        %v4251 = vunpack.c.l.b16 %v2917
        %v4252 = vunpack.c.h.b16 %v2917
        %v4253 = vunpack.c.l.b16 %v2918
        %v4254 = vunpack.c.h.b16 %v2918
        %v4255 = vunpack.c.l.b16 %v2919
        %v4256 = vunpack.c.h.b16 %v2919
        %v4257 = vunpack.c.l.b16 %v2920
        %v4258 = vunpack.c.h.b16 %v2920
        %v4259 = vunpack.c.l.b16 %v2921
        %v4260 = vunpack.c.h.b16 %v2921
        %v4261 = vunpack.c.l.b16 %v2922
        %v4262 = vunpack.c.h.b16 %v2922
        %v4263 = vunpack.c.l.b16 %v2923
        %v4264 = vunpack.c.h.b16 %v2923
        %v4265 = vunpack.c.l.b16 %v2924
        %v4266 = vunpack.c.h.b16 %v2924
        %v4267 = vunpack.c.l.b16 %v2925
        %v4268 = vunpack.c.h.b16 %v2925
        %v4269 = vunpack.c.l.b16 %v2926
        %v4270 = vunpack.c.h.b16 %v2926
        %v4271 = vunpack.c.l.b16 %v2927
        %v4272 = vunpack.c.h.b16 %v2927
        %v4273 = vunpack.c.l.b16 %v2928
        %v4274 = vunpack.c.h.b16 %v2928
        %v4275 = vunpack.c.l.b16 %v2929
        %v4276 = vunpack.c.h.b16 %v2929
        %v4277 = vunpack.c.l.b16 %v2930
        %v4278 = vunpack.c.h.b16 %v2930
        %v4279 = vunpack.c.l.b16 %v2931
        %v4280 = vunpack.c.h.b16 %v2931
        %v4281 = vunpack.c.l.b16 %v2932
        %v4282 = vunpack.c.h.b16 %v2932
        %v4283 = vunpack.c.l.b16 %v2933
        %v4284 = vunpack.c.h.b16 %v2933
        %v4285 = vunpack.c.l.b16 %v2934
        %v4286 = vunpack.c.h.b16 %v2934
        %v4287 = vunpack.c.l.b16 %v2935
        %v4288 = vunpack.c.h.b16 %v2935
        %v4289 = vunpack.c.l.b16 %v2936
        %v4290 = vunpack.c.h.b16 %v2936
        %v4291 = vunpack.c.l.b16 %v2937
        %v4292 = vunpack.c.h.b16 %v2937
        %v4293 = vunpack.c.l.b16 %v2938
        %v4294 = vunpack.c.h.b16 %v2938
        %v4295 = vunpack.c.l.b16 %v2939
        %v4296 = vunpack.c.h.b16 %v2939
        %v4297 = vunpack.c.l.b16 %v2940
        %v4298 = vunpack.c.h.b16 %v2940
        %v4299 = vunpack.c.l.b16 %v2941
        %v4300 = vunpack.c.h.b16 %v2941
        %v4301 = vunpack.c.l.b16 %v2942
        %v4302 = vunpack.c.h.b16 %v2942
        %v4303 = vunpack.c.l.b16 %v2943
        %v4304 = vunpack.c.h.b16 %v2943
        %v4305 = vunpack.c.l.b16 %v2944
        %v4306 = vunpack.c.h.b16 %v2944
        %v4307 = vunpack.c.l.b16 %v2945
        %v4308 = vunpack.c.h.b16 %v2945
        %v4309 = vunpack.c.l.b16 %v2946
        %v4310 = vunpack.c.h.b16 %v2946
        %v4311 = vunpack.c.l.b16 %v2947
        %v4312 = vunpack.c.h.b16 %v2947
        %v4313 = vunpack.c.l.b16 %v2948
        %v4314 = vunpack.c.h.b16 %v2948
        %v4315 = vunpack.c.l.b16 %v2949
        %v4316 = vunpack.c.h.b16 %v2949
        %v4317 = vunpack.c.l.b16 %v2950
        %v4318 = vunpack.c.h.b16 %v2950
        %v4319 = vunpack.c.l.b16 %v2951
        %v4320 = vunpack.c.h.b16 %v2951
        %v4321 = vunpack.c.l.b16 %v2952
        %v4322 = vunpack.c.h.b16 %v2952
        %v4323 = vunpack.c.l.b16 %v2953
        %v4324 = vunpack.c.h.b16 %v2953
        %v4325 = vunpack.c.l.b16 %v2954
        %v4326 = vunpack.c.h.b16 %v2954
        %v4327 = vunpack.c.l.b16 %v2955
        %v4328 = vunpack.c.h.b16 %v2955
        %v4329 = vunpack.c.l.b16 %v2956
        %v4330 = vunpack.c.h.b16 %v2956
        %v4331 = vunpack.c.l.b16 %v2957
        %v4332 = vunpack.c.h.b16 %v2957
        %v4333 = vunpack.c.l.b16 %v2958
        %v4334 = vunpack.c.h.b16 %v2958
        %v4335 = vunpack.c.l.b16 %v2959
        %v4336 = vunpack.c.h.b16 %v2959
        %v4337 = vunpack.c.l.b16 %v2960
        %v4338 = vunpack.c.h.b16 %v2960
        %v4339 = vunpack.c.l.b16 %v2961
        %v4340 = vunpack.c.h.b16 %v2961
        %v4341 = vunpack.c.l.b16 %v2962
        %v4342 = vunpack.c.h.b16 %v2962
        %v4343 = vunpack.c.l.b16 %v2963
        %v4344 = vunpack.c.h.b16 %v2963
        %v4345 = vunpack.c.l.b16 %v2964
        %v4346 = vunpack.c.h.b16 %v2964
        %v4347 = vunpack.c.l.b16 %v2965
        %v4348 = vunpack.c.h.b16 %v2965
        %v4349 = vunpack.c.l.b16 %v2966
        %v4350 = vunpack.c.h.b16 %v2966
        %v4351 = vunpack.c.l.b16 %v2967
        %v4352 = vunpack.c.h.b16 %v2967
        %v4353 = vunpack.c.l.b16 %v2968
        %v4354 = vunpack.c.h.b16 %v2968
        %v4355 = vunpack.c.l.b16 %v2969
        %v4356 = vunpack.c.h.b16 %v2969
        %v4357 = vunpack.c.l.b16 %v2970
        %v4358 = vunpack.c.h.b16 %v2970
        %v4359 = vunpack.c.l.b16 %v2971
        %v4360 = vunpack.c.h.b16 %v2971
        %v4361 = vunpack.c.l.b16 %v2972
        %v4362 = vunpack.c.h.b16 %v2972
        %v4363 = vunpack.c.l.b16 %v2973
        %v4364 = vunpack.c.h.b16 %v2973
        %v4365 = vunpack.c.l.b16 %v2974
        %v4366 = vunpack.c.h.b16 %v2974
        %v4367 = vunpack.c.l.b16 %v2975
        %v4368 = vunpack.c.h.b16 %v2975
        %v4369 = vunpack.c.l.b16 %v2976
        %v4370 = vunpack.c.h.b16 %v2976
        %v4371 = vunpack.c.l.b16 %v2977
        %v4372 = vunpack.c.h.b16 %v2977
        %v4373 = vunpack.c.l.b16 %v2978
        %v4374 = vunpack.c.h.b16 %v2978
        %v4375 = vunpack.c.l.b16 %v2979
        %v4376 = vunpack.c.h.b16 %v2979
        %v4377 = vunpack.c.l.b16 %v2980
        %v4378 = vunpack.c.h.b16 %v2980
        %v4379 = vunpack.c.l.b16 %v2981
        %v4380 = vunpack.c.h.b16 %v2981
        %v4381 = vunpack.c.l.b16 %v2982
        %v4382 = vunpack.c.h.b16 %v2982
        %v4383 = vunpack.c.l.b16 %v2983
        %v4384 = vunpack.c.h.b16 %v2983
        %v4385 = vunpack.c.l.b16 %v2984
        %v4386 = vunpack.c.h.b16 %v2984
        %v4387 = vunpack.c.l.b16 %v2985
        %v4388 = vunpack.c.h.b16 %v2985
        %v4389 = vunpack.c.l.b16 %v2986
        %v4390 = vunpack.c.h.b16 %v2986
        %v4391 = vunpack.c.l.b16 %v2987
        %v4392 = vunpack.c.h.b16 %v2987
        %v4393 = vunpack.c.l.b16 %v2988
        %v4394 = vunpack.c.h.b16 %v2988
        %v4395 = vunpack.c.l.b16 %v2989
        %v4396 = vunpack.c.h.b16 %v2989
        %v4397 = vunpack.c.l.b16 %v2990
        %v4398 = vunpack.c.h.b16 %v2990
        %v4399 = vunpack.c.l.b16 %v2991
        %v4400 = vunpack.c.h.b16 %v2991
        %v4401 = vunpack.c.l.b16 %v2992
        %v4402 = vunpack.c.h.b16 %v2992
        %v4403 = vunpack.c.l.b16 %v2993
        %v4404 = vunpack.c.h.b16 %v2993
        %v4405 = vunpack.c.l.b16 %v2994
        %v4406 = vunpack.c.h.b16 %v2994
        %v4407 = vunpack.c.l.b16 %v2995
        %v4408 = vunpack.c.h.b16 %v2995
        %v4409 = vunpack.c.l.b16 %v2996
        %v4410 = vunpack.c.h.b16 %v2996
        %v4411 = vunpack.c.l.b16 %v2997
        %v4412 = vunpack.c.h.b16 %v2997
        %v4413 = vunpack.c.l.b16 %v2998
        %v4414 = vunpack.c.h.b16 %v2998
        %v4415 = vunpack.c.l.b16 %v2999
        %v4416 = vunpack.c.h.b16 %v2999
        %v4417 = vunpack.c.l.b16 %v3000
        %v4418 = vunpack.c.h.b16 %v3000
        %v4419 = vunpack.c.l.b16 %v3001
        %v4420 = vunpack.c.h.b16 %v3001
        %v4421 = vunpack.c.l.b16 %v3002
        %v4422 = vunpack.c.h.b16 %v3002
        %v4423 = vunpack.c.l.b16 %v3003
        %v4424 = vunpack.c.h.b16 %v3003
        %v4425 = vunpack.c.l.b16 %v3004
        %v4426 = vunpack.c.h.b16 %v3004
        %v4427 = vunpack.c.l.b16 %v3005
        %v4428 = vunpack.c.h.b16 %v3005
        %v4429 = vunpack.c.l.b16 %v3006
        %v4430 = vunpack.c.h.b16 %v3006
        %v4431 = vunpack.c.l.b16 %v3007
        %v4432 = vunpack.c.h.b16 %v3007
        %v4433 = vunpack.c.l.b16 %v3008
        %v4434 = vunpack.c.h.b16 %v3008
        %v4435 = vunpack.c.l.b16 %v3009
        %v4436 = vunpack.c.h.b16 %v3009
        %v4437 = vunpack.c.l.b16 %v3010
        %v4438 = vunpack.c.h.b16 %v3010
        %v4439 = vunpack.c.l.b16 %v3011
        %v4440 = vunpack.c.h.b16 %v3011
        %v4441 = vunpack.c.l.b16 %v3012
        %v4442 = vunpack.c.h.b16 %v3012
        %v4443 = vunpack.c.l.b16 %v3013
        %v4444 = vunpack.c.h.b16 %v3013
        %v4445 = vunpack.c.l.b16 %v3014
        %v4446 = vunpack.c.h.b16 %v3014
        %v4447 = vunpack.c.l.b16 %v3015
        %v4448 = vunpack.c.h.b16 %v3015
        %v4449 = vunpack.c.l.b16 %v3016
        %v4450 = vunpack.c.h.b16 %v3016
        %v4451 = vunpack.c.l.b16 %v3017
        %v4452 = vunpack.c.h.b16 %v3017
        %v4453 = vunpack.c.l.b16 %v3018
        %v4454 = vunpack.c.h.b16 %v3018
        %v4455 = vunpack.c.l.b16 %v3019
        %v4456 = vunpack.c.h.b16 %v3019
        %v4457 = vunpack.c.l.b16 %v3020
        %v4458 = vunpack.c.h.b16 %v3020
        %v4459 = vunpack.c.l.b16 %v3021
        %v4460 = vunpack.c.h.b16 %v3021
        %v4461 = vunpack.c.l.b16 %v3022
        %v4462 = vunpack.c.h.b16 %v3022
        %v4463 = vunpack.c.l.b16 %v3023
        %v4464 = vunpack.c.h.b16 %v3023
        %v4465 = vunpack.c.l.b16 %v3024
        %v4466 = vunpack.c.h.b16 %v3024
        %v4467 = vunpack.c.l.b16 %v3025
        %v4468 = vunpack.c.h.b16 %v3025
        %v4469 = vunpack.c.l.b16 %v3026
        %v4470 = vunpack.c.h.b16 %v3026
        %v4471 = vunpack.c.l.b16 %v3027
        %v4472 = vunpack.c.h.b16 %v3027
        %v4473 = vunpack.c.l.b16 %v3028
        %v4474 = vunpack.c.h.b16 %v3028
        %v4475 = vunpack.c.l.b16 %v3029
        %v4476 = vunpack.c.h.b16 %v3029
        %v4477 = vunpack.c.l.b16 %v3030
        %v4478 = vunpack.c.h.b16 %v3030
        %v4479 = vunpack.c.l.b16 %v3031
        %v4480 = vunpack.c.h.b16 %v3031
        %v4481 = vunpack.c.l.b16 %v3032
        %v4482 = vunpack.c.h.b16 %v3032
        %v4483 = vunpack.c.l.b16 %v3033
        %v4484 = vunpack.c.h.b16 %v3033
        %v4485 = vunpack.c.l.b16 %v3034
        %v4486 = vunpack.c.h.b16 %v3034
        %v4487 = vunpack.c.l.b16 %v3035
        %v4488 = vunpack.c.h.b16 %v3035
        %v4489 = vunpack.c.l.b16 %v3036
        %v4490 = vunpack.c.h.b16 %v3036
        %v4491 = vunpack.c.l.b16 %v3037
        %v4492 = vunpack.c.h.b16 %v3037
        %v4493 = vunpack.c.l.b16 %v3038
        %v4494 = vunpack.c.h.b16 %v3038
        %v4495 = vunpack.c.l.b16 %v3039
        %v4496 = vunpack.c.h.b16 %v3039
        %v4497 = vunpack.c.l.b16 %v3040
        %v4498 = vunpack.c.h.b16 %v3040
        %v4499 = vunpack.c.l.b16 %v3041
        %v4500 = vunpack.c.h.b16 %v3041
        %v4501 = vunpack.c.l.b16 %v3042
        %v4502 = vunpack.c.h.b16 %v3042
        %v4503 = vunpack.c.l.b16 %v3043
        %v4504 = vunpack.c.h.b16 %v3043
        %v4505 = vunpack.c.l.b16 %v3044
        %v4506 = vunpack.c.h.b16 %v3044
        %v4507 = vunpack.c.l.b16 %v3045
        %v4508 = vunpack.c.h.b16 %v3045
        %v4509 = vunpack.c.l.b16 %v3046
        %v4510 = vunpack.c.h.b16 %v3046
        %v4511 = vunpack.c.l.b16 %v3047
        %v4512 = vunpack.c.h.b16 %v3047
        %v4513 = vunpack.c.l.b16 %v3048
        %v4514 = vunpack.c.h.b16 %v3048
        %v4515 = vunpack.c.l.b16 %v3049
        %v4516 = vunpack.c.h.b16 %v3049
        %v4517 = vunpack.c.l.b16 %v3050
        %v4518 = vunpack.c.h.b16 %v3050
        %v4519 = vunpack.c.l.b16 %v3051
        %v4520 = vunpack.c.h.b16 %v3051
        %v4521 = vunpack.c.l.b16 %v3052
        %v4522 = vunpack.c.h.b16 %v3052
        %v4523 = vunpack.c.l.b16 %v3053
        %v4524 = vunpack.c.h.b16 %v3053
        %v4525 = vunpack.c.l.b16 %v3054
        %v4526 = vunpack.c.h.b16 %v3054
        %v4527 = vunpack.c.l.b16 %v3055
        %v4528 = vunpack.c.h.b16 %v3055
        %v4529 = vunpack.c.l.b16 %v3056
        %v4530 = vunpack.c.h.b16 %v3056
        %v4531 = vunpack.c.l.b16 %v3057
        %v4532 = vunpack.c.h.b16 %v3057
        %v4533 = vunpack.c.l.b16 %v3058
        %v4534 = vunpack.c.h.b16 %v3058
        %v4535 = vunpack.c.l.b16 %v3059
        %v4536 = vunpack.c.h.b16 %v3059
        %v4537 = vunpack.c.l.b16 %v3060
        %v4538 = vunpack.c.h.b16 %v3060
        %v4539 = vunpack.c.l.b16 %v3061
        %v4540 = vunpack.c.h.b16 %v3061
        %v4541 = vunpack.c.l.b16 %v3062
        %v4542 = vunpack.c.h.b16 %v3062
        %v4543 = vunpack.c.l.b16 %v3063
        %v4544 = vunpack.c.h.b16 %v3063
        %v4545 = vunpack.c.l.b16 %v3064
        %v4546 = vunpack.c.h.b16 %v3064
        %v4547 = vunpack.c.l.b16 %v3065
        %v4548 = vunpack.c.h.b16 %v3065
        %v4549 = vunpack.c.l.b16 %v3066
        %v4550 = vunpack.c.h.b16 %v3066
        %v4551 = vunpack.c.l.b16 %v3067
        %v4552 = vunpack.c.h.b16 %v3067
        %v4553 = vunpack.c.l.b16 %v3068
        %v4554 = vunpack.c.h.b16 %v3068
        %v4555 = vunpack.c.l.b16 %v3069
        %v4556 = vunpack.c.h.b16 %v3069
        %v4557 = vunpack.c.l.b16 %v3070
        %v4558 = vunpack.c.h.b16 %v3070
        %v4559 = vunpack.c.l.b16 %v3071
        %v4560 = vunpack.c.h.b16 %v3071
        %v4561 = vunpack.c.l.b16 %v3072
        %v4562 = vunpack.c.h.b16 %v3072
        %v4563 = vunpack.c.l.b16 %v3073
        %v4564 = vunpack.c.h.b16 %v3073
        %v4565 = vunpack.c.l.b16 %v3074
        %v4566 = vunpack.c.h.b16 %v3074
        %v4567 = vunpack.c.l.b16 %v3075
        %v4568 = vunpack.c.h.b16 %v3075
        %v4569 = vunpack.c.l.b16 %v3076
        %v4570 = vunpack.c.h.b16 %v3076
        %v4571 = vunpack.c.l.b16 %v3077
        %v4572 = vunpack.c.h.b16 %v3077
        %v4573 = vunpack.c.l.b16 %v3078
        %v4574 = vunpack.c.h.b16 %v3078
        %v4575 = vunpack.c.l.b16 %v3079
        %v4576 = vunpack.c.h.b16 %v3079
        %v4577 = vunpack.c.l.b16 %v3080
        %v4578 = vunpack.c.h.b16 %v3080
        %v4579 = vunpack.c.l.b16 %v3081
        %v4580 = vunpack.c.h.b16 %v3081
        %v4581 = vunpack.c.l.b16 %v3082
        %v4582 = vunpack.c.h.b16 %v3082
        %v4583 = vunpack.c.l.b16 %v3083
        %v4584 = vunpack.c.h.b16 %v3083
        %v4585 = vunpack.c.l.b16 %v3084
        %v4586 = vunpack.c.h.b16 %v3084
        %v4587 = vunpack.c.l.b16 %v3085
        %v4588 = vunpack.c.h.b16 %v3085
        %v4589 = vunpack.c.l.b16 %v3086
        %v4590 = vunpack.c.h.b16 %v3086
        %v4591 = vunpack.c.l.b16 %v3087
        %v4592 = vunpack.c.h.b16 %v3087
        %v4593 = vunpack.c.l.b16 %v3088
        %v4594 = vunpack.c.h.b16 %v3088
        %v4595 = vunpack.c.l.b16 %v3089
        %v4596 = vunpack.c.h.b16 %v3089
        %v4597 = vunpack.c.l.b16 %v3090
        %v4598 = vunpack.c.h.b16 %v3090
        %v4599 = vunpack.c.l.b16 %v3091
        %v4600 = vunpack.c.h.b16 %v3091
        %v4601 = vunpack.c.l.b16 %v3092
        %v4602 = vunpack.c.h.b16 %v3092
        %v4603 = vunpack.c.l.b16 %v3093
        %v4604 = vunpack.c.h.b16 %v3093
        %v4605 = vunpack.c.l.b16 %v3094
        %v4606 = vunpack.c.h.b16 %v3094
        %v4607 = vunpack.c.l.b16 %v3095
        %v4608 = vunpack.c.h.b16 %v3095
        %v4609 = vunpack.c.l.b16 %v3096
        %v4610 = vunpack.c.h.b16 %v3096
        %v4611 = vunpack.c.l.b16 %v3097
        %v4612 = vunpack.c.h.b16 %v3097
        %v4613 = vunpack.c.l.b16 %v3098
        %v4614 = vunpack.c.h.b16 %v3098
        %v4615 = vunpack.c.l.b16 %v3099
        %v4616 = vunpack.c.h.b16 %v3099
        %v4617 = vunpack.c.l.b16 %v3100
        %v4618 = vunpack.c.h.b16 %v3100
        %v4619 = vunpack.c.l.b16 %v3101
        %v4620 = vunpack.c.h.b16 %v3101
        %v4621 = vunpack.c.l.b16 %v3102
        %v4622 = vunpack.c.h.b16 %v3102
        %v4623 = vunpack.c.l.b16 %v3103
        %v4624 = vunpack.c.h.b16 %v3103
        %v4625 = vunpack.c.l.b16 %v3104
        %v4626 = vunpack.c.h.b16 %v3104
        %v4627 = vunpack.c.l.b16 %v3105
        %v4628 = vunpack.c.h.b16 %v3105
        %v4629 = vunpack.c.l.b16 %v3106
        %v4630 = vunpack.c.h.b16 %v3106
        %v4631 = vunpack.c.l.b16 %v3107
        %v4632 = vunpack.c.h.b16 %v3107
        %v4633 = vunpack.c.l.b16 %v3108
        %v4634 = vunpack.c.h.b16 %v3108
        %v4635 = vunpack.c.l.b16 %v3109
        %v4636 = vunpack.c.h.b16 %v3109
        %v4637 = vunpack.c.l.b16 %v3110
        %v4638 = vunpack.c.h.b16 %v3110
        %v4639 = vunpack.c.l.b16 %v3111
        %v4640 = vunpack.c.h.b16 %v3111
        %v4641 = vunpack.c.l.b16 %v3112
        %v4642 = vunpack.c.h.b16 %v3112
        %v4643 = vunpack.c.l.b16 %v3113
        %v4644 = vunpack.c.h.b16 %v3113
        %v4645 = vunpack.c.l.b16 %v3114
        %v4646 = vunpack.c.h.b16 %v3114
        %v4647 = vunpack.c.l.b16 %v3115
        %v4648 = vunpack.c.h.b16 %v3115
        %v4649 = vunpack.c.l.b16 %v3116
        %v4650 = vunpack.c.h.b16 %v3116
        %v4651 = vunpack.c.l.b16 %v3117
        %v4652 = vunpack.c.h.b16 %v3117
        %v4653 = vunpack.c.l.b16 %v3118
        %v4654 = vunpack.c.h.b16 %v3118
        %v4655 = vunpack.c.l.b16 %v3119
        %v4656 = vunpack.c.h.b16 %v3119
        %v4657 = vunpack.c.l.b16 %v3120
        %v4658 = vunpack.c.h.b16 %v3120
        %v4659 = vunpack.c.l.b16 %v3121
        %v4660 = vunpack.c.h.b16 %v3121
        %v4661 = vunpack.c.l.b16 %v3122
        %v4662 = vunpack.c.h.b16 %v3122
        %v4663 = vunpack.c.l.b16 %v3123
        %v4664 = vunpack.c.h.b16 %v3123
        %v4665 = vunpack.c.l.b16 %v3124
        %v4666 = vunpack.c.h.b16 %v3124
        %v4667 = vunpack.c.l.b16 %v3125
        %v4668 = vunpack.c.h.b16 %v3125
        %v4669 = vunpack.c.l.b16 %v3126
        %v4670 = vunpack.c.h.b16 %v3126
        %v4671 = vunpack.c.l.b16 %v3127
        %v4672 = vunpack.c.h.b16 %v3127
        %v4673 = vunpack.c.l.b16 %v3128
        %v4674 = vunpack.c.h.b16 %v3128
        %v4675 = vunpack.c.l.b16 %v3129
        %v4676 = vunpack.c.h.b16 %v3129
        %v4677 = vunpack.c.l.b16 %v3130
        %v4678 = vunpack.c.h.b16 %v3130
        %v4679 = vunpack.c.l.b16 %v3131
        %v4680 = vunpack.c.h.b16 %v3131
        %v4681 = vunpack.c.l.b16 %v3132
        %v4682 = vunpack.c.h.b16 %v3132
        %v4683 = vunpack.c.l.b16 %v3133
        %v4684 = vunpack.c.h.b16 %v3133
        %v4685 = vunpack.c.l.b16 %v3134
        %v4686 = vunpack.c.h.b16 %v3134
        %v4687 = vunpack.c.l.b16 %v3135
        %v4688 = vunpack.c.h.b16 %v3135
        %v4689 = vunpack.c.l.b16 %v3136
        %v4690 = vunpack.c.h.b16 %v3136
        %v4691 = vunpack.c.l.b16 %v3137
        %v4692 = vunpack.c.h.b16 %v3137
        %v4693 = vunpack.c.l.b16 %v3138
        %v4694 = vunpack.c.h.b16 %v3138
        %v4695 = vunpack.c.l.b16 %v3139
        %v4696 = vunpack.c.h.b16 %v3139
        %v4697 = vunpack.c.l.b16 %v3140
        %v4698 = vunpack.c.h.b16 %v3140
        %v4699 = vunpack.c.l.b16 %v3141
        %v4700 = vunpack.c.h.b16 %v3141
        %v4701 = vunpack.c.l.b16 %v3142
        %v4702 = vunpack.c.h.b16 %v3142
        %v4703 = vunpack.c.l.b16 %v3143
        %v4704 = vunpack.c.h.b16 %v3143
        %v4705 = vunpack.c.l.b16 %v3144
        %v4706 = vunpack.c.h.b16 %v3144
        %v4707 = vunpack.c.l.b16 %v3145
        %v4708 = vunpack.c.h.b16 %v3145
        %v4709 = vunpack.c.l.b16 %v3146
        %v4710 = vunpack.c.h.b16 %v3146
        %v4711 = vpack.c.b16 %v3695, %v3687
        %v4712 = vpack.c.b16 %v3696, %v3688
        %v4713 = vpack.c.b16 %v3697, %v3689
        %v4714 = vpack.c.b16 %v3698, %v3690
        %v4715 = vpack.c.b16 %v3699, %v3691
        %v4716 = vpack.c.b16 %v3700, %v3692
        %v4717 = vpack.c.b16 %v3701, %v3693
        %v4718 = vpack.c.b16 %v3702, %v3694
        %v4719 = vpack.c.b16 %v3711, %v3703
        %v4720 = vpack.c.b16 %v3712, %v3704
        %v4721 = vpack.c.b16 %v3713, %v3705
        %v4722 = vpack.c.b16 %v3714, %v3706
        %v4723 = vpack.c.b16 %v3715, %v3707
        %v4724 = vpack.c.b16 %v3716, %v3708
        %v4725 = vpack.c.b16 %v3717, %v3709
        %v4726 = vpack.c.b16 %v3718, %v3710
        %v4727 = vpack.c.b16 %v3727, %v3719
        %v4728 = vpack.c.b16 %v3728, %v3720
        %v4729 = vpack.c.b16 %v3729, %v3721
        %v4730 = vpack.c.b16 %v3730, %v3722
        %v4731 = vpack.c.b16 %v3731, %v3723
        %v4732 = vpack.c.b16 %v3732, %v3724
        %v4733 = vpack.c.b16 %v3733, %v3725
        %v4734 = vpack.c.b16 %v3734, %v3726
        %v4735 = vpack.c.b16 %v3743, %v3735
        %v4736 = vpack.c.b16 %v3744, %v3736
        %v4737 = vpack.c.b16 %v3745, %v3737
        %v4738 = vpack.c.b16 %v3746, %v3738
        %v4739 = vpack.c.b16 %v3747, %v3739
        %v4740 = vpack.c.b16 %v3748, %v3740
        %v4741 = vpack.c.b16 %v3749, %v3741
        %v4742 = vpack.c.b16 %v3750, %v3742
        %v4743 = vpack.c.b16 %v3759, %v3751
        %v4744 = vpack.c.b16 %v3760, %v3752
        %v4745 = vpack.c.b16 %v3761, %v3753
        %v4746 = vpack.c.b16 %v3762, %v3754
        %v4747 = vpack.c.b16 %v3763, %v3755
        %v4748 = vpack.c.b16 %v3764, %v3756
        %v4749 = vpack.c.b16 %v3765, %v3757
        %v4750 = vpack.c.b16 %v3766, %v3758
        %v4751 = vpack.c.b16 %v3775, %v3767
        %v4752 = vpack.c.b16 %v3776, %v3768
        %v4753 = vpack.c.b16 %v3777, %v3769
        %v4754 = vpack.c.b16 %v3778, %v3770
        %v4755 = vpack.c.b16 %v3779, %v3771
        %v4756 = vpack.c.b16 %v3780, %v3772
        %v4757 = vpack.c.b16 %v3781, %v3773
        %v4758 = vpack.c.b16 %v3782, %v3774
        %v4759 = vpack.c.b16 %v3791, %v3783
        %v4760 = vpack.c.b16 %v3792, %v3784
        %v4761 = vpack.c.b16 %v3793, %v3785
        %v4762 = vpack.c.b16 %v3794, %v3786
        %v4763 = vpack.c.b16 %v3795, %v3787
        %v4764 = vpack.c.b16 %v3796, %v3788
        %v4765 = vpack.c.b16 %v3797, %v3789
        %v4766 = vpack.c.b16 %v3798, %v3790
        %v4767 = vpack.c.b16 %v3807, %v3799
        %v4768 = vpack.c.b16 %v3808, %v3800
        %v4769 = vpack.c.b16 %v3809, %v3801
        %v4770 = vpack.c.b16 %v3810, %v3802
        %v4771 = vpack.c.b16 %v3811, %v3803
        %v4772 = vpack.c.b16 %v3812, %v3804
        %v4773 = vpack.c.b16 %v3813, %v3805
        %v4774 = vpack.c.b16 %v3814, %v3806
        %v4775 = vpack.c.b16 %v3823, %v3815
        %v4776 = vpack.c.b16 %v3824, %v3816
        %v4777 = vpack.c.b16 %v3825, %v3817
        %v4778 = vpack.c.b16 %v3826, %v3818
        %v4779 = vpack.c.b16 %v3827, %v3819
        %v4780 = vpack.c.b16 %v3828, %v3820
        %v4781 = vpack.c.b16 %v3829, %v3821
        %v4782 = vpack.c.b16 %v3830, %v3822
        %v4783 = vpack.c.b16 %v3839, %v3831
        %v4784 = vpack.c.b16 %v3840, %v3832
        %v4785 = vpack.c.b16 %v3841, %v3833
        %v4786 = vpack.c.b16 %v3842, %v3834
        %v4787 = vpack.c.b16 %v3843, %v3835
        %v4788 = vpack.c.b16 %v3844, %v3836
        %v4789 = vpack.c.b16 %v3845, %v3837
        %v4790 = vpack.c.b16 %v3846, %v3838
        %v4791 = vpack.c.b16 %v3855, %v3847
        %v4792 = vpack.c.b16 %v3856, %v3848
        %v4793 = vpack.c.b16 %v3857, %v3849
        %v4794 = vpack.c.b16 %v3858, %v3850
        %v4795 = vpack.c.b16 %v3859, %v3851
        %v4796 = vpack.c.b16 %v3860, %v3852
        %v4797 = vpack.c.b16 %v3861, %v3853
        %v4798 = vpack.c.b16 %v3862, %v3854
        %v4799 = vpack.c.b16 %v3871, %v3863
        %v4800 = vpack.c.b16 %v3872, %v3864
        %v4801 = vpack.c.b16 %v3873, %v3865
        %v4802 = vpack.c.b16 %v3874, %v3866
        %v4803 = vpack.c.b16 %v3875, %v3867
        %v4804 = vpack.c.b16 %v3876, %v3868
        %v4805 = vpack.c.b16 %v3877, %v3869
        %v4806 = vpack.c.b16 %v3878, %v3870
        %v4807 = vpack.c.b16 %v3887, %v3879
        %v4808 = vpack.c.b16 %v3888, %v3880
        %v4809 = vpack.c.b16 %v3889, %v3881
        %v4810 = vpack.c.b16 %v3890, %v3882
        %v4811 = vpack.c.b16 %v3891, %v3883
        %v4812 = vpack.c.b16 %v3892, %v3884
        %v4813 = vpack.c.b16 %v3893, %v3885
        %v4814 = vpack.c.b16 %v3894, %v3886
        %v4815 = vpack.c.b16 %v3903, %v3895
        %v4816 = vpack.c.b16 %v3904, %v3896
        %v4817 = vpack.c.b16 %v3905, %v3897
        %v4818 = vpack.c.b16 %v3906, %v3898
        %v4819 = vpack.c.b16 %v3907, %v3899
        %v4820 = vpack.c.b16 %v3908, %v3900
        %v4821 = vpack.c.b16 %v3909, %v3901
        %v4822 = vpack.c.b16 %v3910, %v3902
        %v4823 = vpack.c.b16 %v3919, %v3911
        %v4824 = vpack.c.b16 %v3920, %v3912
        %v4825 = vpack.c.b16 %v3921, %v3913
        %v4826 = vpack.c.b16 %v3922, %v3914
        %v4827 = vpack.c.b16 %v3923, %v3915
        %v4828 = vpack.c.b16 %v3924, %v3916
        %v4829 = vpack.c.b16 %v3925, %v3917
        %v4830 = vpack.c.b16 %v3926, %v3918
        %v4831 = vpack.c.b16 %v3935, %v3927
        %v4832 = vpack.c.b16 %v3936, %v3928
        %v4833 = vpack.c.b16 %v3937, %v3929
        %v4834 = vpack.c.b16 %v3938, %v3930
        %v4835 = vpack.c.b16 %v3939, %v3931
        %v4836 = vpack.c.b16 %v3940, %v3932
        %v4837 = vpack.c.b16 %v3941, %v3933
        %v4838 = vpack.c.b16 %v3942, %v3934
        %v4839 = vpack.c.b16 %v3951, %v3943
        %v4840 = vpack.c.b16 %v3952, %v3944
        %v4841 = vpack.c.b16 %v3953, %v3945
        %v4842 = vpack.c.b16 %v3954, %v3946
        %v4843 = vpack.c.b16 %v3955, %v3947
        %v4844 = vpack.c.b16 %v3956, %v3948
        %v4845 = vpack.c.b16 %v3957, %v3949
        %v4846 = vpack.c.b16 %v3958, %v3950
        %v4847 = vpack.c.b16 %v3967, %v3959
        %v4848 = vpack.c.b16 %v3968, %v3960
        %v4849 = vpack.c.b16 %v3969, %v3961
        %v4850 = vpack.c.b16 %v3970, %v3962
        %v4851 = vpack.c.b16 %v3971, %v3963
        %v4852 = vpack.c.b16 %v3972, %v3964
        %v4853 = vpack.c.b16 %v3973, %v3965
        %v4854 = vpack.c.b16 %v3974, %v3966
        %v4855 = vpack.c.b16 %v3983, %v3975
        %v4856 = vpack.c.b16 %v3984, %v3976
        %v4857 = vpack.c.b16 %v3985, %v3977
        %v4858 = vpack.c.b16 %v3986, %v3978
        %v4859 = vpack.c.b16 %v3987, %v3979
        %v4860 = vpack.c.b16 %v3988, %v3980
        %v4861 = vpack.c.b16 %v3989, %v3981
        %v4862 = vpack.c.b16 %v3990, %v3982
        %v4863 = vpack.c.b16 %v3999, %v3991
        %v4864 = vpack.c.b16 %v4000, %v3992
        %v4865 = vpack.c.b16 %v4001, %v3993
        %v4866 = vpack.c.b16 %v4002, %v3994
        %v4867 = vpack.c.b16 %v4003, %v3995
        %v4868 = vpack.c.b16 %v4004, %v3996
        %v4869 = vpack.c.b16 %v4005, %v3997
        %v4870 = vpack.c.b16 %v4006, %v3998
        %v4871 = vpack.c.b16 %v4015, %v4007
        %v4872 = vpack.c.b16 %v4016, %v4008
        %v4873 = vpack.c.b16 %v4017, %v4009
        %v4874 = vpack.c.b16 %v4018, %v4010
        %v4875 = vpack.c.b16 %v4019, %v4011
        %v4876 = vpack.c.b16 %v4020, %v4012
        %v4877 = vpack.c.b16 %v4021, %v4013
        %v4878 = vpack.c.b16 %v4022, %v4014
        %v4879 = vpack.c.b16 %v4031, %v4023
        %v4880 = vpack.c.b16 %v4032, %v4024
        %v4881 = vpack.c.b16 %v4033, %v4025
        %v4882 = vpack.c.b16 %v4034, %v4026
        %v4883 = vpack.c.b16 %v4035, %v4027
        %v4884 = vpack.c.b16 %v4036, %v4028
        %v4885 = vpack.c.b16 %v4037, %v4029
        %v4886 = vpack.c.b16 %v4038, %v4030
        %v4887 = vpack.c.b16 %v4047, %v4039
        %v4888 = vpack.c.b16 %v4048, %v4040
        %v4889 = vpack.c.b16 %v4049, %v4041
        %v4890 = vpack.c.b16 %v4050, %v4042
        %v4891 = vpack.c.b16 %v4051, %v4043
        %v4892 = vpack.c.b16 %v4052, %v4044
        %v4893 = vpack.c.b16 %v4053, %v4045
        %v4894 = vpack.c.b16 %v4054, %v4046
        %v4895 = vpack.c.b16 %v4063, %v4055
        %v4896 = vpack.c.b16 %v4064, %v4056
        %v4897 = vpack.c.b16 %v4065, %v4057
        %v4898 = vpack.c.b16 %v4066, %v4058
        %v4899 = vpack.c.b16 %v4067, %v4059
        %v4900 = vpack.c.b16 %v4068, %v4060
        %v4901 = vpack.c.b16 %v4069, %v4061
        %v4902 = vpack.c.b16 %v4070, %v4062
        %v4903 = vpack.c.b16 %v4079, %v4071
        %v4904 = vpack.c.b16 %v4080, %v4072
        %v4905 = vpack.c.b16 %v4081, %v4073
        %v4906 = vpack.c.b16 %v4082, %v4074
        %v4907 = vpack.c.b16 %v4083, %v4075
        %v4908 = vpack.c.b16 %v4084, %v4076
        %v4909 = vpack.c.b16 %v4085, %v4077
        %v4910 = vpack.c.b16 %v4086, %v4078
        %v4911 = vpack.c.b16 %v4095, %v4087
        %v4912 = vpack.c.b16 %v4096, %v4088
        %v4913 = vpack.c.b16 %v4097, %v4089
        %v4914 = vpack.c.b16 %v4098, %v4090
        %v4915 = vpack.c.b16 %v4099, %v4091
        %v4916 = vpack.c.b16 %v4100, %v4092
        %v4917 = vpack.c.b16 %v4101, %v4093
        %v4918 = vpack.c.b16 %v4102, %v4094
        %v4919 = vpack.c.b16 %v4111, %v4103
        %v4920 = vpack.c.b16 %v4112, %v4104
        %v4921 = vpack.c.b16 %v4113, %v4105
        %v4922 = vpack.c.b16 %v4114, %v4106
        %v4923 = vpack.c.b16 %v4115, %v4107
        %v4924 = vpack.c.b16 %v4116, %v4108
        %v4925 = vpack.c.b16 %v4117, %v4109
        %v4926 = vpack.c.b16 %v4118, %v4110
        %v4927 = vpack.c.b16 %v4127, %v4119
        %v4928 = vpack.c.b16 %v4128, %v4120
        %v4929 = vpack.c.b16 %v4129, %v4121
        %v4930 = vpack.c.b16 %v4130, %v4122
        %v4931 = vpack.c.b16 %v4131, %v4123
        %v4932 = vpack.c.b16 %v4132, %v4124
        %v4933 = vpack.c.b16 %v4133, %v4125
        %v4934 = vpack.c.b16 %v4134, %v4126
        %v4935 = vpack.c.b16 %v4143, %v4135
        %v4936 = vpack.c.b16 %v4144, %v4136
        %v4937 = vpack.c.b16 %v4145, %v4137
        %v4938 = vpack.c.b16 %v4146, %v4138
        %v4939 = vpack.c.b16 %v4147, %v4139
        %v4940 = vpack.c.b16 %v4148, %v4140
        %v4941 = vpack.c.b16 %v4149, %v4141
        %v4942 = vpack.c.b16 %v4150, %v4142
        %v4943 = vpack.c.b16 %v4159, %v4151
        %v4944 = vpack.c.b16 %v4160, %v4152
        %v4945 = vpack.c.b16 %v4161, %v4153
        %v4946 = vpack.c.b16 %v4162, %v4154
        %v4947 = vpack.c.b16 %v4163, %v4155
        %v4948 = vpack.c.b16 %v4164, %v4156
        %v4949 = vpack.c.b16 %v4165, %v4157
        %v4950 = vpack.c.b16 %v4166, %v4158
        %v4951 = vpack.c.b16 %v4175, %v4167
        %v4952 = vpack.c.b16 %v4176, %v4168
        %v4953 = vpack.c.b16 %v4177, %v4169
        %v4954 = vpack.c.b16 %v4178, %v4170
        %v4955 = vpack.c.b16 %v4179, %v4171
        %v4956 = vpack.c.b16 %v4180, %v4172
        %v4957 = vpack.c.b16 %v4181, %v4173
        %v4958 = vpack.c.b16 %v4182, %v4174
        %v4959 = vpack.c.b16 %v4191, %v4183
        %v4960 = vpack.c.b16 %v4192, %v4184
        %v4961 = vpack.c.b16 %v4193, %v4185
        %v4962 = vpack.c.b16 %v4194, %v4186
        %v4963 = vpack.c.b16 %v4195, %v4187
        %v4964 = vpack.c.b16 %v4196, %v4188
        %v4965 = vpack.c.b16 %v4197, %v4189
        %v4966 = vpack.c.b16 %v4198, %v4190
        %v4967 = vpack.c.b16 %v4207, %v4199
        %v4968 = vpack.c.b16 %v4208, %v4200
        %v4969 = vpack.c.b16 %v4209, %v4201
        %v4970 = vpack.c.b16 %v4210, %v4202
        %v4971 = vpack.c.b16 %v4211, %v4203
        %v4972 = vpack.c.b16 %v4212, %v4204
        %v4973 = vpack.c.b16 %v4213, %v4205
        %v4974 = vpack.c.b16 %v4214, %v4206
        %v4975 = vpack.c.b16 %v4223, %v4215
        %v4976 = vpack.c.b16 %v4224, %v4216
        %v4977 = vpack.c.b16 %v4225, %v4217
        %v4978 = vpack.c.b16 %v4226, %v4218
        %v4979 = vpack.c.b16 %v4227, %v4219
        %v4980 = vpack.c.b16 %v4228, %v4220
        %v4981 = vpack.c.b16 %v4229, %v4221
        %v4982 = vpack.c.b16 %v4230, %v4222
        %v4983 = vpack.c.b16 %v4239, %v4231
        %v4984 = vpack.c.b16 %v4240, %v4232
        %v4985 = vpack.c.b16 %v4241, %v4233
        %v4986 = vpack.c.b16 %v4242, %v4234
        %v4987 = vpack.c.b16 %v4243, %v4235
        %v4988 = vpack.c.b16 %v4244, %v4236
        %v4989 = vpack.c.b16 %v4245, %v4237
        %v4990 = vpack.c.b16 %v4246, %v4238
        %v4991 = vpack.c.b16 %v4255, %v4247
        %v4992 = vpack.c.b16 %v4256, %v4248
        %v4993 = vpack.c.b16 %v4257, %v4249
        %v4994 = vpack.c.b16 %v4258, %v4250
        %v4995 = vpack.c.b16 %v4259, %v4251
        %v4996 = vpack.c.b16 %v4260, %v4252
        %v4997 = vpack.c.b16 %v4261, %v4253
        %v4998 = vpack.c.b16 %v4262, %v4254
        %v4999 = vpack.c.b16 %v4271, %v4263
        %v5000 = vpack.c.b16 %v4272, %v4264
        %v5001 = vpack.c.b16 %v4273, %v4265
        %v5002 = vpack.c.b16 %v4274, %v4266
        %v5003 = vpack.c.b16 %v4275, %v4267
        %v5004 = vpack.c.b16 %v4276, %v4268
        %v5005 = vpack.c.b16 %v4277, %v4269
        %v5006 = vpack.c.b16 %v4278, %v4270
        %v5007 = vpack.c.b16 %v4287, %v4279
        %v5008 = vpack.c.b16 %v4288, %v4280
        %v5009 = vpack.c.b16 %v4289, %v4281
        %v5010 = vpack.c.b16 %v4290, %v4282
        %v5011 = vpack.c.b16 %v4291, %v4283
        %v5012 = vpack.c.b16 %v4292, %v4284
        %v5013 = vpack.c.b16 %v4293, %v4285
        %v5014 = vpack.c.b16 %v4294, %v4286
        %v5015 = vpack.c.b16 %v4303, %v4295
        %v5016 = vpack.c.b16 %v4304, %v4296
        %v5017 = vpack.c.b16 %v4305, %v4297
        %v5018 = vpack.c.b16 %v4306, %v4298
        %v5019 = vpack.c.b16 %v4307, %v4299
        %v5020 = vpack.c.b16 %v4308, %v4300
        %v5021 = vpack.c.b16 %v4309, %v4301
        %v5022 = vpack.c.b16 %v4310, %v4302
        %v5023 = vpack.c.b16 %v4319, %v4311
        %v5024 = vpack.c.b16 %v4320, %v4312
        %v5025 = vpack.c.b16 %v4321, %v4313
        %v5026 = vpack.c.b16 %v4322, %v4314
        %v5027 = vpack.c.b16 %v4323, %v4315
        %v5028 = vpack.c.b16 %v4324, %v4316
        %v5029 = vpack.c.b16 %v4325, %v4317
        %v5030 = vpack.c.b16 %v4326, %v4318
        %v5031 = vpack.c.b16 %v4335, %v4327
        %v5032 = vpack.c.b16 %v4336, %v4328
        %v5033 = vpack.c.b16 %v4337, %v4329
        %v5034 = vpack.c.b16 %v4338, %v4330
        %v5035 = vpack.c.b16 %v4339, %v4331
        %v5036 = vpack.c.b16 %v4340, %v4332
        %v5037 = vpack.c.b16 %v4341, %v4333
        %v5038 = vpack.c.b16 %v4342, %v4334
        %v5039 = vpack.c.b16 %v4351, %v4343
        %v5040 = vpack.c.b16 %v4352, %v4344
        %v5041 = vpack.c.b16 %v4353, %v4345
        %v5042 = vpack.c.b16 %v4354, %v4346
        %v5043 = vpack.c.b16 %v4355, %v4347
        %v5044 = vpack.c.b16 %v4356, %v4348
        %v5045 = vpack.c.b16 %v4357, %v4349
        %v5046 = vpack.c.b16 %v4358, %v4350
        %v5047 = vpack.c.b16 %v4367, %v4359
        %v5048 = vpack.c.b16 %v4368, %v4360
        %v5049 = vpack.c.b16 %v4369, %v4361
        %v5050 = vpack.c.b16 %v4370, %v4362
        %v5051 = vpack.c.b16 %v4371, %v4363
        %v5052 = vpack.c.b16 %v4372, %v4364
        %v5053 = vpack.c.b16 %v4373, %v4365
        %v5054 = vpack.c.b16 %v4374, %v4366
        %v5055 = vpack.c.b16 %v4383, %v4375
        %v5056 = vpack.c.b16 %v4384, %v4376
        %v5057 = vpack.c.b16 %v4385, %v4377
        %v5058 = vpack.c.b16 %v4386, %v4378
        %v5059 = vpack.c.b16 %v4387, %v4379
        %v5060 = vpack.c.b16 %v4388, %v4380
        %v5061 = vpack.c.b16 %v4389, %v4381
        %v5062 = vpack.c.b16 %v4390, %v4382
        %v5063 = vpack.c.b16 %v4399, %v4391
        %v5064 = vpack.c.b16 %v4400, %v4392
        %v5065 = vpack.c.b16 %v4401, %v4393
        %v5066 = vpack.c.b16 %v4402, %v4394
        %v5067 = vpack.c.b16 %v4403, %v4395
        %v5068 = vpack.c.b16 %v4404, %v4396
        %v5069 = vpack.c.b16 %v4405, %v4397
        %v5070 = vpack.c.b16 %v4406, %v4398
        %v5071 = vpack.c.b16 %v4415, %v4407
        %v5072 = vpack.c.b16 %v4416, %v4408
        %v5073 = vpack.c.b16 %v4417, %v4409
        %v5074 = vpack.c.b16 %v4418, %v4410
        %v5075 = vpack.c.b16 %v4419, %v4411
        %v5076 = vpack.c.b16 %v4420, %v4412
        %v5077 = vpack.c.b16 %v4421, %v4413
        %v5078 = vpack.c.b16 %v4422, %v4414
        %v5079 = vpack.c.b16 %v4431, %v4423
        %v5080 = vpack.c.b16 %v4432, %v4424
        %v5081 = vpack.c.b16 %v4433, %v4425
        %v5082 = vpack.c.b16 %v4434, %v4426
        %v5083 = vpack.c.b16 %v4435, %v4427
        %v5084 = vpack.c.b16 %v4436, %v4428
        %v5085 = vpack.c.b16 %v4437, %v4429
        %v5086 = vpack.c.b16 %v4438, %v4430
        %v5087 = vpack.c.b16 %v4447, %v4439
        %v5088 = vpack.c.b16 %v4448, %v4440
        %v5089 = vpack.c.b16 %v4449, %v4441
        %v5090 = vpack.c.b16 %v4450, %v4442
        %v5091 = vpack.c.b16 %v4451, %v4443
        %v5092 = vpack.c.b16 %v4452, %v4444
        %v5093 = vpack.c.b16 %v4453, %v4445
        %v5094 = vpack.c.b16 %v4454, %v4446
        %v5095 = vpack.c.b16 %v4463, %v4455
        %v5096 = vpack.c.b16 %v4464, %v4456
        %v5097 = vpack.c.b16 %v4465, %v4457
        %v5098 = vpack.c.b16 %v4466, %v4458
        %v5099 = vpack.c.b16 %v4467, %v4459
        %v5100 = vpack.c.b16 %v4468, %v4460
        %v5101 = vpack.c.b16 %v4469, %v4461
        %v5102 = vpack.c.b16 %v4470, %v4462
        %v5103 = vpack.c.b16 %v4479, %v4471
        %v5104 = vpack.c.b16 %v4480, %v4472
        %v5105 = vpack.c.b16 %v4481, %v4473
        %v5106 = vpack.c.b16 %v4482, %v4474
        %v5107 = vpack.c.b16 %v4483, %v4475
        %v5108 = vpack.c.b16 %v4484, %v4476
        %v5109 = vpack.c.b16 %v4485, %v4477
        %v5110 = vpack.c.b16 %v4486, %v4478
        %v5111 = vpack.c.b16 %v4495, %v4487
        %v5112 = vpack.c.b16 %v4496, %v4488
        %v5113 = vpack.c.b16 %v4497, %v4489
        %v5114 = vpack.c.b16 %v4498, %v4490
        %v5115 = vpack.c.b16 %v4499, %v4491
        %v5116 = vpack.c.b16 %v4500, %v4492
        %v5117 = vpack.c.b16 %v4501, %v4493
        %v5118 = vpack.c.b16 %v4502, %v4494
        %v5119 = vpack.c.b16 %v4511, %v4503
        %v5120 = vpack.c.b16 %v4512, %v4504
        %v5121 = vpack.c.b16 %v4513, %v4505
        %v5122 = vpack.c.b16 %v4514, %v4506
        %v5123 = vpack.c.b16 %v4515, %v4507
        %v5124 = vpack.c.b16 %v4516, %v4508
        %v5125 = vpack.c.b16 %v4517, %v4509
        %v5126 = vpack.c.b16 %v4518, %v4510
        %v5127 = vpack.c.b16 %v4527, %v4519
        %v5128 = vpack.c.b16 %v4528, %v4520
        %v5129 = vpack.c.b16 %v4529, %v4521
        %v5130 = vpack.c.b16 %v4530, %v4522
        %v5131 = vpack.c.b16 %v4531, %v4523
        %v5132 = vpack.c.b16 %v4532, %v4524
        %v5133 = vpack.c.b16 %v4533, %v4525
        %v5134 = vpack.c.b16 %v4534, %v4526
        %v5135 = vpack.c.b16 %v4543, %v4535
        %v5136 = vpack.c.b16 %v4544, %v4536
        %v5137 = vpack.c.b16 %v4545, %v4537
        %v5138 = vpack.c.b16 %v4546, %v4538
        %v5139 = vpack.c.b16 %v4547, %v4539
        %v5140 = vpack.c.b16 %v4548, %v4540
        %v5141 = vpack.c.b16 %v4549, %v4541
        %v5142 = vpack.c.b16 %v4550, %v4542
        %v5143 = vpack.c.b16 %v4559, %v4551
        %v5144 = vpack.c.b16 %v4560, %v4552
        %v5145 = vpack.c.b16 %v4561, %v4553
        %v5146 = vpack.c.b16 %v4562, %v4554
        %v5147 = vpack.c.b16 %v4563, %v4555
        %v5148 = vpack.c.b16 %v4564, %v4556
        %v5149 = vpack.c.b16 %v4565, %v4557
        %v5150 = vpack.c.b16 %v4566, %v4558
        %v5151 = vpack.c.b16 %v4575, %v4567
        %v5152 = vpack.c.b16 %v4576, %v4568
        %v5153 = vpack.c.b16 %v4577, %v4569
        %v5154 = vpack.c.b16 %v4578, %v4570
        %v5155 = vpack.c.b16 %v4579, %v4571
        %v5156 = vpack.c.b16 %v4580, %v4572
        %v5157 = vpack.c.b16 %v4581, %v4573
        %v5158 = vpack.c.b16 %v4582, %v4574
        %v5159 = vpack.c.b16 %v4591, %v4583
        %v5160 = vpack.c.b16 %v4592, %v4584
        %v5161 = vpack.c.b16 %v4593, %v4585
        %v5162 = vpack.c.b16 %v4594, %v4586
        %v5163 = vpack.c.b16 %v4595, %v4587
        %v5164 = vpack.c.b16 %v4596, %v4588
        %v5165 = vpack.c.b16 %v4597, %v4589
        %v5166 = vpack.c.b16 %v4598, %v4590
        %v5167 = vpack.c.b16 %v4607, %v4599
        %v5168 = vpack.c.b16 %v4608, %v4600
        %v5169 = vpack.c.b16 %v4609, %v4601
        %v5170 = vpack.c.b16 %v4610, %v4602
        %v5171 = vpack.c.b16 %v4611, %v4603
        %v5172 = vpack.c.b16 %v4612, %v4604
        %v5173 = vpack.c.b16 %v4613, %v4605
        %v5174 = vpack.c.b16 %v4614, %v4606
        %v5175 = vpack.c.b16 %v4623, %v4615
        %v5176 = vpack.c.b16 %v4624, %v4616
        %v5177 = vpack.c.b16 %v4625, %v4617
        %v5178 = vpack.c.b16 %v4626, %v4618
        %v5179 = vpack.c.b16 %v4627, %v4619
        %v5180 = vpack.c.b16 %v4628, %v4620
        %v5181 = vpack.c.b16 %v4629, %v4621
        %v5182 = vpack.c.b16 %v4630, %v4622
        %v5183 = vpack.c.b16 %v4639, %v4631
        %v5184 = vpack.c.b16 %v4640, %v4632
        %v5185 = vpack.c.b16 %v4641, %v4633
        %v5186 = vpack.c.b16 %v4642, %v4634
        %v5187 = vpack.c.b16 %v4643, %v4635
        %v5188 = vpack.c.b16 %v4644, %v4636
        %v5189 = vpack.c.b16 %v4645, %v4637
        %v5190 = vpack.c.b16 %v4646, %v4638
        %v5191 = vpack.c.b16 %v4655, %v4647
        %v5192 = vpack.c.b16 %v4656, %v4648
        %v5193 = vpack.c.b16 %v4657, %v4649
        %v5194 = vpack.c.b16 %v4658, %v4650
        %v5195 = vpack.c.b16 %v4659, %v4651
        %v5196 = vpack.c.b16 %v4660, %v4652
        %v5197 = vpack.c.b16 %v4661, %v4653
        %v5198 = vpack.c.b16 %v4662, %v4654
        %v5199 = vpack.c.b16 %v4671, %v4663
        %v5200 = vpack.c.b16 %v4672, %v4664
        %v5201 = vpack.c.b16 %v4673, %v4665
        %v5202 = vpack.c.b16 %v4674, %v4666
        %v5203 = vpack.c.b16 %v4675, %v4667
        %v5204 = vpack.c.b16 %v4676, %v4668
        %v5205 = vpack.c.b16 %v4677, %v4669
        %v5206 = vpack.c.b16 %v4678, %v4670
        %v5207 = vpack.c.b16 %v4687, %v4679
        %v5208 = vpack.c.b16 %v4688, %v4680
        %v5209 = vpack.c.b16 %v4689, %v4681
        %v5210 = vpack.c.b16 %v4690, %v4682
        %v5211 = vpack.c.b16 %v4691, %v4683
        %v5212 = vpack.c.b16 %v4692, %v4684
        %v5213 = vpack.c.b16 %v4693, %v4685
        %v5214 = vpack.c.b16 %v4694, %v4686
        %v5215 = vpack.c.b16 %v4703, %v4695
        %v5216 = vpack.c.b16 %v4704, %v4696
        %v5217 = vpack.c.b16 %v4705, %v4697
        %v5218 = vpack.c.b16 %v4706, %v4698
        %v5219 = vpack.c.b16 %v4707, %v4699
        %v5220 = vpack.c.b16 %v4708, %v4700
        %v5221 = vpack.c.b16 %v4709, %v4701
        %v5222 = vpack.c.b16 %v4710, %v4702
        %5735 = vmatprep.subr.bf16.mxu0 %v4712
        %5736 = vmatpush1.bf16.msra.mxu0 %v4711
        %5737 = vmatprep.subr.bf16.mxu0 %v4720
        %5738 = vmatpush1.bf16.msra.mxu0 %v4719
        %5739 = vmatprep.subr.bf16.mxu0 %v4728
        %5740 = vmatpush1.bf16.msra.mxu0 %v4727
        %5741 = vmatprep.subr.bf16.mxu0 %v4736
        %5742 = vmatpush1.bf16.msra.mxu0 %v4735
        %5743 = vmatprep.subr.bf16.mxu0 %v4744
        %5744 = vmatpush1.bf16.msra.mxu0 %v4743
        %5745 = vmatprep.subr.bf16.mxu0 %v4752
        %5746 = vmatpush1.bf16.msra.mxu0 %v4751
        %5747 = vmatprep.subr.bf16.mxu0 %v4760
        %5748 = vmatpush1.bf16.msra.mxu0 %v4759
        %5749 = vmatprep.subr.bf16.mxu0 %v4768
        %5750 = vmatpush1.bf16.msra.mxu0 %v4767
        %5751 = vmatprep.subr.bf16.mxu0 %v4776
        %5752 = vmatpush1.bf16.msra.mxu0 %v4775
        %5753 = vmatprep.subr.bf16.mxu0 %v4784
        %5754 = vmatpush1.bf16.msra.mxu0 %v4783
        %5755 = vmatprep.subr.bf16.mxu0 %v4792
        %5756 = vmatpush1.bf16.msra.mxu0 %v4791
        %5757 = vmatprep.subr.bf16.mxu0 %v4800
        %5758 = vmatpush1.bf16.msra.mxu0 %v4799
        %5759 = vmatprep.subr.bf16.mxu0 %v4808
        %5760 = vmatpush1.bf16.msra.mxu0 %v4807
        %5761 = vmatprep.subr.bf16.mxu0 %v4816
        %5762 = vmatpush1.bf16.msra.mxu0 %v4815
        %5763 = vmatprep.subr.bf16.mxu0 %v4824
        %5764 = vmatpush1.bf16.msra.mxu0 %v4823
        %5765 = vmatprep.subr.bf16.mxu0 %v4832
        %5766 = vmatpush1.bf16.msra.mxu0 %v4831
        %5767 = vmatprep.mubr.bf16.mxu0 %v3160
        %5768 = vmatmul.mubr.bf16.gmra.mrb[0].mxu0 %v3159
        %v5769 = vpop.f32.mrb[0].mxu0
        %v5770 = vadd.f32 0.0, %v5769
        %v5771 = vpop.f32.mrb[0].mxu0
        %v5772 = vadd.f32 0.0, %v5771
        %v5773 = vpop.f32.mrb[0].mxu0
        %v5774 = vpop.f32.mrb[0].mxu0
        %5775 = vdwg.mxu0
        %5776 = vmatprep.subr.bf16.mxu0 %v4840
        %5777 = vmatpush1.bf16.msra.mxu0 %v4839
        %5778 = vmatprep.subr.bf16.mxu0 %v4848
        %5779 = vmatpush1.bf16.msra.mxu0 %v4847
        %5780 = vmatprep.subr.bf16.mxu0 %v4856
        %5781 = vmatpush1.bf16.msra.mxu0 %v4855
        %5782 = vmatprep.subr.bf16.mxu0 %v4864
        %5783 = vmatpush1.bf16.msra.mxu0 %v4863
        %5784 = vmatprep.subr.bf16.mxu0 %v4872
        %5785 = vmatpush1.bf16.msra.mxu0 %v4871
        %5786 = vmatprep.subr.bf16.mxu0 %v4880
        %5787 = vmatpush1.bf16.msra.mxu0 %v4879
        %5788 = vmatprep.subr.bf16.mxu0 %v4888
        %5789 = vmatpush1.bf16.msra.mxu0 %v4887
        %5790 = vmatprep.subr.bf16.mxu0 %v4896
        %5791 = vmatpush1.bf16.msra.mxu0 %v4895
        %5792 = vmatprep.subr.bf16.mxu0 %v4904
        %5793 = vmatpush1.bf16.msra.mxu0 %v4903
        %5794 = vmatprep.subr.bf16.mxu0 %v4912
        %5795 = vmatpush1.bf16.msra.mxu0 %v4911
        %5796 = vmatprep.subr.bf16.mxu0 %v4920
        %5797 = vmatpush1.bf16.msra.mxu0 %v4919
        %5798 = vmatprep.subr.bf16.mxu0 %v4928
        %5799 = vmatpush1.bf16.msra.mxu0 %v4927
        %5800 = vmatprep.subr.bf16.mxu0 %v4936
        %5801 = vmatpush1.bf16.msra.mxu0 %v4935
        %5802 = vmatprep.subr.bf16.mxu0 %v4944
        %5803 = vmatpush1.bf16.msra.mxu0 %v4943
        %5804 = vmatprep.subr.bf16.mxu0 %v4952
        %5805 = vmatpush1.bf16.msra.mxu0 %v4951
        %5806 = vmatprep.subr.bf16.mxu0 %v4960
        %5807 = vmatpush1.bf16.msra.mxu0 %v4959
        %5808 = vmatprep.mubr.bf16.mxu0 %v3162
        %5809 = vmatmul.mubr.bf16.gmra.mrb[0].mxu0 %v3161
        %v5810 = vpop.f32.mrb[0].mxu0
        %v5811 = vadd.f32 %v5770, %v5810
        %v5812 = vpop.f32.mrb[0].mxu0
        %v5813 = vadd.f32 %v5772, %v5812
        %v5814 = vpop.f32.mrb[0].mxu0
        %v5815 = vpop.f32.mrb[0].mxu0
        %5816 = vdwg.mxu0
        %5817 = vmatprep.subr.bf16.mxu0 %v4968
        %5818 = vmatpush1.bf16.msra.mxu0 %v4967
        %5819 = vmatprep.subr.bf16.mxu0 %v4976
        %5820 = vmatpush1.bf16.msra.mxu0 %v4975
        %5821 = vmatprep.subr.bf16.mxu0 %v4984
        %5822 = vmatpush1.bf16.msra.mxu0 %v4983
        %5823 = vmatprep.subr.bf16.mxu0 %v4992
        %5824 = vmatpush1.bf16.msra.mxu0 %v4991
        %5825 = vmatprep.subr.bf16.mxu0 %v5000
        %5826 = vmatpush1.bf16.msra.mxu0 %v4999
        %5827 = vmatprep.subr.bf16.mxu0 %v5008
        %5828 = vmatpush1.bf16.msra.mxu0 %v5007
        %5829 = vmatprep.subr.bf16.mxu0 %v5016
        %5830 = vmatpush1.bf16.msra.mxu0 %v5015
        %5831 = vmatprep.subr.bf16.mxu0 %v5024
        %5832 = vmatpush1.bf16.msra.mxu0 %v5023
        %5833 = vmatprep.subr.bf16.mxu0 %v5032
        %5834 = vmatpush1.bf16.msra.mxu0 %v5031
        %5835 = vmatprep.subr.bf16.mxu0 %v5040
        %5836 = vmatpush1.bf16.msra.mxu0 %v5039
        %5837 = vmatprep.subr.bf16.mxu0 %v5048
        %5838 = vmatpush1.bf16.msra.mxu0 %v5047
        %5839 = vmatprep.subr.bf16.mxu0 %v5056
        %5840 = vmatpush1.bf16.msra.mxu0 %v5055
        %5841 = vmatprep.subr.bf16.mxu0 %v5064
        %5842 = vmatpush1.bf16.msra.mxu0 %v5063
        %5843 = vmatprep.subr.bf16.mxu0 %v5072
        %5844 = vmatpush1.bf16.msra.mxu0 %v5071
        %5845 = vmatprep.subr.bf16.mxu0 %v5080
        %5846 = vmatpush1.bf16.msra.mxu0 %v5079
        %5847 = vmatprep.subr.bf16.mxu0 %v5088
        %5848 = vmatpush1.bf16.msra.mxu0 %v5087
        %5849 = vmatprep.mubr.bf16.mxu0 %v3164
        %5850 = vmatmul.mubr.bf16.gmra.mrb[0].mxu0 %v3163
        %v5851 = vpop.f32.mrb[0].mxu0
        %v5852 = vadd.f32 %v5811, %v5851
        %v5853 = vpop.f32.mrb[0].mxu0
        %v5854 = vadd.f32 %v5813, %v5853
        %v5855 = vpop.f32.mrb[0].mxu0
        %v5856 = vpop.f32.mrb[0].mxu0
        %5857 = vdwg.mxu0
        %5858 = vmatprep.subr.bf16.mxu0 %v5096
        %5859 = vmatpush1.bf16.msra.mxu0 %v5095
        %5860 = vmatprep.subr.bf16.mxu0 %v5104
        %5861 = vmatpush1.bf16.msra.mxu0 %v5103
        %5862 = vmatprep.subr.bf16.mxu0 %v5112
        %5863 = vmatpush1.bf16.msra.mxu0 %v5111
        %5864 = vmatprep.subr.bf16.mxu0 %v5120
        %5865 = vmatpush1.bf16.msra.mxu0 %v5119
        %5866 = vmatprep.subr.bf16.mxu0 %v5128
        %5867 = vmatpush1.bf16.msra.mxu0 %v5127
        %5868 = vmatprep.subr.bf16.mxu0 %v5136
        %5869 = vmatpush1.bf16.msra.mxu0 %v5135
        %5870 = vmatprep.subr.bf16.mxu0 %v5144
        %5871 = vmatpush1.bf16.msra.mxu0 %v5143
        %5872 = vmatprep.subr.bf16.mxu0 %v5152
        %5873 = vmatpush1.bf16.msra.mxu0 %v5151
        %5874 = vmatprep.subr.bf16.mxu0 %v5160
        %5875 = vmatpush1.bf16.msra.mxu0 %v5159
        %5876 = vmatprep.subr.bf16.mxu0 %v5168
        %5877 = vmatpush1.bf16.msra.mxu0 %v5167
        %5878 = vmatprep.subr.bf16.mxu0 %v5176
        %5879 = vmatpush1.bf16.msra.mxu0 %v5175
        %5880 = vmatprep.subr.bf16.mxu0 %v5184
        %5881 = vmatpush1.bf16.msra.mxu0 %v5183
        %5882 = vmatprep.subr.bf16.mxu0 %v5192
        %5883 = vmatpush1.bf16.msra.mxu0 %v5191
        %5884 = vmatprep.subr.bf16.mxu0 %v5200
        %5885 = vmatpush1.bf16.msra.mxu0 %v5199
        %5886 = vmatprep.subr.bf16.mxu0 %v5208
        %5887 = vmatpush1.bf16.msra.mxu0 %v5207
        %5888 = vmatprep.subr.bf16.mxu0 %v5216
        %5889 = vmatpush1.bf16.msra.mxu0 %v5215
        %5890 = vmatprep.mubr.bf16.mxu0 %v3166
        %5891 = vmatmul.mubr.bf16.gmra.mrb[0].mxu0 %v3165
        %v5892 = vpop.f32.mrb[0].mxu0
        %v5893 = vadd.f32 %v5852, %v5892
        %v5894 = vpop.f32.mrb[0].mxu0
        %v5895 = vadd.f32 %v5854, %v5894
        %v5896 = vpop.f32.mrb[0].mxu0
        %v5897 = vpop.f32.mrb[0].mxu0
        %5898 = vdwg.mxu0
        %5899 = vmatprep.subr.bf16.mxu0 %v4714
        %5900 = vmatpush1.bf16.msra.mxu0 %v4713
        %5901 = vmatprep.subr.bf16.mxu0 %v4722
        %5902 = vmatpush1.bf16.msra.mxu0 %v4721
        %5903 = vmatprep.subr.bf16.mxu0 %v4730
        %5904 = vmatpush1.bf16.msra.mxu0 %v4729
        %5905 = vmatprep.subr.bf16.mxu0 %v4738
        %5906 = vmatpush1.bf16.msra.mxu0 %v4737
        %5907 = vmatprep.subr.bf16.mxu0 %v4746
        %5908 = vmatpush1.bf16.msra.mxu0 %v4745
        %5909 = vmatprep.subr.bf16.mxu0 %v4754
        %5910 = vmatpush1.bf16.msra.mxu0 %v4753
        %5911 = vmatprep.subr.bf16.mxu0 %v4762
        %5912 = vmatpush1.bf16.msra.mxu0 %v4761
        %5913 = vmatprep.subr.bf16.mxu0 %v4770
        %5914 = vmatpush1.bf16.msra.mxu0 %v4769
        %5915 = vmatprep.subr.bf16.mxu0 %v4778
        %5916 = vmatpush1.bf16.msra.mxu0 %v4777
        %5917 = vmatprep.subr.bf16.mxu0 %v4786
        %5918 = vmatpush1.bf16.msra.mxu0 %v4785
        %5919 = vmatprep.subr.bf16.mxu0 %v4794
        %5920 = vmatpush1.bf16.msra.mxu0 %v4793
        %5921 = vmatprep.subr.bf16.mxu0 %v4802
        %5922 = vmatpush1.bf16.msra.mxu0 %v4801
        %5923 = vmatprep.subr.bf16.mxu0 %v4810
        %5924 = vmatpush1.bf16.msra.mxu0 %v4809
        %5925 = vmatprep.subr.bf16.mxu0 %v4818
        %5926 = vmatpush1.bf16.msra.mxu0 %v4817
        %5927 = vmatprep.subr.bf16.mxu0 %v4826
        %5928 = vmatpush1.bf16.msra.mxu0 %v4825
        %5929 = vmatprep.subr.bf16.mxu0 %v4834
        %5930 = vmatpush1.bf16.msra.mxu0 %v4833
        %5931 = vmatprep.mubr.bf16.mxu0 %v3160
        %5932 = vmatmul.mubr.bf16.gmra.mrb[0].mxu0 %v3159
        %v5933 = vpop.f32.mrb[0].mxu0
        %v5934 = vadd.f32 0.0, %v5933
        %v5935 = vpop.f32.mrb[0].mxu0
        %v5936 = vadd.f32 0.0, %v5935
        %v5937 = vpop.f32.mrb[0].mxu0
        %v5938 = vpop.f32.mrb[0].mxu0
        %5939 = vdwg.mxu0
        %5940 = vmatprep.subr.bf16.mxu0 %v4842
        %5941 = vmatpush1.bf16.msra.mxu0 %v4841
        %5942 = vmatprep.subr.bf16.mxu0 %v4850
        %5943 = vmatpush1.bf16.msra.mxu0 %v4849
        %5944 = vmatprep.subr.bf16.mxu0 %v4858
        %5945 = vmatpush1.bf16.msra.mxu0 %v4857
        %5946 = vmatprep.subr.bf16.mxu0 %v4866
        %5947 = vmatpush1.bf16.msra.mxu0 %v4865
        %5948 = vmatprep.subr.bf16.mxu0 %v4874
        %5949 = vmatpush1.bf16.msra.mxu0 %v4873
        %5950 = vmatprep.subr.bf16.mxu0 %v4882
        %5951 = vmatpush1.bf16.msra.mxu0 %v4881
        %5952 = vmatprep.subr.bf16.mxu0 %v4890
        %5953 = vmatpush1.bf16.msra.mxu0 %v4889
        %5954 = vmatprep.subr.bf16.mxu0 %v4898
        %5955 = vmatpush1.bf16.msra.mxu0 %v4897
        %5956 = vmatprep.subr.bf16.mxu0 %v4906
        %5957 = vmatpush1.bf16.msra.mxu0 %v4905
        %5958 = vmatprep.subr.bf16.mxu0 %v4914
        %5959 = vmatpush1.bf16.msra.mxu0 %v4913
        %5960 = vmatprep.subr.bf16.mxu0 %v4922
        %5961 = vmatpush1.bf16.msra.mxu0 %v4921
        %5962 = vmatprep.subr.bf16.mxu0 %v4930
        %5963 = vmatpush1.bf16.msra.mxu0 %v4929
        %5964 = vmatprep.subr.bf16.mxu0 %v4938
        %5965 = vmatpush1.bf16.msra.mxu0 %v4937
        %5966 = vmatprep.subr.bf16.mxu0 %v4946
        %5967 = vmatpush1.bf16.msra.mxu0 %v4945
        %5968 = vmatprep.subr.bf16.mxu0 %v4954
        %5969 = vmatpush1.bf16.msra.mxu0 %v4953
        %5970 = vmatprep.subr.bf16.mxu0 %v4962
        %5971 = vmatpush1.bf16.msra.mxu0 %v4961
        %5972 = vmatprep.mubr.bf16.mxu0 %v3162
        %5973 = vmatmul.mubr.bf16.gmra.mrb[0].mxu0 %v3161
        %v5974 = vpop.f32.mrb[0].mxu0
        %v5975 = vadd.f32 %v5934, %v5974
        %v5976 = vpop.f32.mrb[0].mxu0
        %v5977 = vadd.f32 %v5936, %v5976
        %v5978 = vpop.f32.mrb[0].mxu0
        %v5979 = vpop.f32.mrb[0].mxu0
        %5980 = vdwg.mxu0
        %5981 = vmatprep.subr.bf16.mxu0 %v4970
        %5982 = vmatpush1.bf16.msra.mxu0 %v4969
        %5983 = vmatprep.subr.bf16.mxu0 %v4978
        %5984 = vmatpush1.bf16.msra.mxu0 %v4977
        %5985 = vmatprep.subr.bf16.mxu0 %v4986
        %5986 = vmatpush1.bf16.msra.mxu0 %v4985
        %5987 = vmatprep.subr.bf16.mxu0 %v4994
        %5988 = vmatpush1.bf16.msra.mxu0 %v4993
        %5989 = vmatprep.subr.bf16.mxu0 %v5002
        %5990 = vmatpush1.bf16.msra.mxu0 %v5001
        %5991 = vmatprep.subr.bf16.mxu0 %v5010
        %5992 = vmatpush1.bf16.msra.mxu0 %v5009
        %5993 = vmatprep.subr.bf16.mxu0 %v5018
        %5994 = vmatpush1.bf16.msra.mxu0 %v5017
        %5995 = vmatprep.subr.bf16.mxu0 %v5026
        %5996 = vmatpush1.bf16.msra.mxu0 %v5025
        %5997 = vmatprep.subr.bf16.mxu0 %v5034
        %5998 = vmatpush1.bf16.msra.mxu0 %v5033
        %5999 = vmatprep.subr.bf16.mxu0 %v5042
        %6000 = vmatpush1.bf16.msra.mxu0 %v5041
        %6001 = vmatprep.subr.bf16.mxu0 %v5050
        %6002 = vmatpush1.bf16.msra.mxu0 %v5049
        %6003 = vmatprep.subr.bf16.mxu0 %v5058
        %6004 = vmatpush1.bf16.msra.mxu0 %v5057
        %6005 = vmatprep.subr.bf16.mxu0 %v5066
        %6006 = vmatpush1.bf16.msra.mxu0 %v5065
        %6007 = vmatprep.subr.bf16.mxu0 %v5074
        %6008 = vmatpush1.bf16.msra.mxu0 %v5073
        %6009 = vmatprep.subr.bf16.mxu0 %v5082
        %6010 = vmatpush1.bf16.msra.mxu0 %v5081
        %6011 = vmatprep.subr.bf16.mxu0 %v5090
        %6012 = vmatpush1.bf16.msra.mxu0 %v5089
        %6013 = vmatprep.mubr.bf16.mxu0 %v3164
        %6014 = vmatmul.mubr.bf16.gmra.mrb[0].mxu0 %v3163
        %v6015 = vpop.f32.mrb[0].mxu0
        %v6016 = vadd.f32 %v5975, %v6015
        %v6017 = vpop.f32.mrb[0].mxu0
        %v6018 = vadd.f32 %v5977, %v6017
        %v6019 = vpop.f32.mrb[0].mxu0
        %v6020 = vpop.f32.mrb[0].mxu0
        %6021 = vdwg.mxu0
        %6022 = vmatprep.subr.bf16.mxu0 %v5098
        %6023 = vmatpush1.bf16.msra.mxu0 %v5097
        %6024 = vmatprep.subr.bf16.mxu0 %v5106
        %6025 = vmatpush1.bf16.msra.mxu0 %v5105
        %6026 = vmatprep.subr.bf16.mxu0 %v5114
        %6027 = vmatpush1.bf16.msra.mxu0 %v5113
        %6028 = vmatprep.subr.bf16.mxu0 %v5122
        %6029 = vmatpush1.bf16.msra.mxu0 %v5121
        %6030 = vmatprep.subr.bf16.mxu0 %v5130
        %6031 = vmatpush1.bf16.msra.mxu0 %v5129
        %6032 = vmatprep.subr.bf16.mxu0 %v5138
        %6033 = vmatpush1.bf16.msra.mxu0 %v5137
        %6034 = vmatprep.subr.bf16.mxu0 %v5146
        %6035 = vmatpush1.bf16.msra.mxu0 %v5145
        %6036 = vmatprep.subr.bf16.mxu0 %v5154
        %6037 = vmatpush1.bf16.msra.mxu0 %v5153
        %6038 = vmatprep.subr.bf16.mxu0 %v5162
        %6039 = vmatpush1.bf16.msra.mxu0 %v5161
        %6040 = vmatprep.subr.bf16.mxu0 %v5170
        %6041 = vmatpush1.bf16.msra.mxu0 %v5169
        %6042 = vmatprep.subr.bf16.mxu0 %v5178
        %6043 = vmatpush1.bf16.msra.mxu0 %v5177
        %6044 = vmatprep.subr.bf16.mxu0 %v5186
        %6045 = vmatpush1.bf16.msra.mxu0 %v5185
        %6046 = vmatprep.subr.bf16.mxu0 %v5194
        %6047 = vmatpush1.bf16.msra.mxu0 %v5193
        %6048 = vmatprep.subr.bf16.mxu0 %v5202
        %6049 = vmatpush1.bf16.msra.mxu0 %v5201
        %6050 = vmatprep.subr.bf16.mxu0 %v5210
        %6051 = vmatpush1.bf16.msra.mxu0 %v5209
        %6052 = vmatprep.subr.bf16.mxu0 %v5218
        %6053 = vmatpush1.bf16.msra.mxu0 %v5217
        %6054 = vmatprep.mubr.bf16.mxu0 %v3166
        %6055 = vmatmul.mubr.bf16.gmra.mrb[0].mxu0 %v3165
        %v6056 = vpop.f32.mrb[0].mxu0
        %v6057 = vadd.f32 %v6016, %v6056
        %v6058 = vpop.f32.mrb[0].mxu0
        %v6059 = vadd.f32 %v6018, %v6058
        %v6060 = vpop.f32.mrb[0].mxu0
        %v6061 = vpop.f32.mrb[0].mxu0
        %6062 = vdwg.mxu0
        %6063 = vmatprep.subr.bf16.mxu0 %v4716
        %6064 = vmatpush1.bf16.msra.mxu0 %v4715
        %6065 = vmatprep.subr.bf16.mxu0 %v4724
        %6066 = vmatpush1.bf16.msra.mxu0 %v4723
        %6067 = vmatprep.subr.bf16.mxu0 %v4732
        %6068 = vmatpush1.bf16.msra.mxu0 %v4731
        %6069 = vmatprep.subr.bf16.mxu0 %v4740
        %6070 = vmatpush1.bf16.msra.mxu0 %v4739
        %6071 = vmatprep.subr.bf16.mxu0 %v4748
        %6072 = vmatpush1.bf16.msra.mxu0 %v4747
        %6073 = vmatprep.subr.bf16.mxu0 %v4756
        %6074 = vmatpush1.bf16.msra.mxu0 %v4755
        %6075 = vmatprep.subr.bf16.mxu0 %v4764
        %6076 = vmatpush1.bf16.msra.mxu0 %v4763
        %6077 = vmatprep.subr.bf16.mxu0 %v4772
        %6078 = vmatpush1.bf16.msra.mxu0 %v4771
        %6079 = vmatprep.subr.bf16.mxu0 %v4780
        %6080 = vmatpush1.bf16.msra.mxu0 %v4779
        %6081 = vmatprep.subr.bf16.mxu0 %v4788
        %6082 = vmatpush1.bf16.msra.mxu0 %v4787
        %6083 = vmatprep.subr.bf16.mxu0 %v4796
        %6084 = vmatpush1.bf16.msra.mxu0 %v4795
        %6085 = vmatprep.subr.bf16.mxu0 %v4804
        %6086 = vmatpush1.bf16.msra.mxu0 %v4803
        %6087 = vmatprep.subr.bf16.mxu0 %v4812
        %6088 = vmatpush1.bf16.msra.mxu0 %v4811
        %6089 = vmatprep.subr.bf16.mxu0 %v4820
        %6090 = vmatpush1.bf16.msra.mxu0 %v4819
        %6091 = vmatprep.subr.bf16.mxu0 %v4828
        %6092 = vmatpush1.bf16.msra.mxu0 %v4827
        %6093 = vmatprep.subr.bf16.mxu0 %v4836
        %6094 = vmatpush1.bf16.msra.mxu0 %v4835
        %6095 = vmatprep.mubr.bf16.mxu0 %v3160
        %6096 = vmatmul.mubr.bf16.gmra.mrb[0].mxu0 %v3159
        %v6097 = vpop.f32.mrb[0].mxu0
        %v6098 = vadd.f32 0.0, %v6097
        %v6099 = vpop.f32.mrb[0].mxu0
        %v6100 = vadd.f32 0.0, %v6099
        %v6101 = vpop.f32.mrb[0].mxu0
        %v6102 = vpop.f32.mrb[0].mxu0
        %6103 = vdwg.mxu0
        %6104 = vmatprep.subr.bf16.mxu0 %v4844
        %6105 = vmatpush1.bf16.msra.mxu0 %v4843
        %6106 = vmatprep.subr.bf16.mxu0 %v4852
        %6107 = vmatpush1.bf16.msra.mxu0 %v4851
        %6108 = vmatprep.subr.bf16.mxu0 %v4860
        %6109 = vmatpush1.bf16.msra.mxu0 %v4859
        %6110 = vmatprep.subr.bf16.mxu0 %v4868
        %6111 = vmatpush1.bf16.msra.mxu0 %v4867
        %6112 = vmatprep.subr.bf16.mxu0 %v4876
        %6113 = vmatpush1.bf16.msra.mxu0 %v4875
        %6114 = vmatprep.subr.bf16.mxu0 %v4884
        %6115 = vmatpush1.bf16.msra.mxu0 %v4883
        %6116 = vmatprep.subr.bf16.mxu0 %v4892
        %6117 = vmatpush1.bf16.msra.mxu0 %v4891
        %6118 = vmatprep.subr.bf16.mxu0 %v4900
        %6119 = vmatpush1.bf16.msra.mxu0 %v4899
        %6120 = vmatprep.subr.bf16.mxu0 %v4908
        %6121 = vmatpush1.bf16.msra.mxu0 %v4907
        %6122 = vmatprep.subr.bf16.mxu0 %v4916
        %6123 = vmatpush1.bf16.msra.mxu0 %v4915
        %6124 = vmatprep.subr.bf16.mxu0 %v4924
        %6125 = vmatpush1.bf16.msra.mxu0 %v4923
        %6126 = vmatprep.subr.bf16.mxu0 %v4932
        %6127 = vmatpush1.bf16.msra.mxu0 %v4931
        %6128 = vmatprep.subr.bf16.mxu0 %v4940
        %6129 = vmatpush1.bf16.msra.mxu0 %v4939
        %6130 = vmatprep.subr.bf16.mxu0 %v4948
        %6131 = vmatpush1.bf16.msra.mxu0 %v4947
        %6132 = vmatprep.subr.bf16.mxu0 %v4956
        %6133 = vmatpush1.bf16.msra.mxu0 %v4955
        %6134 = vmatprep.subr.bf16.mxu0 %v4964
        %6135 = vmatpush1.bf16.msra.mxu0 %v4963
        %6136 = vmatprep.mubr.bf16.mxu0 %v3162
        %6137 = vmatmul.mubr.bf16.gmra.mrb[0].mxu0 %v3161
        %v6138 = vpop.f32.mrb[0].mxu0
        %v6139 = vadd.f32 %v6098, %v6138
        %v6140 = vpop.f32.mrb[0].mxu0
        %v6141 = vadd.f32 %v6100, %v6140
        %v6142 = vpop.f32.mrb[0].mxu0
        %v6143 = vpop.f32.mrb[0].mxu0
        %6144 = vdwg.mxu0
        %6145 = vmatprep.subr.bf16.mxu0 %v4972
        %6146 = vmatpush1.bf16.msra.mxu0 %v4971
        %6147 = vmatprep.subr.bf16.mxu0 %v4980
        %6148 = vmatpush1.bf16.msra.mxu0 %v4979
        %6149 = vmatprep.subr.bf16.mxu0 %v4988
        %6150 = vmatpush1.bf16.msra.mxu0 %v4987
        %6151 = vmatprep.subr.bf16.mxu0 %v4996
        %6152 = vmatpush1.bf16.msra.mxu0 %v4995
        %6153 = vmatprep.subr.bf16.mxu0 %v5004
        %6154 = vmatpush1.bf16.msra.mxu0 %v5003
        %6155 = vmatprep.subr.bf16.mxu0 %v5012
        %6156 = vmatpush1.bf16.msra.mxu0 %v5011
        %6157 = vmatprep.subr.bf16.mxu0 %v5020
        %6158 = vmatpush1.bf16.msra.mxu0 %v5019
        %6159 = vmatprep.subr.bf16.mxu0 %v5028
        %6160 = vmatpush1.bf16.msra.mxu0 %v5027
        %6161 = vmatprep.subr.bf16.mxu0 %v5036
        %6162 = vmatpush1.bf16.msra.mxu0 %v5035
        %6163 = vmatprep.subr.bf16.mxu0 %v5044
        %6164 = vmatpush1.bf16.msra.mxu0 %v5043
        %6165 = vmatprep.subr.bf16.mxu0 %v5052
        %6166 = vmatpush1.bf16.msra.mxu0 %v5051
        %6167 = vmatprep.subr.bf16.mxu0 %v5060
        %6168 = vmatpush1.bf16.msra.mxu0 %v5059
        %6169 = vmatprep.subr.bf16.mxu0 %v5068
        %6170 = vmatpush1.bf16.msra.mxu0 %v5067
        %6171 = vmatprep.subr.bf16.mxu0 %v5076
        %6172 = vmatpush1.bf16.msra.mxu0 %v5075
        %6173 = vmatprep.subr.bf16.mxu0 %v5084
        %6174 = vmatpush1.bf16.msra.mxu0 %v5083
        %6175 = vmatprep.subr.bf16.mxu0 %v5092
        %6176 = vmatpush1.bf16.msra.mxu0 %v5091
        %6177 = vmatprep.mubr.bf16.mxu0 %v3164
        %6178 = vmatmul.mubr.bf16.gmra.mrb[0].mxu0 %v3163
        %v6179 = vpop.f32.mrb[0].mxu0
        %v6180 = vadd.f32 %v6139, %v6179
        %v6181 = vpop.f32.mrb[0].mxu0
        %v6182 = vadd.f32 %v6141, %v6181
        %v6183 = vpop.f32.mrb[0].mxu0
        %v6184 = vpop.f32.mrb[0].mxu0
        %6185 = vdwg.mxu0
        %6186 = vmatprep.subr.bf16.mxu0 %v5100
        %6187 = vmatpush1.bf16.msra.mxu0 %v5099
        %6188 = vmatprep.subr.bf16.mxu0 %v5108
        %6189 = vmatpush1.bf16.msra.mxu0 %v5107
        %6190 = vmatprep.subr.bf16.mxu0 %v5116
        %6191 = vmatpush1.bf16.msra.mxu0 %v5115
        %6192 = vmatprep.subr.bf16.mxu0 %v5124
        %6193 = vmatpush1.bf16.msra.mxu0 %v5123
        %6194 = vmatprep.subr.bf16.mxu0 %v5132
        %6195 = vmatpush1.bf16.msra.mxu0 %v5131
        %6196 = vmatprep.subr.bf16.mxu0 %v5140
        %6197 = vmatpush1.bf16.msra.mxu0 %v5139
        %6198 = vmatprep.subr.bf16.mxu0 %v5148
        %6199 = vmatpush1.bf16.msra.mxu0 %v5147
        %6200 = vmatprep.subr.bf16.mxu0 %v5156
        %6201 = vmatpush1.bf16.msra.mxu0 %v5155
        %6202 = vmatprep.subr.bf16.mxu0 %v5164
        %6203 = vmatpush1.bf16.msra.mxu0 %v5163
        %6204 = vmatprep.subr.bf16.mxu0 %v5172
        %6205 = vmatpush1.bf16.msra.mxu0 %v5171
        %6206 = vmatprep.subr.bf16.mxu0 %v5180
        %6207 = vmatpush1.bf16.msra.mxu0 %v5179
        %6208 = vmatprep.subr.bf16.mxu0 %v5188
        %6209 = vmatpush1.bf16.msra.mxu0 %v5187
        %6210 = vmatprep.subr.bf16.mxu0 %v5196
        %6211 = vmatpush1.bf16.msra.mxu0 %v5195
        %6212 = vmatprep.subr.bf16.mxu0 %v5204
        %6213 = vmatpush1.bf16.msra.mxu0 %v5203
        %6214 = vmatprep.subr.bf16.mxu0 %v5212
        %6215 = vmatpush1.bf16.msra.mxu0 %v5211
        %6216 = vmatprep.subr.bf16.mxu0 %v5220
        %6217 = vmatpush1.bf16.msra.mxu0 %v5219
        %6218 = vmatprep.mubr.bf16.mxu0 %v3166
        %6219 = vmatmul.mubr.bf16.gmra.mrb[0].mxu0 %v3165
        %v6220 = vpop.f32.mrb[0].mxu0
        %v6221 = vadd.f32 %v6180, %v6220
        %v6222 = vpop.f32.mrb[0].mxu0
        %v6223 = vadd.f32 %v6182, %v6222
        %v6224 = vpop.f32.mrb[0].mxu0
        %v6225 = vpop.f32.mrb[0].mxu0
        %6226 = vdwg.mxu0
        %6227 = vmatprep.subr.bf16.mxu0 %v4718
        %6228 = vmatpush1.bf16.msra.mxu0 %v4717
        %6229 = vmatprep.subr.bf16.mxu0 %v4726
        %6230 = vmatpush1.bf16.msra.mxu0 %v4725
        %6231 = vmatprep.subr.bf16.mxu0 %v4734
        %6232 = vmatpush1.bf16.msra.mxu0 %v4733
        %6233 = vmatprep.subr.bf16.mxu0 %v4742
        %6234 = vmatpush1.bf16.msra.mxu0 %v4741
        %6235 = vmatprep.subr.bf16.mxu0 %v4750
        %6236 = vmatpush1.bf16.msra.mxu0 %v4749
        %6237 = vmatprep.subr.bf16.mxu0 %v4758
        %6238 = vmatpush1.bf16.msra.mxu0 %v4757
        %6239 = vmatprep.subr.bf16.mxu0 %v4766
        %6240 = vmatpush1.bf16.msra.mxu0 %v4765
        %6241 = vmatprep.subr.bf16.mxu0 %v4774
        %6242 = vmatpush1.bf16.msra.mxu0 %v4773
        %6243 = vmatprep.subr.bf16.mxu0 %v4782
        %6244 = vmatpush1.bf16.msra.mxu0 %v4781
        %6245 = vmatprep.subr.bf16.mxu0 %v4790
        %6246 = vmatpush1.bf16.msra.mxu0 %v4789
        %6247 = vmatprep.subr.bf16.mxu0 %v4798
        %6248 = vmatpush1.bf16.msra.mxu0 %v4797
        %6249 = vmatprep.subr.bf16.mxu0 %v4806
        %6250 = vmatpush1.bf16.msra.mxu0 %v4805
        %6251 = vmatprep.subr.bf16.mxu0 %v4814
        %6252 = vmatpush1.bf16.msra.mxu0 %v4813
        %6253 = vmatprep.subr.bf16.mxu0 %v4822
        %6254 = vmatpush1.bf16.msra.mxu0 %v4821
        %6255 = vmatprep.subr.bf16.mxu0 %v4830
        %6256 = vmatpush1.bf16.msra.mxu0 %v4829
        %6257 = vmatprep.subr.bf16.mxu0 %v4838
        %6258 = vmatpush1.bf16.msra.mxu0 %v4837
        %6259 = vmatprep.mubr.bf16.mxu0 %v3160
        %6260 = vmatmul.mubr.bf16.gmra.mrb[0].mxu0 %v3159
        %v6261 = vpop.f32.mrb[0].mxu0
        %v6262 = vadd.f32 0.0, %v6261
        %v6263 = vpop.f32.mrb[0].mxu0
        %v6264 = vadd.f32 0.0, %v6263
        %v6265 = vpop.f32.mrb[0].mxu0
        %v6266 = vpop.f32.mrb[0].mxu0
        %6267 = vdwg.mxu0
        %6268 = vmatprep.subr.bf16.mxu0 %v4846
        %6269 = vmatpush1.bf16.msra.mxu0 %v4845
        %6270 = vmatprep.subr.bf16.mxu0 %v4854
        %6271 = vmatpush1.bf16.msra.mxu0 %v4853
        %6272 = vmatprep.subr.bf16.mxu0 %v4862
        %6273 = vmatpush1.bf16.msra.mxu0 %v4861
        %6274 = vmatprep.subr.bf16.mxu0 %v4870
        %6275 = vmatpush1.bf16.msra.mxu0 %v4869
        %6276 = vmatprep.subr.bf16.mxu0 %v4878
        %6277 = vmatpush1.bf16.msra.mxu0 %v4877
        %6278 = vmatprep.subr.bf16.mxu0 %v4886
        %6279 = vmatpush1.bf16.msra.mxu0 %v4885
        %6280 = vmatprep.subr.bf16.mxu0 %v4894
        %6281 = vmatpush1.bf16.msra.mxu0 %v4893
        %6282 = vmatprep.subr.bf16.mxu0 %v4902
        %6283 = vmatpush1.bf16.msra.mxu0 %v4901
        %6284 = vmatprep.subr.bf16.mxu0 %v4910
        %6285 = vmatpush1.bf16.msra.mxu0 %v4909
        %6286 = vmatprep.subr.bf16.mxu0 %v4918
        %6287 = vmatpush1.bf16.msra.mxu0 %v4917
        %6288 = vmatprep.subr.bf16.mxu0 %v4926
        %6289 = vmatpush1.bf16.msra.mxu0 %v4925
        %6290 = vmatprep.subr.bf16.mxu0 %v4934
        %6291 = vmatpush1.bf16.msra.mxu0 %v4933
        %6292 = vmatprep.subr.bf16.mxu0 %v4942
        %6293 = vmatpush1.bf16.msra.mxu0 %v4941
        %6294 = vmatprep.subr.bf16.mxu0 %v4950
        %6295 = vmatpush1.bf16.msra.mxu0 %v4949
        %6296 = vmatprep.subr.bf16.mxu0 %v4958
        %6297 = vmatpush1.bf16.msra.mxu0 %v4957
        %6298 = vmatprep.subr.bf16.mxu0 %v4966
        %6299 = vmatpush1.bf16.msra.mxu0 %v4965
        %6300 = vmatprep.mubr.bf16.mxu0 %v3162
        %6301 = vmatmul.mubr.bf16.gmra.mrb[0].mxu0 %v3161
        %v6302 = vpop.f32.mrb[0].mxu0
        %v6303 = vadd.f32 %v6262, %v6302
        %v6304 = vpop.f32.mrb[0].mxu0
        %v6305 = vadd.f32 %v6264, %v6304
        %v6306 = vpop.f32.mrb[0].mxu0
        %v6307 = vpop.f32.mrb[0].mxu0
        %6308 = vdwg.mxu0
        %6309 = vmatprep.subr.bf16.mxu0 %v4974
        %6310 = vmatpush1.bf16.msra.mxu0 %v4973
        %6311 = vmatprep.subr.bf16.mxu0 %v4982
        %6312 = vmatpush1.bf16.msra.mxu0 %v4981
        %6313 = vmatprep.subr.bf16.mxu0 %v4990
        %6314 = vmatpush1.bf16.msra.mxu0 %v4989
        %6315 = vmatprep.subr.bf16.mxu0 %v4998
        %6316 = vmatpush1.bf16.msra.mxu0 %v4997
        %6317 = vmatprep.subr.bf16.mxu0 %v5006
        %6318 = vmatpush1.bf16.msra.mxu0 %v5005
        %6319 = vmatprep.subr.bf16.mxu0 %v5014
        %6320 = vmatpush1.bf16.msra.mxu0 %v5013
        %6321 = vmatprep.subr.bf16.mxu0 %v5022
        %6322 = vmatpush1.bf16.msra.mxu0 %v5021
        %6323 = vmatprep.subr.bf16.mxu0 %v5030
        %6324 = vmatpush1.bf16.msra.mxu0 %v5029
        %6325 = vmatprep.subr.bf16.mxu0 %v5038
        %6326 = vmatpush1.bf16.msra.mxu0 %v5037
        %6327 = vmatprep.subr.bf16.mxu0 %v5046
        %6328 = vmatpush1.bf16.msra.mxu0 %v5045
        %6329 = vmatprep.subr.bf16.mxu0 %v5054
        %6330 = vmatpush1.bf16.msra.mxu0 %v5053
        %6331 = vmatprep.subr.bf16.mxu0 %v5062
        %6332 = vmatpush1.bf16.msra.mxu0 %v5061
        %6333 = vmatprep.subr.bf16.mxu0 %v5070
        %6334 = vmatpush1.bf16.msra.mxu0 %v5069
        %6335 = vmatprep.subr.bf16.mxu0 %v5078
        %6336 = vmatpush1.bf16.msra.mxu0 %v5077
        %6337 = vmatprep.subr.bf16.mxu0 %v5086
        %6338 = vmatpush1.bf16.msra.mxu0 %v5085
        %6339 = vmatprep.subr.bf16.mxu0 %v5094
        %6340 = vmatpush1.bf16.msra.mxu0 %v5093
        %6341 = vmatprep.mubr.bf16.mxu0 %v3164
        %6342 = vmatmul.mubr.bf16.gmra.mrb[0].mxu0 %v3163
        %v6343 = vpop.f32.mrb[0].mxu0
        %v6344 = vadd.f32 %v6303, %v6343
        %v6345 = vpop.f32.mrb[0].mxu0
        %v6346 = vadd.f32 %v6305, %v6345
        %v6347 = vpop.f32.mrb[0].mxu0
        %v6348 = vpop.f32.mrb[0].mxu0
        %6349 = vdwg.mxu0
        %6350 = vmatprep.subr.bf16.mxu0 %v5102
        %6351 = vmatpush1.bf16.msra.mxu0 %v5101
        %6352 = vmatprep.subr.bf16.mxu0 %v5110
        %6353 = vmatpush1.bf16.msra.mxu0 %v5109
        %6354 = vmatprep.subr.bf16.mxu0 %v5118
        %6355 = vmatpush1.bf16.msra.mxu0 %v5117
        %6356 = vmatprep.subr.bf16.mxu0 %v5126
        %6357 = vmatpush1.bf16.msra.mxu0 %v5125
        %6358 = vmatprep.subr.bf16.mxu0 %v5134
        %6359 = vmatpush1.bf16.msra.mxu0 %v5133
        %6360 = vmatprep.subr.bf16.mxu0 %v5142
        %6361 = vmatpush1.bf16.msra.mxu0 %v5141
        %6362 = vmatprep.subr.bf16.mxu0 %v5150
        %6363 = vmatpush1.bf16.msra.mxu0 %v5149
        %6364 = vmatprep.subr.bf16.mxu0 %v5158
        %6365 = vmatpush1.bf16.msra.mxu0 %v5157
        %6366 = vmatprep.subr.bf16.mxu0 %v5166
        %6367 = vmatpush1.bf16.msra.mxu0 %v5165
        %6368 = vmatprep.subr.bf16.mxu0 %v5174
        %6369 = vmatpush1.bf16.msra.mxu0 %v5173
        %6370 = vmatprep.subr.bf16.mxu0 %v5182
        %6371 = vmatpush1.bf16.msra.mxu0 %v5181
        %6372 = vmatprep.subr.bf16.mxu0 %v5190
        %6373 = vmatpush1.bf16.msra.mxu0 %v5189
        %6374 = vmatprep.subr.bf16.mxu0 %v5198
        %6375 = vmatpush1.bf16.msra.mxu0 %v5197
        %6376 = vmatprep.subr.bf16.mxu0 %v5206
        %6377 = vmatpush1.bf16.msra.mxu0 %v5205
        %6378 = vmatprep.subr.bf16.mxu0 %v5214
        %6379 = vmatpush1.bf16.msra.mxu0 %v5213
        %6380 = vmatprep.subr.bf16.mxu0 %v5222
        %6381 = vmatpush1.bf16.msra.mxu0 %v5221
        %6382 = vmatprep.mubr.bf16.mxu0 %v3166
        %6383 = vmatmul.mubr.bf16.gmra.mrb[0].mxu0 %v3165
        %v6384 = vpop.f32.mrb[0].mxu0
        %v6385 = vadd.f32 %v6344, %v6384
        %v6386 = vpop.f32.mrb[0].mxu0
        %v6387 = vadd.f32 %v6346, %v6386
        %v6388 = vpop.f32.mrb[0].mxu0
        %v6389 = vpop.f32.mrb[0].mxu0
        %6390 = vdwg.mxu0
        %s6391 = sadd.s32 %s23, 1
        %v6392 = vrot.slane %v5893, 4
        %v6393 = vadd.f32 %v5893, %v6392
        %v6394 = vrot.slane %v6393, 2
        %v6395 = vadd.f32 %v6393, %v6394
        %v6396 = vrot.slane %v6395, 1
        %v6397 = vadd.f32 %v6395, %v6396
        %v6398 = vrot.slane %v5895, 4
        %v6399 = vadd.f32 %v5895, %v6398
        %v6400 = vrot.slane %v6399, 2
        %v6401 = vadd.f32 %v6399, %v6400
        %v6402 = vrot.slane %v6401, 1
        %v6403 = vadd.f32 %v6401, %v6402
        %v6404 = vrot.slane %v6057, 4
        %v6405 = vadd.f32 %v6057, %v6404
        %v6406 = vrot.slane %v6405, 2
        %v6407 = vadd.f32 %v6405, %v6406
        %v6408 = vrot.slane %v6407, 1
        %v6409 = vadd.f32 %v6407, %v6408
        %v6410 = vrot.slane %v6059, 4
        %v6411 = vadd.f32 %v6059, %v6410
        %v6412 = vrot.slane %v6411, 2
        %v6413 = vadd.f32 %v6411, %v6412
        %v6414 = vrot.slane %v6413, 1
        %v6415 = vadd.f32 %v6413, %v6414
        %v6416 = vrot.slane %v6221, 4
        %v6417 = vadd.f32 %v6221, %v6416
        %v6418 = vrot.slane %v6417, 2
        %v6419 = vadd.f32 %v6417, %v6418
        %v6420 = vrot.slane %v6419, 1
        %v6421 = vadd.f32 %v6419, %v6420
        %v6422 = vrot.slane %v6223, 4
        %v6423 = vadd.f32 %v6223, %v6422
        %v6424 = vrot.slane %v6423, 2
        %v6425 = vadd.f32 %v6423, %v6424
        %v6426 = vrot.slane %v6425, 1
        %v6427 = vadd.f32 %v6425, %v6426
        %v6428 = vrot.slane %v6385, 4
        %v6429 = vadd.f32 %v6385, %v6428
        %v6430 = vrot.slane %v6429, 2
        %v6431 = vadd.f32 %v6429, %v6430
        %v6432 = vrot.slane %v6431, 1
        %v6433 = vadd.f32 %v6431, %v6432
        %v6434 = vrot.slane %v6387, 4
        %v6435 = vadd.f32 %v6387, %v6434
        %v6436 = vrot.slane %v6435, 2
        %v6437 = vadd.f32 %v6435, %v6436
        %v6438 = vrot.slane %v6437, 1
        %v6439 = vadd.f32 %v6437, %v6438
        %v6440 = vmul.f32 %v5893, %v5893
        %v6441 = vmul.f32 %v5895, %v5895
        %v6442 = vmul.f32 %v6057, %v6057
        %v6443 = vmul.f32 %v6059, %v6059
        %v6444 = vmul.f32 %v6221, %v6221
        %v6445 = vmul.f32 %v6223, %v6223
        %v6446 = vmul.f32 %v6385, %v6385
        %v6447 = vmul.f32 %v6387, %v6387
        %v6448 = vrot.slane %v6440, 4
        %v6449 = vadd.f32 %v6440, %v6448
        %v6450 = vrot.slane %v6449, 2
        %v6451 = vadd.f32 %v6449, %v6450
        %v6452 = vrot.slane %v6451, 1
        %v6453 = vadd.f32 %v6451, %v6452
        %v6454 = vrot.slane %v6441, 4
        %v6455 = vadd.f32 %v6441, %v6454
        %v6456 = vrot.slane %v6455, 2
        %v6457 = vadd.f32 %v6455, %v6456
        %v6458 = vrot.slane %v6457, 1
        %v6459 = vadd.f32 %v6457, %v6458
        %v6460 = vrot.slane %v6442, 4
        %v6461 = vadd.f32 %v6442, %v6460
        %v6462 = vrot.slane %v6461, 2
        %v6463 = vadd.f32 %v6461, %v6462
        %v6464 = vrot.slane %v6463, 1
        %v6465 = vadd.f32 %v6463, %v6464
        %v6466 = vrot.slane %v6443, 4
        %v6467 = vadd.f32 %v6443, %v6466
        %v6468 = vrot.slane %v6467, 2
        %v6469 = vadd.f32 %v6467, %v6468
        %v6470 = vrot.slane %v6469, 1
        %v6471 = vadd.f32 %v6469, %v6470
        %v6472 = vrot.slane %v6444, 4
        %v6473 = vadd.f32 %v6444, %v6472
        %v6474 = vrot.slane %v6473, 2
        %v6475 = vadd.f32 %v6473, %v6474
        %v6476 = vrot.slane %v6475, 1
        %v6477 = vadd.f32 %v6475, %v6476
        %v6478 = vrot.slane %v6445, 4
        %v6479 = vadd.f32 %v6445, %v6478
        %v6480 = vrot.slane %v6479, 2
        %v6481 = vadd.f32 %v6479, %v6480
        %v6482 = vrot.slane %v6481, 1
        %v6483 = vadd.f32 %v6481, %v6482
        %v6484 = vrot.slane %v6446, 4
        %v6485 = vadd.f32 %v6446, %v6484
        %v6486 = vrot.slane %v6485, 2
        %v6487 = vadd.f32 %v6485, %v6486
        %v6488 = vrot.slane %v6487, 1
        %v6489 = vadd.f32 %v6487, %v6488
        %v6490 = vrot.slane %v6447, 4
        %v6491 = vadd.f32 %v6447, %v6490
        %v6492 = vrot.slane %v6491, 2
        %v6493 = vadd.f32 %v6491, %v6492
        %v6494 = vrot.slane %v6493, 1
        %v6495 = vadd.f32 %v6493, %v6494
        %v6496 = vmul.f32 %v6397, 0.125
        %v6497 = vmul.f32 %v6403, 0.125
        %v6498 = vmul.f32 %v6409, 0.125
        %v6499 = vmul.f32 %v6415, 0.125
        %v6500 = vmul.f32 %v6421, 0.125
        %v6501 = vmul.f32 %v6427, 0.125
        %v6502 = vmul.f32 %v6433, 0.125
        %v6503 = vmul.f32 %v6439, 0.125
        %v6504 = vmul.f32 %v6453, 0.125
        %v6505 = vmul.f32 %v6459, 0.125
        %v6506 = vmul.f32 %v6465, 0.125
        %v6507 = vmul.f32 %v6471, 0.125
        %v6508 = vmul.f32 %v6477, 0.125
        %v6509 = vmul.f32 %v6483, 0.125
        %v6510 = vmul.f32 %v6489, 0.125
        %v6511 = vmul.f32 %v6495, 0.125
        %v6512 = vmul.f32 %v6496, %v6496
        %v6513 = vmul.f32 %v6497, %v6497
        %v6514 = vmul.f32 %v6498, %v6498
        %v6515 = vmul.f32 %v6499, %v6499
        %v6516 = vmul.f32 %v6500, %v6500
        %v6517 = vmul.f32 %v6501, %v6501
        %v6518 = vmul.f32 %v6502, %v6502
        %v6519 = vmul.f32 %v6503, %v6503
        %v6520 = vsub.f32 %v6504, %v6512
        %v6521 = vsub.f32 %v6505, %v6513
        %v6522 = vsub.f32 %v6506, %v6514
        %v6523 = vsub.f32 %v6507, %v6515
        %v6524 = vsub.f32 %v6508, %v6516
        %v6525 = vsub.f32 %v6509, %v6517
        %v6526 = vsub.f32 %v6510, %v6518
        %v6527 = vsub.f32 %v6511, %v6519
        %v6528 = vmax.f32 %v6520, 0.0
        %v6529 = vmax.f32 %v6521, 0.0
        %v6530 = vmax.f32 %v6522, 0.0
        %v6531 = vmax.f32 %v6523, 0.0
        %v6532 = vmax.f32 %v6524, 0.0
        %v6533 = vmax.f32 %v6525, 0.0
        %v6534 = vmax.f32 %v6526, 0.0
        %v6535 = vmax.f32 %v6527, 0.0
        %s6536 = sshra.s32 %s6391, 3
        %s6537 = sand.u32 %s6391, 7
        %s6538 = sshra.s32 %s6391, 3
        %s6539 = sand.u32 %s6391, 7
        %s6540 = smul.u32 %s6536, 8
        %s6541 = smul.u32 %s6540, 8
        %s6542 = sadd.s32 %s6541, %s6539
        %s6543 = scalar_lea.vmem [#allocation9], %s6542
        %v6544 = vld [vmem:[%s6543] ss:$8 sm:$0xf]
        %v6545 = vld [vmem:[%s6543] ss:$8 sm:$0xf0]
        %v6546 = vor.u32 %v6544, %v6545
        %s6547 = sadd.s32 %s23, 5
        %s6548 = sshra.s32 %s6547, 3
        %s6549 = sand.u32 %s6547, 7
        %s6550 = sshra.s32 %s6547, 3
        %s6551 = sand.u32 %s6547, 7
        %s6552 = smul.u32 %s6548, 8
        %s6553 = smul.u32 %s6552, 8
        %s6554 = sadd.s32 %s6553, %s6551
        %s6555 = scalar_lea.vmem [#allocation9], %s6554
        %v6556 = vld [vmem:[%s6555] ss:$8 sm:$0xf]
        %v6557 = vld [vmem:[%s6555] ss:$8 sm:$0xf0]
        %v6558 = vor.u32 %v6556, %v6557
        %v6559 = vadd.f32 %v6528, 1e-05
        %v6560 = vadd.f32 %v6529, 1e-05
        %v6561 = vadd.f32 %v6530, 1e-05
        %v6562 = vadd.f32 %v6531, 1e-05
        %v6563 = vadd.f32 %v6532, 1e-05
        %v6564 = vadd.f32 %v6533, 1e-05
        %v6565 = vadd.f32 %v6534, 1e-05
        %v6566 = vadd.f32 %v6535, 1e-05
        %v6567 = vrsqrt.pop %v6559
        %v6568 = vrsqrt.pop %v6560
        %v6569 = vrsqrt.pop %v6561
        %v6570 = vrsqrt.pop %v6562
        %v6571 = vrsqrt.pop %v6563
        %v6572 = vrsqrt.pop %v6564
        %v6573 = vrsqrt.pop %v6565
        %v6574 = vrsqrt.pop %v6566
        %v6583 = vcombine.low %v6567, %v6568
        %v6584 = vcombine.low %v6569, %v6570
        %v6585 = vcombine.low %v6571, %v6572
        %v6586 = vcombine.low %v6573, %v6574
        %v6588 = vunpack.c.l.s4 1966171168
        %v6589 = vunpack.c.0.s8 %v6588
        %v6590 = vlaneseq
        %v6591 = vshrl.u32 %v6590, 7
        %v6592 = vsub.s32 %v6589, %v6591
        %v6593 = vrot.slane %v6583, %v6592
        %v6595 = vunpack.c.l.s4 1966171168
        %v6596 = vunpack.c.0.s8 %v6595
        %v6597 = vlaneseq
        %v6598 = vshrl.u32 %v6597, 7
        %v6599 = vsub.s32 %v6596, %v6598
        %v6600 = vrot.slane %v6584, %v6599
        %v6602 = vunpack.c.l.s4 1966171168
        %v6603 = vunpack.c.0.s8 %v6602
        %v6604 = vlaneseq
        %v6605 = vshrl.u32 %v6604, 7
        %v6606 = vsub.s32 %v6603, %v6605
        %v6607 = vrot.slane %v6585, %v6606
        %v6609 = vunpack.c.l.s4 1966171168
        %v6610 = vunpack.c.0.s8 %v6609
        %v6611 = vlaneseq
        %v6612 = vshrl.u32 %v6611, 7
        %v6613 = vsub.s32 %v6610, %v6612
        %v6614 = vrot.slane %v6586, %v6613
        %v6615 = vcombine.low %v6593, %v6600
        %v6616 = vcombine.low %v6607, %v6614
        %v6618 = vunpack.c.l.s4 1966171168
        %v6619 = vunpack.c.0.s8 %v6618
        %v6620 = vlaneseq
        %v6621 = vshrl.u32 %v6620, 7
        %v6622 = vsub.s32 %v6619, %v6621
        %v6623 = vrot.slane %v6615, %v6622
        %v6625 = vunpack.c.l.s4 1966171168
        %v6626 = vunpack.c.0.s8 %v6625
        %v6627 = vlaneseq
        %v6628 = vshrl.u32 %v6627, 7
        %v6629 = vsub.s32 %v6626, %v6628
        %v6630 = vrot.slane %v6616, %v6629
        %v6631 = vcombine.low %v6623, %v6630
        %v6633 = vmul.f32 %v6546, %v6631
        %v6635 = vlaneseq
        %v6636 = vshrl.u32 %v6635, 7
        %v6637 = vsub.s32 0, %v6636
        %v6638 = vrot.slane %v6633, %v6637
        %v6639 = vlaneseq
        %v6640 = vshrl.u32 %v6639, 7
        %v6641 = vsub.s32 1, %v6640
        %v6642 = vrot.slane %v6633, %v6641
        %v6643 = vlaneseq
        %v6644 = vshrl.u32 %v6643, 7
        %v6645 = vsub.s32 2, %v6644
        %v6646 = vrot.slane %v6633, %v6645
        %v6647 = vlaneseq
        %v6648 = vshrl.u32 %v6647, 7
        %v6649 = vsub.s32 3, %v6648
        %v6650 = vrot.slane %v6633, %v6649
        %v6651 = vlaneseq
        %v6652 = vshrl.u32 %v6651, 7
        %v6653 = vsub.s32 4, %v6652
        %v6654 = vrot.slane %v6633, %v6653
        %v6655 = vlaneseq
        %v6656 = vshrl.u32 %v6655, 7
        %v6657 = vsub.s32 5, %v6656
        %v6658 = vrot.slane %v6633, %v6657
        %v6659 = vlaneseq
        %v6660 = vshrl.u32 %v6659, 7
        %v6661 = vsub.s32 6, %v6660
        %v6662 = vrot.slane %v6633, %v6661
        %v6663 = vlaneseq
        %v6664 = vshrl.u32 %v6663, 7
        %v6665 = vsub.s32 7, %v6664
        %v6666 = vrot.slane %v6633, %v6665
        %v6675 = vmul.f32 %v6496, %v6638
        %v6676 = vmul.f32 %v6497, %v6642
        %v6677 = vmul.f32 %v6498, %v6646
        %v6678 = vmul.f32 %v6499, %v6650
        %v6679 = vmul.f32 %v6500, %v6654
        %v6680 = vmul.f32 %v6501, %v6658
        %v6681 = vmul.f32 %v6502, %v6662
        %v6682 = vmul.f32 %v6503, %v6666
        %v6691 = vcombine.low %v6675, %v6676
        %v6692 = vcombine.low %v6677, %v6678
        %v6693 = vcombine.low %v6679, %v6680
        %v6694 = vcombine.low %v6681, %v6682
        %v6696 = vunpack.c.l.s4 1966171168
        %v6697 = vunpack.c.0.s8 %v6696
        %v6698 = vlaneseq
        %v6699 = vshrl.u32 %v6698, 7
        %v6700 = vsub.s32 %v6697, %v6699
        %v6701 = vrot.slane %v6691, %v6700
        %v6703 = vunpack.c.l.s4 1966171168
        %v6704 = vunpack.c.0.s8 %v6703
        %v6705 = vlaneseq
        %v6706 = vshrl.u32 %v6705, 7
        %v6707 = vsub.s32 %v6704, %v6706
        %v6708 = vrot.slane %v6692, %v6707
        %v6710 = vunpack.c.l.s4 1966171168
        %v6711 = vunpack.c.0.s8 %v6710
        %v6712 = vlaneseq
        %v6713 = vshrl.u32 %v6712, 7
        %v6714 = vsub.s32 %v6711, %v6713
        %v6715 = vrot.slane %v6693, %v6714
        %v6717 = vunpack.c.l.s4 1966171168
        %v6718 = vunpack.c.0.s8 %v6717
        %v6719 = vlaneseq
        %v6720 = vshrl.u32 %v6719, 7
        %v6721 = vsub.s32 %v6718, %v6720
        %v6722 = vrot.slane %v6694, %v6721
        %v6723 = vcombine.low %v6701, %v6708
        %v6724 = vcombine.low %v6715, %v6722
        %v6726 = vunpack.c.l.s4 1966171168
        %v6727 = vunpack.c.0.s8 %v6726
        %v6728 = vlaneseq
        %v6729 = vshrl.u32 %v6728, 7
        %v6730 = vsub.s32 %v6727, %v6729
        %v6731 = vrot.slane %v6723, %v6730
        %v6733 = vunpack.c.l.s4 1966171168
        %v6734 = vunpack.c.0.s8 %v6733
        %v6735 = vlaneseq
        %v6736 = vshrl.u32 %v6735, 7
        %v6737 = vsub.s32 %v6734, %v6736
        %v6738 = vrot.slane %v6724, %v6737
        %v6739 = vcombine.low %v6731, %v6738
        %v6741 = vsub.f32 %v6558, %v6739
        %v6742 = vmul.f32 %v5893, %v6638
        %v6743 = vmul.f32 %v5895, %v6642
        %v6744 = vmul.f32 %v6057, %v6646
        %v6745 = vmul.f32 %v6059, %v6650
        %v6746 = vmul.f32 %v6221, %v6654
        %v6747 = vmul.f32 %v6223, %v6658
        %v6748 = vmul.f32 %v6385, %v6662
        %v6749 = vmul.f32 %v6387, %v6666
        %v6751 = vlaneseq
        %v6752 = vshrl.u32 %v6751, 7
        %v6753 = vsub.s32 0, %v6752
        %v6754 = vrot.slane %v6741, %v6753
        %v6755 = vlaneseq
        %v6756 = vshrl.u32 %v6755, 7
        %v6757 = vsub.s32 1, %v6756
        %v6758 = vrot.slane %v6741, %v6757
        %v6759 = vlaneseq
        %v6760 = vshrl.u32 %v6759, 7
        %v6761 = vsub.s32 2, %v6760
        %v6762 = vrot.slane %v6741, %v6761
        %v6763 = vlaneseq
        %v6764 = vshrl.u32 %v6763, 7
        %v6765 = vsub.s32 3, %v6764
        %v6766 = vrot.slane %v6741, %v6765
        %v6767 = vlaneseq
        %v6768 = vshrl.u32 %v6767, 7
        %v6769 = vsub.s32 4, %v6768
        %v6770 = vrot.slane %v6741, %v6769
        %v6771 = vlaneseq
        %v6772 = vshrl.u32 %v6771, 7
        %v6773 = vsub.s32 5, %v6772
        %v6774 = vrot.slane %v6741, %v6773
        %v6775 = vlaneseq
        %v6776 = vshrl.u32 %v6775, 7
        %v6777 = vsub.s32 6, %v6776
        %v6778 = vrot.slane %v6741, %v6777
        %v6779 = vlaneseq
        %v6780 = vshrl.u32 %v6779, 7
        %v6781 = vsub.s32 7, %v6780
        %v6782 = vrot.slane %v6741, %v6781
        %v6791 = vadd.f32 %v6742, %v6754
        %v6792 = vadd.f32 %v6743, %v6758
        %v6793 = vadd.f32 %v6744, %v6762
        %v6794 = vadd.f32 %v6745, %v6766
        %v6795 = vadd.f32 %v6746, %v6770
        %v6796 = vadd.f32 %v6747, %v6774
        %v6797 = vadd.f32 %v6748, %v6778
        %v6798 = vadd.f32 %v6749, %v6782
        %v6799 = vmax.f32 %v6791, 0.0
        %v6800 = vmax.f32 %v6792, 0.0
        %v6801 = vmax.f32 %v6793, 0.0
        %v6802 = vmax.f32 %v6794, 0.0
        %v6803 = vmax.f32 %v6795, 0.0
        %v6804 = vmax.f32 %v6796, 0.0
        %v6805 = vmax.f32 %v6797, 0.0
        %v6806 = vmax.f32 %v6798, 0.0
        %v6807 = vpack.c.bf16 %v6799, %v6799
        %v6808 = vpack.c.bf16 %v6800, %v6800
        %v6809 = vpack.c.bf16 %v6801, %v6801
        %v6810 = vpack.c.bf16 %v6802, %v6802
        %v6811 = vpack.c.bf16 %v6803, %v6803
        %v6812 = vpack.c.bf16 %v6804, %v6804
        %v6813 = vpack.c.bf16 %v6805, %v6805
        %v6814 = vpack.c.bf16 %v6806, %v6806
        %v6823 = vunpack.c.l.b16 %v6807
        %v6824 = vunpack.c.l.b16 %v6808
        %v6825 = vunpack.c.l.b16 %v6809
        %v6826 = vunpack.c.l.b16 %v6810
        %v6827 = vunpack.c.l.b16 %v6811
        %v6828 = vunpack.c.l.b16 %v6812
        %v6829 = vunpack.c.l.b16 %v6813
        %v6830 = vunpack.c.l.b16 %v6814
        %v6831 = vpack.c.b16 %v6824, %v6823
        %v6832 = vpack.c.b16 %v6826, %v6825
        %v6833 = vpack.c.b16 %v6828, %v6827
        %v6834 = vpack.c.b16 %v6830, %v6829
        %6839 = vst [vmem:[#allocation2] sm:$0xff] %v6831
        %6840 = vst [vmem:[#allocation2 + $0x8] sm:$0xff] %v6832
        %6841 = vst [vmem:[#allocation2 + $0x10] sm:$0xff] %v6833
        %6842 = vst [vmem:[#allocation2 + $0x18] sm:$0xff] %v6834
        %p6843 = scmp.eq.s32.totalorder %s23, 2
        // Predicated region
        $region69: #{hegen_forward.1} parent=43 // pred_check
          %p6844 = pneg %p6843
        $region70: #{hegen_forward.1} parent=43 // pred_check_branch
          %6846 = sbr.rel (%p6844) target = $region72
        $region71: #{hegen_forward.1} parent=43 // pred_region
          %v6847 = vld [vmem:[#allocation2] sm:$0xff]
          %v6848 = vld [vmem:[#allocation2 + $0x8] sm:$0xff]
          %v6849 = vld [vmem:[#allocation2 + $0x10] sm:$0xff]
          %v6850 = vld [vmem:[#allocation2 + $0x18] sm:$0xff]
          %v6851 = vld [vmem:[#allocation8] sm:$0xff]
          %v6852 = vld [vmem:[#allocation8 + $0x8] sm:$0xff]
          %v6853 = vld [vmem:[#allocation8 + $0x10] sm:$0xff]
          %v6854 = vld [vmem:[#allocation8 + $0x18] sm:$0xff]
          %v6855 = vld [vmem:[#allocation8 + $0x20] sm:$0xff]
          %v6856 = vld [vmem:[#allocation8 + $0x28] sm:$0xff]
          %v6857 = vld [vmem:[#allocation8 + $0x30] sm:$0xff]
          %v6858 = vld [vmem:[#allocation8 + $0x38] sm:$0xff]
          %v6859 = vld [vmem:[#allocation8 + $0x40] sm:$0xff]
          %v6860 = vld [vmem:[#allocation8 + $0x48] sm:$0xff]
          %v6861 = vld [vmem:[#allocation8 + $0x50] sm:$0xff]
          %v6862 = vld [vmem:[#allocation8 + $0x58] sm:$0xff]
          %v6863 = vld [vmem:[#allocation8 + $0x60] sm:$0xff]
          %v6864 = vld [vmem:[#allocation8 + $0x68] sm:$0xff]
          %v6865 = vld [vmem:[#allocation8 + $0x70] sm:$0xff]
          %v6866 = vld [vmem:[#allocation8 + $0x78] sm:$0xff]
          %v6867 = vld [vmem:[#allocation8 + $0x80] sm:$0xff]
          %v6868 = vld [vmem:[#allocation8 + $0x88] sm:$0xff]
          %v6869 = vld [vmem:[#allocation8 + $0x90] sm:$0xff]
          %v6870 = vld [vmem:[#allocation8 + $0x98] sm:$0xff]
          %v6871 = vld [vmem:[#allocation8 + $0xa0] sm:$0xff]
          %v6872 = vld [vmem:[#allocation8 + $0xa8] sm:$0xff]
          %v6873 = vld [vmem:[#allocation8 + $0xb0] sm:$0xff]
          %v6874 = vld [vmem:[#allocation8 + $0xb8] sm:$0xff]
          %v6875 = vld [vmem:[#allocation8 + $0xc0] sm:$0xff]
          %v6876 = vld [vmem:[#allocation8 + $0xc8] sm:$0xff]
          %v6877 = vld [vmem:[#allocation8 + $0xd0] sm:$0xff]
          %v6878 = vld [vmem:[#allocation8 + $0xd8] sm:$0xff]
          %v6879 = vld [vmem:[#allocation8 + $0xe0] sm:$0xff]
          %v6880 = vld [vmem:[#allocation8 + $0xe8] sm:$0xff]
          %v6881 = vld [vmem:[#allocation8 + $0xf0] sm:$0xff]
          %v6882 = vld [vmem:[#allocation8 + $0xf8] sm:$0xff]
          %v6883 = vld [vmem:[#allocation8 + $0x100] sm:$0xff]
          %v6884 = vld [vmem:[#allocation8 + $0x108] sm:$0xff]
          %v6885 = vld [vmem:[#allocation8 + $0x110] sm:$0xff]
          %v6886 = vld [vmem:[#allocation8 + $0x118] sm:$0xff]
          %v6887 = vld [vmem:[#allocation8 + $0x120] sm:$0xff]
          %v6888 = vld [vmem:[#allocation8 + $0x128] sm:$0xff]
          %v6889 = vld [vmem:[#allocation8 + $0x130] sm:$0xff]
          %v6890 = vld [vmem:[#allocation8 + $0x138] sm:$0xff]
          %v6891 = vld [vmem:[#allocation8 + $0x140] sm:$0xff]
          %v6892 = vld [vmem:[#allocation8 + $0x148] sm:$0xff]
          %v6893 = vld [vmem:[#allocation8 + $0x150] sm:$0xff]
          %v6894 = vld [vmem:[#allocation8 + $0x158] sm:$0xff]
          %v6895 = vld [vmem:[#allocation8 + $0x160] sm:$0xff]
          %v6896 = vld [vmem:[#allocation8 + $0x168] sm:$0xff]
          %v6897 = vld [vmem:[#allocation8 + $0x170] sm:$0xff]
          %v6898 = vld [vmem:[#allocation8 + $0x178] sm:$0xff]
          %v6899 = vld [vmem:[#allocation8 + $0x180] sm:$0xff]
          %v6900 = vld [vmem:[#allocation8 + $0x188] sm:$0xff]
          %v6901 = vld [vmem:[#allocation8 + $0x190] sm:$0xff]
          %v6902 = vld [vmem:[#allocation8 + $0x198] sm:$0xff]
          %v6903 = vld [vmem:[#allocation8 + $0x1a0] sm:$0xff]
          %v6904 = vld [vmem:[#allocation8 + $0x1a8] sm:$0xff]
          %v6905 = vld [vmem:[#allocation8 + $0x1b0] sm:$0xff]
          %v6906 = vld [vmem:[#allocation8 + $0x1b8] sm:$0xff]
          %v6907 = vld [vmem:[#allocation8 + $0x1c0] sm:$0xff]
          %v6908 = vld [vmem:[#allocation8 + $0x1c8] sm:$0xff]
          %v6909 = vld [vmem:[#allocation8 + $0x1d0] sm:$0xff]
          %v6910 = vld [vmem:[#allocation8 + $0x1d8] sm:$0xff]
          %v6911 = vld [vmem:[#allocation8 + $0x1e0] sm:$0xff]
          %v6912 = vld [vmem:[#allocation8 + $0x1e8] sm:$0xff]
          %v6913 = vld [vmem:[#allocation8 + $0x1f0] sm:$0xff]
          %v6914 = vld [vmem:[#allocation8 + $0x1f8] sm:$0xff]
          %v6915 = vld [vmem:[#allocation8 + $0x200] sm:$0xff]
          %v6916 = vld [vmem:[#allocation8 + $0x208] sm:$0xff]
          %v6917 = vld [vmem:[#allocation8 + $0x210] sm:$0xff]
          %v6918 = vld [vmem:[#allocation8 + $0x218] sm:$0xff]
          %v6919 = vld [vmem:[#allocation8 + $0x220] sm:$0xff]
          %v6920 = vld [vmem:[#allocation8 + $0x228] sm:$0xff]
          %v6921 = vld [vmem:[#allocation8 + $0x230] sm:$0xff]
          %v6922 = vld [vmem:[#allocation8 + $0x238] sm:$0xff]
          %v6923 = vld [vmem:[#allocation8 + $0x240] sm:$0xff]
          %v6924 = vld [vmem:[#allocation8 + $0x248] sm:$0xff]
          %v6925 = vld [vmem:[#allocation8 + $0x250] sm:$0xff]
          %v6926 = vld [vmem:[#allocation8 + $0x258] sm:$0xff]
          %v6927 = vld [vmem:[#allocation8 + $0x260] sm:$0xff]
          %v6928 = vld [vmem:[#allocation8 + $0x268] sm:$0xff]
          %v6929 = vld [vmem:[#allocation8 + $0x270] sm:$0xff]
          %v6930 = vld [vmem:[#allocation8 + $0x278] sm:$0xff]
          %v6931 = vld [vmem:[#allocation8 + $0x280] sm:$0xff]
          %v6932 = vld [vmem:[#allocation8 + $0x288] sm:$0xff]
          %v6933 = vld [vmem:[#allocation8 + $0x290] sm:$0xff]
          %v6934 = vld [vmem:[#allocation8 + $0x298] sm:$0xff]
          %v6935 = vld [vmem:[#allocation8 + $0x2a0] sm:$0xff]
          %v6936 = vld [vmem:[#allocation8 + $0x2a8] sm:$0xff]
          %v6937 = vld [vmem:[#allocation8 + $0x2b0] sm:$0xff]
          %v6938 = vld [vmem:[#allocation8 + $0x2b8] sm:$0xff]
          %v6939 = vld [vmem:[#allocation8 + $0x2c0] sm:$0xff]
          %v6940 = vld [vmem:[#allocation8 + $0x2c8] sm:$0xff]
          %v6941 = vld [vmem:[#allocation8 + $0x2d0] sm:$0xff]
          %v6942 = vld [vmem:[#allocation8 + $0x2d8] sm:$0xff]
          %v6943 = vld [vmem:[#allocation8 + $0x2e0] sm:$0xff]
          %v6944 = vld [vmem:[#allocation8 + $0x2e8] sm:$0xff]
          %v6945 = vld [vmem:[#allocation8 + $0x2f0] sm:$0xff]
          %v6946 = vld [vmem:[#allocation8 + $0x2f8] sm:$0xff]
          %v6947 = vld [vmem:[#allocation8 + $0x300] sm:$0xff]
          %v6948 = vld [vmem:[#allocation8 + $0x308] sm:$0xff]
          %v6949 = vld [vmem:[#allocation8 + $0x310] sm:$0xff]
          %v6950 = vld [vmem:[#allocation8 + $0x318] sm:$0xff]
          %v6951 = vld [vmem:[#allocation8 + $0x320] sm:$0xff]
          %v6952 = vld [vmem:[#allocation8 + $0x328] sm:$0xff]
          %v6953 = vld [vmem:[#allocation8 + $0x330] sm:$0xff]
          %v6954 = vld [vmem:[#allocation8 + $0x338] sm:$0xff]
          %v6955 = vld [vmem:[#allocation8 + $0x340] sm:$0xff]
          %v6956 = vld [vmem:[#allocation8 + $0x348] sm:$0xff]
          %v6957 = vld [vmem:[#allocation8 + $0x350] sm:$0xff]
          %v6958 = vld [vmem:[#allocation8 + $0x358] sm:$0xff]
          %v6959 = vld [vmem:[#allocation8 + $0x360] sm:$0xff]
          %v6960 = vld [vmem:[#allocation8 + $0x368] sm:$0xff]
          %v6961 = vld [vmem:[#allocation8 + $0x370] sm:$0xff]
          %v6962 = vld [vmem:[#allocation8 + $0x378] sm:$0xff]
          %v6963 = vld [vmem:[#allocation8 + $0x380] sm:$0xff]
          %v6964 = vld [vmem:[#allocation8 + $0x388] sm:$0xff]
          %v6965 = vld [vmem:[#allocation8 + $0x390] sm:$0xff]
          %v6966 = vld [vmem:[#allocation8 + $0x398] sm:$0xff]
          %v6967 = vld [vmem:[#allocation8 + $0x3a0] sm:$0xff]
          %v6968 = vld [vmem:[#allocation8 + $0x3a8] sm:$0xff]
          %v6969 = vld [vmem:[#allocation8 + $0x3b0] sm:$0xff]
          %v6970 = vld [vmem:[#allocation8 + $0x3b8] sm:$0xff]
          %v6971 = vld [vmem:[#allocation8 + $0x3c0] sm:$0xff]
          %v6972 = vld [vmem:[#allocation8 + $0x3c8] sm:$0xff]
          %v6973 = vld [vmem:[#allocation8 + $0x3d0] sm:$0xff]
          %v6974 = vld [vmem:[#allocation8 + $0x3d8] sm:$0xff]
          %v6975 = vld [vmem:[#allocation8 + $0x3e0] sm:$0xff]
          %v6976 = vld [vmem:[#allocation8 + $0x3e8] sm:$0xff]
          %v6977 = vld [vmem:[#allocation8 + $0x3f0] sm:$0xff]
          %v6978 = vld [vmem:[#allocation8 + $0x3f8] sm:$0xff]
          %v6979 = vld [vmem:[#allocation8 + $0x400] sm:$0xff]
          %v6980 = vld [vmem:[#allocation8 + $0x408] sm:$0xff]
          %v6981 = vld [vmem:[#allocation8 + $0x410] sm:$0xff]
          %v6982 = vld [vmem:[#allocation8 + $0x418] sm:$0xff]
          %v6983 = vld [vmem:[#allocation8 + $0x420] sm:$0xff]
          %v6984 = vld [vmem:[#allocation8 + $0x428] sm:$0xff]
          %v6985 = vld [vmem:[#allocation8 + $0x430] sm:$0xff]
          %v6986 = vld [vmem:[#allocation8 + $0x438] sm:$0xff]
          %v6987 = vld [vmem:[#allocation8 + $0x440] sm:$0xff]
          %v6988 = vld [vmem:[#allocation8 + $0x448] sm:$0xff]
          %v6989 = vld [vmem:[#allocation8 + $0x450] sm:$0xff]
          %v6990 = vld [vmem:[#allocation8 + $0x458] sm:$0xff]
          %v6991 = vld [vmem:[#allocation8 + $0x460] sm:$0xff]
          %v6992 = vld [vmem:[#allocation8 + $0x468] sm:$0xff]
          %v6993 = vld [vmem:[#allocation8 + $0x470] sm:$0xff]
          %v6994 = vld [vmem:[#allocation8 + $0x478] sm:$0xff]
          %v6995 = vld [vmem:[#allocation8 + $0x480] sm:$0xff]
          %v6996 = vld [vmem:[#allocation8 + $0x488] sm:$0xff]
          %v6997 = vld [vmem:[#allocation8 + $0x490] sm:$0xff]
          %v6998 = vld [vmem:[#allocation8 + $0x498] sm:$0xff]
          %v6999 = vld [vmem:[#allocation8 + $0x4a0] sm:$0xff]
          %v7000 = vld [vmem:[#allocation8 + $0x4a8] sm:$0xff]
          %v7001 = vld [vmem:[#allocation8 + $0x4b0] sm:$0xff]
          %v7002 = vld [vmem:[#allocation8 + $0x4b8] sm:$0xff]
          %v7003 = vld [vmem:[#allocation8 + $0x4c0] sm:$0xff]
          %v7004 = vld [vmem:[#allocation8 + $0x4c8] sm:$0xff]
          %v7005 = vld [vmem:[#allocation8 + $0x4d0] sm:$0xff]
          %v7006 = vld [vmem:[#allocation8 + $0x4d8] sm:$0xff]
          %v7007 = vld [vmem:[#allocation8 + $0x4e0] sm:$0xff]
          %v7008 = vld [vmem:[#allocation8 + $0x4e8] sm:$0xff]
          %v7009 = vld [vmem:[#allocation8 + $0x4f0] sm:$0xff]
          %v7010 = vld [vmem:[#allocation8 + $0x4f8] sm:$0xff]
          %v7011 = vld [vmem:[#allocation8 + $0x500] sm:$0xff]
          %v7012 = vld [vmem:[#allocation8 + $0x508] sm:$0xff]
          %v7013 = vld [vmem:[#allocation8 + $0x510] sm:$0xff]
          %v7014 = vld [vmem:[#allocation8 + $0x518] sm:$0xff]
          %v7015 = vld [vmem:[#allocation8 + $0x520] sm:$0xff]
          %v7016 = vld [vmem:[#allocation8 + $0x528] sm:$0xff]
          %v7017 = vld [vmem:[#allocation8 + $0x530] sm:$0xff]
          %v7018 = vld [vmem:[#allocation8 + $0x538] sm:$0xff]
          %v7019 = vld [vmem:[#allocation8 + $0x540] sm:$0xff]
          %v7020 = vld [vmem:[#allocation8 + $0x548] sm:$0xff]
          %v7021 = vld [vmem:[#allocation8 + $0x550] sm:$0xff]
          %v7022 = vld [vmem:[#allocation8 + $0x558] sm:$0xff]
          %v7023 = vld [vmem:[#allocation8 + $0x560] sm:$0xff]
          %v7024 = vld [vmem:[#allocation8 + $0x568] sm:$0xff]
          %v7025 = vld [vmem:[#allocation8 + $0x570] sm:$0xff]
          %v7026 = vld [vmem:[#allocation8 + $0x578] sm:$0xff]
          %v7027 = vld [vmem:[#allocation8 + $0x580] sm:$0xff]
          %v7028 = vld [vmem:[#allocation8 + $0x588] sm:$0xff]
          %v7029 = vld [vmem:[#allocation8 + $0x590] sm:$0xff]
          %v7030 = vld [vmem:[#allocation8 + $0x598] sm:$0xff]
          %v7031 = vld [vmem:[#allocation8 + $0x5a0] sm:$0xff]
          %v7032 = vld [vmem:[#allocation8 + $0x5a8] sm:$0xff]
          %v7033 = vld [vmem:[#allocation8 + $0x5b0] sm:$0xff]
          %v7034 = vld [vmem:[#allocation8 + $0x5b8] sm:$0xff]
          %v7035 = vld [vmem:[#allocation8 + $0x5c0] sm:$0xff]
          %v7036 = vld [vmem:[#allocation8 + $0x5c8] sm:$0xff]
          %v7037 = vld [vmem:[#allocation8 + $0x5d0] sm:$0xff]
          %v7038 = vld [vmem:[#allocation8 + $0x5d8] sm:$0xff]
          %v7039 = vld [vmem:[#allocation8 + $0x5e0] sm:$0xff]
          %v7040 = vld [vmem:[#allocation8 + $0x5e8] sm:$0xff]
          %v7041 = vld [vmem:[#allocation8 + $0x5f0] sm:$0xff]
          %v7042 = vld [vmem:[#allocation8 + $0x5f8] sm:$0xff]
          %v7043 = vld [vmem:[#allocation8 + $0x600] sm:$0xff]
          %v7044 = vld [vmem:[#allocation8 + $0x608] sm:$0xff]
          %v7045 = vld [vmem:[#allocation8 + $0x610] sm:$0xff]
          %v7046 = vld [vmem:[#allocation8 + $0x618] sm:$0xff]
          %v7047 = vld [vmem:[#allocation8 + $0x620] sm:$0xff]
          %v7048 = vld [vmem:[#allocation8 + $0x628] sm:$0xff]
          %v7049 = vld [vmem:[#allocation8 + $0x630] sm:$0xff]
          %v7050 = vld [vmem:[#allocation8 + $0x638] sm:$0xff]
          %v7051 = vld [vmem:[#allocation8 + $0x640] sm:$0xff]
          %v7052 = vld [vmem:[#allocation8 + $0x648] sm:$0xff]
          %v7053 = vld [vmem:[#allocation8 + $0x650] sm:$0xff]
          %v7054 = vld [vmem:[#allocation8 + $0x658] sm:$0xff]
          %v7055 = vld [vmem:[#allocation8 + $0x660] sm:$0xff]
          %v7056 = vld [vmem:[#allocation8 + $0x668] sm:$0xff]
          %v7057 = vld [vmem:[#allocation8 + $0x670] sm:$0xff]
          %v7058 = vld [vmem:[#allocation8 + $0x678] sm:$0xff]
          %v7059 = vld [vmem:[#allocation8 + $0x680] sm:$0xff]
          %v7060 = vld [vmem:[#allocation8 + $0x688] sm:$0xff]
          %v7061 = vld [vmem:[#allocation8 + $0x690] sm:$0xff]
          %v7062 = vld [vmem:[#allocation8 + $0x698] sm:$0xff]
          %v7063 = vld [vmem:[#allocation8 + $0x6a0] sm:$0xff]
          %v7064 = vld [vmem:[#allocation8 + $0x6a8] sm:$0xff]
          %v7065 = vld [vmem:[#allocation8 + $0x6b0] sm:$0xff]
          %v7066 = vld [vmem:[#allocation8 + $0x6b8] sm:$0xff]
          %v7067 = vld [vmem:[#allocation8 + $0x6c0] sm:$0xff]
          %v7068 = vld [vmem:[#allocation8 + $0x6c8] sm:$0xff]
          %v7069 = vld [vmem:[#allocation8 + $0x6d0] sm:$0xff]
          %v7070 = vld [vmem:[#allocation8 + $0x6d8] sm:$0xff]
          %v7071 = vld [vmem:[#allocation8 + $0x6e0] sm:$0xff]
          %v7072 = vld [vmem:[#allocation8 + $0x6e8] sm:$0xff]
          %v7073 = vld [vmem:[#allocation8 + $0x6f0] sm:$0xff]
          %v7074 = vld [vmem:[#allocation8 + $0x6f8] sm:$0xff]
          %v7075 = vld [vmem:[#allocation8 + $0x700] sm:$0xff]
          %v7076 = vld [vmem:[#allocation8 + $0x708] sm:$0xff]
          %v7077 = vld [vmem:[#allocation8 + $0x710] sm:$0xff]
          %v7078 = vld [vmem:[#allocation8 + $0x718] sm:$0xff]
          %v7079 = vld [vmem:[#allocation8 + $0x720] sm:$0xff]
          %v7080 = vld [vmem:[#allocation8 + $0x728] sm:$0xff]
          %v7081 = vld [vmem:[#allocation8 + $0x730] sm:$0xff]
          %v7082 = vld [vmem:[#allocation8 + $0x738] sm:$0xff]
          %v7083 = vld [vmem:[#allocation8 + $0x740] sm:$0xff]
          %v7084 = vld [vmem:[#allocation8 + $0x748] sm:$0xff]
          %v7085 = vld [vmem:[#allocation8 + $0x750] sm:$0xff]
          %v7086 = vld [vmem:[#allocation8 + $0x758] sm:$0xff]
          %v7087 = vld [vmem:[#allocation8 + $0x760] sm:$0xff]
          %v7088 = vld [vmem:[#allocation8 + $0x768] sm:$0xff]
          %v7089 = vld [vmem:[#allocation8 + $0x770] sm:$0xff]
          %v7090 = vld [vmem:[#allocation8 + $0x778] sm:$0xff]
          %v7091 = vld [vmem:[#allocation8 + $0x780] sm:$0xff]
          %v7092 = vld [vmem:[#allocation8 + $0x788] sm:$0xff]
          %v7093 = vld [vmem:[#allocation8 + $0x790] sm:$0xff]
          %v7094 = vld [vmem:[#allocation8 + $0x798] sm:$0xff]
          %v7095 = vld [vmem:[#allocation8 + $0x7a0] sm:$0xff]
          %v7096 = vld [vmem:[#allocation8 + $0x7a8] sm:$0xff]
          %v7097 = vld [vmem:[#allocation8 + $0x7b0] sm:$0xff]
          %v7098 = vld [vmem:[#allocation8 + $0x7b8] sm:$0xff]
          %v7099 = vld [vmem:[#allocation8 + $0x7c0] sm:$0xff]
          %v7100 = vld [vmem:[#allocation8 + $0x7c8] sm:$0xff]
          %v7101 = vld [vmem:[#allocation8 + $0x7d0] sm:$0xff]
          %v7102 = vld [vmem:[#allocation8 + $0x7d8] sm:$0xff]
          %v7103 = vld [vmem:[#allocation8 + $0x7e0] sm:$0xff]
          %v7104 = vld [vmem:[#allocation8 + $0x7e8] sm:$0xff]
          %v7105 = vld [vmem:[#allocation8 + $0x7f0] sm:$0xff]
          %v7106 = vld [vmem:[#allocation8 + $0x7f8] sm:$0xff]
          %v7107 = vld [vmem:[#allocation11] sm:$0xf]
          %v7109 = vlaneseq
          %v7110 = vshrl.u32 %v7109, 7
          %v7111 = vsub.s32 0, %v7110
          %v7112 = vrot.slane %v7107, %v7111
          %v7113 = vlaneseq
          %v7114 = vshrl.u32 %v7113, 7
          %v7115 = vsub.s32 1, %v7114
          %v7116 = vrot.slane %v7107, %v7115
          %v7117 = vlaneseq
          %v7118 = vshrl.u32 %v7117, 7
          %v7119 = vsub.s32 2, %v7118
          %v7120 = vrot.slane %v7107, %v7119
          %v7121 = vlaneseq
          %v7122 = vshrl.u32 %v7121, 7
          %v7123 = vsub.s32 3, %v7122
          %v7124 = vrot.slane %v7107, %v7123
          %v7133 = vunpack.c.l.b16 %v6847
          %v7134 = vunpack.c.h.b16 %v6847
          %v7135 = vunpack.c.l.b16 %v6848
          %v7136 = vunpack.c.h.b16 %v6848
          %v7137 = vunpack.c.l.b16 %v6849
          %v7138 = vunpack.c.h.b16 %v6849
          %v7139 = vunpack.c.l.b16 %v6850
          %v7140 = vunpack.c.h.b16 %v6850
          %v7141 = vpack.c.b16 %v7133, %v7133
          %v7142 = vpack.c.b16 %v7134, %v7134
          %v7143 = vpack.c.b16 %v7135, %v7135
          %v7144 = vpack.c.b16 %v7136, %v7136
          %v7145 = vpack.c.b16 %v7137, %v7137
          %v7146 = vpack.c.b16 %v7138, %v7138
          %v7147 = vpack.c.b16 %v7139, %v7139
          %v7148 = vpack.c.b16 %v7140, %v7140
          %v7413 = vunpack.c.l.b16 %v6851
          %v7414 = vunpack.c.h.b16 %v6851
          %v7415 = vunpack.c.l.b16 %v6852
          %v7416 = vunpack.c.h.b16 %v6852
          %v7417 = vunpack.c.l.b16 %v6853
          %v7418 = vunpack.c.h.b16 %v6853
          %v7419 = vunpack.c.l.b16 %v6854
          %v7420 = vunpack.c.h.b16 %v6854
          %v7421 = vunpack.c.l.b16 %v6855
          %v7422 = vunpack.c.h.b16 %v6855
          %v7423 = vunpack.c.l.b16 %v6856
          %v7424 = vunpack.c.h.b16 %v6856
          %v7425 = vunpack.c.l.b16 %v6857
          %v7426 = vunpack.c.h.b16 %v6857
          %v7427 = vunpack.c.l.b16 %v6858
          %v7428 = vunpack.c.h.b16 %v6858
          %v7429 = vunpack.c.l.b16 %v6859
          %v7430 = vunpack.c.h.b16 %v6859
          %v7431 = vunpack.c.l.b16 %v6860
          %v7432 = vunpack.c.h.b16 %v6860
          %v7433 = vunpack.c.l.b16 %v6861
          %v7434 = vunpack.c.h.b16 %v6861
          %v7435 = vunpack.c.l.b16 %v6862
          %v7436 = vunpack.c.h.b16 %v6862
          %v7437 = vunpack.c.l.b16 %v6863
          %v7438 = vunpack.c.h.b16 %v6863
          %v7439 = vunpack.c.l.b16 %v6864
          %v7440 = vunpack.c.h.b16 %v6864
          %v7441 = vunpack.c.l.b16 %v6865
          %v7442 = vunpack.c.h.b16 %v6865
          %v7443 = vunpack.c.l.b16 %v6866
          %v7444 = vunpack.c.h.b16 %v6866
          %v7445 = vunpack.c.l.b16 %v6867
          %v7446 = vunpack.c.h.b16 %v6867
          %v7447 = vunpack.c.l.b16 %v6868
          %v7448 = vunpack.c.h.b16 %v6868
          %v7449 = vunpack.c.l.b16 %v6869
          %v7450 = vunpack.c.h.b16 %v6869
          %v7451 = vunpack.c.l.b16 %v6870
          %v7452 = vunpack.c.h.b16 %v6870
          %v7453 = vunpack.c.l.b16 %v6871
          %v7454 = vunpack.c.h.b16 %v6871
          %v7455 = vunpack.c.l.b16 %v6872
          %v7456 = vunpack.c.h.b16 %v6872
          %v7457 = vunpack.c.l.b16 %v6873
          %v7458 = vunpack.c.h.b16 %v6873
          %v7459 = vunpack.c.l.b16 %v6874
          %v7460 = vunpack.c.h.b16 %v6874
          %v7461 = vunpack.c.l.b16 %v6875
          %v7462 = vunpack.c.h.b16 %v6875
          %v7463 = vunpack.c.l.b16 %v6876
          %v7464 = vunpack.c.h.b16 %v6876
          %v7465 = vunpack.c.l.b16 %v6877
          %v7466 = vunpack.c.h.b16 %v6877
          %v7467 = vunpack.c.l.b16 %v6878
          %v7468 = vunpack.c.h.b16 %v6878
          %v7469 = vunpack.c.l.b16 %v6879
          %v7470 = vunpack.c.h.b16 %v6879
          %v7471 = vunpack.c.l.b16 %v6880
          %v7472 = vunpack.c.h.b16 %v6880
          %v7473 = vunpack.c.l.b16 %v6881
          %v7474 = vunpack.c.h.b16 %v6881
          %v7475 = vunpack.c.l.b16 %v6882
          %v7476 = vunpack.c.h.b16 %v6882
          %v7477 = vunpack.c.l.b16 %v6883
          %v7478 = vunpack.c.h.b16 %v6883
          %v7479 = vunpack.c.l.b16 %v6884
          %v7480 = vunpack.c.h.b16 %v6884
          %v7481 = vunpack.c.l.b16 %v6885
          %v7482 = vunpack.c.h.b16 %v6885
          %v7483 = vunpack.c.l.b16 %v6886
          %v7484 = vunpack.c.h.b16 %v6886
          %v7485 = vunpack.c.l.b16 %v6887
          %v7486 = vunpack.c.h.b16 %v6887
          %v7487 = vunpack.c.l.b16 %v6888
          %v7488 = vunpack.c.h.b16 %v6888
          %v7489 = vunpack.c.l.b16 %v6889
          %v7490 = vunpack.c.h.b16 %v6889
          %v7491 = vunpack.c.l.b16 %v6890
          %v7492 = vunpack.c.h.b16 %v6890
          %v7493 = vunpack.c.l.b16 %v6891
          %v7494 = vunpack.c.h.b16 %v6891
          %v7495 = vunpack.c.l.b16 %v6892
          %v7496 = vunpack.c.h.b16 %v6892
          %v7497 = vunpack.c.l.b16 %v6893
          %v7498 = vunpack.c.h.b16 %v6893
          %v7499 = vunpack.c.l.b16 %v6894
          %v7500 = vunpack.c.h.b16 %v6894
          %v7501 = vunpack.c.l.b16 %v6895
          %v7502 = vunpack.c.h.b16 %v6895
          %v7503 = vunpack.c.l.b16 %v6896
          %v7504 = vunpack.c.h.b16 %v6896
          %v7505 = vunpack.c.l.b16 %v6897
          %v7506 = vunpack.c.h.b16 %v6897
          %v7507 = vunpack.c.l.b16 %v6898
          %v7508 = vunpack.c.h.b16 %v6898
          %v7509 = vunpack.c.l.b16 %v6899
          %v7510 = vunpack.c.h.b16 %v6899
          %v7511 = vunpack.c.l.b16 %v6900
          %v7512 = vunpack.c.h.b16 %v6900
          %v7513 = vunpack.c.l.b16 %v6901
          %v7514 = vunpack.c.h.b16 %v6901
          %v7515 = vunpack.c.l.b16 %v6902
          %v7516 = vunpack.c.h.b16 %v6902
          %v7517 = vunpack.c.l.b16 %v6903
          %v7518 = vunpack.c.h.b16 %v6903
          %v7519 = vunpack.c.l.b16 %v6904
          %v7520 = vunpack.c.h.b16 %v6904
          %v7521 = vunpack.c.l.b16 %v6905
          %v7522 = vunpack.c.h.b16 %v6905
          %v7523 = vunpack.c.l.b16 %v6906
          %v7524 = vunpack.c.h.b16 %v6906
          %v7525 = vunpack.c.l.b16 %v6907
          %v7526 = vunpack.c.h.b16 %v6907
          %v7527 = vunpack.c.l.b16 %v6908
          %v7528 = vunpack.c.h.b16 %v6908
          %v7529 = vunpack.c.l.b16 %v6909
          %v7530 = vunpack.c.h.b16 %v6909
          %v7531 = vunpack.c.l.b16 %v6910
          %v7532 = vunpack.c.h.b16 %v6910
          %v7533 = vunpack.c.l.b16 %v6911
          %v7534 = vunpack.c.h.b16 %v6911
          %v7535 = vunpack.c.l.b16 %v6912
          %v7536 = vunpack.c.h.b16 %v6912
          %v7537 = vunpack.c.l.b16 %v6913
          %v7538 = vunpack.c.h.b16 %v6913
          %v7539 = vunpack.c.l.b16 %v6914
          %v7540 = vunpack.c.h.b16 %v6914
          %v7541 = vunpack.c.l.b16 %v6915
          %v7542 = vunpack.c.h.b16 %v6915
          %v7543 = vunpack.c.l.b16 %v6916
          %v7544 = vunpack.c.h.b16 %v6916
          %v7545 = vunpack.c.l.b16 %v6917
          %v7546 = vunpack.c.h.b16 %v6917
          %v7547 = vunpack.c.l.b16 %v6918
          %v7548 = vunpack.c.h.b16 %v6918
          %v7549 = vunpack.c.l.b16 %v6919
          %v7550 = vunpack.c.h.b16 %v6919
          %v7551 = vunpack.c.l.b16 %v6920
          %v7552 = vunpack.c.h.b16 %v6920
          %v7553 = vunpack.c.l.b16 %v6921
          %v7554 = vunpack.c.h.b16 %v6921
          %v7555 = vunpack.c.l.b16 %v6922
          %v7556 = vunpack.c.h.b16 %v6922
          %v7557 = vunpack.c.l.b16 %v6923
          %v7558 = vunpack.c.h.b16 %v6923
          %v7559 = vunpack.c.l.b16 %v6924
          %v7560 = vunpack.c.h.b16 %v6924
          %v7561 = vunpack.c.l.b16 %v6925
          %v7562 = vunpack.c.h.b16 %v6925
          %v7563 = vunpack.c.l.b16 %v6926
          %v7564 = vunpack.c.h.b16 %v6926
          %v7565 = vunpack.c.l.b16 %v6927
          %v7566 = vunpack.c.h.b16 %v6927
          %v7567 = vunpack.c.l.b16 %v6928
          %v7568 = vunpack.c.h.b16 %v6928
          %v7569 = vunpack.c.l.b16 %v6929
          %v7570 = vunpack.c.h.b16 %v6929
          %v7571 = vunpack.c.l.b16 %v6930
          %v7572 = vunpack.c.h.b16 %v6930
          %v7573 = vunpack.c.l.b16 %v6931
          %v7574 = vunpack.c.h.b16 %v6931
          %v7575 = vunpack.c.l.b16 %v6932
          %v7576 = vunpack.c.h.b16 %v6932
          %v7577 = vunpack.c.l.b16 %v6933
          %v7578 = vunpack.c.h.b16 %v6933
          %v7579 = vunpack.c.l.b16 %v6934
          %v7580 = vunpack.c.h.b16 %v6934
          %v7581 = vunpack.c.l.b16 %v6935
          %v7582 = vunpack.c.h.b16 %v6935
          %v7583 = vunpack.c.l.b16 %v6936
          %v7584 = vunpack.c.h.b16 %v6936
          %v7585 = vunpack.c.l.b16 %v6937
          %v7586 = vunpack.c.h.b16 %v6937
          %v7587 = vunpack.c.l.b16 %v6938
          %v7588 = vunpack.c.h.b16 %v6938
          %v7589 = vunpack.c.l.b16 %v6939
          %v7590 = vunpack.c.h.b16 %v6939
          %v7591 = vunpack.c.l.b16 %v6940
          %v7592 = vunpack.c.h.b16 %v6940
          %v7593 = vunpack.c.l.b16 %v6941
          %v7594 = vunpack.c.h.b16 %v6941
          %v7595 = vunpack.c.l.b16 %v6942
          %v7596 = vunpack.c.h.b16 %v6942
          %v7597 = vunpack.c.l.b16 %v6943
          %v7598 = vunpack.c.h.b16 %v6943
          %v7599 = vunpack.c.l.b16 %v6944
          %v7600 = vunpack.c.h.b16 %v6944
          %v7601 = vunpack.c.l.b16 %v6945
          %v7602 = vunpack.c.h.b16 %v6945
          %v7603 = vunpack.c.l.b16 %v6946
          %v7604 = vunpack.c.h.b16 %v6946
          %v7605 = vunpack.c.l.b16 %v6947
          %v7606 = vunpack.c.h.b16 %v6947
          %v7607 = vunpack.c.l.b16 %v6948
          %v7608 = vunpack.c.h.b16 %v6948
          %v7609 = vunpack.c.l.b16 %v6949
          %v7610 = vunpack.c.h.b16 %v6949
          %v7611 = vunpack.c.l.b16 %v6950
          %v7612 = vunpack.c.h.b16 %v6950
          %v7613 = vunpack.c.l.b16 %v6951
          %v7614 = vunpack.c.h.b16 %v6951
          %v7615 = vunpack.c.l.b16 %v6952
          %v7616 = vunpack.c.h.b16 %v6952
          %v7617 = vunpack.c.l.b16 %v6953
          %v7618 = vunpack.c.h.b16 %v6953
          %v7619 = vunpack.c.l.b16 %v6954
          %v7620 = vunpack.c.h.b16 %v6954
          %v7621 = vunpack.c.l.b16 %v6955
          %v7622 = vunpack.c.h.b16 %v6955
          %v7623 = vunpack.c.l.b16 %v6956
          %v7624 = vunpack.c.h.b16 %v6956
          %v7625 = vunpack.c.l.b16 %v6957
          %v7626 = vunpack.c.h.b16 %v6957
          %v7627 = vunpack.c.l.b16 %v6958
          %v7628 = vunpack.c.h.b16 %v6958
          %v7629 = vunpack.c.l.b16 %v6959
          %v7630 = vunpack.c.h.b16 %v6959
          %v7631 = vunpack.c.l.b16 %v6960
          %v7632 = vunpack.c.h.b16 %v6960
          %v7633 = vunpack.c.l.b16 %v6961
          %v7634 = vunpack.c.h.b16 %v6961
          %v7635 = vunpack.c.l.b16 %v6962
          %v7636 = vunpack.c.h.b16 %v6962
          %v7637 = vunpack.c.l.b16 %v6963
          %v7638 = vunpack.c.h.b16 %v6963
          %v7639 = vunpack.c.l.b16 %v6964
          %v7640 = vunpack.c.h.b16 %v6964
          %v7641 = vunpack.c.l.b16 %v6965
          %v7642 = vunpack.c.h.b16 %v6965
          %v7643 = vunpack.c.l.b16 %v6966
          %v7644 = vunpack.c.h.b16 %v6966
          %v7645 = vunpack.c.l.b16 %v6967
          %v7646 = vunpack.c.h.b16 %v6967
          %v7647 = vunpack.c.l.b16 %v6968
          %v7648 = vunpack.c.h.b16 %v6968
          %v7649 = vunpack.c.l.b16 %v6969
          %v7650 = vunpack.c.h.b16 %v6969
          %v7651 = vunpack.c.l.b16 %v6970
          %v7652 = vunpack.c.h.b16 %v6970
          %v7653 = vunpack.c.l.b16 %v6971
          %v7654 = vunpack.c.h.b16 %v6971
          %v7655 = vunpack.c.l.b16 %v6972
          %v7656 = vunpack.c.h.b16 %v6972
          %v7657 = vunpack.c.l.b16 %v6973
          %v7658 = vunpack.c.h.b16 %v6973
          %v7659 = vunpack.c.l.b16 %v6974
          %v7660 = vunpack.c.h.b16 %v6974
          %v7661 = vunpack.c.l.b16 %v6975
          %v7662 = vunpack.c.h.b16 %v6975
          %v7663 = vunpack.c.l.b16 %v6976
          %v7664 = vunpack.c.h.b16 %v6976
          %v7665 = vunpack.c.l.b16 %v6977
          %v7666 = vunpack.c.h.b16 %v6977
          %v7667 = vunpack.c.l.b16 %v6978
          %v7668 = vunpack.c.h.b16 %v6978
          %v7669 = vunpack.c.l.b16 %v6979
          %v7670 = vunpack.c.h.b16 %v6979
          %v7671 = vunpack.c.l.b16 %v6980
          %v7672 = vunpack.c.h.b16 %v6980
          %v7673 = vunpack.c.l.b16 %v6981
          %v7674 = vunpack.c.h.b16 %v6981
          %v7675 = vunpack.c.l.b16 %v6982
          %v7676 = vunpack.c.h.b16 %v6982
          %v7677 = vunpack.c.l.b16 %v6983
          %v7678 = vunpack.c.h.b16 %v6983
          %v7679 = vunpack.c.l.b16 %v6984
          %v7680 = vunpack.c.h.b16 %v6984
          %v7681 = vunpack.c.l.b16 %v6985
          %v7682 = vunpack.c.h.b16 %v6985
          %v7683 = vunpack.c.l.b16 %v6986
          %v7684 = vunpack.c.h.b16 %v6986
          %v7685 = vunpack.c.l.b16 %v6987
          %v7686 = vunpack.c.h.b16 %v6987
          %v7687 = vunpack.c.l.b16 %v6988
          %v7688 = vunpack.c.h.b16 %v6988
          %v7689 = vunpack.c.l.b16 %v6989
          %v7690 = vunpack.c.h.b16 %v6989
          %v7691 = vunpack.c.l.b16 %v6990
          %v7692 = vunpack.c.h.b16 %v6990
          %v7693 = vunpack.c.l.b16 %v6991
          %v7694 = vunpack.c.h.b16 %v6991
          %v7695 = vunpack.c.l.b16 %v6992
          %v7696 = vunpack.c.h.b16 %v6992
          %v7697 = vunpack.c.l.b16 %v6993
          %v7698 = vunpack.c.h.b16 %v6993
          %v7699 = vunpack.c.l.b16 %v6994
          %v7700 = vunpack.c.h.b16 %v6994
          %v7701 = vunpack.c.l.b16 %v6995
          %v7702 = vunpack.c.h.b16 %v6995
          %v7703 = vunpack.c.l.b16 %v6996
          %v7704 = vunpack.c.h.b16 %v6996
          %v7705 = vunpack.c.l.b16 %v6997
          %v7706 = vunpack.c.h.b16 %v6997
          %v7707 = vunpack.c.l.b16 %v6998
          %v7708 = vunpack.c.h.b16 %v6998
          %v7709 = vunpack.c.l.b16 %v6999
          %v7710 = vunpack.c.h.b16 %v6999
          %v7711 = vunpack.c.l.b16 %v7000
          %v7712 = vunpack.c.h.b16 %v7000
          %v7713 = vunpack.c.l.b16 %v7001
          %v7714 = vunpack.c.h.b16 %v7001
          %v7715 = vunpack.c.l.b16 %v7002
          %v7716 = vunpack.c.h.b16 %v7002
          %v7717 = vunpack.c.l.b16 %v7003
          %v7718 = vunpack.c.h.b16 %v7003
          %v7719 = vunpack.c.l.b16 %v7004
          %v7720 = vunpack.c.h.b16 %v7004
          %v7721 = vunpack.c.l.b16 %v7005
          %v7722 = vunpack.c.h.b16 %v7005
          %v7723 = vunpack.c.l.b16 %v7006
          %v7724 = vunpack.c.h.b16 %v7006
          %v7725 = vunpack.c.l.b16 %v7007
          %v7726 = vunpack.c.h.b16 %v7007
          %v7727 = vunpack.c.l.b16 %v7008
          %v7728 = vunpack.c.h.b16 %v7008
          %v7729 = vunpack.c.l.b16 %v7009
          %v7730 = vunpack.c.h.b16 %v7009
          %v7731 = vunpack.c.l.b16 %v7010
          %v7732 = vunpack.c.h.b16 %v7010
          %v7733 = vunpack.c.l.b16 %v7011
          %v7734 = vunpack.c.h.b16 %v7011
          %v7735 = vunpack.c.l.b16 %v7012
          %v7736 = vunpack.c.h.b16 %v7012
          %v7737 = vunpack.c.l.b16 %v7013
          %v7738 = vunpack.c.h.b16 %v7013
          %v7739 = vunpack.c.l.b16 %v7014
          %v7740 = vunpack.c.h.b16 %v7014
          %v7741 = vunpack.c.l.b16 %v7015
          %v7742 = vunpack.c.h.b16 %v7015
          %v7743 = vunpack.c.l.b16 %v7016
          %v7744 = vunpack.c.h.b16 %v7016
          %v7745 = vunpack.c.l.b16 %v7017
          %v7746 = vunpack.c.h.b16 %v7017
          %v7747 = vunpack.c.l.b16 %v7018
          %v7748 = vunpack.c.h.b16 %v7018
          %v7749 = vunpack.c.l.b16 %v7019
          %v7750 = vunpack.c.h.b16 %v7019
          %v7751 = vunpack.c.l.b16 %v7020
          %v7752 = vunpack.c.h.b16 %v7020
          %v7753 = vunpack.c.l.b16 %v7021
          %v7754 = vunpack.c.h.b16 %v7021
          %v7755 = vunpack.c.l.b16 %v7022
          %v7756 = vunpack.c.h.b16 %v7022
          %v7757 = vunpack.c.l.b16 %v7023
          %v7758 = vunpack.c.h.b16 %v7023
          %v7759 = vunpack.c.l.b16 %v7024
          %v7760 = vunpack.c.h.b16 %v7024
          %v7761 = vunpack.c.l.b16 %v7025
          %v7762 = vunpack.c.h.b16 %v7025
          %v7763 = vunpack.c.l.b16 %v7026
          %v7764 = vunpack.c.h.b16 %v7026
          %v7765 = vunpack.c.l.b16 %v7027
          %v7766 = vunpack.c.h.b16 %v7027
          %v7767 = vunpack.c.l.b16 %v7028
          %v7768 = vunpack.c.h.b16 %v7028
          %v7769 = vunpack.c.l.b16 %v7029
          %v7770 = vunpack.c.h.b16 %v7029
          %v7771 = vunpack.c.l.b16 %v7030
          %v7772 = vunpack.c.h.b16 %v7030
          %v7773 = vunpack.c.l.b16 %v7031
          %v7774 = vunpack.c.h.b16 %v7031
          %v7775 = vunpack.c.l.b16 %v7032
          %v7776 = vunpack.c.h.b16 %v7032
          %v7777 = vunpack.c.l.b16 %v7033
          %v7778 = vunpack.c.h.b16 %v7033
          %v7779 = vunpack.c.l.b16 %v7034
          %v7780 = vunpack.c.h.b16 %v7034
          %v7781 = vunpack.c.l.b16 %v7035
          %v7782 = vunpack.c.h.b16 %v7035
          %v7783 = vunpack.c.l.b16 %v7036
          %v7784 = vunpack.c.h.b16 %v7036
          %v7785 = vunpack.c.l.b16 %v7037
          %v7786 = vunpack.c.h.b16 %v7037
          %v7787 = vunpack.c.l.b16 %v7038
          %v7788 = vunpack.c.h.b16 %v7038
          %v7789 = vunpack.c.l.b16 %v7039
          %v7790 = vunpack.c.h.b16 %v7039
          %v7791 = vunpack.c.l.b16 %v7040
          %v7792 = vunpack.c.h.b16 %v7040
          %v7793 = vunpack.c.l.b16 %v7041
          %v7794 = vunpack.c.h.b16 %v7041
          %v7795 = vunpack.c.l.b16 %v7042
          %v7796 = vunpack.c.h.b16 %v7042
          %v7797 = vunpack.c.l.b16 %v7043
          %v7798 = vunpack.c.h.b16 %v7043
          %v7799 = vunpack.c.l.b16 %v7044
          %v7800 = vunpack.c.h.b16 %v7044
          %v7801 = vunpack.c.l.b16 %v7045
          %v7802 = vunpack.c.h.b16 %v7045
          %v7803 = vunpack.c.l.b16 %v7046
          %v7804 = vunpack.c.h.b16 %v7046
          %v7805 = vunpack.c.l.b16 %v7047
          %v7806 = vunpack.c.h.b16 %v7047
          %v7807 = vunpack.c.l.b16 %v7048
          %v7808 = vunpack.c.h.b16 %v7048
          %v7809 = vunpack.c.l.b16 %v7049
          %v7810 = vunpack.c.h.b16 %v7049
          %v7811 = vunpack.c.l.b16 %v7050
          %v7812 = vunpack.c.h.b16 %v7050
          %v7813 = vunpack.c.l.b16 %v7051
          %v7814 = vunpack.c.h.b16 %v7051
          %v7815 = vunpack.c.l.b16 %v7052
          %v7816 = vunpack.c.h.b16 %v7052
          %v7817 = vunpack.c.l.b16 %v7053
          %v7818 = vunpack.c.h.b16 %v7053
          %v7819 = vunpack.c.l.b16 %v7054
          %v7820 = vunpack.c.h.b16 %v7054
          %v7821 = vunpack.c.l.b16 %v7055
          %v7822 = vunpack.c.h.b16 %v7055
          %v7823 = vunpack.c.l.b16 %v7056
          %v7824 = vunpack.c.h.b16 %v7056
          %v7825 = vunpack.c.l.b16 %v7057
          %v7826 = vunpack.c.h.b16 %v7057
          %v7827 = vunpack.c.l.b16 %v7058
          %v7828 = vunpack.c.h.b16 %v7058
          %v7829 = vunpack.c.l.b16 %v7059
          %v7830 = vunpack.c.h.b16 %v7059
          %v7831 = vunpack.c.l.b16 %v7060
          %v7832 = vunpack.c.h.b16 %v7060
          %v7833 = vunpack.c.l.b16 %v7061
          %v7834 = vunpack.c.h.b16 %v7061
          %v7835 = vunpack.c.l.b16 %v7062
          %v7836 = vunpack.c.h.b16 %v7062
          %v7837 = vunpack.c.l.b16 %v7063
          %v7838 = vunpack.c.h.b16 %v7063
          %v7839 = vunpack.c.l.b16 %v7064
          %v7840 = vunpack.c.h.b16 %v7064
          %v7841 = vunpack.c.l.b16 %v7065
          %v7842 = vunpack.c.h.b16 %v7065
          %v7843 = vunpack.c.l.b16 %v7066
          %v7844 = vunpack.c.h.b16 %v7066
          %v7845 = vunpack.c.l.b16 %v7067
          %v7846 = vunpack.c.h.b16 %v7067
          %v7847 = vunpack.c.l.b16 %v7068
          %v7848 = vunpack.c.h.b16 %v7068
          %v7849 = vunpack.c.l.b16 %v7069
          %v7850 = vunpack.c.h.b16 %v7069
          %v7851 = vunpack.c.l.b16 %v7070
          %v7852 = vunpack.c.h.b16 %v7070
          %v7853 = vunpack.c.l.b16 %v7071
          %v7854 = vunpack.c.h.b16 %v7071
          %v7855 = vunpack.c.l.b16 %v7072
          %v7856 = vunpack.c.h.b16 %v7072
          %v7857 = vunpack.c.l.b16 %v7073
          %v7858 = vunpack.c.h.b16 %v7073
          %v7859 = vunpack.c.l.b16 %v7074
          %v7860 = vunpack.c.h.b16 %v7074
          %v7861 = vunpack.c.l.b16 %v7075
          %v7862 = vunpack.c.h.b16 %v7075
          %v7863 = vunpack.c.l.b16 %v7076
          %v7864 = vunpack.c.h.b16 %v7076
          %v7865 = vunpack.c.l.b16 %v7077
          %v7866 = vunpack.c.h.b16 %v7077
          %v7867 = vunpack.c.l.b16 %v7078
          %v7868 = vunpack.c.h.b16 %v7078
          %v7869 = vunpack.c.l.b16 %v7079
          %v7870 = vunpack.c.h.b16 %v7079
          %v7871 = vunpack.c.l.b16 %v7080
          %v7872 = vunpack.c.h.b16 %v7080
          %v7873 = vunpack.c.l.b16 %v7081
          %v7874 = vunpack.c.h.b16 %v7081
          %v7875 = vunpack.c.l.b16 %v7082
          %v7876 = vunpack.c.h.b16 %v7082
          %v7877 = vunpack.c.l.b16 %v7083
          %v7878 = vunpack.c.h.b16 %v7083
          %v7879 = vunpack.c.l.b16 %v7084
          %v7880 = vunpack.c.h.b16 %v7084
          %v7881 = vunpack.c.l.b16 %v7085
          %v7882 = vunpack.c.h.b16 %v7085
          %v7883 = vunpack.c.l.b16 %v7086
          %v7884 = vunpack.c.h.b16 %v7086
          %v7885 = vunpack.c.l.b16 %v7087
          %v7886 = vunpack.c.h.b16 %v7087
          %v7887 = vunpack.c.l.b16 %v7088
          %v7888 = vunpack.c.h.b16 %v7088
          %v7889 = vunpack.c.l.b16 %v7089
          %v7890 = vunpack.c.h.b16 %v7089
          %v7891 = vunpack.c.l.b16 %v7090
          %v7892 = vunpack.c.h.b16 %v7090
          %v7893 = vunpack.c.l.b16 %v7091
          %v7894 = vunpack.c.h.b16 %v7091
          %v7895 = vunpack.c.l.b16 %v7092
          %v7896 = vunpack.c.h.b16 %v7092
          %v7897 = vunpack.c.l.b16 %v7093
          %v7898 = vunpack.c.h.b16 %v7093
          %v7899 = vunpack.c.l.b16 %v7094
          %v7900 = vunpack.c.h.b16 %v7094
          %v7901 = vunpack.c.l.b16 %v7095
          %v7902 = vunpack.c.h.b16 %v7095
          %v7903 = vunpack.c.l.b16 %v7096
          %v7904 = vunpack.c.h.b16 %v7096
          %v7905 = vunpack.c.l.b16 %v7097
          %v7906 = vunpack.c.h.b16 %v7097
          %v7907 = vunpack.c.l.b16 %v7098
          %v7908 = vunpack.c.h.b16 %v7098
          %v7909 = vunpack.c.l.b16 %v7099
          %v7910 = vunpack.c.h.b16 %v7099
          %v7911 = vunpack.c.l.b16 %v7100
          %v7912 = vunpack.c.h.b16 %v7100
          %v7913 = vunpack.c.l.b16 %v7101
          %v7914 = vunpack.c.h.b16 %v7101
          %v7915 = vunpack.c.l.b16 %v7102
          %v7916 = vunpack.c.h.b16 %v7102
          %v7917 = vunpack.c.l.b16 %v7103
          %v7918 = vunpack.c.h.b16 %v7103
          %v7919 = vunpack.c.l.b16 %v7104
          %v7920 = vunpack.c.h.b16 %v7104
          %v7921 = vunpack.c.l.b16 %v7105
          %v7922 = vunpack.c.h.b16 %v7105
          %v7923 = vunpack.c.l.b16 %v7106
          %v7924 = vunpack.c.h.b16 %v7106
          %v7925 = vpack.c.b16 %v7417, %v7413
          %v7926 = vpack.c.b16 %v7418, %v7414
          %v7927 = vpack.c.b16 %v7419, %v7415
          %v7928 = vpack.c.b16 %v7420, %v7416
          %v7929 = vpack.c.b16 %v7425, %v7421
          %v7930 = vpack.c.b16 %v7426, %v7422
          %v7931 = vpack.c.b16 %v7427, %v7423
          %v7932 = vpack.c.b16 %v7428, %v7424
          %v7933 = vpack.c.b16 %v7433, %v7429
          %v7934 = vpack.c.b16 %v7434, %v7430
          %v7935 = vpack.c.b16 %v7435, %v7431
          %v7936 = vpack.c.b16 %v7436, %v7432
          %v7937 = vpack.c.b16 %v7441, %v7437
          %v7938 = vpack.c.b16 %v7442, %v7438
          %v7939 = vpack.c.b16 %v7443, %v7439
          %v7940 = vpack.c.b16 %v7444, %v7440
          %v7941 = vpack.c.b16 %v7449, %v7445
          %v7942 = vpack.c.b16 %v7450, %v7446
          %v7943 = vpack.c.b16 %v7451, %v7447
          %v7944 = vpack.c.b16 %v7452, %v7448
          %v7945 = vpack.c.b16 %v7457, %v7453
          %v7946 = vpack.c.b16 %v7458, %v7454
          %v7947 = vpack.c.b16 %v7459, %v7455
          %v7948 = vpack.c.b16 %v7460, %v7456
          %v7949 = vpack.c.b16 %v7465, %v7461
          %v7950 = vpack.c.b16 %v7466, %v7462
          %v7951 = vpack.c.b16 %v7467, %v7463
          %v7952 = vpack.c.b16 %v7468, %v7464
          %v7953 = vpack.c.b16 %v7473, %v7469
          %v7954 = vpack.c.b16 %v7474, %v7470
          %v7955 = vpack.c.b16 %v7475, %v7471
          %v7956 = vpack.c.b16 %v7476, %v7472
          %v7957 = vpack.c.b16 %v7481, %v7477
          %v7958 = vpack.c.b16 %v7482, %v7478
          %v7959 = vpack.c.b16 %v7483, %v7479
          %v7960 = vpack.c.b16 %v7484, %v7480
          %v7961 = vpack.c.b16 %v7489, %v7485
          %v7962 = vpack.c.b16 %v7490, %v7486
          %v7963 = vpack.c.b16 %v7491, %v7487
          %v7964 = vpack.c.b16 %v7492, %v7488
          %v7965 = vpack.c.b16 %v7497, %v7493
          %v7966 = vpack.c.b16 %v7498, %v7494
          %v7967 = vpack.c.b16 %v7499, %v7495
          %v7968 = vpack.c.b16 %v7500, %v7496
          %v7969 = vpack.c.b16 %v7505, %v7501
          %v7970 = vpack.c.b16 %v7506, %v7502
          %v7971 = vpack.c.b16 %v7507, %v7503
          %v7972 = vpack.c.b16 %v7508, %v7504
          %v7973 = vpack.c.b16 %v7513, %v7509
          %v7974 = vpack.c.b16 %v7514, %v7510
          %v7975 = vpack.c.b16 %v7515, %v7511
          %v7976 = vpack.c.b16 %v7516, %v7512
          %v7977 = vpack.c.b16 %v7521, %v7517
          %v7978 = vpack.c.b16 %v7522, %v7518
          %v7979 = vpack.c.b16 %v7523, %v7519
          %v7980 = vpack.c.b16 %v7524, %v7520
          %v7981 = vpack.c.b16 %v7529, %v7525
          %v7982 = vpack.c.b16 %v7530, %v7526
          %v7983 = vpack.c.b16 %v7531, %v7527
          %v7984 = vpack.c.b16 %v7532, %v7528
          %v7985 = vpack.c.b16 %v7537, %v7533
          %v7986 = vpack.c.b16 %v7538, %v7534
          %v7987 = vpack.c.b16 %v7539, %v7535
          %v7988 = vpack.c.b16 %v7540, %v7536
          %v7989 = vpack.c.b16 %v7545, %v7541
          %v7990 = vpack.c.b16 %v7546, %v7542
          %v7991 = vpack.c.b16 %v7547, %v7543
          %v7992 = vpack.c.b16 %v7548, %v7544
          %v7993 = vpack.c.b16 %v7553, %v7549
          %v7994 = vpack.c.b16 %v7554, %v7550
          %v7995 = vpack.c.b16 %v7555, %v7551
          %v7996 = vpack.c.b16 %v7556, %v7552
          %v7997 = vpack.c.b16 %v7561, %v7557
          %v7998 = vpack.c.b16 %v7562, %v7558
          %v7999 = vpack.c.b16 %v7563, %v7559
          %v8000 = vpack.c.b16 %v7564, %v7560
          %v8001 = vpack.c.b16 %v7569, %v7565
          %v8002 = vpack.c.b16 %v7570, %v7566
          %v8003 = vpack.c.b16 %v7571, %v7567
          %v8004 = vpack.c.b16 %v7572, %v7568
          %v8005 = vpack.c.b16 %v7577, %v7573
          %v8006 = vpack.c.b16 %v7578, %v7574
          %v8007 = vpack.c.b16 %v7579, %v7575
          %v8008 = vpack.c.b16 %v7580, %v7576
          %v8009 = vpack.c.b16 %v7585, %v7581
          %v8010 = vpack.c.b16 %v7586, %v7582
          %v8011 = vpack.c.b16 %v7587, %v7583
          %v8012 = vpack.c.b16 %v7588, %v7584
          %v8013 = vpack.c.b16 %v7593, %v7589
          %v8014 = vpack.c.b16 %v7594, %v7590
          %v8015 = vpack.c.b16 %v7595, %v7591
          %v8016 = vpack.c.b16 %v7596, %v7592
          %v8017 = vpack.c.b16 %v7601, %v7597
          %v8018 = vpack.c.b16 %v7602, %v7598
          %v8019 = vpack.c.b16 %v7603, %v7599
          %v8020 = vpack.c.b16 %v7604, %v7600
          %v8021 = vpack.c.b16 %v7609, %v7605
          %v8022 = vpack.c.b16 %v7610, %v7606
          %v8023 = vpack.c.b16 %v7611, %v7607
          %v8024 = vpack.c.b16 %v7612, %v7608
          %v8025 = vpack.c.b16 %v7617, %v7613
          %v8026 = vpack.c.b16 %v7618, %v7614
          %v8027 = vpack.c.b16 %v7619, %v7615
          %v8028 = vpack.c.b16 %v7620, %v7616
          %v8029 = vpack.c.b16 %v7625, %v7621
          %v8030 = vpack.c.b16 %v7626, %v7622
          %v8031 = vpack.c.b16 %v7627, %v7623
          %v8032 = vpack.c.b16 %v7628, %v7624
          %v8033 = vpack.c.b16 %v7633, %v7629
          %v8034 = vpack.c.b16 %v7634, %v7630
          %v8035 = vpack.c.b16 %v7635, %v7631
          %v8036 = vpack.c.b16 %v7636, %v7632
          %v8037 = vpack.c.b16 %v7641, %v7637
          %v8038 = vpack.c.b16 %v7642, %v7638
          %v8039 = vpack.c.b16 %v7643, %v7639
          %v8040 = vpack.c.b16 %v7644, %v7640
          %v8041 = vpack.c.b16 %v7649, %v7645
          %v8042 = vpack.c.b16 %v7650, %v7646
          %v8043 = vpack.c.b16 %v7651, %v7647
          %v8044 = vpack.c.b16 %v7652, %v7648
          %v8045 = vpack.c.b16 %v7657, %v7653
          %v8046 = vpack.c.b16 %v7658, %v7654
          %v8047 = vpack.c.b16 %v7659, %v7655
          %v8048 = vpack.c.b16 %v7660, %v7656
          %v8049 = vpack.c.b16 %v7665, %v7661
          %v8050 = vpack.c.b16 %v7666, %v7662
          %v8051 = vpack.c.b16 %v7667, %v7663
          %v8052 = vpack.c.b16 %v7668, %v7664
          %v8053 = vpack.c.b16 %v7673, %v7669
          %v8054 = vpack.c.b16 %v7674, %v7670
          %v8055 = vpack.c.b16 %v7675, %v7671
          %v8056 = vpack.c.b16 %v7676, %v7672
          %v8057 = vpack.c.b16 %v7681, %v7677
          %v8058 = vpack.c.b16 %v7682, %v7678
          %v8059 = vpack.c.b16 %v7683, %v7679
          %v8060 = vpack.c.b16 %v7684, %v7680
          %v8061 = vpack.c.b16 %v7689, %v7685
          %v8062 = vpack.c.b16 %v7690, %v7686
          %v8063 = vpack.c.b16 %v7691, %v7687
          %v8064 = vpack.c.b16 %v7692, %v7688
          %v8065 = vpack.c.b16 %v7697, %v7693
          %v8066 = vpack.c.b16 %v7698, %v7694
          %v8067 = vpack.c.b16 %v7699, %v7695
          %v8068 = vpack.c.b16 %v7700, %v7696
          %v8069 = vpack.c.b16 %v7705, %v7701
          %v8070 = vpack.c.b16 %v7706, %v7702
          %v8071 = vpack.c.b16 %v7707, %v7703
          %v8072 = vpack.c.b16 %v7708, %v7704
          %v8073 = vpack.c.b16 %v7713, %v7709
          %v8074 = vpack.c.b16 %v7714, %v7710
          %v8075 = vpack.c.b16 %v7715, %v7711
          %v8076 = vpack.c.b16 %v7716, %v7712
          %v8077 = vpack.c.b16 %v7721, %v7717
          %v8078 = vpack.c.b16 %v7722, %v7718
          %v8079 = vpack.c.b16 %v7723, %v7719
          %v8080 = vpack.c.b16 %v7724, %v7720
          %v8081 = vpack.c.b16 %v7729, %v7725
          %v8082 = vpack.c.b16 %v7730, %v7726
          %v8083 = vpack.c.b16 %v7731, %v7727
          %v8084 = vpack.c.b16 %v7732, %v7728
          %v8085 = vpack.c.b16 %v7737, %v7733
          %v8086 = vpack.c.b16 %v7738, %v7734
          %v8087 = vpack.c.b16 %v7739, %v7735
          %v8088 = vpack.c.b16 %v7740, %v7736
          %v8089 = vpack.c.b16 %v7745, %v7741
          %v8090 = vpack.c.b16 %v7746, %v7742
          %v8091 = vpack.c.b16 %v7747, %v7743
          %v8092 = vpack.c.b16 %v7748, %v7744
          %v8093 = vpack.c.b16 %v7753, %v7749
          %v8094 = vpack.c.b16 %v7754, %v7750
          %v8095 = vpack.c.b16 %v7755, %v7751
          %v8096 = vpack.c.b16 %v7756, %v7752
          %v8097 = vpack.c.b16 %v7761, %v7757
          %v8098 = vpack.c.b16 %v7762, %v7758
          %v8099 = vpack.c.b16 %v7763, %v7759
          %v8100 = vpack.c.b16 %v7764, %v7760
          %v8101 = vpack.c.b16 %v7769, %v7765
          %v8102 = vpack.c.b16 %v7770, %v7766
          %v8103 = vpack.c.b16 %v7771, %v7767
          %v8104 = vpack.c.b16 %v7772, %v7768
          %v8105 = vpack.c.b16 %v7777, %v7773
          %v8106 = vpack.c.b16 %v7778, %v7774
          %v8107 = vpack.c.b16 %v7779, %v7775
          %v8108 = vpack.c.b16 %v7780, %v7776
          %v8109 = vpack.c.b16 %v7785, %v7781
          %v8110 = vpack.c.b16 %v7786, %v7782
          %v8111 = vpack.c.b16 %v7787, %v7783
          %v8112 = vpack.c.b16 %v7788, %v7784
          %v8113 = vpack.c.b16 %v7793, %v7789
          %v8114 = vpack.c.b16 %v7794, %v7790
          %v8115 = vpack.c.b16 %v7795, %v7791
          %v8116 = vpack.c.b16 %v7796, %v7792
          %v8117 = vpack.c.b16 %v7801, %v7797
          %v8118 = vpack.c.b16 %v7802, %v7798
          %v8119 = vpack.c.b16 %v7803, %v7799
          %v8120 = vpack.c.b16 %v7804, %v7800
          %v8121 = vpack.c.b16 %v7809, %v7805
          %v8122 = vpack.c.b16 %v7810, %v7806
          %v8123 = vpack.c.b16 %v7811, %v7807
          %v8124 = vpack.c.b16 %v7812, %v7808
          %v8125 = vpack.c.b16 %v7817, %v7813
          %v8126 = vpack.c.b16 %v7818, %v7814
          %v8127 = vpack.c.b16 %v7819, %v7815
          %v8128 = vpack.c.b16 %v7820, %v7816
          %v8129 = vpack.c.b16 %v7825, %v7821
          %v8130 = vpack.c.b16 %v7826, %v7822
          %v8131 = vpack.c.b16 %v7827, %v7823
          %v8132 = vpack.c.b16 %v7828, %v7824
          %v8133 = vpack.c.b16 %v7833, %v7829
          %v8134 = vpack.c.b16 %v7834, %v7830
          %v8135 = vpack.c.b16 %v7835, %v7831
          %v8136 = vpack.c.b16 %v7836, %v7832
          %v8137 = vpack.c.b16 %v7841, %v7837
          %v8138 = vpack.c.b16 %v7842, %v7838
          %v8139 = vpack.c.b16 %v7843, %v7839
          %v8140 = vpack.c.b16 %v7844, %v7840
          %v8141 = vpack.c.b16 %v7849, %v7845
          %v8142 = vpack.c.b16 %v7850, %v7846
          %v8143 = vpack.c.b16 %v7851, %v7847
          %v8144 = vpack.c.b16 %v7852, %v7848
          %v8145 = vpack.c.b16 %v7857, %v7853
          %v8146 = vpack.c.b16 %v7858, %v7854
          %v8147 = vpack.c.b16 %v7859, %v7855
          %v8148 = vpack.c.b16 %v7860, %v7856
          %v8149 = vpack.c.b16 %v7865, %v7861
          %v8150 = vpack.c.b16 %v7866, %v7862
          %v8151 = vpack.c.b16 %v7867, %v7863
          %v8152 = vpack.c.b16 %v7868, %v7864
          %v8153 = vpack.c.b16 %v7873, %v7869
          %v8154 = vpack.c.b16 %v7874, %v7870
          %v8155 = vpack.c.b16 %v7875, %v7871
          %v8156 = vpack.c.b16 %v7876, %v7872
          %v8157 = vpack.c.b16 %v7881, %v7877
          %v8158 = vpack.c.b16 %v7882, %v7878
          %v8159 = vpack.c.b16 %v7883, %v7879
          %v8160 = vpack.c.b16 %v7884, %v7880
          %v8161 = vpack.c.b16 %v7889, %v7885
          %v8162 = vpack.c.b16 %v7890, %v7886
          %v8163 = vpack.c.b16 %v7891, %v7887
          %v8164 = vpack.c.b16 %v7892, %v7888
          %v8165 = vpack.c.b16 %v7897, %v7893
          %v8166 = vpack.c.b16 %v7898, %v7894
          %v8167 = vpack.c.b16 %v7899, %v7895
          %v8168 = vpack.c.b16 %v7900, %v7896
          %v8169 = vpack.c.b16 %v7905, %v7901
          %v8170 = vpack.c.b16 %v7906, %v7902
          %v8171 = vpack.c.b16 %v7907, %v7903
          %v8172 = vpack.c.b16 %v7908, %v7904
          %v8173 = vpack.c.b16 %v7913, %v7909
          %v8174 = vpack.c.b16 %v7914, %v7910
          %v8175 = vpack.c.b16 %v7915, %v7911
          %v8176 = vpack.c.b16 %v7916, %v7912
          %v8177 = vpack.c.b16 %v7921, %v7917
          %v8178 = vpack.c.b16 %v7922, %v7918
          %v8179 = vpack.c.b16 %v7923, %v7919
          %v8180 = vpack.c.b16 %v7924, %v7920
          %8437 = vmatprep.subr.bf16.mxu0 %v7926
          %8438 = vmatpush1.bf16.msra.mxu0 %v7925
          %8439 = vmatprep.subr.bf16.mxu0 %v7930
          %8440 = vmatpush1.bf16.msra.mxu0 %v7929
          %8441 = vmatprep.subr.bf16.mxu0 %v7934
          %8442 = vmatpush1.bf16.msra.mxu0 %v7933
          %8443 = vmatprep.subr.bf16.mxu0 %v7938
          %8444 = vmatpush1.bf16.msra.mxu0 %v7937
          %8445 = vmatprep.subr.bf16.mxu0 %v7942
          %8446 = vmatpush1.bf16.msra.mxu0 %v7941
          %8447 = vmatprep.subr.bf16.mxu0 %v7946
          %8448 = vmatpush1.bf16.msra.mxu0 %v7945
          %8449 = vmatprep.subr.bf16.mxu0 %v7950
          %8450 = vmatpush1.bf16.msra.mxu0 %v7949
          %8451 = vmatprep.subr.bf16.mxu0 %v7954
          %8452 = vmatpush1.bf16.msra.mxu0 %v7953
          %8453 = vmatprep.subr.bf16.mxu0 %v7958
          %8454 = vmatpush1.bf16.msra.mxu0 %v7957
          %8455 = vmatprep.subr.bf16.mxu0 %v7962
          %8456 = vmatpush1.bf16.msra.mxu0 %v7961
          %8457 = vmatprep.subr.bf16.mxu0 %v7966
          %8458 = vmatpush1.bf16.msra.mxu0 %v7965
          %8459 = vmatprep.subr.bf16.mxu0 %v7970
          %8460 = vmatpush1.bf16.msra.mxu0 %v7969
          %8461 = vmatprep.subr.bf16.mxu0 %v7974
          %8462 = vmatpush1.bf16.msra.mxu0 %v7973
          %8463 = vmatprep.subr.bf16.mxu0 %v7978
          %8464 = vmatpush1.bf16.msra.mxu0 %v7977
          %8465 = vmatprep.subr.bf16.mxu0 %v7982
          %8466 = vmatpush1.bf16.msra.mxu0 %v7981
          %8467 = vmatprep.subr.bf16.mxu0 %v7986
          %8468 = vmatpush1.bf16.msra.mxu0 %v7985
          %8469 = vmatprep.mubr.bf16.mxu0 %v7142
          %8470 = vmatmul.mubr.bf16.gmra.mrb[0].mxu0 %v7141
          %v8471 = vpop.f32.mrb[0].mxu0
          %v8472 = vadd.f32 %v7112, %v8471
          %v8473 = vpop.f32.mrb[0].mxu0
          %v8474 = vadd.f32 %v7116, %v8473
          %v8475 = vpop.f32.mrb[0].mxu0
          %v8476 = vpop.f32.mrb[0].mxu0
          %8477 = vdwg.mxu0
          %8478 = vmatprep.subr.bf16.mxu0 %v7990
          %8479 = vmatpush1.bf16.msra.mxu0 %v7989
          %8480 = vmatprep.subr.bf16.mxu0 %v7994
          %8481 = vmatpush1.bf16.msra.mxu0 %v7993
          %8482 = vmatprep.subr.bf16.mxu0 %v7998
          %8483 = vmatpush1.bf16.msra.mxu0 %v7997
          %8484 = vmatprep.subr.bf16.mxu0 %v8002
          %8485 = vmatpush1.bf16.msra.mxu0 %v8001
          %8486 = vmatprep.subr.bf16.mxu0 %v8006
          %8487 = vmatpush1.bf16.msra.mxu0 %v8005
          %8488 = vmatprep.subr.bf16.mxu0 %v8010
          %8489 = vmatpush1.bf16.msra.mxu0 %v8009
          %8490 = vmatprep.subr.bf16.mxu0 %v8014
          %8491 = vmatpush1.bf16.msra.mxu0 %v8013
          %8492 = vmatprep.subr.bf16.mxu0 %v8018
          %8493 = vmatpush1.bf16.msra.mxu0 %v8017
          %8494 = vmatprep.subr.bf16.mxu0 %v8022
          %8495 = vmatpush1.bf16.msra.mxu0 %v8021
          %8496 = vmatprep.subr.bf16.mxu0 %v8026
          %8497 = vmatpush1.bf16.msra.mxu0 %v8025
          %8498 = vmatprep.subr.bf16.mxu0 %v8030
          %8499 = vmatpush1.bf16.msra.mxu0 %v8029
          %8500 = vmatprep.subr.bf16.mxu0 %v8034
          %8501 = vmatpush1.bf16.msra.mxu0 %v8033
          %8502 = vmatprep.subr.bf16.mxu0 %v8038
          %8503 = vmatpush1.bf16.msra.mxu0 %v8037
          %8504 = vmatprep.subr.bf16.mxu0 %v8042
          %8505 = vmatpush1.bf16.msra.mxu0 %v8041
          %8506 = vmatprep.subr.bf16.mxu0 %v8046
          %8507 = vmatpush1.bf16.msra.mxu0 %v8045
          %8508 = vmatprep.subr.bf16.mxu0 %v8050
          %8509 = vmatpush1.bf16.msra.mxu0 %v8049
          %8510 = vmatprep.mubr.bf16.mxu0 %v7144
          %8511 = vmatmul.mubr.bf16.gmra.mrb[0].mxu0 %v7143
          %v8512 = vpop.f32.mrb[0].mxu0
          %v8513 = vadd.f32 %v8472, %v8512
          %v8514 = vpop.f32.mrb[0].mxu0
          %v8515 = vadd.f32 %v8474, %v8514
          %v8516 = vpop.f32.mrb[0].mxu0
          %v8517 = vpop.f32.mrb[0].mxu0
          %8518 = vdwg.mxu0
          %8519 = vmatprep.subr.bf16.mxu0 %v8054
          %8520 = vmatpush1.bf16.msra.mxu0 %v8053
          %8521 = vmatprep.subr.bf16.mxu0 %v8058
          %8522 = vmatpush1.bf16.msra.mxu0 %v8057
          %8523 = vmatprep.subr.bf16.mxu0 %v8062
          %8524 = vmatpush1.bf16.msra.mxu0 %v8061
          %8525 = vmatprep.subr.bf16.mxu0 %v8066
          %8526 = vmatpush1.bf16.msra.mxu0 %v8065
          %8527 = vmatprep.subr.bf16.mxu0 %v8070
          %8528 = vmatpush1.bf16.msra.mxu0 %v8069
          %8529 = vmatprep.subr.bf16.mxu0 %v8074
          %8530 = vmatpush1.bf16.msra.mxu0 %v8073
          %8531 = vmatprep.subr.bf16.mxu0 %v8078
          %8532 = vmatpush1.bf16.msra.mxu0 %v8077
          %8533 = vmatprep.subr.bf16.mxu0 %v8082
          %8534 = vmatpush1.bf16.msra.mxu0 %v8081
          %8535 = vmatprep.subr.bf16.mxu0 %v8086
          %8536 = vmatpush1.bf16.msra.mxu0 %v8085
          %8537 = vmatprep.subr.bf16.mxu0 %v8090
          %8538 = vmatpush1.bf16.msra.mxu0 %v8089
          %8539 = vmatprep.subr.bf16.mxu0 %v8094
          %8540 = vmatpush1.bf16.msra.mxu0 %v8093
          %8541 = vmatprep.subr.bf16.mxu0 %v8098
          %8542 = vmatpush1.bf16.msra.mxu0 %v8097
          %8543 = vmatprep.subr.bf16.mxu0 %v8102
          %8544 = vmatpush1.bf16.msra.mxu0 %v8101
          %8545 = vmatprep.subr.bf16.mxu0 %v8106
          %8546 = vmatpush1.bf16.msra.mxu0 %v8105
          %8547 = vmatprep.subr.bf16.mxu0 %v8110
          %8548 = vmatpush1.bf16.msra.mxu0 %v8109
          %8549 = vmatprep.subr.bf16.mxu0 %v8114
          %8550 = vmatpush1.bf16.msra.mxu0 %v8113
          %8551 = vmatprep.mubr.bf16.mxu0 %v7146
          %8552 = vmatmul.mubr.bf16.gmra.mrb[0].mxu0 %v7145
          %v8553 = vpop.f32.mrb[0].mxu0
          %v8554 = vadd.f32 %v8513, %v8553
          %v8555 = vpop.f32.mrb[0].mxu0
          %v8556 = vadd.f32 %v8515, %v8555
          %v8557 = vpop.f32.mrb[0].mxu0
          %v8558 = vpop.f32.mrb[0].mxu0
          %8559 = vdwg.mxu0
          %8560 = vmatprep.subr.bf16.mxu0 %v8118
          %8561 = vmatpush1.bf16.msra.mxu0 %v8117
          %8562 = vmatprep.subr.bf16.mxu0 %v8122
          %8563 = vmatpush1.bf16.msra.mxu0 %v8121
          %8564 = vmatprep.subr.bf16.mxu0 %v8126
          %8565 = vmatpush1.bf16.msra.mxu0 %v8125
          %8566 = vmatprep.subr.bf16.mxu0 %v8130
          %8567 = vmatpush1.bf16.msra.mxu0 %v8129
          %8568 = vmatprep.subr.bf16.mxu0 %v8134
          %8569 = vmatpush1.bf16.msra.mxu0 %v8133
          %8570 = vmatprep.subr.bf16.mxu0 %v8138
          %8571 = vmatpush1.bf16.msra.mxu0 %v8137
          %8572 = vmatprep.subr.bf16.mxu0 %v8142
          %8573 = vmatpush1.bf16.msra.mxu0 %v8141
          %8574 = vmatprep.subr.bf16.mxu0 %v8146
          %8575 = vmatpush1.bf16.msra.mxu0 %v8145
          %8576 = vmatprep.subr.bf16.mxu0 %v8150
          %8577 = vmatpush1.bf16.msra.mxu0 %v8149
          %8578 = vmatprep.subr.bf16.mxu0 %v8154
          %8579 = vmatpush1.bf16.msra.mxu0 %v8153
          %8580 = vmatprep.subr.bf16.mxu0 %v8158
          %8581 = vmatpush1.bf16.msra.mxu0 %v8157
          %8582 = vmatprep.subr.bf16.mxu0 %v8162
          %8583 = vmatpush1.bf16.msra.mxu0 %v8161
          %8584 = vmatprep.subr.bf16.mxu0 %v8166
          %8585 = vmatpush1.bf16.msra.mxu0 %v8165
          %8586 = vmatprep.subr.bf16.mxu0 %v8170
          %8587 = vmatpush1.bf16.msra.mxu0 %v8169
          %8588 = vmatprep.subr.bf16.mxu0 %v8174
          %8589 = vmatpush1.bf16.msra.mxu0 %v8173
          %8590 = vmatprep.subr.bf16.mxu0 %v8178
          %8591 = vmatpush1.bf16.msra.mxu0 %v8177
          %8592 = vmatprep.mubr.bf16.mxu0 %v7148
          %8593 = vmatmul.mubr.bf16.gmra.mrb[0].mxu0 %v7147
          %v8594 = vpop.f32.mrb[0].mxu0
          %v8595 = vadd.f32 %v8554, %v8594
          %v8596 = vpop.f32.mrb[0].mxu0
          %v8597 = vadd.f32 %v8556, %v8596
          %v8598 = vpop.f32.mrb[0].mxu0
          %v8599 = vpop.f32.mrb[0].mxu0
          %8600 = vdwg.mxu0
          %8601 = vmatprep.subr.bf16.mxu0 %v7928
          %8602 = vmatpush1.bf16.msra.mxu0 %v7927
          %8603 = vmatprep.subr.bf16.mxu0 %v7932
          %8604 = vmatpush1.bf16.msra.mxu0 %v7931
          %8605 = vmatprep.subr.bf16.mxu0 %v7936
          %8606 = vmatpush1.bf16.msra.mxu0 %v7935
          %8607 = vmatprep.subr.bf16.mxu0 %v7940
          %8608 = vmatpush1.bf16.msra.mxu0 %v7939
          %8609 = vmatprep.subr.bf16.mxu0 %v7944
          %8610 = vmatpush1.bf16.msra.mxu0 %v7943
          %8611 = vmatprep.subr.bf16.mxu0 %v7948
          %8612 = vmatpush1.bf16.msra.mxu0 %v7947
          %8613 = vmatprep.subr.bf16.mxu0 %v7952
          %8614 = vmatpush1.bf16.msra.mxu0 %v7951
          %8615 = vmatprep.subr.bf16.mxu0 %v7956
          %8616 = vmatpush1.bf16.msra.mxu0 %v7955
          %8617 = vmatprep.subr.bf16.mxu0 %v7960
          %8618 = vmatpush1.bf16.msra.mxu0 %v7959
          %8619 = vmatprep.subr.bf16.mxu0 %v7964
          %8620 = vmatpush1.bf16.msra.mxu0 %v7963
          %8621 = vmatprep.subr.bf16.mxu0 %v7968
          %8622 = vmatpush1.bf16.msra.mxu0 %v7967
          %8623 = vmatprep.subr.bf16.mxu0 %v7972
          %8624 = vmatpush1.bf16.msra.mxu0 %v7971
          %8625 = vmatprep.subr.bf16.mxu0 %v7976
          %8626 = vmatpush1.bf16.msra.mxu0 %v7975
          %8627 = vmatprep.subr.bf16.mxu0 %v7980
          %8628 = vmatpush1.bf16.msra.mxu0 %v7979
          %8629 = vmatprep.subr.bf16.mxu0 %v7984
          %8630 = vmatpush1.bf16.msra.mxu0 %v7983
          %8631 = vmatprep.subr.bf16.mxu0 %v7988
          %8632 = vmatpush1.bf16.msra.mxu0 %v7987
          %8633 = vmatprep.mubr.bf16.mxu0 %v7142
          %8634 = vmatmul.mubr.bf16.gmra.mrb[0].mxu0 %v7141
          %v8635 = vpop.f32.mrb[0].mxu0
          %v8636 = vadd.f32 %v7120, %v8635
          %v8637 = vpop.f32.mrb[0].mxu0
          %v8638 = vadd.f32 %v7124, %v8637
          %v8639 = vpop.f32.mrb[0].mxu0
          %v8640 = vpop.f32.mrb[0].mxu0
          %8641 = vdwg.mxu0
          %8642 = vmatprep.subr.bf16.mxu0 %v7992
          %8643 = vmatpush1.bf16.msra.mxu0 %v7991
          %8644 = vmatprep.subr.bf16.mxu0 %v7996
          %8645 = vmatpush1.bf16.msra.mxu0 %v7995
          %8646 = vmatprep.subr.bf16.mxu0 %v8000
          %8647 = vmatpush1.bf16.msra.mxu0 %v7999
          %8648 = vmatprep.subr.bf16.mxu0 %v8004
          %8649 = vmatpush1.bf16.msra.mxu0 %v8003
          %8650 = vmatprep.subr.bf16.mxu0 %v8008
          %8651 = vmatpush1.bf16.msra.mxu0 %v8007
          %8652 = vmatprep.subr.bf16.mxu0 %v8012
          %8653 = vmatpush1.bf16.msra.mxu0 %v8011
          %8654 = vmatprep.subr.bf16.mxu0 %v8016
          %8655 = vmatpush1.bf16.msra.mxu0 %v8015
          %8656 = vmatprep.subr.bf16.mxu0 %v8020
          %8657 = vmatpush1.bf16.msra.mxu0 %v8019
          %8658 = vmatprep.subr.bf16.mxu0 %v8024
          %8659 = vmatpush1.bf16.msra.mxu0 %v8023
          %8660 = vmatprep.subr.bf16.mxu0 %v8028
          %8661 = vmatpush1.bf16.msra.mxu0 %v8027
          %8662 = vmatprep.subr.bf16.mxu0 %v8032
          %8663 = vmatpush1.bf16.msra.mxu0 %v8031
          %8664 = vmatprep.subr.bf16.mxu0 %v8036
          %8665 = vmatpush1.bf16.msra.mxu0 %v8035
          %8666 = vmatprep.subr.bf16.mxu0 %v8040
          %8667 = vmatpush1.bf16.msra.mxu0 %v8039
          %8668 = vmatprep.subr.bf16.mxu0 %v8044
          %8669 = vmatpush1.bf16.msra.mxu0 %v8043
          %8670 = vmatprep.subr.bf16.mxu0 %v8048
          %8671 = vmatpush1.bf16.msra.mxu0 %v8047
          %8672 = vmatprep.subr.bf16.mxu0 %v8052
          %8673 = vmatpush1.bf16.msra.mxu0 %v8051
          %8674 = vmatprep.mubr.bf16.mxu0 %v7144
          %8675 = vmatmul.mubr.bf16.gmra.mrb[0].mxu0 %v7143
          %v8676 = vpop.f32.mrb[0].mxu0
          %v8677 = vadd.f32 %v8636, %v8676
          %v8678 = vpop.f32.mrb[0].mxu0
          %v8679 = vadd.f32 %v8638, %v8678
          %v8680 = vpop.f32.mrb[0].mxu0
          %v8681 = vpop.f32.mrb[0].mxu0
          %8682 = vdwg.mxu0
          %8683 = vmatprep.subr.bf16.mxu0 %v8056
          %8684 = vmatpush1.bf16.msra.mxu0 %v8055
          %8685 = vmatprep.subr.bf16.mxu0 %v8060
          %8686 = vmatpush1.bf16.msra.mxu0 %v8059
          %8687 = vmatprep.subr.bf16.mxu0 %v8064
          %8688 = vmatpush1.bf16.msra.mxu0 %v8063
          %8689 = vmatprep.subr.bf16.mxu0 %v8068
          %8690 = vmatpush1.bf16.msra.mxu0 %v8067
          %8691 = vmatprep.subr.bf16.mxu0 %v8072
          %8692 = vmatpush1.bf16.msra.mxu0 %v8071
          %8693 = vmatprep.subr.bf16.mxu0 %v8076
          %8694 = vmatpush1.bf16.msra.mxu0 %v8075
          %8695 = vmatprep.subr.bf16.mxu0 %v8080
          %8696 = vmatpush1.bf16.msra.mxu0 %v8079
          %8697 = vmatprep.subr.bf16.mxu0 %v8084
          %8698 = vmatpush1.bf16.msra.mxu0 %v8083
          %8699 = vmatprep.subr.bf16.mxu0 %v8088
          %8700 = vmatpush1.bf16.msra.mxu0 %v8087
          %8701 = vmatprep.subr.bf16.mxu0 %v8092
          %8702 = vmatpush1.bf16.msra.mxu0 %v8091
          %8703 = vmatprep.subr.bf16.mxu0 %v8096
          %8704 = vmatpush1.bf16.msra.mxu0 %v8095
          %8705 = vmatprep.subr.bf16.mxu0 %v8100
          %8706 = vmatpush1.bf16.msra.mxu0 %v8099
          %8707 = vmatprep.subr.bf16.mxu0 %v8104
          %8708 = vmatpush1.bf16.msra.mxu0 %v8103
          %8709 = vmatprep.subr.bf16.mxu0 %v8108
          %8710 = vmatpush1.bf16.msra.mxu0 %v8107
          %8711 = vmatprep.subr.bf16.mxu0 %v8112
          %8712 = vmatpush1.bf16.msra.mxu0 %v8111
          %8713 = vmatprep.subr.bf16.mxu0 %v8116
          %8714 = vmatpush1.bf16.msra.mxu0 %v8115
          %8715 = vmatprep.mubr.bf16.mxu0 %v7146
          %8716 = vmatmul.mubr.bf16.gmra.mrb[0].mxu0 %v7145
          %v8717 = vpop.f32.mrb[0].mxu0
          %v8718 = vadd.f32 %v8677, %v8717
          %v8719 = vpop.f32.mrb[0].mxu0
          %v8720 = vadd.f32 %v8679, %v8719
          %v8721 = vpop.f32.mrb[0].mxu0
          %v8722 = vpop.f32.mrb[0].mxu0
          %8723 = vdwg.mxu0
          %8724 = vmatprep.subr.bf16.mxu0 %v8120
          %8725 = vmatpush1.bf16.msra.mxu0 %v8119
          %8726 = vmatprep.subr.bf16.mxu0 %v8124
          %8727 = vmatpush1.bf16.msra.mxu0 %v8123
          %8728 = vmatprep.subr.bf16.mxu0 %v8128
          %8729 = vmatpush1.bf16.msra.mxu0 %v8127
          %8730 = vmatprep.subr.bf16.mxu0 %v8132
          %8731 = vmatpush1.bf16.msra.mxu0 %v8131
          %8732 = vmatprep.subr.bf16.mxu0 %v8136
          %8733 = vmatpush1.bf16.msra.mxu0 %v8135
          %8734 = vmatprep.subr.bf16.mxu0 %v8140
          %8735 = vmatpush1.bf16.msra.mxu0 %v8139
          %8736 = vmatprep.subr.bf16.mxu0 %v8144
          %8737 = vmatpush1.bf16.msra.mxu0 %v8143
          %8738 = vmatprep.subr.bf16.mxu0 %v8148
          %8739 = vmatpush1.bf16.msra.mxu0 %v8147
          %8740 = vmatprep.subr.bf16.mxu0 %v8152
          %8741 = vmatpush1.bf16.msra.mxu0 %v8151
          %8742 = vmatprep.subr.bf16.mxu0 %v8156
          %8743 = vmatpush1.bf16.msra.mxu0 %v8155
          %8744 = vmatprep.subr.bf16.mxu0 %v8160
          %8745 = vmatpush1.bf16.msra.mxu0 %v8159
          %8746 = vmatprep.subr.bf16.mxu0 %v8164
          %8747 = vmatpush1.bf16.msra.mxu0 %v8163
          %8748 = vmatprep.subr.bf16.mxu0 %v8168
          %8749 = vmatpush1.bf16.msra.mxu0 %v8167
          %8750 = vmatprep.subr.bf16.mxu0 %v8172
          %8751 = vmatpush1.bf16.msra.mxu0 %v8171
          %8752 = vmatprep.subr.bf16.mxu0 %v8176
          %8753 = vmatpush1.bf16.msra.mxu0 %v8175
          %8754 = vmatprep.subr.bf16.mxu0 %v8180
          %8755 = vmatpush1.bf16.msra.mxu0 %v8179
          %8756 = vmatprep.mubr.bf16.mxu0 %v7148
          %8757 = vmatmul.mubr.bf16.gmra.mrb[0].mxu0 %v7147
          %v8758 = vpop.f32.mrb[0].mxu0
          %v8759 = vadd.f32 %v8718, %v8758
          %v8760 = vpop.f32.mrb[0].mxu0
          %v8761 = vadd.f32 %v8720, %v8760
          %v8762 = vpop.f32.mrb[0].mxu0
          %v8763 = vpop.f32.mrb[0].mxu0
          %8764 = vdwg.mxu0
          %8765 = vst [vmem:[#allocation12] sm:$0xff] %v8595
          %8766 = vst [vmem:[#allocation12 + $0x8] sm:$0xff] %v8597
          %8767 = vst [vmem:[#allocation12 + $0x10] sm:$0xff] %v8759
          %8768 = vst [vmem:[#allocation12 + $0x18] sm:$0xff] %v8761
        $region72: #{hegen_forward.1} parent=43 // pred_fallthru
          _
        // Predicated region
        $region73: #{hegen_forward.1} parent=43 // pred_check
          %p8769 = pneg %p167
        $region74: #{hegen_forward.1} parent=43 // pred_check_branch
          %8771 = sbr.rel (%p8769) target = $region76
        $region75: #{hegen_forward.1} parent=43 // pred_region
          %s8773 = ssub.s32 512, 512
          %8774 = vsyncadd [#allocation5], %s8773
          %s8776 = sshll.u32 [#allocation12], 4
          %s8777 = int_to_ptr.vmem [resolvable:$true] %s8776
          %8779 = dma.vmem_to_hbm [thread:$0]  %s8777, 512, %s6, [#allocation5]
        $region76: #{hegen_forward.1} parent=43 // pred_fallthru
          _
        // Predicated region
        $region77: #{hegen_forward.1} parent=43 // pred_check
          %p8780 = pneg %p167
        $region78: #{hegen_forward.1} parent=43 // pred_check_branch
          %8782 = sbr.rel (%p8780) target = $region80
        $region79: #{hegen_forward.1} parent=43 // pred_region
          %8783 = dma.done [#allocation5], 512
        $region80: #{hegen_forward.1} parent=43 // pred_fallthru
          _
      $region44: #{hegen_forward.1} parent=5 // pred_fallthru
        _
      %p8784 = scmp.le.s32.totalorder 2, %s18
      // Predicated region
      $region81: #{hegen_forward.1} parent=5 // pred_check
        %p8785 = pneg %p8784
      $region82: #{hegen_forward.1} parent=5 // pred_check_branch
        %8787 = sbr.rel (%p8785) target = $region84
      $region83: #{hegen_forward.1} parent=5 // pred_region
        %s8788 = ssub.s32 %s18, 2
      $region84: #{hegen_forward.1} parent=5 // pred_fallthru
        _
    $region6: #{hegen_forward.1} parent=1 // loop_footer
      %s22 = sadd.s32 1, %s18
    $region7: #{hegen_forward.1} parent=1 // loop_footer_branch
      %17 = sbr.rel target = $region3
    $region8: #{hegen_forward.1} parent=1 // loop_exit
      _
    %8789 = vsyncpa [#allocation4], 1
    %s8790 = scalar_lea.sflag [#allocation4], 1
    %8791 = vsyncpa %s8790, 1
    %8792 = vsyncpa [#allocation7], 1
    %s8793 = scalar_lea.sflag [#allocation7], 1
    %8794 = vsyncpa %s8793, 1
    %8795 = vsyncpa [#allocation10], 1
    %8796 = vsyncpa [#allocation5], 1
    %s8797 = scalar_lea.sflag [#allocation5], 1
    %8798 = vsyncpa %s8797, 1

</llo_original>
